<compile_context>
chip_gen: v5e
topology: v5e:2x2
jax: 0.10.0
libtpu: 0.0.40
codegen_flags: <defaults>
</compile_context>

<pallas_src>
import functools

import jax
import jax.numpy as jnp
from jax.experimental import pallas as pl
from jax.experimental.pallas import tpu as pltpu

# Explicit scoped-VMEM limit (v5e default is only 16 MiB); kept below v7x's
# 64 MiB physical per-core VMEM.  Demo tiles use well under 5 MiB.
VMEM_LIMIT = 48 * 1024 * 1024


# ----------------------------- shared math -----------------------------------
def _rmsnorm(x, g, eps=1e-6):
    var = jnp.mean(x * x, axis=-1, keepdims=True)
    return x * jax.lax.rsqrt(var + eps) * g


def _silu(x):
    return x * jax.lax.logistic(x)


# ------------------------ fused decoder-layer kernel --------------------------
def decoder_layer_kernel(x_ref, g1_ref, g2_ref, wqkv_ref, cos_ref, sin_ref,
                         wo_ref, wgu_ref, wd_ref, o_ref, *, num_heads, ffn):
    # x_ref: (1, S, D) f32 residual stream for one batch element.
    # wqkv: (D, 3D) bf16, wo: (D, D) bf16, wgu: (D, 2F) bf16, wd: (F, D) bf16.
    x = x_ref[0]                                  # (S, D)
    S, D = x.shape
    H = num_heads
    Dh = D // H

    # --- RMSNorm + fused QKV projection (qkv never leaves VMEM) ---------------
    h = _rmsnorm(x, g1_ref[...]).astype(jnp.bfloat16)
    qkv = jnp.dot(h, wqkv_ref[...], preferred_element_type=jnp.float32)  # (S, 3D)

    # Lane-aligned 128-wide head slices -> (H, S, Dh); no HBM transpose pass.
    def split_heads(off):
        return jnp.stack(
            [qkv[:, off + hh * Dh: off + (hh + 1) * Dh] for hh in range(H)],
            axis=0)

    q = split_heads(0)
    k = split_heads(D)
    v = split_heads(2 * D)

    cos = cos_ref[...][None]                      # (1, S, Dh)
    sin = sin_ref[...][None]                      # (1, S, Dh), sign folded in

    def rope(t):
        # rotate_half == roll by exactly Dh/2 lanes (head-local), signed sin.
        rot = pltpu.roll(t.reshape(H * S, Dh), Dh // 2, 1).reshape(H, S, Dh)
        return t * cos + rot * sin

    scale = 1.0 / jnp.sqrt(jnp.float32(Dh))
    qb = (rope(q) * scale).astype(jnp.bfloat16)   # scale folded into q: O(H*S*Dh)
    kb = rope(k).astype(jnp.bfloat16)
    vb = v.astype(jnp.bfloat16)

    # --- causal attention (demo S fits VMEM; TODO(synk): flash-tile for prod S)
    s_ = jnp.einsum("hqd,hkd->hqk", qb, kb,
                    preferred_element_type=jnp.float32)           # (H, S, S)
    qi = jax.lax.broadcasted_iota(jnp.int32, (S, S), 0)
    ki = jax.lax.broadcasted_iota(jnp.int32, (S, S), 1)
    s_ = jnp.where((ki <= qi)[None], s_, -1e30)

    p = jnp.exp(s_ - jnp.max(s_, axis=-1, keepdims=True))
    p = p * pl.reciprocal(jnp.sum(p, axis=-1, keepdims=True), approx=True)

    ctx = jnp.einsum("hqk,hkd->hqd", p.astype(jnp.bfloat16), vb,
                     preferred_element_type=jnp.float32)          # (H, S, Dh)

    # --- O-projection: one contraction with K = H*Dh (lane-aligned concat) ----
    ctx2 = jnp.concatenate([ctx[hh] for hh in range(H)],
                           axis=-1).astype(jnp.bfloat16)          # (S, D)
    y = x + jnp.dot(ctx2, wo_ref[...], preferred_element_type=jnp.float32)

    # --- SwiGLU MLP (fused gate|up weight) ------------------------------------
    h2 = _rmsnorm(y, g2_ref[...]).astype(jnp.bfloat16)
    gu = jnp.dot(h2, wgu_ref[...], preferred_element_type=jnp.float32)  # (S, 2F)
    act = (_silu(gu[:, :ffn]) * gu[:, ffn:]).astype(jnp.bfloat16)
    o_ref[0] = y + jnp.dot(act, wd_ref[...], preferred_element_type=jnp.float32)


# --------------------------- V-tiled LM head kernel ----------------------------
def lm_head_kernel(x_ref, gf_ref, wlm_ref, logits_ref, tok_ref, maxlog_ref,
                   *, vocab, tn):
    # x_ref: (B, D) last-token hidden states; wlm_ref: (D, tn) bf16 vocab tile.
    j = pl.program_id(0)

    @pl.when(j == 0)
    def _():
        maxlog_ref[...] = jnp.full(maxlog_ref.shape, -jnp.inf, maxlog_ref.dtype)
        tok_ref[...] = jnp.zeros(tok_ref.shape, tok_ref.dtype)

    h = _rmsnorm(x_ref[...], gf_ref[...]).astype(jnp.bfloat16)
    lt = jnp.dot(h, wlm_ref[...], preferred_element_type=jnp.float32)   # (B, tn)
    # Demo-scale full logits writeback (kept for verification).
    # TODO(synk): drop this output at real V (~152k) and only emit next_token.
    logits_ref[...] = lt

    col = jax.lax.broadcasted_iota(jnp.int32, lt.shape, 1) + j * tn
    valid = col < vocab                                   # mask padded vocab tail
    ltm = jnp.where(valid, lt, -jnp.inf)

    tile_max = jnp.max(ltm, axis=-1, keepdims=True)                     # (B, 1)
    is_max = ltm == tile_max
    tile_arg = jnp.min(jnp.where(is_max, col, jnp.int32(2 ** 30)),
                       axis=-1, keepdims=True)                          # (B, 1)

    better = tile_max > maxlog_ref[...]        # strict > keeps first occurrence
    maxlog_ref[...] = jnp.where(better, tile_max, maxlog_ref[...])
    tok_ref[...] = jnp.where(better, tile_arg, tok_ref[...])


# ----------------------------- wrappers ----------------------------------------
def _rope_tables(S, Dh):
    inv_freq = 1.0 / (10000.0 ** (jnp.arange(0, Dh, 2, dtype=jnp.float32) / Dh))
    t = jnp.arange(S, dtype=jnp.float32)
    freqs = jnp.outer(t, inv_freq)                         # (S, Dh/2)
    emb = jnp.concatenate([freqs, freqs], axis=-1)         # (S, Dh)
    sign = jnp.concatenate([-jnp.ones((1, Dh // 2), jnp.float32),
                            jnp.ones((1, Dh // 2), jnp.float32)], axis=-1)
    return jnp.cos(emb), jnp.sin(emb) * sign               # cos, signed sin


def prepare_params(p, num_heads, S):
    """Fuse / reshape / bf16-cast weights once, on the host."""
    D = p["wq"].shape[0]
    Dh = D // num_heads
    cos, sin = _rope_tables(S, Dh)
    return {
        "g1": p["g1"], "g2": p["g2"], "gf": p["gf"],
        "wqkv": jnp.concatenate([p["wq"], p["wk"], p["wv"]],
                                axis=1).astype(jnp.bfloat16),
        "wo": p["wo"].astype(jnp.bfloat16),
        "wgu": jnp.concatenate([p["wg"], p["wu"]], axis=1).astype(jnp.bfloat16),
        "wd": p["wd"].astype(jnp.bfloat16),
        "wlm": p["wlm"].astype(jnp.bfloat16),
        "cos": cos, "sin": sin,
    }


def decoder_layer(x, kp, num_heads):
    B, S, D = x.shape
    D3 = kp["wqkv"].shape[1]
    F2 = kp["wgu"].shape[1]
    F = F2 // 2
    Dh = D // num_heads
    kernel = functools.partial(decoder_layer_kernel, num_heads=num_heads, ffn=F)
    # TODO(synk): at prod dims, K/N-tile the weight specs below (whole-array
    # constant-index blocks do not fit VMEM) and use pl.Buffered(1) on them.
    return pl.pallas_call(
        kernel,
        out_shape=jax.ShapeDtypeStruct((B, S, D), jnp.float32),
        grid=(B,),
        in_specs=[
            pl.BlockSpec((1, S, D), lambda b: (b, 0, 0)),
            pl.BlockSpec((1, D), lambda b: (0, 0)),
            pl.BlockSpec((1, D), lambda b: (0, 0)),
            pl.BlockSpec((D, D3), lambda b: (0, 0)),
            pl.BlockSpec((S, Dh), lambda b: (0, 0)),
            pl.BlockSpec((S, Dh), lambda b: (0, 0)),
            pl.BlockSpec((D, D), lambda b: (0, 0)),
            pl.BlockSpec((D, F2), lambda b: (0, 0)),
            pl.BlockSpec((F, D), lambda b: (0, 0)),
        ],
        out_specs=pl.BlockSpec((1, S, D), lambda b: (b, 0, 0)),
        compiler_params=pltpu.CompilerParams(
            dimension_semantics=("parallel",), vmem_limit_bytes=VMEM_LIMIT),
    )(x, kp["g1"], kp["g2"], kp["wqkv"], kp["cos"], kp["sin"],
      kp["wo"], kp["wgu"], kp["wd"])


def lm_head_last(x_last, kp, tn=256):
    """V-tiled LM head with fused running max/argmax (greedy decode)."""
    B, D = x_last.shape
    V = kp["wlm"].shape[1]
    nv = pl.cdiv(V, tn)
    V_pad = nv * tn
    wlm = kp["wlm"]
    if V_pad != V:
        wlm = jnp.pad(wlm, ((0, 0), (0, V_pad - V)))

    logits, tok, mx = pl.pallas_call(
        functools.partial(lm_head_kernel, vocab=V, tn=tn),
        out_shape=(
            jax.ShapeDtypeStruct((B, V_pad), jnp.float32),   # demo-only logits
            jax.ShapeDtypeStruct((B, 1), jnp.int32),         # next token id
            jax.ShapeDtypeStruct((B, 1), jnp.float32),       # max logit
        ),
        grid=(nv,),
        in_specs=[
            pl.BlockSpec((B, D), lambda j: (0, 0)),
            pl.BlockSpec((1, D), lambda j: (0, 0)),
            pl.BlockSpec((D, tn), lambda j: (0, j)),
        ],
        out_specs=(
            pl.BlockSpec((B, tn), lambda j: (0, j)),
            pl.BlockSpec((B, 1), lambda j: (0, 0)),
            pl.BlockSpec((B, 1), lambda j: (0, 0)),
        ),
        compiler_params=pltpu.CompilerParams(
            dimension_semantics=("arbitrary",), vmem_limit_bytes=VMEM_LIMIT),
    )(x_last, kp["gf"], wlm)
    return logits[:, :V], tok[:, 0], mx[:, 0]


@functools.partial(jax.jit, static_argnames=("num_heads",))
def infer_model_single_forward(x, kp, num_heads):
    """Synthetic stand-in for InferModel_single.forward / infer_llm hot path."""
    y = decoder_layer(x, kp, num_heads)         # (B, S, D) post-layer residual
    h_last = y[:, -1, :]                        # greedy decode: last position only
    logits, next_token, _ = lm_head_last(h_last, kp)
    return logits, next_token


# --------------- reference (same bf16 matmul precision, pure JAX) --------------
def _ref_forward_last(x, p, num_heads):
    B, S, D = x.shape
    Dh = D // num_heads
    inv_freq = 1.0 / (10000.0 ** (jnp.arange(0, Dh, 2, dtype=jnp.float32) / Dh))
    t = jnp.arange(S, dtype=jnp.float32)
    emb = jnp.concatenate([jnp.outer(t, inv_freq)] * 2, axis=-1)
    cos, sin = jnp.cos(emb), jnp.sin(emb)

    def bf(a):
        return a.astype(jnp.bfloat16).astype(jnp.float32)

    def mm(a, b):
        return bf(a) @ bf(b)

    def rope(t_):
        t1, t2 = t_[:, :Dh // 2], t_[:, Dh // 2:]
        return t_ * cos + jnp.concatenate([-t2, t1], axis=-1) * sin

    outs = []
    causal = jnp.tril(jnp.ones((S, S), bool))
    for b in range(B):
        xb = x[b]
        h = _rmsnorm(xb, p["g1"])
        q, k, v = mm(h, p["wq"]), mm(h, p["wk"]), mm(h, p["wv"])
        attn = jnp.zeros((S, D), jnp.float32)
        for hh in range(num_heads):
            sl = slice(hh * Dh, (hh + 1) * Dh)
            qh, kh, vh = rope(q[:, sl]), rope(k[:, sl]), v[:, sl]
            s = mm(qh, kh.T) / jnp.sqrt(jnp.float32(Dh))
            s = jnp.where(causal, s, -1e30)
            ctx = mm(jax.nn.softmax(s, axis=-1), vh)
            attn = attn + mm(ctx, p["wo"][sl, :])
        xb = xb + attn
        h2 = _rmsnorm(xb, p["g2"])
        xb = xb + mm(_silu(mm(h2, p["wg"])) * mm(h2, p["wu"]), p["wd"])
        hf = _rmsnorm(xb[-1:], p["gf"])
        outs.append(mm(hf, p["wlm"])[0])
    return jnp.stack(outs)


# ----------------------------- main --------------------------------------------
if __name__ == "__main__":
    # Scaled-down Qwen2-style dims; head_dim=128 matches the real model.
    B, S, D, H, F, V = 2, 128, 256, 2, 512, 512

    key = jax.random.PRNGKey(0)
    ks = jax.random.split(key, 10)
    sc = 0.05
    params = {
        "g1": jnp.ones((1, D), jnp.float32),
        "g2": jnp.ones((1, D), jnp.float32),
        "gf": jnp.ones((1, D), jnp.float32),
        "wq": sc * jax.random.normal(ks[0], (D, D), jnp.float32),
        "wk": sc * jax.random.normal(ks[1], (D, D), jnp.float32),
        "wv": sc * jax.random.normal(ks[2], (D, D), jnp.float32),
        "wo": sc * jax.random.normal(ks[3], (D, D), jnp.float32),
        "wg": sc * jax.random.normal(ks[4], (D, F), jnp.float32),
        "wu": sc * jax.random.normal(ks[5], (D, F), jnp.float32),
        "wd": sc * jax.random.normal(ks[6], (F, D), jnp.float32),
        "wlm": sc * jax.random.normal(ks[7], (D, V), jnp.float32),
    }
    # synthetic "token embeddings" standing in for processor output
    x = jax.random.normal(ks[8], (B, S, D), jnp.float32)

    kp = prepare_params(params, H, S)
    logits, next_tok = infer_model_single_forward(x, kp, H)
    jax.block_until_ready((logits, next_tok))

    ref = _ref_forward_last(x, params, H)
    assert logits.shape == (B, V) and next_tok.shape == (B,)
    max_err = float(jnp.max(jnp.abs(logits - ref)))
    assert jnp.allclose(logits, ref, atol=3e-2, rtol=3e-2), max_err
    assert bool(jnp.all(next_tok == jnp.argmax(logits, axis=-1))), "argmax mismatch"

    print("KERNEL_OK")
</pallas_src>

<mosaic_0001>
module attributes {stable_mosaic.version = 11 : i64} {
  func.func @lm_head_kernel(%arg0: i32, %arg1: memref<2x256xf32, #tpu.memory_space<vmem>>, %arg2: memref<1x256xf32, #tpu.memory_space<vmem>>, %arg3: memref<256x256xbf16, #tpu.memory_space<vmem>>, %arg4: memref<2x256xf32, #tpu.memory_space<vmem>>, %arg5: memref<2x1xi32, #tpu.memory_space<vmem>>, %arg6: memref<2x1xf32, #tpu.memory_space<vmem>>) attributes {dimension_semantics = [#tpu.dimension_semantics<arbitrary>], iteration_bounds = array<i64: 2>, scalar_prefetch = 0 : i64, scratch_operands = 0 : i64, tpu.core_type = #tpu.core_type<tc>, window_params = [{pipeline_mode = #tpu.pipeline_mode<synchronous>, transform_indices = @transform_0, window_bounds = array<i64: 2, 256>}, {pipeline_mode = #tpu.pipeline_mode<synchronous>, transform_indices = @transform_1, window_bounds = array<i64: 1, 256>}, {transform_indices = @transform_2, window_bounds = array<i64: 256, 256>}, {transform_indices = @transform_3, window_bounds = array<i64: 2, 256>}, {pipeline_mode = #tpu.pipeline_mode<synchronous>, transform_indices = @transform_4, window_bounds = array<i64: 2, 1>}, {pipeline_mode = #tpu.pipeline_mode<synchronous>, transform_indices = @transform_5, window_bounds = array<i64: 2, 1>}]} {
    %c0_i32 = arith.constant 0 : i32
    %0 = arith.cmpi eq, %arg0, %c0_i32 : i32
    %1 = arith.extui %0 : i1 to i32
    %c0_i32_0 = arith.constant 0 : i32
    %2 = arith.cmpi ne, %1, %c0_i32_0 : i32
    scf.if %2 {
      %cst_24 = arith.constant 0xFF800000 : f32
      %45 = vector.broadcast %cst_24 : f32 to vector<2x1xf32>
      %c0_25 = arith.constant 0 : index
      %c0_26 = arith.constant 0 : index
      %46 = vector.load %arg6[%c0_25, %c0_26] : memref<2x1xf32, #tpu.memory_space<vmem>>, vector<2x1xf32>
      tpu.vector_store %arg6[%c0_25, %c0_26], %45 {strides = array<i32>} : memref<2x1xf32, #tpu.memory_space<vmem>>, vector<2x1xf32>,
      %c0_i32_27 = arith.constant 0 : i32
      %47 = vector.broadcast %c0_i32_27 : i32 to vector<2x1xi32>
      %c0_28 = arith.constant 0 : index
      %c0_29 = arith.constant 0 : index
      %48 = vector.load %arg5[%c0_28, %c0_29] : memref<2x1xi32, #tpu.memory_space<vmem>>, vector<2x1xi32>
      tpu.vector_store %arg5[%c0_28, %c0_29], %47 {strides = array<i32>} : memref<2x1xi32, #tpu.memory_space<vmem>>, vector<2x1xi32>,
    } else {
    }
    %c0 = arith.constant 0 : index
    %c0_1 = arith.constant 0 : index
    %3 = vector.load %arg1[%c0, %c0_1] : memref<2x256xf32, #tpu.memory_space<vmem>>, vector<2x256xf32>
    %c0_2 = arith.constant 0 : index
    %c0_3 = arith.constant 0 : index
    %4 = vector.load %arg2[%c0_2, %c0_3] : memref<1x256xf32, #tpu.memory_space<vmem>>, vector<1x256xf32>
    %5 = arith.mulf %3, %3 : vector<2x256xf32>
    %cst = arith.constant dense<0.000000e+00> : vector<2xf32>
    %6 = vector.multi_reduction <add>, %5, %cst [1] : vector<2x256xf32> to vector<2xf32>
    %7 = vector.shape_cast %6 : vector<2xf32> to vector<2x1xf32>
    %cst_4 = arith.constant 2.560000e+02 : f32
    %8 = vector.broadcast %cst_4 : f32 to vector<2x1xf32>
    %9 = arith.divf %7, %8 : vector<2x1xf32>
    %cst_5 = arith.constant 9.99999997E-7 : f32
    %10 = vector.broadcast %cst_5 : f32 to vector<2x1xf32>
    %11 = arith.addf %9, %10 : vector<2x1xf32>
    %12 = math.rsqrt %11 : vector<2x1xf32>
    %13 = vector.broadcast %12 : vector<2x1xf32> to vector<2x256xf32>
    %14 = arith.mulf %3, %13 : vector<2x256xf32>
    %15 = vector.broadcast %4 : vector<1x256xf32> to vector<2x256xf32>
    %16 = arith.mulf %14, %15 : vector<2x256xf32>
    %17 = arith.truncf %16 : vector<2x256xf32> to vector<2x256xbf16>
    %c0_6 = arith.constant 0 : index
    %c0_7 = arith.constant 0 : index
    %18 = vector.load %arg3[%c0_6, %c0_7] : memref<256x256xbf16, #tpu.memory_space<vmem>>, vector<256x256xbf16>
    %cst_8 = arith.constant dense<0.000000e+00> : vector<2x256xf32>
    %19 = tpu.matmul %17, %18, %cst_8 {dimension_numbers = #tpu.dot_dimension_numbers<[1], [0], [0], [1], [0, 0, 1, 1], [], []>} : vector<2x256xbf16>, vector<256x256xbf16>, vector<2x256xf32> -> vector<2x256xf32>
    %c0_9 = arith.constant 0 : index
    %c0_10 = arith.constant 0 : index
    %20 = vector.load %arg4[%c0_9, %c0_10] : memref<2x256xf32, #tpu.memory_space<vmem>>, vector<2x256xf32>
    tpu.vector_store %arg4[%c0_9, %c0_10], %19 {strides = array<i32>} : memref<2x256xf32, #tpu.memory_space<vmem>>, vector<2x256xf32>,
    %21 = tpu.iota {dimensions = array<i32: 1>} : vector<2x256xi32>
    %c256_i32 = arith.constant 256 : i32
    %22 = arith.muli %arg0, %c256_i32 : i32
    %23 = vector.broadcast %22 : i32 to vector<2x256xi32>
    %24 = arith.addi %21, %23 : vector<2x256xi32>
    %c512_i32 = arith.constant 512 : i32
    %25 = vector.broadcast %c512_i32 : i32 to vector<2x256xi32>
    %26 = arith.cmpi slt, %24, %25 : vector<2x256xi32>
    %cst_11 = arith.constant 0xFF800000 : f32
    %27 = vector.broadcast %cst_11 : f32 to vector<2x256xf32>
    %28 = arith.select %26, %19, %27 : vector<2x256xi1>, vector<2x256xf32>
    %cst_12 = arith.constant dense<0xFF800000> : vector<2xf32>
    %29 = vector.multi_reduction <maximumf>, %28, %cst_12 [1] : vector<2x256xf32> to vector<2xf32>
    %30 = vector.shape_cast %29 : vector<2xf32> to vector<2x1xf32>
    %31 = vector.broadcast %30 : vector<2x1xf32> to vector<2x256xf32>
    %32 = arith.cmpf oeq, %28, %31 : vector<2x256xf32>
    %c1073741824_i32 = arith.constant 1073741824 : i32
    %33 = vector.broadcast %c1073741824_i32 : i32 to vector<2x256xi32>
    %34 = arith.select %32, %24, %33 : vector<2x256xi1>, vector<2x256xi32>
    %cst_13 = arith.constant dense<2147483647> : vector<2xi32>
    %35 = vector.multi_reduction <minsi>, %34, %cst_13 [1] : vector<2x256xi32> to vector<2xi32>
    %36 = vector.shape_cast %35 : vector<2xi32> to vector<2x1xi32>
    %c0_14 = arith.constant 0 : index
    %c0_15 = arith.constant 0 : index
    %37 = vector.load %arg6[%c0_14, %c0_15] : memref<2x1xf32, #tpu.memory_space<vmem>>, vector<2x1xf32>
    %38 = arith.cmpf ogt, %30, %37 : vector<2x1xf32>
    %c0_16 = arith.constant 0 : index
    %c0_17 = arith.constant 0 : index
    %39 = vector.load %arg6[%c0_16, %c0_17] : memref<2x1xf32, #tpu.memory_space<vmem>>, vector<2x1xf32>
    %40 = arith.select %38, %30, %39 : vector<2x1xi1>, vector<2x1xf32>
    %c0_18 = arith.constant 0 : index
    %c0_19 = arith.constant 0 : index
    %41 = vector.load %arg6[%c0_18, %c0_19] : memref<2x1xf32, #tpu.memory_space<vmem>>, vector<2x1xf32>
    tpu.vector_store %arg6[%c0_18, %c0_19], %40 {strides = array<i32>} : memref<2x1xf32, #tpu.memory_space<vmem>>, vector<2x1xf32>,
    %c0_20 = arith.constant 0 : index
    %c0_21 = arith.constant 0 : index
    %42 = vector.load %arg5[%c0_20, %c0_21] : memref<2x1xi32, #tpu.memory_space<vmem>>, vector<2x1xi32>
    %43 = arith.select %38, %36, %42 : vector<2x1xi1>, vector<2x1xi32>
    %c0_22 = arith.constant 0 : index
    %c0_23 = arith.constant 0 : index
    %44 = vector.load %arg5[%c0_22, %c0_23] : memref<2x1xi32, #tpu.memory_space<vmem>>, vector<2x1xi32>
    tpu.vector_store %arg5[%c0_22, %c0_23], %43 {strides = array<i32>} : memref<2x1xi32, #tpu.memory_space<vmem>>, vector<2x1xi32>,
    return
  }
  func.func @transform_0(%arg0: i32) -> (i32, i32) {
    %c0_i32 = arith.constant 0 : i32
    %c0_i32_0 = arith.constant 0 : i32
    %c0_i32_1 = arith.constant 0 : i32
    return %c0_i32, %c0_i32_0 : i32, i32
  }
  func.func @transform_1(%arg0: i32) -> (i32, i32) {
    %c0_i32 = arith.constant 0 : i32
    %c0_i32_0 = arith.constant 0 : i32
    %c0_i32_1 = arith.constant 0 : i32
    return %c0_i32, %c0_i32_0 : i32, i32
  }
  func.func @transform_2(%arg0: i32) -> (i32, i32) {
    %c0_i32 = arith.constant 0 : i32
    %c0_i32_0 = arith.constant 0 : i32
    return %c0_i32, %arg0 : i32, i32
  }
  func.func @transform_3(%arg0: i32) -> (i32, i32) {
    %c0_i32 = arith.constant 0 : i32
    %c0_i32_0 = arith.constant 0 : i32
    return %c0_i32, %arg0 : i32, i32
  }
  func.func @transform_4(%arg0: i32) -> (i32, i32) {
    %c0_i32 = arith.constant 0 : i32
    %c0_i32_0 = arith.constant 0 : i32
    %c0_i32_1 = arith.constant 0 : i32
    return %c0_i32, %c0_i32_0 : i32, i32
  }
  func.func @transform_5(%arg0: i32) -> (i32, i32) {
    %c0_i32 = arith.constant 0 : i32
    %c0_i32_0 = arith.constant 0 : i32
    %c0_i32_1 = arith.constant 0 : i32
    return %c0_i32, %c0_i32_0 : i32, i32
  }
}

module attributes {stable_mosaic.version = 11 : i64} {
  func.func @decoder_layer_kernel(%arg0: i32, %arg1: memref<1x128x256xf32, #tpu.memory_space<vmem>>, %arg2: memref<1x256xf32, #tpu.memory_space<vmem>>, %arg3: memref<1x256xf32, #tpu.memory_space<vmem>>, %arg4: memref<256x768xbf16, #tpu.memory_space<vmem>>, %arg5: memref<128x128xf32, #tpu.memory_space<vmem>>, %arg6: memref<128x128xf32, #tpu.memory_space<vmem>>, %arg7: memref<256x256xbf16, #tpu.memory_space<vmem>>, %arg8: memref<256x1024xbf16, #tpu.memory_space<vmem>>, %arg9: memref<512x256xbf16, #tpu.memory_space<vmem>>, %arg10: memref<1x128x256xf32, #tpu.memory_space<vmem>>) attributes {dimension_semantics = [#tpu.dimension_semantics<parallel>], iteration_bounds = array<i64: 2>, scalar_prefetch = 0 : i64, scratch_operands = 0 : i64, tpu.core_type = #tpu.core_type<tc>, window_params = [{transform_indices = @transform_0, window_bounds = array<i64: 1, 128, 256>}, {pipeline_mode = #tpu.pipeline_mode<synchronous>, transform_indices = @transform_1, window_bounds = array<i64: 1, 256>}, {pipeline_mode = #tpu.pipeline_mode<synchronous>, transform_indices = @transform_2, window_bounds = array<i64: 1, 256>}, {pipeline_mode = #tpu.pipeline_mode<synchronous>, transform_indices = @transform_3, window_bounds = array<i64: 256, 768>}, {pipeline_mode = #tpu.pipeline_mode<synchronous>, transform_indices = @transform_4, window_bounds = array<i64: 128, 128>}, {pipeline_mode = #tpu.pipeline_mode<synchronous>, transform_indices = @transform_5, window_bounds = array<i64: 128, 128>}, {pipeline_mode = #tpu.pipeline_mode<synchronous>, transform_indices = @transform_6, window_bounds = array<i64: 256, 256>}, {pipeline_mode = #tpu.pipeline_mode<synchronous>, transform_indices = @transform_7, window_bounds = array<i64: 256, 1024>}, {pipeline_mode = #tpu.pipeline_mode<synchronous>, transform_indices = @transform_8, window_bounds = array<i64: 512, 256>}, {transform_indices = @transform_9, window_bounds = array<i64: 1, 128, 256>}]} {
    %c0 = arith.constant 0 : index
    %c0_0 = arith.constant 0 : index
    %c0_1 = arith.constant 0 : index
    %0 = vector.load %arg1[%c0, %c0_0, %c0_1] : memref<1x128x256xf32, #tpu.memory_space<vmem>>, vector<1x128x256xf32>
    %1 = vector.shape_cast %0 : vector<1x128x256xf32> to vector<128x256xf32>
    %c0_2 = arith.constant 0 : index
    %c0_3 = arith.constant 0 : index
    %2 = vector.load %arg2[%c0_2, %c0_3] : memref<1x256xf32, #tpu.memory_space<vmem>>, vector<1x256xf32>
    %3 = arith.mulf %1, %1 : vector<128x256xf32>
    %cst = arith.constant dense<0.000000e+00> : vector<128xf32>
    %4 = vector.multi_reduction <add>, %3, %cst [1] : vector<128x256xf32> to vector<128xf32>
    %5 = vector.shape_cast %4 : vector<128xf32> to vector<128x1xf32>
    %cst_4 = arith.constant 2.560000e+02 : f32
    %6 = vector.broadcast %cst_4 : f32 to vector<128x1xf32>
    %7 = arith.divf %5, %6 : vector<128x1xf32>
    %cst_5 = arith.constant 9.99999997E-7 : f32
    %8 = vector.broadcast %cst_5 : f32 to vector<128x1xf32>
    %9 = arith.addf %7, %8 : vector<128x1xf32>
    %10 = math.rsqrt %9 : vector<128x1xf32>
    %11 = vector.broadcast %10 : vector<128x1xf32> to vector<128x256xf32>
    %12 = arith.mulf %1, %11 : vector<128x256xf32>
    %13 = vector.broadcast %2 : vector<1x256xf32> to vector<128x256xf32>
    %14 = arith.mulf %12, %13 : vector<128x256xf32>
    %15 = arith.truncf %14 : vector<128x256xf32> to vector<128x256xbf16>
    %c0_6 = arith.constant 0 : index
    %c0_7 = arith.constant 0 : index
    %16 = vector.load %arg4[%c0_6, %c0_7] : memref<256x768xbf16, #tpu.memory_space<vmem>>, vector<256x768xbf16>
    %cst_8 = arith.constant dense<0.000000e+00> : vector<128x768xf32>
    %17 = tpu.matmul %15, %16, %cst_8 {dimension_numbers = #tpu.dot_dimension_numbers<[1], [0], [0], [1], [0, 0, 1, 1], [], []>} : vector<128x256xbf16>, vector<256x768xbf16>, vector<128x768xf32> -> vector<128x768xf32>
    %18 = vector.extract_strided_slice %17 {offsets = [0, 0], sizes = [128, 128], strides = [1, 1]} : vector<128x768xf32> to vector<128x128xf32>
    %19 = vector.extract_strided_slice %17 {offsets = [0, 128], sizes = [128, 128], strides = [1, 1]} : vector<128x768xf32> to vector<128x128xf32>
    %20 = vector.shape_cast %18 : vector<128x128xf32> to vector<1x128x128xf32>
    %21 = vector.shape_cast %19 : vector<128x128xf32> to vector<1x128x128xf32>
    %22 = tpu.concatenate %20, %21 in 0 : vector<1x128x128xf32>, vector<1x128x128xf32> -> vector<2x128x128xf32>
    %23 = vector.extract_strided_slice %17 {offsets = [0, 256], sizes = [128, 128], strides = [1, 1]} : vector<128x768xf32> to vector<128x128xf32>
    %24 = vector.extract_strided_slice %17 {offsets = [0, 384], sizes = [128, 128], strides = [1, 1]} : vector<128x768xf32> to vector<128x128xf32>
    %25 = vector.shape_cast %23 : vector<128x128xf32> to vector<1x128x128xf32>
    %26 = vector.shape_cast %24 : vector<128x128xf32> to vector<1x128x128xf32>
    %27 = tpu.concatenate %25, %26 in 0 : vector<1x128x128xf32>, vector<1x128x128xf32> -> vector<2x128x128xf32>
    %28 = vector.extract_strided_slice %17 {offsets = [0, 512], sizes = [128, 128], strides = [1, 1]} : vector<128x768xf32> to vector<128x128xf32>
    %29 = vector.extract_strided_slice %17 {offsets = [0, 640], sizes = [128, 128], strides = [1, 1]} : vector<128x768xf32> to vector<128x128xf32>
    %30 = vector.shape_cast %28 : vector<128x128xf32> to vector<1x128x128xf32>
    %31 = vector.shape_cast %29 : vector<128x128xf32> to vector<1x128x128xf32>
    %32 = tpu.concatenate %30, %31 in 0 : vector<1x128x128xf32>, vector<1x128x128xf32> -> vector<2x128x128xf32>
    %c0_9 = arith.constant 0 : index
    %c0_10 = arith.constant 0 : index
    %33 = vector.load %arg5[%c0_9, %c0_10] : memref<128x128xf32, #tpu.memory_space<vmem>>, vector<128x128xf32>
    %34 = vector.shape_cast %33 : vector<128x128xf32> to vector<1x128x128xf32>
    %c0_11 = arith.constant 0 : index
    %c0_12 = arith.constant 0 : index
    %35 = vector.load %arg6[%c0_11, %c0_12] : memref<128x128xf32, #tpu.memory_space<vmem>>, vector<128x128xf32>
    %36 = vector.shape_cast %35 : vector<128x128xf32> to vector<1x128x128xf32>
    %cst_13 = arith.constant 1.280000e+02 : f32
    %37 = math.sqrt %cst_13 : f32
    %cst_14 = arith.constant 1.000000e+00 : f32
    %38 = arith.divf %cst_14, %37 : f32
    %39 = vector.shape_cast %22 : vector<2x128x128xf32> to vector<256x128xf32>
    %c64_i32 = arith.constant 64 : i32
    %40 = tpu.dynamic_rotate %39 by %c64_i32 dim 1 : vector<256x128xf32>, i32 -> vector<256x128xf32>
    %41 = vector.shape_cast %40 : vector<256x128xf32> to vector<2x128x128xf32>
    %42 = vector.broadcast %34 : vector<1x128x128xf32> to vector<2x128x128xf32>
    %43 = arith.mulf %22, %42 : vector<2x128x128xf32>
    %44 = vector.broadcast %36 : vector<1x128x128xf32> to vector<2x128x128xf32>
    %45 = arith.mulf %41, %44 : vector<2x128x128xf32>
    %46 = arith.addf %43, %45 : vector<2x128x128xf32>
    %47 = vector.broadcast %38 : f32 to vector<2x128x128xf32>
    %48 = arith.mulf %46, %47 : vector<2x128x128xf32>
    %49 = arith.truncf %48 : vector<2x128x128xf32> to vector<2x128x128xbf16>
    %50 = vector.shape_cast %27 : vector<2x128x128xf32> to vector<256x128xf32>
    %c64_i32_15 = arith.constant 64 : i32
    %51 = tpu.dynamic_rotate %50 by %c64_i32_15 dim 1 : vector<256x128xf32>, i32 -> vector<256x128xf32>
    %52 = vector.shape_cast %51 : vector<256x128xf32> to vector<2x128x128xf32>
    %53 = vector.broadcast %34 : vector<1x128x128xf32> to vector<2x128x128xf32>
    %54 = arith.mulf %27, %53 : vector<2x128x128xf32>
    %55 = vector.broadcast %36 : vector<1x128x128xf32> to vector<2x128x128xf32>
    %56 = arith.mulf %52, %55 : vector<2x128x128xf32>
    %57 = arith.addf %54, %56 : vector<2x128x128xf32>
    %58 = arith.truncf %57 : vector<2x128x128xf32> to vector<2x128x128xbf16>
    %59 = arith.truncf %32 : vector<2x128x128xf32> to vector<2x128x128xbf16>
    "tpu.trace_start"() <{level = 10 : i32, message = "hqd,hkd->hqk"}> : () -> ()
    %cst_16 = arith.constant dense<0.000000e+00> : vector<2x128x128xf32>
    %60 = tpu.matmul %49, %58, %cst_16 {dimension_numbers = #tpu.dot_dimension_numbers<[2], [2], [1], [1], [0, 0, 0, 1, 1, 1], [0], [0]>} : vector<2x128x128xbf16>, vector<2x128x128xbf16>, vector<2x128x128xf32> -> vector<2x128x128xf32>
    "tpu.trace_stop"() : () -> ()
    %61 = tpu.iota {dimensions = array<i32: 0>} : vector<128x128xi32>
    %62 = tpu.iota {dimensions = array<i32: 1>} : vector<128x128xi32>
    %63 = arith.cmpi sle, %62, %61 : vector<128x128xi32>
    %64 = vector.shape_cast %63 : vector<128x128xi1> to vector<1x128x128xi1>
    %cst_17 = arith.constant -1.000000e+30 : f32
    %65 = vector.shape_cast %64 : vector<1x128x128xi1> to vector<1x128x128xi1>
    %66 = vector.broadcast %65 : vector<1x128x128xi1> to vector<2x128x128xi1>
    %67 = vector.broadcast %cst_17 : f32 to vector<2x128x128xf32>
    %68 = arith.select %66, %60, %67 : vector<2x128x128xi1>, vector<2x128x128xf32>
    %cst_18 = arith.constant dense<0xFF800000> : vector<2x128xf32>
    %69 = vector.multi_reduction <maximumf>, %68, %cst_18 [2] : vector<2x128x128xf32> to vector<2x128xf32>
    %70 = vector.shape_cast %69 : vector<2x128xf32> to vector<2x128x1xf32>
    %71 = vector.broadcast %70 : vector<2x128x1xf32> to vector<2x128x128xf32>
    %72 = arith.subf %68, %71 : vector<2x128x128xf32>
    %73 = math.exp %72 : vector<2x128x128xf32>
    %cst_19 = arith.constant dense<0.000000e+00> : vector<2x128xf32>
    %74 = vector.multi_reduction <add>, %73, %cst_19 [2] : vector<2x128x128xf32> to vector<2x128xf32>
    %75 = vector.shape_cast %74 : vector<2x128xf32> to vector<2x128x1xf32>
    %76 = tpu.reciprocal %75 {approx = true} : vector<2x128x1xf32> -> vector<2x128x1xf32>
    %77 = vector.broadcast %76 : vector<2x128x1xf32> to vector<2x128x128xf32>
    %78 = arith.mulf %73, %77 : vector<2x128x128xf32>
    %79 = arith.truncf %78 : vector<2x128x128xf32> to vector<2x128x128xbf16>
    "tpu.trace_start"() <{level = 10 : i32, message = "hqk,hkd->hqd"}> : () -> ()
    %cst_20 = arith.constant dense<0.000000e+00> : vector<2x128x128xf32>
    %80 = tpu.matmul %79, %59, %cst_20 {dimension_numbers = #tpu.dot_dimension_numbers<[2], [1], [1], [2], [0, 0, 0, 1, 1, 2], [0], [0]>} : vector<2x128x128xbf16>, vector<2x128x128xbf16>, vector<2x128x128xf32> -> vector<2x128x128xf32>
    "tpu.trace_stop"() : () -> ()
    %81 = vector.extract_strided_slice %80 {offsets = [0, 0, 0], sizes = [1, 128, 128], strides = [1, 1, 1]} : vector<2x128x128xf32> to vector<1x128x128xf32>
    %82 = vector.shape_cast %81 : vector<1x128x128xf32> to vector<128x128xf32>
    %83 = vector.extract_strided_slice %80 {offsets = [1, 0, 0], sizes = [1, 128, 128], strides = [1, 1, 1]} : vector<2x128x128xf32> to vector<1x128x128xf32>
    %84 = vector.shape_cast %83 : vector<1x128x128xf32> to vector<128x128xf32>
    %85 = tpu.concatenate %82, %84 in 1 : vector<128x128xf32>, vector<128x128xf32> -> vector<128x256xf32>
    %86 = arith.truncf %85 : vector<128x256xf32> to vector<128x256xbf16>
    %c0_21 = arith.constant 0 : index
    %c0_22 = arith.constant 0 : index
    %87 = vector.load %arg7[%c0_21, %c0_22] : memref<256x256xbf16, #tpu.memory_space<vmem>>, vector<256x256xbf16>
    %cst_23 = arith.constant dense<0.000000e+00> : vector<128x256xf32>
    %88 = tpu.matmul %86, %87, %cst_23 {dimension_numbers = #tpu.dot_dimension_numbers<[1], [0], [0], [1], [0, 0, 1, 1], [], []>} : vector<128x256xbf16>, vector<256x256xbf16>, vector<128x256xf32> -> vector<128x256xf32>
    %89 = arith.addf %1, %88 : vector<128x256xf32>
    %c0_24 = arith.constant 0 : index
    %c0_25 = arith.constant 0 : index
    %90 = vector.load %arg3[%c0_24, %c0_25] : memref<1x256xf32, #tpu.memory_space<vmem>>, vector<1x256xf32>
    %91 = arith.mulf %89, %89 : vector<128x256xf32>
    %cst_26 = arith.constant dense<0.000000e+00> : vector<128xf32>
    %92 = vector.multi_reduction <add>, %91, %cst_26 [1] : vector<128x256xf32> to vector<128xf32>
    %93 = vector.shape_cast %92 : vector<128xf32> to vector<128x1xf32>
    %cst_27 = arith.constant 2.560000e+02 : f32
    %94 = vector.broadcast %cst_27 : f32 to vector<128x1xf32>
    %95 = arith.divf %93, %94 : vector<128x1xf32>
    %cst_28 = arith.constant 9.99999997E-7 : f32
    %96 = vector.broadcast %cst_28 : f32 to vector<128x1xf32>
    %97 = arith.addf %95, %96 : vector<128x1xf32>
    %98 = math.rsqrt %97 : vector<128x1xf32>
    %99 = vector.broadcast %98 : vector<128x1xf32> to vector<128x256xf32>
    %100 = arith.mulf %89, %99 : vector<128x256xf32>
    %101 = vector.broadcast %90 : vector<1x256xf32> to vector<128x256xf32>
    %102 = arith.mulf %100, %101 : vector<128x256xf32>
    %103 = arith.truncf %102 : vector<128x256xf32> to vector<128x256xbf16>
    %c0_29 = arith.constant 0 : index
    %c0_30 = arith.constant 0 : index
    %104 = vector.load %arg8[%c0_29, %c0_30] : memref<256x1024xbf16, #tpu.memory_space<vmem>>, vector<256x1024xbf16>
    %cst_31 = arith.constant dense<0.000000e+00> : vector<128x1024xf32>
    %105 = tpu.matmul %103, %104, %cst_31 {dimension_numbers = #tpu.dot_dimension_numbers<[1], [0], [0], [1], [0, 0, 1, 1], [], []>} : vector<128x256xbf16>, vector<256x1024xbf16>, vector<128x1024xf32> -> vector<128x1024xf32>
    %106 = vector.extract_strided_slice %105 {offsets = [0, 0], sizes = [128, 512], strides = [1, 1]} : vector<128x1024xf32> to vector<128x512xf32>
    %107 = arith.negf %106 : vector<128x512xf32>
    %108 = math.exp %107 : vector<128x512xf32>
    %cst_32 = arith.constant 1.000000e+00 : f32
    %109 = vector.broadcast %cst_32 : f32 to vector<128x512xf32>
    %110 = arith.addf %109, %108 : vector<128x512xf32>
    %111 = arith.divf %109, %110 : vector<128x512xf32>
    %112 = arith.mulf %106, %111 : vector<128x512xf32>
    %113 = vector.extract_strided_slice %105 {offsets = [0, 512], sizes = [128, 512], strides = [1, 1]} : vector<128x1024xf32> to vector<128x512xf32>
    %114 = arith.mulf %112, %113 : vector<128x512xf32>
    %115 = arith.truncf %114 : vector<128x512xf32> to vector<128x512xbf16>
    %c0_33 = arith.constant 0 : index
    %c0_34 = arith.constant 0 : index
    %116 = vector.load %arg9[%c0_33, %c0_34] : memref<512x256xbf16, #tpu.memory_space<vmem>>, vector<512x256xbf16>
    %cst_35 = arith.constant dense<0.000000e+00> : vector<128x256xf32>
    %117 = tpu.matmul %115, %116, %cst_35 {dimension_numbers = #tpu.dot_dimension_numbers<[1], [0], [0], [1], [0, 0, 1, 1], [], []>} : vector<128x512xbf16>, vector<512x256xbf16>, vector<128x256xf32> -> vector<128x256xf32>
    %118 = arith.addf %89, %117 : vector<128x256xf32>
    %c0_36 = arith.constant 0 : index
    %c0_37 = arith.constant 0 : index
    %c0_38 = arith.constant 0 : index
    %119 = vector.load %arg10[%c0_36, %c0_37, %c0_38] : memref<1x128x256xf32, #tpu.memory_space<vmem>>, vector<1x128x256xf32>
    %120 = vector.shape_cast %119 : vector<1x128x256xf32> to vector<128x256xf32>
    %121 = vector.shape_cast %118 : vector<128x256xf32> to vector<1x128x256xf32>
    tpu.vector_store %arg10[%c0_36, %c0_37, %c0_38], %121 {strides = array<i32>} : memref<1x128x256xf32, #tpu.memory_space<vmem>>, vector<1x128x256xf32>,
    return
  }
  func.func @transform_0(%arg0: i32) -> (i32, i32, i32) {
    %c0_i32 = arith.constant 0 : i32
    %c0_i32_0 = arith.constant 0 : i32
    %c0_i32_1 = arith.constant 0 : i32
    return %arg0, %c0_i32, %c0_i32_0 : i32, i32, i32
  }
  func.func @transform_1(%arg0: i32) -> (i32, i32) {
    %c0_i32 = arith.constant 0 : i32
    %c0_i32_0 = arith.constant 0 : i32
    %c0_i32_1 = arith.constant 0 : i32
    return %c0_i32, %c0_i32_0 : i32, i32
  }
  func.func @transform_2(%arg0: i32) -> (i32, i32) {
    %c0_i32 = arith.constant 0 : i32
    %c0_i32_0 = arith.constant 0 : i32
    %c0_i32_1 = arith.constant 0 : i32
    return %c0_i32, %c0_i32_0 : i32, i32
  }
  func.func @transform_3(%arg0: i32) -> (i32, i32) {
    %c0_i32 = arith.constant 0 : i32
    %c0_i32_0 = arith.constant 0 : i32
    %c0_i32_1 = arith.constant 0 : i32
    return %c0_i32, %c0_i32_0 : i32, i32
  }
  func.func @transform_4(%arg0: i32) -> (i32, i32) {
    %c0_i32 = arith.constant 0 : i32
    %c0_i32_0 = arith.constant 0 : i32
    %c0_i32_1 = arith.constant 0 : i32
    return %c0_i32, %c0_i32_0 : i32, i32
  }
  func.func @transform_5(%arg0: i32) -> (i32, i32) {
    %c0_i32 = arith.constant 0 : i32
    %c0_i32_0 = arith.constant 0 : i32
    %c0_i32_1 = arith.constant 0 : i32
    return %c0_i32, %c0_i32_0 : i32, i32
  }
  func.func @transform_6(%arg0: i32) -> (i32, i32) {
    %c0_i32 = arith.constant 0 : i32
    %c0_i32_0 = arith.constant 0 : i32
    %c0_i32_1 = arith.constant 0 : i32
    return %c0_i32, %c0_i32_0 : i32, i32
  }
  func.func @transform_7(%arg0: i32) -> (i32, i32) {
    %c0_i32 = arith.constant 0 : i32
    %c0_i32_0 = arith.constant 0 : i32
    %c0_i32_1 = arith.constant 0 : i32
    return %c0_i32, %c0_i32_0 : i32, i32
  }
  func.func @transform_8(%arg0: i32) -> (i32, i32) {
    %c0_i32 = arith.constant 0 : i32
    %c0_i32_0 = arith.constant 0 : i32
    %c0_i32_1 = arith.constant 0 : i32
    return %c0_i32, %c0_i32_0 : i32, i32
  }
  func.func @transform_9(%arg0: i32) -> (i32, i32, i32) {
    %c0_i32 = arith.constant 0 : i32
    %c0_i32_0 = arith.constant 0 : i32
    %c0_i32_1 = arith.constant 0 : i32
    return %arg0, %c0_i32, %c0_i32_0 : i32, i32, i32
  }
}

</mosaic_0001>

<llo_original>
// kernel: infer_model_single_forward.3
$region0: #{infer_model_single_forward.3}
  #allocation0 [shape = 'u32[]', space=smem, size = 0x4, offset = 0x4, fixed_abs, tag = 'smem constant byte address 0x4 - core index']
  #allocation1 [shape = 'u32[72,128]{1,0:T(1,128)}', space=vmem, size = 0x9000, scoped, tag = 'internal scratch']
  %s0 = inlined_call_operand.vmem [shape: f32[2,256], index: 0, kind: input, shape index: {}]
  %s1 = inlined_call_operand.vmem [shape: f32[1,256], index: 1, kind: input, shape index: {}]
  %s2 = inlined_call_operand.hbm [shape: bf16[256,512], index: 2, kind: input, shape index: {}]
  %s3 = inlined_call_operand.hbm [shape: f32[2,512], index: 3, kind: output, shape index: {0}]
  %s4 = inlined_call_operand.vmem [shape: s32[2,1], index: 4, kind: output, shape index: {1}]
  %s5 = inlined_call_operand.hbm [shape: f32[2,1], index: 5, kind: output, shape index: {2}]
  %6 = xla_tuple %s3, %s4, %s5
  %s7 = sld [smem:[#allocation0]]
  $region69: #{infer_model_single_forward.3} parent=0
    _
  %s9 = ssub.s32 1, %s7
  %s10 = scalar_select 0, %s9, %s7
  $region1: #{infer_model_single_forward.3} parent=0
    #allocation2 [shape = 'u8[262144]{0}', space=vmem, size = 0x40000, scoped, tag = 'input window, operand 2']
    #allocation3 [shape = 's32[2]{0}', space=sflag, size = 0x8, scoped, tag = 'scoped memory for infer_model_single_forward.3']
    #allocation4 [shape = 's32[2]{0}', space=sflag, size = 0x8, scoped, tag = 'scoped memory for infer_model_single_forward.3']
    #allocation5 [shape = 'u8[4096]{0}', space=vmem, size = 0x1000, scoped, tag = 'output window, operand 0']
    #allocation6 [shape = 'u8[1024]{0}', space=vmem, size = 0x400, scoped, tag = 'output window, operand 2, single buffered']
    #allocation7 [shape = 's32[1]{0}', space=sflag, size = 0x4, scoped, tag = 'scoped memory for infer_model_single_forward.3']
    %11 = vsyncpa [#allocation3], 0
    %s12 = scalar_lea.sflag [#allocation3], 1
    %13 = vsyncpa %s12, 0
    %14 = vsyncpa [#allocation4], 0
    %s15 = scalar_lea.sflag [#allocation4], 1
    %16 = vsyncpa %s15, 0
    %17 = vsyncpa [#allocation7], 0
    loop: start=0, step=1, limit=4
    $region2: #{infer_model_single_forward.3} parent=1 // loop_pre_header
      _
    $region3: #{infer_model_single_forward.3} parent=1 // loop_header
      %s19 = sphi 0, %s23
      %p20 = scmp.ge.s32.totalorder %s19, 4
      %s27 = sphi 0, %s27
      %s29 = sphi 0, %s27
      %s30 = sphi 0, %s29
      %s44 = sphi 0, %s30
      %s48 = sphi 0, %s48
      %s50 = sphi 0, %s48
      %s51 = sphi 0, %s50
      %s65 = sphi 0, %s51
      %s71 = sphi 0, %s73
      %s74 = sphi 0, %s71
      %s75 = sphi 0, %s74
      %s91 = sphi 0, %s75
      %s97 = sphi 0, %s99
      %s100 = sphi 0, %s97
      %s101 = sphi 0, %s100
      %s117 = sphi 0, %s101
      %s121 = sphi 0, %s121
      %s123 = sphi 0, %s121
      %s124 = sphi 0, %s123
      %s138 = sphi 0, %s124
      %s142 = sphi 0, %s142
      %s144 = sphi 0, %s142
      %s145 = sphi 0, %s144
      %s159 = sphi 0, %s145
    $region4: #{infer_model_single_forward.3} parent=1 // loop_header_branch
      %22 = sbr.rel (%p20) target = $region8
    $region5: #{infer_model_single_forward.3} parent=1 // loop_body
      %s24 = ssub.s32 %s19, 1
      %s25 = ssub.s32 %s19, 2
      %s26 = sadd.s32 %s19, 1
      %s28 = sadd.s32 %s27, 1
      %p31 = scmp.eq.s32.totalorder %s19, 1
      %p32 = scmp.ne.s32.totalorder %s27, %s29
      %p33 = scmp.eq.s32.totalorder %s19, 0
      %p34 = por %p32, %p33
      %p35 = scmp.ne.s32.totalorder %s27, %s29
      %p36 = scmp.eq.s32.totalorder %s24, 1
      %p37 = por %p35, %p36
      %p38 = scmp.ne.s32.totalorder %s29, %s30
      %p39 = scmp.eq.s32.totalorder %s24, 0
      %p40 = por %p38, %p39
      %p41 = scmp.ne.s32.totalorder %s29, %s30
      %p42 = scmp.eq.s32.totalorder %s25, 1
      %p43 = por %p41, %p42
      %p45 = scmp.ne.s32.totalorder %s30, %s44
      %p46 = scmp.eq.s32.totalorder %s25, 0
      %p47 = por %p45, %p46
      %s49 = sadd.s32 %s48, 1
      %p52 = scmp.eq.s32.totalorder %s19, 1
      %p53 = scmp.ne.s32.totalorder %s48, %s50
      %p54 = scmp.eq.s32.totalorder %s19, 0
      %p55 = por %p53, %p54
      %p56 = scmp.ne.s32.totalorder %s48, %s50
      %p57 = scmp.eq.s32.totalorder %s24, 1
      %p58 = por %p56, %p57
      %p59 = scmp.ne.s32.totalorder %s50, %s51
      %p60 = scmp.eq.s32.totalorder %s24, 0
      %p61 = por %p59, %p60
      %p62 = scmp.ne.s32.totalorder %s50, %s51
      %p63 = scmp.eq.s32.totalorder %s25, 1
      %p64 = por %p62, %p63
      %p66 = scmp.ne.s32.totalorder %s51, %s65
      %p67 = scmp.eq.s32.totalorder %s25, 0
      %p68 = por %p66, %p67
      %s69 = ssub.s32 %s19, %s26
      %p70 = scmp.eq.s32.totalorder %s69, 0
      %s72 = sadd.s32 %s71, 1
      %s73 = scalar_select %p70, %s71, %s72
      %p76 = pneg %p70
      %p77 = scmp.eq.s32.totalorder %s19, 1
      %p78 = por %p76, %p77
      %p79 = scmp.ne.s32.totalorder %s71, %s74
      %p80 = scmp.eq.s32.totalorder %s19, 0
      %p81 = por %p79, %p80
      %p82 = scmp.ne.s32.totalorder %s71, %s74
      %p83 = scmp.eq.s32.totalorder %s24, 1
      %p84 = por %p82, %p83
      %p85 = scmp.ne.s32.totalorder %s74, %s75
      %p86 = scmp.eq.s32.totalorder %s24, 0
      %p87 = por %p85, %p86
      %p88 = scmp.ne.s32.totalorder %s74, %s75
      %p89 = scmp.eq.s32.totalorder %s25, 1
      %p90 = por %p88, %p89
      %p92 = scmp.ne.s32.totalorder %s75, %s91
      %p93 = scmp.eq.s32.totalorder %s25, 0
      %p94 = por %p92, %p93
      %s95 = ssub.s32 %s19, %s26
      %p96 = scmp.eq.s32.totalorder %s95, 0
      %s98 = sadd.s32 %s97, 1
      %s99 = scalar_select %p96, %s97, %s98
      %p102 = pneg %p96
      %p103 = scmp.eq.s32.totalorder %s19, 1
      %p104 = por %p102, %p103
      %p105 = scmp.ne.s32.totalorder %s97, %s100
      %p106 = scmp.eq.s32.totalorder %s19, 0
      %p107 = por %p105, %p106
      %p108 = scmp.ne.s32.totalorder %s97, %s100
      %p109 = scmp.eq.s32.totalorder %s24, 1
      %p110 = por %p108, %p109
      %p111 = scmp.ne.s32.totalorder %s100, %s101
      %p112 = scmp.eq.s32.totalorder %s24, 0
      %p113 = por %p111, %p112
      %p114 = scmp.ne.s32.totalorder %s100, %s101
      %p115 = scmp.eq.s32.totalorder %s25, 1
      %p116 = por %p114, %p115
      %p118 = scmp.ne.s32.totalorder %s101, %s117
      %p119 = scmp.eq.s32.totalorder %s25, 0
      %p120 = por %p118, %p119
      %s122 = sadd.s32 %s121, 1
      %p125 = scmp.eq.s32.totalorder %s19, 1
      %p126 = scmp.ne.s32.totalorder %s121, %s123
      %p127 = scmp.eq.s32.totalorder %s19, 0
      %p128 = por %p126, %p127
      %p129 = scmp.ne.s32.totalorder %s121, %s123
      %p130 = scmp.eq.s32.totalorder %s24, 1
      %p131 = por %p129, %p130
      %p132 = scmp.ne.s32.totalorder %s123, %s124
      %p133 = scmp.eq.s32.totalorder %s24, 0
      %p134 = por %p132, %p133
      %p135 = scmp.ne.s32.totalorder %s123, %s124
      %p136 = scmp.eq.s32.totalorder %s25, 1
      %p137 = por %p135, %p136
      %p139 = scmp.ne.s32.totalorder %s124, %s138
      %p140 = scmp.eq.s32.totalorder %s25, 0
      %p141 = por %p139, %p140
      %s143 = sadd.s32 %s142, 1
      %p146 = scmp.eq.s32.totalorder %s19, 1
      %p147 = scmp.ne.s32.totalorder %s142, %s144
      %p148 = scmp.eq.s32.totalorder %s19, 0
      %p149 = por %p147, %p148
      %p150 = scmp.ne.s32.totalorder %s142, %s144
      %p151 = scmp.eq.s32.totalorder %s24, 1
      %p152 = por %p150, %p151
      %p153 = scmp.ne.s32.totalorder %s144, %s145
      %p154 = scmp.eq.s32.totalorder %s24, 0
      %p155 = por %p153, %p154
      %p156 = scmp.ne.s32.totalorder %s144, %s145
      %p157 = scmp.eq.s32.totalorder %s25, 1
      %p158 = por %p156, %p157
      %p160 = scmp.ne.s32.totalorder %s145, %s159
      %p161 = scmp.eq.s32.totalorder %s25, 0
      %p162 = por %p160, %p161
      %p163 = scmp.le.s32.totalorder 1, %s19
      %p164 = scmp.lt.s32.totalorder %s19, 3
      %p165 = pnand %p163, %p164
      %p166 = pneg %p165
      // Predicated region
      $region9: #{infer_model_single_forward.3} parent=5 // pred_check
        _
      $region10: #{infer_model_single_forward.3} parent=5 // pred_check_branch
        %168 = sbr.rel (%p165) target = $region12
      $region11: #{infer_model_single_forward.3} parent=5 // pred_region
        %s169 = ssub.s32 %s19, 1
        // Predicated region
        $region13: #{infer_model_single_forward.3} parent=11 // pred_check
          %p170 = pneg %p40
        $region14: #{infer_model_single_forward.3} parent=11 // pred_check_branch
          %172 = sbr.rel (%p170) target = $region16
        $region15: #{infer_model_single_forward.3} parent=11 // pred_region
          _
        $region16: #{infer_model_single_forward.3} parent=11 // pred_fallthru
          _
        // Predicated region
        $region17: #{infer_model_single_forward.3} parent=11 // pred_check
          %p173 = pneg %p61
        $region18: #{infer_model_single_forward.3} parent=11 // pred_check_branch
          %175 = sbr.rel (%p173) target = $region20
        $region19: #{infer_model_single_forward.3} parent=11 // pred_region
          _
        $region20: #{infer_model_single_forward.3} parent=11 // pred_fallthru
          _
      $region12: #{infer_model_single_forward.3} parent=5 // pred_fallthru
        _
      %p176 = scmp.lt.s32.totalorder %s19, 2
      // Predicated region
      $region21: #{infer_model_single_forward.3} parent=5 // pred_check
        %p177 = pneg %p176
      $region22: #{infer_model_single_forward.3} parent=5 // pred_check_branch
        %179 = sbr.rel (%p177) target = $region24
      $region23: #{infer_model_single_forward.3} parent=5 // pred_region
        // Predicated region
        $region25: #{infer_model_single_forward.3} parent=23 // pred_check
          %p180 = pneg %p81
        $region26: #{infer_model_single_forward.3} parent=23 // pred_check_branch
          %182 = sbr.rel (%p180) target = $region28
        $region27: #{infer_model_single_forward.3} parent=23 // pred_region
          %s183 = sand.u32 %s71, 1
          %s184 = scalar_lea.sflag [#allocation3], %s183
          %s185 = sand.u32 %s71, 1
          %s186 = smul.addr %s185, 256
          %s187 = scalar_lea.vmem [#allocation2], %s186
          %s188 = smul.u32 2, %s19
          %190 = vsyncadd %s184, 0
          %s191 = smul.addr %s188, 4
          %s192 = scalar_lea.hbm %s2, %s191
          %s193 = sshll.u32 %s192, 4
          %s194 = int_to_ptr.hbm [resolvable:$true] %s193
          %s195 = sshll.u32 %s187, 4
          %s196 = int_to_ptr.vmem [resolvable:$true] %s195
          %201 = dma.hbm_to_vmem [thread:$0]  %s194, 4096, %s196, %s184, 256, 128, 8
        $region28: #{infer_model_single_forward.3} parent=23 // pred_fallthru
          _
      $region24: #{infer_model_single_forward.3} parent=5 // pred_fallthru
        _
      %p202 = scmp.le.s32.totalorder 1, %s19
      %p203 = scmp.lt.s32.totalorder %s19, 3
      %p204 = pnand %p202, %p203
      %p205 = pneg %p204
      // Predicated region
      $region29: #{infer_model_single_forward.3} parent=5 // pred_check
        _
      $region30: #{infer_model_single_forward.3} parent=5 // pred_check_branch
        %207 = sbr.rel (%p204) target = $region32
      $region31: #{infer_model_single_forward.3} parent=5 // pred_region
        %s208 = ssub.s32 %s19, 1
        %s209 = sand.u32 %s74, 1
        %s210 = scalar_lea.sflag [#allocation3], %s209
        %s211 = sand.u32 %s74, 1
        %s212 = smul.addr %s211, 256
        %s213 = scalar_lea.vmem [#allocation2], %s212
        // Predicated region
        $region33: #{infer_model_single_forward.3} parent=31 // pred_check
          %p214 = pneg %p87
        $region34: #{infer_model_single_forward.3} parent=31 // pred_check_branch
          %216 = sbr.rel (%p214) target = $region36
        $region35: #{infer_model_single_forward.3} parent=31 // pred_region
          %218 = dma.done %s210, 4096
        $region36: #{infer_model_single_forward.3} parent=31 // pred_fallthru
          _
        %p219 = pneg %p40
        %p220 = pneg %p37
        %p221 = pneg %p61
        %p222 = pneg %p58
        %s223 = sand.u32 %s74, 1
        %s224 = scalar_lea.sflag [#allocation3], %s223
        %s225 = sand.u32 %s74, 1
        %s226 = smul.addr %s225, 256
        %s227 = scalar_lea.vmem [#allocation2], %s226
        %p228 = pneg %p87
        %p229 = pneg %p84
        %p230 = pneg %p113
        %p231 = pneg %p110
        %s232 = sand.u32 %s100, 1
        %s233 = scalar_lea.sflag [#allocation4], %s232
        %s234 = sand.u32 %s100, 1
        %s235 = smul.addr %s234, 4
        %s236 = scalar_lea.vmem [#allocation5], %s235
        %p237 = pneg %p134
        %p238 = pneg %p131
        %p239 = pneg %p155
        %p240 = pneg %p152
        %s241 = smul.u32 2, %s24
        %s242 = smul.u32 2, %s24
        %p243 = scmp.eq.s32.totalorder %s24, 0
        // Predicated region
        $region37: #{infer_model_single_forward.3} parent=31 // pred_check
          %p244 = pneg %p243
        $region38: #{infer_model_single_forward.3} parent=31 // pred_check_branch
          %246 = sbr.rel (%p244) target = $region40
        $region39: #{infer_model_single_forward.3} parent=31 // pred_region
          %vm247 = vcmask 1024
          %248 = vst.msk [vmem:[#allocation6] sm:$0x3] %vm247, -inf
          %249 = vst.msk [vmem:[%s4] sm:$0x3] %vm247, 0
        $region40: #{infer_model_single_forward.3} parent=31 // pred_fallthru
          _
        %v250 = vld [vmem:[%s0] sm:$0xf]
        %v251 = vld [vmem:[%s1] sm:$0x3]
        %v252 = vmul.f32 %v250, %v250
        %254 = vst [vmem:[#allocation1] ss:$4 sm:$0xff] %v252
        %v255 = vld.sshfl [vmem:[#allocation1] sm:$0xff pattern:$0x73625140]
        %v256 = vld.sshfl [vmem:[#allocation1 + $0x8] sm:$0xff pattern:$0x73625140]
        %vm259 = vcmask 1041408
        %v260 = vsel %vm259, %v255, 0.0
        %v261 = vsel %vm259, %v256, 0.0
        %v262 = vadd.f32 %v260, %v261
        %263 = vadd.xlane.f32.xlu0 %v262
        %v264 = vpop.xlane.xlu0 %263
        %v265 = vrcp.pop 256.0
        %v266 = vmul.f32 256.0, %v265
        %v267 = vsub.f32 1.0, %v266
        %v268 = vmul.f32 %v265, %v267
        %v269 = vadd.f32 %v265, %v268
        %vm270 = vweird.f32 %v265
        %v271 = vsel %vm270, %v265, %v269
        %v272 = vmul.f32 %v264, %v271
        %v273 = vadd.f32 %v272, 1e-06
        %v274 = vrsqrt.pop %v273
        %v275 = vmul.f32 %v274, %v273
        %v276 = vmul.f32 %v275, %v274
        %v277 = vmul.f32 0.5, %v276
        %v278 = vsub.f32 1.5, %v277
        %v279 = vmul.f32 %v274, %v278
        %vm280 = vweird.f32 %v273
        %vm281 = vweird.f32 %v274
        %vm282 = vmor %vm280, %vm281
        %v283 = vsel %vm282, %v274, %v279
        %v286 = vunpack.c.l.s4 269488144
        %v287 = vunpack.c.0.s8 %v286
        %v288 = vperm.slane %v283, %v287
        %v290 = vmul.f32 %v250, %v288
        %v292 = vperm.slane %v251, 0
        %v293 = vperm.slane %v251, 1
        %v294 = vrot.slane %v293, 6
        %v295 = vsel %vm259, %v292, %v294
        %v297 = vmul.f32 %v290, %v295
        %299 = vst [vmem:[#allocation1] ss:$4 sm:$0xff] %v297
        %v300 = vld.sshfl [vmem:[#allocation1] sm:$0xff pattern:$0x73625140]
        %v301 = vld.sshfl [vmem:[#allocation1 + $0x8] sm:$0xff pattern:$0x73625140]
        %v304 = vpack.c.bf16 %v300, %v300
        %v305 = vpack.c.bf16 %v301, %v301
        %v306 = vld [vmem:[%s213] sm:$0xff]
        %v307 = vld [vmem:[%s213 + $0x8] sm:$0xff]
        %v308 = vld [vmem:[%s213 + $0x10] sm:$0xff]
        %v309 = vld [vmem:[%s213 + $0x18] sm:$0xff]
        %v310 = vld [vmem:[%s213 + $0x20] sm:$0xff]
        %v311 = vld [vmem:[%s213 + $0x28] sm:$0xff]
        %v312 = vld [vmem:[%s213 + $0x30] sm:$0xff]
        %v313 = vld [vmem:[%s213 + $0x38] sm:$0xff]
        %v314 = vld [vmem:[%s213 + $0x40] sm:$0xff]
        %v315 = vld [vmem:[%s213 + $0x48] sm:$0xff]
        %v316 = vld [vmem:[%s213 + $0x50] sm:$0xff]
        %v317 = vld [vmem:[%s213 + $0x58] sm:$0xff]
        %v318 = vld [vmem:[%s213 + $0x60] sm:$0xff]
        %v319 = vld [vmem:[%s213 + $0x68] sm:$0xff]
        %v320 = vld [vmem:[%s213 + $0x70] sm:$0xff]
        %v321 = vld [vmem:[%s213 + $0x78] sm:$0xff]
        %v322 = vld [vmem:[%s213 + $0x80] sm:$0xff]
        %v323 = vld [vmem:[%s213 + $0x88] sm:$0xff]
        %v324 = vld [vmem:[%s213 + $0x90] sm:$0xff]
        %v325 = vld [vmem:[%s213 + $0x98] sm:$0xff]
        %v326 = vld [vmem:[%s213 + $0xa0] sm:$0xff]
        %v327 = vld [vmem:[%s213 + $0xa8] sm:$0xff]
        %v328 = vld [vmem:[%s213 + $0xb0] sm:$0xff]
        %v329 = vld [vmem:[%s213 + $0xb8] sm:$0xff]
        %v330 = vld [vmem:[%s213 + $0xc0] sm:$0xff]
        %v331 = vld [vmem:[%s213 + $0xc8] sm:$0xff]
        %v332 = vld [vmem:[%s213 + $0xd0] sm:$0xff]
        %v333 = vld [vmem:[%s213 + $0xd8] sm:$0xff]
        %v334 = vld [vmem:[%s213 + $0xe0] sm:$0xff]
        %v335 = vld [vmem:[%s213 + $0xe8] sm:$0xff]
        %v336 = vld [vmem:[%s213 + $0xf0] sm:$0xff]
        %v337 = vld [vmem:[%s213 + $0xf8] sm:$0xff]
        %v370 = vunpack.c.l.b16 %v306
        %v371 = vunpack.c.h.b16 %v306
        %v372 = vunpack.c.l.b16 %v307
        %v373 = vunpack.c.h.b16 %v307
        %v374 = vunpack.c.l.b16 %v308
        %v375 = vunpack.c.h.b16 %v308
        %v376 = vunpack.c.l.b16 %v309
        %v377 = vunpack.c.h.b16 %v309
        %v378 = vunpack.c.l.b16 %v310
        %v379 = vunpack.c.h.b16 %v310
        %v380 = vunpack.c.l.b16 %v311
        %v381 = vunpack.c.h.b16 %v311
        %v382 = vunpack.c.l.b16 %v312
        %v383 = vunpack.c.h.b16 %v312
        %v384 = vunpack.c.l.b16 %v313
        %v385 = vunpack.c.h.b16 %v313
        %v386 = vunpack.c.l.b16 %v314
        %v387 = vunpack.c.h.b16 %v314
        %v388 = vunpack.c.l.b16 %v315
        %v389 = vunpack.c.h.b16 %v315
        %v390 = vunpack.c.l.b16 %v316
        %v391 = vunpack.c.h.b16 %v316
        %v392 = vunpack.c.l.b16 %v317
        %v393 = vunpack.c.h.b16 %v317
        %v394 = vunpack.c.l.b16 %v318
        %v395 = vunpack.c.h.b16 %v318
        %v396 = vunpack.c.l.b16 %v319
        %v397 = vunpack.c.h.b16 %v319
        %v398 = vunpack.c.l.b16 %v320
        %v399 = vunpack.c.h.b16 %v320
        %v400 = vunpack.c.l.b16 %v321
        %v401 = vunpack.c.h.b16 %v321
        %v402 = vunpack.c.l.b16 %v322
        %v403 = vunpack.c.h.b16 %v322
        %v404 = vunpack.c.l.b16 %v323
        %v405 = vunpack.c.h.b16 %v323
        %v406 = vunpack.c.l.b16 %v324
        %v407 = vunpack.c.h.b16 %v324
        %v408 = vunpack.c.l.b16 %v325
        %v409 = vunpack.c.h.b16 %v325
        %v410 = vunpack.c.l.b16 %v326
        %v411 = vunpack.c.h.b16 %v326
        %v412 = vunpack.c.l.b16 %v327
        %v413 = vunpack.c.h.b16 %v327
        %v414 = vunpack.c.l.b16 %v328
        %v415 = vunpack.c.h.b16 %v328
        %v416 = vunpack.c.l.b16 %v329
        %v417 = vunpack.c.h.b16 %v329
        %v418 = vunpack.c.l.b16 %v330
        %v419 = vunpack.c.h.b16 %v330
        %v420 = vunpack.c.l.b16 %v331
        %v421 = vunpack.c.h.b16 %v331
        %v422 = vunpack.c.l.b16 %v332
        %v423 = vunpack.c.h.b16 %v332
        %v424 = vunpack.c.l.b16 %v333
        %v425 = vunpack.c.h.b16 %v333
        %v426 = vunpack.c.l.b16 %v334
        %v427 = vunpack.c.h.b16 %v334
        %v428 = vunpack.c.l.b16 %v335
        %v429 = vunpack.c.h.b16 %v335
        %v430 = vunpack.c.l.b16 %v336
        %v431 = vunpack.c.h.b16 %v336
        %v432 = vunpack.c.l.b16 %v337
        %v433 = vunpack.c.h.b16 %v337
        %v434 = vpack.c.b16 %v372, %v370
        %v435 = vpack.c.b16 %v373, %v371
        %v436 = vpack.c.b16 %v376, %v374
        %v437 = vpack.c.b16 %v377, %v375
        %v438 = vpack.c.b16 %v380, %v378
        %v439 = vpack.c.b16 %v381, %v379
        %v440 = vpack.c.b16 %v384, %v382
        %v441 = vpack.c.b16 %v385, %v383
        %v442 = vpack.c.b16 %v388, %v386
        %v443 = vpack.c.b16 %v389, %v387
        %v444 = vpack.c.b16 %v392, %v390
        %v445 = vpack.c.b16 %v393, %v391
        %v446 = vpack.c.b16 %v396, %v394
        %v447 = vpack.c.b16 %v397, %v395
        %v448 = vpack.c.b16 %v400, %v398
        %v449 = vpack.c.b16 %v401, %v399
        %v450 = vpack.c.b16 %v404, %v402
        %v451 = vpack.c.b16 %v405, %v403
        %v452 = vpack.c.b16 %v408, %v406
        %v453 = vpack.c.b16 %v409, %v407
        %v454 = vpack.c.b16 %v412, %v410
        %v455 = vpack.c.b16 %v413, %v411
        %v456 = vpack.c.b16 %v416, %v414
        %v457 = vpack.c.b16 %v417, %v415
        %v458 = vpack.c.b16 %v420, %v418
        %v459 = vpack.c.b16 %v421, %v419
        %v460 = vpack.c.b16 %v424, %v422
        %v461 = vpack.c.b16 %v425, %v423
        %v462 = vpack.c.b16 %v428, %v426
        %v463 = vpack.c.b16 %v429, %v427
        %v464 = vpack.c.b16 %v432, %v430
        %v465 = vpack.c.b16 %v433, %v431
        %498 = vmatpush.bf16.msra.mxu0 %v448
        %499 = vmatpush.bf16.msra.mxu0 %v446
        %500 = vmatpush.bf16.msra.mxu0 %v444
        %501 = vmatpush.bf16.msra.mxu0 %v442
        %502 = vmatpush.bf16.msra.mxu0 %v440
        %503 = vmatpush.bf16.msra.mxu0 %v438
        %504 = vmatpush.bf16.msra.mxu0 %v436
        %505 = vmatpush.bf16.msra.mxu0 %v434
        %506 = vmatmul.bf16.gmra.mxu0 %v304
        %v507 = vpop.f32.mrf.mxu0
        %v508 = vadd.f32 0.0, %v507
        %v509 = vpop.f32.mrf.mxu0
        %510 = vdwg.mxu0
        %511 = vmatpush.bf16.msra.mxu0 %v464
        %512 = vmatpush.bf16.msra.mxu0 %v462
        %513 = vmatpush.bf16.msra.mxu0 %v460
        %514 = vmatpush.bf16.msra.mxu0 %v458
        %515 = vmatpush.bf16.msra.mxu0 %v456
        %516 = vmatpush.bf16.msra.mxu0 %v454
        %517 = vmatpush.bf16.msra.mxu0 %v452
        %518 = vmatpush.bf16.msra.mxu0 %v450
        %519 = vmatmul.bf16.gmra.mxu0 %v305
        %v520 = vpop.f32.mrf.mxu0
        %v521 = vadd.f32 %v508, %v520
        %v522 = vpop.f32.mrf.mxu0
        %523 = vdwg.mxu0
        %524 = vmatpush.bf16.msra.mxu0 %v449
        %525 = vmatpush.bf16.msra.mxu0 %v447
        %526 = vmatpush.bf16.msra.mxu0 %v445
        %527 = vmatpush.bf16.msra.mxu0 %v443
        %528 = vmatpush.bf16.msra.mxu0 %v441
        %529 = vmatpush.bf16.msra.mxu0 %v439
        %530 = vmatpush.bf16.msra.mxu0 %v437
        %531 = vmatpush.bf16.msra.mxu0 %v435
        %532 = vmatmul.bf16.gmra.mxu0 %v304
        %v533 = vpop.f32.mrf.mxu0
        %v534 = vadd.f32 0.0, %v533
        %v535 = vpop.f32.mrf.mxu0
        %536 = vdwg.mxu0
        %537 = vmatpush.bf16.msra.mxu0 %v465
        %538 = vmatpush.bf16.msra.mxu0 %v463
        %539 = vmatpush.bf16.msra.mxu0 %v461
        %540 = vmatpush.bf16.msra.mxu0 %v459
        %541 = vmatpush.bf16.msra.mxu0 %v457
        %542 = vmatpush.bf16.msra.mxu0 %v455
        %543 = vmatpush.bf16.msra.mxu0 %v453
        %544 = vmatpush.bf16.msra.mxu0 %v451
        %545 = vmatmul.bf16.gmra.mxu0 %v305
        %v546 = vpop.f32.mrf.mxu0
        %v547 = vadd.f32 %v534, %v546
        %v548 = vpop.f32.mrf.mxu0
        %549 = vdwg.mxu0
        %v552 = vrot.slane %v547, 6
        %v553 = vsel %vm259, %v521, %v552
        %555 = vst [vmem:[%s236] sm:$0xf] %v553
        %v556 = vlaneseq
        %v557 = vand.u32 %v556, 127
        %v558 = vadd.s32 %v557, 128
        %s559 = smul.u32 %s24, 256
        %v560 = vstv %s559
        %v561 = vadd.s32 %v557, %v560
        %v562 = vadd.s32 %v558, %v560
        %vm563 = vcmp.lt.s32.totalorder %v561, 512
        %vm564 = vcmp.lt.s32.totalorder %v562, 512
        %v565 = vsel %vm563, %v521, -inf
        %v566 = vsel %vm564, %v547, -inf
        %v567 = vsel %vm259, %v565, -inf
        %v568 = vsel %vm259, %v566, -inf
        %v569 = vmax.f32 %v567, %v568
        %570 = vmax.xlane.f32.xlu0 %v569
        %v571 = vpop.xlane.xlu0 %570
        %vm572 = vcmp.eq.f32.partialorder %v565, %v571
        %vm573 = vcmp.eq.f32.partialorder %v566, %v571
        %v574 = vsel %vm572, %v561, 1073741824
        %v575 = vsel %vm573, %v562, 1073741824
        %v576 = vsel %vm259, %v574, 2147483647
        %v577 = vsel %vm259, %v575, 2147483647
        %vm578 = vcmp.lt.s32.totalorder %v576, %v577
        %v579 = vsel %vm578, %v576, %v577
        %v580 = vand.u32 %v579, 65535
        %v581 = vshra.s32 %v579, 16
        %v582 = vcvt.s32.f32 %v580
        %v583 = vcvt.s32.f32 %v581
        %584 = vmin.xlane.f32.xlu0 %v583
        %v585 = vpop.xlane.xlu0 %584
        %vm586 = vcmp.eq.f32.partialorder %v583, %v585
        %v587 = vsel %vm586, %v582, inf
        %588 = vmin.xlane.f32.xlu0 %v587
        %v589 = vpop.xlane.xlu0 %588
        %v590 = vcvt.f32.s32 %v589
        %v591 = vcvt.f32.s32 %v585
        %v592 = vshll.u32 %v591, 16
        %v593 = vadd.s32 %v592, %v590
        %v594 = vld [vmem:[#allocation6] sm:$0x3]
        %vm595 = vcmp.gt.f32.partialorder %v571, %v594
        %v596 = vsel %vm595, %v571, %v594
        %vm597 = vcmask 1024
        %598 = vst.msk [vmem:[#allocation6] sm:$0x3] %vm597, %v596
        %v599 = vld [vmem:[%s4] sm:$0x3]
        %v600 = vsel %vm595, %v593, %v599
        %601 = vst.msk [vmem:[%s4] sm:$0x3] %vm597, %v600
        %s602 = sand.u32 %s100, 1
        %s603 = scalar_lea.sflag [#allocation4], %s602
        %s604 = sand.u32 %s100, 1
        %s605 = smul.addr %s604, 4
        %s606 = scalar_lea.vmem [#allocation5], %s605
        // Predicated region
        $region41: #{infer_model_single_forward.3} parent=31 // pred_check
          %p607 = pneg %p110
        $region42: #{infer_model_single_forward.3} parent=31 // pred_check_branch
          %609 = sbr.rel (%p607) target = $region44
        $region43: #{infer_model_single_forward.3} parent=31 // pred_region
          %s610 = smul.u32 2, %s24
          %612 = vsyncadd %s603, 0
          %s613 = smul.addr %s610, 2
          %s614 = scalar_lea.hbm %s3, %s613
          %s616 = sshll.u32 %s606, 4
          %s617 = int_to_ptr.vmem [resolvable:$true] %s616
          %s618 = sshll.u32 %s614, 4
          %s619 = int_to_ptr.hbm [resolvable:$true] %s618
          %621 = dma.vmem_to_hbm [thread:$0]  %s617, 64, %s619, %s603
        $region44: #{infer_model_single_forward.3} parent=31 // pred_fallthru
          _
        // Predicated region
        $region45: #{infer_model_single_forward.3} parent=31 // pred_check
          %p622 = pneg %p131
        $region46: #{infer_model_single_forward.3} parent=31 // pred_check_branch
          %624 = sbr.rel (%p622) target = $region48
        $region47: #{infer_model_single_forward.3} parent=31 // pred_region
          _
        $region48: #{infer_model_single_forward.3} parent=31 // pred_fallthru
          _
        // Predicated region
        $region49: #{infer_model_single_forward.3} parent=31 // pred_check
          %p625 = pneg %p152
        $region50: #{infer_model_single_forward.3} parent=31 // pred_check_branch
          %627 = sbr.rel (%p625) target = $region52
        $region51: #{infer_model_single_forward.3} parent=31 // pred_region
          %629 = vsyncadd [#allocation7], 0
          %s631 = sshll.u32 [#allocation6], 4
          %s632 = int_to_ptr.vmem [resolvable:$true] %s631
          %s633 = sshll.u32 %s5, 4
          %s634 = int_to_ptr.hbm [resolvable:$true] %s633
          %636 = dma.vmem_to_hbm [thread:$0]  %s632, 32, %s634, [#allocation7]
        $region52: #{infer_model_single_forward.3} parent=31 // pred_fallthru
          _
        // Predicated region
        $region53: #{infer_model_single_forward.3} parent=31 // pred_check
          %p637 = pneg %p131
        $region54: #{infer_model_single_forward.3} parent=31 // pred_check_branch
          %639 = sbr.rel (%p637) target = $region56
        $region55: #{infer_model_single_forward.3} parent=31 // pred_region
          _
        $region56: #{infer_model_single_forward.3} parent=31 // pred_fallthru
          _
        // Predicated region
        $region57: #{infer_model_single_forward.3} parent=31 // pred_check
          %p640 = pneg %p152
        $region58: #{infer_model_single_forward.3} parent=31 // pred_check_branch
          %642 = sbr.rel (%p640) target = $region60
        $region59: #{infer_model_single_forward.3} parent=31 // pred_region
          %644 = dma.done [#allocation7], 32
        $region60: #{infer_model_single_forward.3} parent=31 // pred_fallthru
          _
      $region32: #{infer_model_single_forward.3} parent=5 // pred_fallthru
        _
      %p645 = scmp.le.s32.totalorder 2, %s19
      // Predicated region
      $region61: #{infer_model_single_forward.3} parent=5 // pred_check
        %p646 = pneg %p645
      $region62: #{infer_model_single_forward.3} parent=5 // pred_check_branch
        %648 = sbr.rel (%p646) target = $region64
      $region63: #{infer_model_single_forward.3} parent=5 // pred_region
        %s649 = ssub.s32 %s19, 2
        // Predicated region
        $region65: #{infer_model_single_forward.3} parent=63 // pred_check
          %p650 = pneg %p116
        $region66: #{infer_model_single_forward.3} parent=63 // pred_check_branch
          %652 = sbr.rel (%p650) target = $region68
        $region67: #{infer_model_single_forward.3} parent=63 // pred_region
          %s653 = sand.u32 %s101, 1
          %s654 = scalar_lea.sflag [#allocation4], %s653
          %s655 = sand.u32 %s101, 1
          %s656 = smul.addr %s655, 4
          %s657 = scalar_lea.vmem [#allocation5], %s656
          %659 = dma.done %s654, 64
        $region68: #{infer_model_single_forward.3} parent=63 // pred_fallthru
          _
      $region64: #{infer_model_single_forward.3} parent=5 // pred_fallthru
        _
    $region6: #{infer_model_single_forward.3} parent=1 // loop_footer
      %s23 = sadd.s32 1, %s19
    $region7: #{infer_model_single_forward.3} parent=1 // loop_footer_branch
      %18 = sbr.rel target = $region3
    $region8: #{infer_model_single_forward.3} parent=1 // loop_exit
      _
    %660 = vsyncpa [#allocation3], 1
    %s661 = scalar_lea.sflag [#allocation3], 1
    %662 = vsyncpa %s661, 1
    %663 = vsyncpa [#allocation4], 1
    %s664 = scalar_lea.sflag [#allocation4], 1
    %665 = vsyncpa %s664, 1
    %666 = vsyncpa [#allocation7], 1

// kernel: infer_model_single_forward.2
$region0: #{infer_model_single_forward.2}
  #allocation0 [shape = 'u32[]', space=smem, size = 0x4, offset = 0x4, fixed_abs, tag = 'smem constant byte address 0x4 - core index']
  #allocation1 [shape = 'u32[72,128]{1,0:T(1,128)}', space=vmem, size = 0x9000, scoped, tag = 'internal scratch']
  %s0 = inlined_call_operand.hbm [shape: f32[2,128,256], index: 0, kind: input, shape index: {}]
  %s1 = inlined_call_operand.hbm [shape: f32[1,256], index: 1, kind: input, shape index: {}]
  %s2 = inlined_call_operand.vmem [shape: f32[1,256], index: 2, kind: input, shape index: {}]
  %s3 = inlined_call_operand.hbm [shape: bf16[256,768], index: 3, kind: input, shape index: {}]
  %s4 = inlined_call_operand.hbm [shape: f32[128,128], index: 4, kind: input, shape index: {}]
  %s5 = inlined_call_operand.hbm [shape: f32[128,128], index: 5, kind: input, shape index: {}]
  %s6 = inlined_call_operand.hbm [shape: bf16[256,256], index: 6, kind: input, shape index: {}]
  %s7 = inlined_call_operand.hbm [shape: bf16[256,1024], index: 7, kind: input, shape index: {}]
  %s8 = inlined_call_operand.hbm [shape: bf16[512,256], index: 8, kind: input, shape index: {}]
  %s9 = inlined_call_operand.vmem [shape: f32[2,128,256], index: 9, kind: output, shape index: {}]
  %s10 = sld [smem:[#allocation0]]
  $region101: #{infer_model_single_forward.2} parent=0
    _
  %s12 = ssub.s32 1, %s10
  %s13 = scalar_select 0, %s12, %s10
  $region1: #{infer_model_single_forward.2} parent=0
    #allocation2 [shape = 'u8[262144]{0}', space=vmem, size = 0x40000, scoped, tag = 'input window, operand 0']
    #allocation3 [shape = 's32[2]{0}', space=sflag, size = 0x8, scoped, tag = 'scoped memory for infer_model_single_forward.2']
    #allocation4 [shape = 'u8[1024]{0}', space=vmem, size = 0x400, scoped, tag = 'input window, operand 1, single buffered']
    #allocation5 [shape = 's32[1]{0}', space=sflag, size = 0x4, scoped, tag = 'scoped memory for infer_model_single_forward.2']
    #allocation6 [shape = 'u8[393216]{0}', space=vmem, size = 0x60000, scoped, tag = 'input window, operand 3, single buffered']
    #allocation7 [shape = 'u8[65536]{0}', space=vmem, size = 0x10000, scoped, tag = 'input window, operand 4, single buffered']
    #allocation8 [shape = 's32[1]{0}', space=sflag, size = 0x4, scoped, tag = 'scoped memory for infer_model_single_forward.2']
    #allocation9 [shape = 'u8[65536]{0}', space=vmem, size = 0x10000, scoped, tag = 'input window, operand 5, single buffered']
    #allocation10 [shape = 'u8[131072]{0}', space=vmem, size = 0x20000, scoped, tag = 'input window, operand 6, single buffered']
    #allocation11 [shape = 's32[1]{0}', space=sflag, size = 0x4, scoped, tag = 'scoped memory for infer_model_single_forward.2']
    #allocation12 [shape = 'u8[524288]{0}', space=vmem, size = 0x80000, scoped, tag = 'input window, operand 7, single buffered']
    #allocation13 [shape = 'u8[262144]{0}', space=vmem, size = 0x40000, scoped, tag = 'input window, operand 8, single buffered']
    #allocation14 [shape = 's32[1]{0}', space=sflag, size = 0x4, scoped, tag = 'scoped memory for infer_model_single_forward.2']
    %14 = vsyncpa [#allocation3], 0
    %s15 = scalar_lea.sflag [#allocation3], 1
    %16 = vsyncpa %s15, 0
    %17 = vsyncpa [#allocation5], 0
    %18 = vsyncpa [#allocation8], 0
    %19 = vsyncpa [#allocation11], 0
    %20 = vsyncpa [#allocation14], 0
    loop: start=0, step=1, limit=4
    $region2: #{infer_model_single_forward.2} parent=1 // loop_pre_header
      _
    $region3: #{infer_model_single_forward.2} parent=1 // loop_header
      %s22 = sphi 0, %s26
      %p23 = scmp.ge.s32.totalorder %s22, 4
      %s32 = sphi 0, %s34
      %s35 = sphi 0, %s32
      %s36 = sphi 0, %s35
      %s52 = sphi 0, %s36
      %s56 = sphi 0, %s56
      %s58 = sphi 0, %s56
      %s59 = sphi 0, %s58
      %s73 = sphi 0, %s59
      %s77 = sphi 0, %s77
      %s79 = sphi 0, %s77
      %s80 = sphi 0, %s79
      %s94 = sphi 0, %s80
      %s98 = sphi 0, %s98
      %s100 = sphi 0, %s98
      %s101 = sphi 0, %s100
      %s115 = sphi 0, %s101
      %s119 = sphi 0, %s119
      %s121 = sphi 0, %s119
      %s122 = sphi 0, %s121
      %s136 = sphi 0, %s122
      %s140 = sphi 0, %s140
      %s142 = sphi 0, %s140
      %s143 = sphi 0, %s142
      %s157 = sphi 0, %s143
      %s161 = sphi 0, %s161
      %s163 = sphi 0, %s161
      %s164 = sphi 0, %s163
      %s178 = sphi 0, %s164
      %s182 = sphi 0, %s182
      %s184 = sphi 0, %s182
      %s185 = sphi 0, %s184
      %s199 = sphi 0, %s185
      %s203 = sphi 0, %s203
      %s205 = sphi 0, %s203
      %s206 = sphi 0, %s205
      %s220 = sphi 0, %s206
      %s226 = sphi 0, %s228
      %s229 = sphi 0, %s226
      %s230 = sphi 0, %s229
      %s246 = sphi 0, %s230
    $region4: #{infer_model_single_forward.2} parent=1 // loop_header_branch
      %25 = sbr.rel (%p23) target = $region8
    $region5: #{infer_model_single_forward.2} parent=1 // loop_body
      %s27 = ssub.s32 %s22, 1
      %s28 = ssub.s32 %s22, 2
      %s29 = sadd.s32 %s22, 1
      %s30 = ssub.s32 %s22, %s29
      %p31 = scmp.eq.s32.totalorder %s30, 0
      %s33 = sadd.s32 %s32, 1
      %s34 = scalar_select %p31, %s32, %s33
      %p37 = pneg %p31
      %p38 = scmp.eq.s32.totalorder %s22, 1
      %p39 = por %p37, %p38
      %p40 = scmp.ne.s32.totalorder %s32, %s35
      %p41 = scmp.eq.s32.totalorder %s22, 0
      %p42 = por %p40, %p41
      %p43 = scmp.ne.s32.totalorder %s32, %s35
      %p44 = scmp.eq.s32.totalorder %s27, 1
      %p45 = por %p43, %p44
      %p46 = scmp.ne.s32.totalorder %s35, %s36
      %p47 = scmp.eq.s32.totalorder %s27, 0
      %p48 = por %p46, %p47
      %p49 = scmp.ne.s32.totalorder %s35, %s36
      %p50 = scmp.eq.s32.totalorder %s28, 1
      %p51 = por %p49, %p50
      %p53 = scmp.ne.s32.totalorder %s36, %s52
      %p54 = scmp.eq.s32.totalorder %s28, 0
      %p55 = por %p53, %p54
      %s57 = sadd.s32 %s56, 1
      %p60 = scmp.eq.s32.totalorder %s22, 1
      %p61 = scmp.ne.s32.totalorder %s56, %s58
      %p62 = scmp.eq.s32.totalorder %s22, 0
      %p63 = por %p61, %p62
      %p64 = scmp.ne.s32.totalorder %s56, %s58
      %p65 = scmp.eq.s32.totalorder %s27, 1
      %p66 = por %p64, %p65
      %p67 = scmp.ne.s32.totalorder %s58, %s59
      %p68 = scmp.eq.s32.totalorder %s27, 0
      %p69 = por %p67, %p68
      %p70 = scmp.ne.s32.totalorder %s58, %s59
      %p71 = scmp.eq.s32.totalorder %s28, 1
      %p72 = por %p70, %p71
      %p74 = scmp.ne.s32.totalorder %s59, %s73
      %p75 = scmp.eq.s32.totalorder %s28, 0
      %p76 = por %p74, %p75
      %s78 = sadd.s32 %s77, 1
      %p81 = scmp.eq.s32.totalorder %s22, 1
      %p82 = scmp.ne.s32.totalorder %s77, %s79
      %p83 = scmp.eq.s32.totalorder %s22, 0
      %p84 = por %p82, %p83
      %p85 = scmp.ne.s32.totalorder %s77, %s79
      %p86 = scmp.eq.s32.totalorder %s27, 1
      %p87 = por %p85, %p86
      %p88 = scmp.ne.s32.totalorder %s79, %s80
      %p89 = scmp.eq.s32.totalorder %s27, 0
      %p90 = por %p88, %p89
      %p91 = scmp.ne.s32.totalorder %s79, %s80
      %p92 = scmp.eq.s32.totalorder %s28, 1
      %p93 = por %p91, %p92
      %p95 = scmp.ne.s32.totalorder %s80, %s94
      %p96 = scmp.eq.s32.totalorder %s28, 0
      %p97 = por %p95, %p96
      %s99 = sadd.s32 %s98, 1
      %p102 = scmp.eq.s32.totalorder %s22, 1
      %p103 = scmp.ne.s32.totalorder %s98, %s100
      %p104 = scmp.eq.s32.totalorder %s22, 0
      %p105 = por %p103, %p104
      %p106 = scmp.ne.s32.totalorder %s98, %s100
      %p107 = scmp.eq.s32.totalorder %s27, 1
      %p108 = por %p106, %p107
      %p109 = scmp.ne.s32.totalorder %s100, %s101
      %p110 = scmp.eq.s32.totalorder %s27, 0
      %p111 = por %p109, %p110
      %p112 = scmp.ne.s32.totalorder %s100, %s101
      %p113 = scmp.eq.s32.totalorder %s28, 1
      %p114 = por %p112, %p113
      %p116 = scmp.ne.s32.totalorder %s101, %s115
      %p117 = scmp.eq.s32.totalorder %s28, 0
      %p118 = por %p116, %p117
      %s120 = sadd.s32 %s119, 1
      %p123 = scmp.eq.s32.totalorder %s22, 1
      %p124 = scmp.ne.s32.totalorder %s119, %s121
      %p125 = scmp.eq.s32.totalorder %s22, 0
      %p126 = por %p124, %p125
      %p127 = scmp.ne.s32.totalorder %s119, %s121
      %p128 = scmp.eq.s32.totalorder %s27, 1
      %p129 = por %p127, %p128
      %p130 = scmp.ne.s32.totalorder %s121, %s122
      %p131 = scmp.eq.s32.totalorder %s27, 0
      %p132 = por %p130, %p131
      %p133 = scmp.ne.s32.totalorder %s121, %s122
      %p134 = scmp.eq.s32.totalorder %s28, 1
      %p135 = por %p133, %p134
      %p137 = scmp.ne.s32.totalorder %s122, %s136
      %p138 = scmp.eq.s32.totalorder %s28, 0
      %p139 = por %p137, %p138
      %s141 = sadd.s32 %s140, 1
      %p144 = scmp.eq.s32.totalorder %s22, 1
      %p145 = scmp.ne.s32.totalorder %s140, %s142
      %p146 = scmp.eq.s32.totalorder %s22, 0
      %p147 = por %p145, %p146
      %p148 = scmp.ne.s32.totalorder %s140, %s142
      %p149 = scmp.eq.s32.totalorder %s27, 1
      %p150 = por %p148, %p149
      %p151 = scmp.ne.s32.totalorder %s142, %s143
      %p152 = scmp.eq.s32.totalorder %s27, 0
      %p153 = por %p151, %p152
      %p154 = scmp.ne.s32.totalorder %s142, %s143
      %p155 = scmp.eq.s32.totalorder %s28, 1
      %p156 = por %p154, %p155
      %p158 = scmp.ne.s32.totalorder %s143, %s157
      %p159 = scmp.eq.s32.totalorder %s28, 0
      %p160 = por %p158, %p159
      %s162 = sadd.s32 %s161, 1
      %p165 = scmp.eq.s32.totalorder %s22, 1
      %p166 = scmp.ne.s32.totalorder %s161, %s163
      %p167 = scmp.eq.s32.totalorder %s22, 0
      %p168 = por %p166, %p167
      %p169 = scmp.ne.s32.totalorder %s161, %s163
      %p170 = scmp.eq.s32.totalorder %s27, 1
      %p171 = por %p169, %p170
      %p172 = scmp.ne.s32.totalorder %s163, %s164
      %p173 = scmp.eq.s32.totalorder %s27, 0
      %p174 = por %p172, %p173
      %p175 = scmp.ne.s32.totalorder %s163, %s164
      %p176 = scmp.eq.s32.totalorder %s28, 1
      %p177 = por %p175, %p176
      %p179 = scmp.ne.s32.totalorder %s164, %s178
      %p180 = scmp.eq.s32.totalorder %s28, 0
      %p181 = por %p179, %p180
      %s183 = sadd.s32 %s182, 1
      %p186 = scmp.eq.s32.totalorder %s22, 1
      %p187 = scmp.ne.s32.totalorder %s182, %s184
      %p188 = scmp.eq.s32.totalorder %s22, 0
      %p189 = por %p187, %p188
      %p190 = scmp.ne.s32.totalorder %s182, %s184
      %p191 = scmp.eq.s32.totalorder %s27, 1
      %p192 = por %p190, %p191
      %p193 = scmp.ne.s32.totalorder %s184, %s185
      %p194 = scmp.eq.s32.totalorder %s27, 0
      %p195 = por %p193, %p194
      %p196 = scmp.ne.s32.totalorder %s184, %s185
      %p197 = scmp.eq.s32.totalorder %s28, 1
      %p198 = por %p196, %p197
      %p200 = scmp.ne.s32.totalorder %s185, %s199
      %p201 = scmp.eq.s32.totalorder %s28, 0
      %p202 = por %p200, %p201
      %s204 = sadd.s32 %s203, 1
      %p207 = scmp.eq.s32.totalorder %s22, 1
      %p208 = scmp.ne.s32.totalorder %s203, %s205
      %p209 = scmp.eq.s32.totalorder %s22, 0
      %p210 = por %p208, %p209
      %p211 = scmp.ne.s32.totalorder %s203, %s205
      %p212 = scmp.eq.s32.totalorder %s27, 1
      %p213 = por %p211, %p212
      %p214 = scmp.ne.s32.totalorder %s205, %s206
      %p215 = scmp.eq.s32.totalorder %s27, 0
      %p216 = por %p214, %p215
      %p217 = scmp.ne.s32.totalorder %s205, %s206
      %p218 = scmp.eq.s32.totalorder %s28, 1
      %p219 = por %p217, %p218
      %p221 = scmp.ne.s32.totalorder %s206, %s220
      %p222 = scmp.eq.s32.totalorder %s28, 0
      %p223 = por %p221, %p222
      %s224 = ssub.s32 %s22, %s29
      %p225 = scmp.eq.s32.totalorder %s224, 0
      %s227 = sadd.s32 %s226, 1
      %s228 = scalar_select %p225, %s226, %s227
      %p231 = pneg %p225
      %p232 = scmp.eq.s32.totalorder %s22, 1
      %p233 = por %p231, %p232
      %p234 = scmp.ne.s32.totalorder %s226, %s229
      %p235 = scmp.eq.s32.totalorder %s22, 0
      %p236 = por %p234, %p235
      %p237 = scmp.ne.s32.totalorder %s226, %s229
      %p238 = scmp.eq.s32.totalorder %s27, 1
      %p239 = por %p237, %p238
      %p240 = scmp.ne.s32.totalorder %s229, %s230
      %p241 = scmp.eq.s32.totalorder %s27, 0
      %p242 = por %p240, %p241
      %p243 = scmp.ne.s32.totalorder %s229, %s230
      %p244 = scmp.eq.s32.totalorder %s28, 1
      %p245 = por %p243, %p244
      %p247 = scmp.ne.s32.totalorder %s230, %s246
      %p248 = scmp.eq.s32.totalorder %s28, 0
      %p249 = por %p247, %p248
      %p250 = scmp.le.s32.totalorder 1, %s22
      %p251 = scmp.lt.s32.totalorder %s22, 3
      %p252 = pnand %p250, %p251
      %p253 = pneg %p252
      // Predicated region
      $region9: #{infer_model_single_forward.2} parent=5 // pred_check
        _
      $region10: #{infer_model_single_forward.2} parent=5 // pred_check_branch
        %255 = sbr.rel (%p252) target = $region12
      $region11: #{infer_model_single_forward.2} parent=5 // pred_region
        %s256 = ssub.s32 %s22, 1
        // Predicated region
        $region13: #{infer_model_single_forward.2} parent=11 // pred_check
          %p257 = pneg %p69
        $region14: #{infer_model_single_forward.2} parent=11 // pred_check_branch
          %259 = sbr.rel (%p257) target = $region16
        $region15: #{infer_model_single_forward.2} parent=11 // pred_region
          %261 = vsyncadd [#allocation5], 0
          %s263 = sshll.u32 %s1, 4
          %s264 = int_to_ptr.hbm [resolvable:$true] %s263
          %s265 = sshll.u32 [#allocation4], 4
          %s266 = int_to_ptr.vmem [resolvable:$true] %s265
          %268 = dma.hbm_to_vmem [thread:$0]  %s264, 32, %s266, [#allocation5]
        $region16: #{infer_model_single_forward.2} parent=11 // pred_fallthru
          _
        // Predicated region
        $region17: #{infer_model_single_forward.2} parent=11 // pred_check
          %p269 = pneg %p90
        $region18: #{infer_model_single_forward.2} parent=11 // pred_check_branch
          %271 = sbr.rel (%p269) target = $region20
        $region19: #{infer_model_single_forward.2} parent=11 // pred_region
          _
        $region20: #{infer_model_single_forward.2} parent=11 // pred_fallthru
          _
        // Predicated region
        $region21: #{infer_model_single_forward.2} parent=11 // pred_check
          %p272 = pneg %p111
        $region22: #{infer_model_single_forward.2} parent=11 // pred_check_branch
          %274 = sbr.rel (%p272) target = $region24
        $region23: #{infer_model_single_forward.2} parent=11 // pred_region
          %276 = vsyncadd [#allocation5], 0
          %s277 = sshll.u32 %s3, 4
          %s278 = int_to_ptr.hbm [resolvable:$true] %s277
          %s279 = sshll.u32 [#allocation6], 4
          %s280 = int_to_ptr.vmem [resolvable:$true] %s279
          %285 = dma.hbm_to_vmem [thread:$0]  %s278, 12288, %s280, [#allocation5], 384, 384, 24
        $region24: #{infer_model_single_forward.2} parent=11 // pred_fallthru
          _
        // Predicated region
        $region25: #{infer_model_single_forward.2} parent=11 // pred_check
          %p286 = pneg %p132
        $region26: #{infer_model_single_forward.2} parent=11 // pred_check_branch
          %288 = sbr.rel (%p286) target = $region28
        $region27: #{infer_model_single_forward.2} parent=11 // pred_region
          %290 = vsyncadd [#allocation8], 0
          %s291 = sshll.u32 %s4, 4
          %s292 = int_to_ptr.hbm [resolvable:$true] %s291
          %s293 = sshll.u32 [#allocation7], 4
          %s294 = int_to_ptr.vmem [resolvable:$true] %s293
          %299 = dma.hbm_to_vmem [thread:$0]  %s292, 2048, %s294, [#allocation8], 128, 128, 8
        $region28: #{infer_model_single_forward.2} parent=11 // pred_fallthru
          _
        // Predicated region
        $region29: #{infer_model_single_forward.2} parent=11 // pred_check
          %p300 = pneg %p153
        $region30: #{infer_model_single_forward.2} parent=11 // pred_check_branch
          %302 = sbr.rel (%p300) target = $region32
        $region31: #{infer_model_single_forward.2} parent=11 // pred_region
          %304 = vsyncadd [#allocation8], 0
          %s305 = sshll.u32 %s5, 4
          %s306 = int_to_ptr.hbm [resolvable:$true] %s305
          %s307 = sshll.u32 [#allocation9], 4
          %s308 = int_to_ptr.vmem [resolvable:$true] %s307
          %313 = dma.hbm_to_vmem [thread:$0]  %s306, 2048, %s308, [#allocation8], 128, 128, 8
        $region32: #{infer_model_single_forward.2} parent=11 // pred_fallthru
          _
        // Predicated region
        $region33: #{infer_model_single_forward.2} parent=11 // pred_check
          %p314 = pneg %p174
        $region34: #{infer_model_single_forward.2} parent=11 // pred_check_branch
          %316 = sbr.rel (%p314) target = $region36
        $region35: #{infer_model_single_forward.2} parent=11 // pred_region
          %318 = vsyncadd [#allocation11], 0
          %s319 = sshll.u32 %s6, 4
          %s320 = int_to_ptr.hbm [resolvable:$true] %s319
          %s321 = sshll.u32 [#allocation10], 4
          %s322 = int_to_ptr.vmem [resolvable:$true] %s321
          %327 = dma.hbm_to_vmem [thread:$0]  %s320, 4096, %s322, [#allocation11], 128, 128, 8
        $region36: #{infer_model_single_forward.2} parent=11 // pred_fallthru
          _
        // Predicated region
        $region37: #{infer_model_single_forward.2} parent=11 // pred_check
          %p328 = pneg %p195
        $region38: #{infer_model_single_forward.2} parent=11 // pred_check_branch
          %330 = sbr.rel (%p328) target = $region40
        $region39: #{infer_model_single_forward.2} parent=11 // pred_region
          %332 = vsyncadd [#allocation11], 0
          %s333 = sshll.u32 %s7, 4
          %s334 = int_to_ptr.hbm [resolvable:$true] %s333
          %s335 = sshll.u32 [#allocation12], 4
          %s336 = int_to_ptr.vmem [resolvable:$true] %s335
          %341 = dma.hbm_to_vmem [thread:$0]  %s334, 16384, %s336, [#allocation11], 512, 512, 32
        $region40: #{infer_model_single_forward.2} parent=11 // pred_fallthru
          _
        // Predicated region
        $region41: #{infer_model_single_forward.2} parent=11 // pred_check
          %p342 = pneg %p216
        $region42: #{infer_model_single_forward.2} parent=11 // pred_check_branch
          %344 = sbr.rel (%p342) target = $region44
        $region43: #{infer_model_single_forward.2} parent=11 // pred_region
          %346 = vsyncadd [#allocation14], 0
          %s347 = sshll.u32 %s8, 4
          %s348 = int_to_ptr.hbm [resolvable:$true] %s347
          %s349 = sshll.u32 [#allocation13], 4
          %s350 = int_to_ptr.vmem [resolvable:$true] %s349
          %355 = dma.hbm_to_vmem [thread:$0]  %s348, 8192, %s350, [#allocation14], 128, 128, 8
        $region44: #{infer_model_single_forward.2} parent=11 // pred_fallthru
          _
      $region12: #{infer_model_single_forward.2} parent=5 // pred_fallthru
        _
      %p356 = scmp.lt.s32.totalorder %s22, 2
      // Predicated region
      $region45: #{infer_model_single_forward.2} parent=5 // pred_check
        %p357 = pneg %p356
      $region46: #{infer_model_single_forward.2} parent=5 // pred_check_branch
        %359 = sbr.rel (%p357) target = $region48
      $region47: #{infer_model_single_forward.2} parent=5 // pred_region
        // Predicated region
        $region49: #{infer_model_single_forward.2} parent=47 // pred_check
          %p360 = pneg %p42
        $region50: #{infer_model_single_forward.2} parent=47 // pred_check_branch
          %362 = sbr.rel (%p360) target = $region52
        $region51: #{infer_model_single_forward.2} parent=47 // pred_region
          %s363 = sand.u32 %s32, 1
          %s364 = scalar_lea.sflag [#allocation3], %s363
          %s365 = sand.u32 %s32, 1
          %s366 = smul.addr %s365, 256
          %s367 = scalar_lea.vmem [#allocation2], %s366
          %369 = vsyncadd %s364, 0
          %s370 = smul.addr %s22, 32
          %s371 = smul.addr %s370, 8
          %s372 = scalar_lea.hbm %s0, %s371
          %s373 = sshll.u32 %s372, 4
          %s374 = int_to_ptr.hbm [resolvable:$true] %s373
          %s375 = sshll.u32 %s367, 4
          %s376 = int_to_ptr.vmem [resolvable:$true] %s375
          %381 = dma.hbm_to_vmem [thread:$0]  %s374, 4096, %s376, %s364, 256, 256, 16
        $region52: #{infer_model_single_forward.2} parent=47 // pred_fallthru
          _
      $region48: #{infer_model_single_forward.2} parent=5 // pred_fallthru
        _
      %p382 = scmp.le.s32.totalorder 1, %s22
      %p383 = scmp.lt.s32.totalorder %s22, 3
      %p384 = pnand %p382, %p383
      %p385 = pneg %p384
      // Predicated region
      $region53: #{infer_model_single_forward.2} parent=5 // pred_check
        _
      $region54: #{infer_model_single_forward.2} parent=5 // pred_check_branch
        %387 = sbr.rel (%p384) target = $region56
      $region55: #{infer_model_single_forward.2} parent=5 // pred_region
        %s388 = ssub.s32 %s22, 1
        %s389 = sand.u32 %s35, 1
        %s390 = scalar_lea.sflag [#allocation3], %s389
        %s391 = sand.u32 %s35, 1
        %s392 = smul.addr %s391, 256
        %s393 = scalar_lea.vmem [#allocation2], %s392
        // Predicated region
        $region57: #{infer_model_single_forward.2} parent=55 // pred_check
          %p394 = pneg %p48
        $region58: #{infer_model_single_forward.2} parent=55 // pred_check_branch
          %396 = sbr.rel (%p394) target = $region60
        $region59: #{infer_model_single_forward.2} parent=55 // pred_region
          %398 = dma.done %s390, 4096
        $region60: #{infer_model_single_forward.2} parent=55 // pred_fallthru
          _
        // Predicated region
        $region61: #{infer_model_single_forward.2} parent=55 // pred_check
          %p399 = pneg %p69
        $region62: #{infer_model_single_forward.2} parent=55 // pred_check_branch
          %401 = sbr.rel (%p399) target = $region64
        $region63: #{infer_model_single_forward.2} parent=55 // pred_region
          %403 = dma.done [#allocation5], 32
        $region64: #{infer_model_single_forward.2} parent=55 // pred_fallthru
          _
        // Predicated region
        $region65: #{infer_model_single_forward.2} parent=55 // pred_check
          %p404 = pneg %p111
        $region66: #{infer_model_single_forward.2} parent=55 // pred_check_branch
          %406 = sbr.rel (%p404) target = $region68
        $region67: #{infer_model_single_forward.2} parent=55 // pred_region
          %408 = dma.done [#allocation5], 12288
        $region68: #{infer_model_single_forward.2} parent=55 // pred_fallthru
          _
        // Predicated region
        $region69: #{infer_model_single_forward.2} parent=55 // pred_check
          %p409 = pneg %p132
        $region70: #{infer_model_single_forward.2} parent=55 // pred_check_branch
          %411 = sbr.rel (%p409) target = $region72
        $region71: #{infer_model_single_forward.2} parent=55 // pred_region
          %413 = dma.done [#allocation8], 2048
        $region72: #{infer_model_single_forward.2} parent=55 // pred_fallthru
          _
        // Predicated region
        $region73: #{infer_model_single_forward.2} parent=55 // pred_check
          %p414 = pneg %p153
        $region74: #{infer_model_single_forward.2} parent=55 // pred_check_branch
          %416 = sbr.rel (%p414) target = $region76
        $region75: #{infer_model_single_forward.2} parent=55 // pred_region
          %418 = dma.done [#allocation8], 2048
        $region76: #{infer_model_single_forward.2} parent=55 // pred_fallthru
          _
        // Predicated region
        $region77: #{infer_model_single_forward.2} parent=55 // pred_check
          %p419 = pneg %p174
        $region78: #{infer_model_single_forward.2} parent=55 // pred_check_branch
          %421 = sbr.rel (%p419) target = $region80
        $region79: #{infer_model_single_forward.2} parent=55 // pred_region
          %423 = dma.done [#allocation11], 4096
        $region80: #{infer_model_single_forward.2} parent=55 // pred_fallthru
          _
        // Predicated region
        $region81: #{infer_model_single_forward.2} parent=55 // pred_check
          %p424 = pneg %p195
        $region82: #{infer_model_single_forward.2} parent=55 // pred_check_branch
          %426 = sbr.rel (%p424) target = $region84
        $region83: #{infer_model_single_forward.2} parent=55 // pred_region
          %428 = dma.done [#allocation11], 16384
        $region84: #{infer_model_single_forward.2} parent=55 // pred_fallthru
          _
        // Predicated region
        $region85: #{infer_model_single_forward.2} parent=55 // pred_check
          %p429 = pneg %p216
        $region86: #{infer_model_single_forward.2} parent=55 // pred_check_branch
          %431 = sbr.rel (%p429) target = $region88
        $region87: #{infer_model_single_forward.2} parent=55 // pred_region
          %433 = dma.done [#allocation14], 8192
        $region88: #{infer_model_single_forward.2} parent=55 // pred_fallthru
          _
        %s434 = sand.u32 %s35, 1
        %s435 = scalar_lea.sflag [#allocation3], %s434
        %s436 = sand.u32 %s35, 1
        %s437 = smul.addr %s436, 256
        %s438 = scalar_lea.vmem [#allocation2], %s437
        %p439 = pneg %p48
        %p440 = pneg %p45
        %p441 = pneg %p69
        %p442 = pneg %p66
        %p443 = pneg %p90
        %p444 = pneg %p87
        %p445 = pneg %p111
        %p446 = pneg %p108
        %p447 = pneg %p132
        %p448 = pneg %p129
        %p449 = pneg %p153
        %p450 = pneg %p150
        %p451 = pneg %p174
        %p452 = pneg %p171
        %p453 = pneg %p195
        %p454 = pneg %p192
        %p455 = pneg %p216
        %p456 = pneg %p213
        %p457 = pneg %p242
        %p458 = pneg %p239
        %p459 = scmp.lt.s32.totalorder %s27, 1
        %s460 = scalar_select %p459, %s27, 1
        %s461 = smul.addr %s460, 32
        %s462 = smul.addr %s461, 8
        %s463 = scalar_lea.vmem %s9, %s462
        %p464 = scmp.lt.s32.totalorder %s27, 1
        %s465 = scalar_select %p464, %s27, 1
        %s466 = smul.addr %s465, 32
        %s467 = smul.addr %s466, 8
        %s468 = scalar_lea.vmem %s9, %s467
        %v469 = vld [vmem:[%s393] sm:$0xff]
        %v470 = vld [vmem:[%s393 + $0x8] sm:$0xff]
        %v471 = vld [vmem:[%s393 + $0x10] sm:$0xff]
        %v472 = vld [vmem:[%s393 + $0x18] sm:$0xff]
        %v473 = vld [vmem:[%s393 + $0x20] sm:$0xff]
        %v474 = vld [vmem:[%s393 + $0x28] sm:$0xff]
        %v475 = vld [vmem:[%s393 + $0x30] sm:$0xff]
        %v476 = vld [vmem:[%s393 + $0x38] sm:$0xff]
        %v477 = vld [vmem:[%s393 + $0x40] sm:$0xff]
        %v478 = vld [vmem:[%s393 + $0x48] sm:$0xff]
        %v479 = vld [vmem:[%s393 + $0x50] sm:$0xff]
        %v480 = vld [vmem:[%s393 + $0x58] sm:$0xff]
        %v481 = vld [vmem:[%s393 + $0x60] sm:$0xff]
        %v482 = vld [vmem:[%s393 + $0x68] sm:$0xff]
        %v483 = vld [vmem:[%s393 + $0x70] sm:$0xff]
        %v484 = vld [vmem:[%s393 + $0x78] sm:$0xff]
        %v485 = vld [vmem:[%s393 + $0x80] sm:$0xff]
        %v486 = vld [vmem:[%s393 + $0x88] sm:$0xff]
        %v487 = vld [vmem:[%s393 + $0x90] sm:$0xff]
        %v488 = vld [vmem:[%s393 + $0x98] sm:$0xff]
        %v489 = vld [vmem:[%s393 + $0xa0] sm:$0xff]
        %v490 = vld [vmem:[%s393 + $0xa8] sm:$0xff]
        %v491 = vld [vmem:[%s393 + $0xb0] sm:$0xff]
        %v492 = vld [vmem:[%s393 + $0xb8] sm:$0xff]
        %v493 = vld [vmem:[%s393 + $0xc0] sm:$0xff]
        %v494 = vld [vmem:[%s393 + $0xc8] sm:$0xff]
        %v495 = vld [vmem:[%s393 + $0xd0] sm:$0xff]
        %v496 = vld [vmem:[%s393 + $0xd8] sm:$0xff]
        %v497 = vld [vmem:[%s393 + $0xe0] sm:$0xff]
        %v498 = vld [vmem:[%s393 + $0xe8] sm:$0xff]
        %v499 = vld [vmem:[%s393 + $0xf0] sm:$0xff]
        %v500 = vld [vmem:[%s393 + $0xf8] sm:$0xff]
        %v501 = vld [vmem:[#allocation4] sm:$0x3]
        %v502 = vmul.f32 %v469, %v469
        %v503 = vmul.f32 %v470, %v470
        %v504 = vmul.f32 %v471, %v471
        %v505 = vmul.f32 %v472, %v472
        %v506 = vmul.f32 %v473, %v473
        %v507 = vmul.f32 %v474, %v474
        %v508 = vmul.f32 %v475, %v475
        %v509 = vmul.f32 %v476, %v476
        %v510 = vmul.f32 %v477, %v477
        %v511 = vmul.f32 %v478, %v478
        %v512 = vmul.f32 %v479, %v479
        %v513 = vmul.f32 %v480, %v480
        %v514 = vmul.f32 %v481, %v481
        %v515 = vmul.f32 %v482, %v482
        %v516 = vmul.f32 %v483, %v483
        %v517 = vmul.f32 %v484, %v484
        %v518 = vmul.f32 %v485, %v485
        %v519 = vmul.f32 %v486, %v486
        %v520 = vmul.f32 %v487, %v487
        %v521 = vmul.f32 %v488, %v488
        %v522 = vmul.f32 %v489, %v489
        %v523 = vmul.f32 %v490, %v490
        %v524 = vmul.f32 %v491, %v491
        %v525 = vmul.f32 %v492, %v492
        %v526 = vmul.f32 %v493, %v493
        %v527 = vmul.f32 %v494, %v494
        %v528 = vmul.f32 %v495, %v495
        %v529 = vmul.f32 %v496, %v496
        %v530 = vmul.f32 %v497, %v497
        %v531 = vmul.f32 %v498, %v498
        %v532 = vmul.f32 %v499, %v499
        %v533 = vmul.f32 %v500, %v500
        %v534 = vadd.f32 %v502, %v503
        %535 = vadd.xlane.f32.xlu0 %v534
        %v536 = vpop.xlane.xlu0 %535
        %v537 = vadd.f32 %v504, %v505
        %538 = vadd.xlane.f32.xlu0 %v537
        %v539 = vpop.xlane.xlu0 %538
        %v540 = vadd.f32 %v506, %v507
        %541 = vadd.xlane.f32.xlu0 %v540
        %v542 = vpop.xlane.xlu0 %541
        %v543 = vadd.f32 %v508, %v509
        %544 = vadd.xlane.f32.xlu0 %v543
        %v545 = vpop.xlane.xlu0 %544
        %v546 = vadd.f32 %v510, %v511
        %547 = vadd.xlane.f32.xlu0 %v546
        %v548 = vpop.xlane.xlu0 %547
        %v549 = vadd.f32 %v512, %v513
        %550 = vadd.xlane.f32.xlu0 %v549
        %v551 = vpop.xlane.xlu0 %550
        %v552 = vadd.f32 %v514, %v515
        %553 = vadd.xlane.f32.xlu0 %v552
        %v554 = vpop.xlane.xlu0 %553
        %v555 = vadd.f32 %v516, %v517
        %556 = vadd.xlane.f32.xlu0 %v555
        %v557 = vpop.xlane.xlu0 %556
        %v558 = vadd.f32 %v518, %v519
        %559 = vadd.xlane.f32.xlu0 %v558
        %v560 = vpop.xlane.xlu0 %559
        %v561 = vadd.f32 %v520, %v521
        %562 = vadd.xlane.f32.xlu0 %v561
        %v563 = vpop.xlane.xlu0 %562
        %v564 = vadd.f32 %v522, %v523
        %565 = vadd.xlane.f32.xlu0 %v564
        %v566 = vpop.xlane.xlu0 %565
        %v567 = vadd.f32 %v524, %v525
        %568 = vadd.xlane.f32.xlu0 %v567
        %v569 = vpop.xlane.xlu0 %568
        %v570 = vadd.f32 %v526, %v527
        %571 = vadd.xlane.f32.xlu0 %v570
        %v572 = vpop.xlane.xlu0 %571
        %v573 = vadd.f32 %v528, %v529
        %574 = vadd.xlane.f32.xlu0 %v573
        %v575 = vpop.xlane.xlu0 %574
        %v576 = vadd.f32 %v530, %v531
        %577 = vadd.xlane.f32.xlu0 %v576
        %v578 = vpop.xlane.xlu0 %577
        %v579 = vadd.f32 %v532, %v533
        %580 = vadd.xlane.f32.xlu0 %v579
        %v581 = vpop.xlane.xlu0 %580
        %v582 = vrcp.pop 256.0
        %v583 = vmul.f32 256.0, %v582
        %v584 = vsub.f32 1.0, %v583
        %v585 = vmul.f32 %v582, %v584
        %v586 = vadd.f32 %v582, %v585
        %vm587 = vweird.f32 %v582
        %v588 = vsel %vm587, %v582, %v586
        %v589 = vmul.f32 %v536, %v588
        %v590 = vmul.f32 %v539, %v588
        %v591 = vmul.f32 %v542, %v588
        %v592 = vmul.f32 %v545, %v588
        %v593 = vmul.f32 %v548, %v588
        %v594 = vmul.f32 %v551, %v588
        %v595 = vmul.f32 %v554, %v588
        %v596 = vmul.f32 %v557, %v588
        %v597 = vmul.f32 %v560, %v588
        %v598 = vmul.f32 %v563, %v588
        %v599 = vmul.f32 %v566, %v588
        %v600 = vmul.f32 %v569, %v588
        %v601 = vmul.f32 %v572, %v588
        %v602 = vmul.f32 %v575, %v588
        %v603 = vmul.f32 %v578, %v588
        %v604 = vmul.f32 %v581, %v588
        %v605 = vadd.f32 %v589, 1e-06
        %v606 = vadd.f32 %v590, 1e-06
        %v607 = vadd.f32 %v591, 1e-06
        %v608 = vadd.f32 %v592, 1e-06
        %v609 = vadd.f32 %v593, 1e-06
        %v610 = vadd.f32 %v594, 1e-06
        %v611 = vadd.f32 %v595, 1e-06
        %v612 = vadd.f32 %v596, 1e-06
        %v613 = vadd.f32 %v597, 1e-06
        %v614 = vadd.f32 %v598, 1e-06
        %v615 = vadd.f32 %v599, 1e-06
        %v616 = vadd.f32 %v600, 1e-06
        %v617 = vadd.f32 %v601, 1e-06
        %v618 = vadd.f32 %v602, 1e-06
        %v619 = vadd.f32 %v603, 1e-06
        %v620 = vadd.f32 %v604, 1e-06
        %v621 = vrsqrt.pop %v605
        %v622 = vmul.f32 %v621, %v605
        %v623 = vmul.f32 %v622, %v621
        %v624 = vmul.f32 0.5, %v623
        %v625 = vsub.f32 1.5, %v624
        %v626 = vmul.f32 %v621, %v625
        %vm627 = vweird.f32 %v605
        %vm628 = vweird.f32 %v621
        %vm629 = vmor %vm627, %vm628
        %v630 = vsel %vm629, %v621, %v626
        %v631 = vrsqrt.pop %v606
        %v632 = vmul.f32 %v631, %v606
        %v633 = vmul.f32 %v632, %v631
        %v634 = vmul.f32 0.5, %v633
        %v635 = vsub.f32 1.5, %v634
        %v636 = vmul.f32 %v631, %v635
        %vm637 = vweird.f32 %v606
        %vm638 = vweird.f32 %v631
        %vm639 = vmor %vm637, %vm638
        %v640 = vsel %vm639, %v631, %v636
        %v641 = vrsqrt.pop %v607
        %v642 = vmul.f32 %v641, %v607
        %v643 = vmul.f32 %v642, %v641
        %v644 = vmul.f32 0.5, %v643
        %v645 = vsub.f32 1.5, %v644
        %v646 = vmul.f32 %v641, %v645
        %vm647 = vweird.f32 %v607
        %vm648 = vweird.f32 %v641
        %vm649 = vmor %vm647, %vm648
        %v650 = vsel %vm649, %v641, %v646
        %v651 = vrsqrt.pop %v608
        %v652 = vmul.f32 %v651, %v608
        %v653 = vmul.f32 %v652, %v651
        %v654 = vmul.f32 0.5, %v653
        %v655 = vsub.f32 1.5, %v654
        %v656 = vmul.f32 %v651, %v655
        %vm657 = vweird.f32 %v608
        %vm658 = vweird.f32 %v651
        %vm659 = vmor %vm657, %vm658
        %v660 = vsel %vm659, %v651, %v656
        %v661 = vrsqrt.pop %v609
        %v662 = vmul.f32 %v661, %v609
        %v663 = vmul.f32 %v662, %v661
        %v664 = vmul.f32 0.5, %v663
        %v665 = vsub.f32 1.5, %v664
        %v666 = vmul.f32 %v661, %v665
        %vm667 = vweird.f32 %v609
        %vm668 = vweird.f32 %v661
        %vm669 = vmor %vm667, %vm668
        %v670 = vsel %vm669, %v661, %v666
        %v671 = vrsqrt.pop %v610
        %v672 = vmul.f32 %v671, %v610
        %v673 = vmul.f32 %v672, %v671
        %v674 = vmul.f32 0.5, %v673
        %v675 = vsub.f32 1.5, %v674
        %v676 = vmul.f32 %v671, %v675
        %vm677 = vweird.f32 %v610
        %vm678 = vweird.f32 %v671
        %vm679 = vmor %vm677, %vm678
        %v680 = vsel %vm679, %v671, %v676
        %v681 = vrsqrt.pop %v611
        %v682 = vmul.f32 %v681, %v611
        %v683 = vmul.f32 %v682, %v681
        %v684 = vmul.f32 0.5, %v683
        %v685 = vsub.f32 1.5, %v684
        %v686 = vmul.f32 %v681, %v685
        %vm687 = vweird.f32 %v611
        %vm688 = vweird.f32 %v681
        %vm689 = vmor %vm687, %vm688
        %v690 = vsel %vm689, %v681, %v686
        %v691 = vrsqrt.pop %v612
        %v692 = vmul.f32 %v691, %v612
        %v693 = vmul.f32 %v692, %v691
        %v694 = vmul.f32 0.5, %v693
        %v695 = vsub.f32 1.5, %v694
        %v696 = vmul.f32 %v691, %v695
        %vm697 = vweird.f32 %v612
        %vm698 = vweird.f32 %v691
        %vm699 = vmor %vm697, %vm698
        %v700 = vsel %vm699, %v691, %v696
        %v701 = vrsqrt.pop %v613
        %v702 = vmul.f32 %v701, %v613
        %v703 = vmul.f32 %v702, %v701
        %v704 = vmul.f32 0.5, %v703
        %v705 = vsub.f32 1.5, %v704
        %v706 = vmul.f32 %v701, %v705
        %vm707 = vweird.f32 %v613
        %vm708 = vweird.f32 %v701
        %vm709 = vmor %vm707, %vm708
        %v710 = vsel %vm709, %v701, %v706
        %v711 = vrsqrt.pop %v614
        %v712 = vmul.f32 %v711, %v614
        %v713 = vmul.f32 %v712, %v711
        %v714 = vmul.f32 0.5, %v713
        %v715 = vsub.f32 1.5, %v714
        %v716 = vmul.f32 %v711, %v715
        %vm717 = vweird.f32 %v614
        %vm718 = vweird.f32 %v711
        %vm719 = vmor %vm717, %vm718
        %v720 = vsel %vm719, %v711, %v716
        %v721 = vrsqrt.pop %v615
        %v722 = vmul.f32 %v721, %v615
        %v723 = vmul.f32 %v722, %v721
        %v724 = vmul.f32 0.5, %v723
        %v725 = vsub.f32 1.5, %v724
        %v726 = vmul.f32 %v721, %v725
        %vm727 = vweird.f32 %v615
        %vm728 = vweird.f32 %v721
        %vm729 = vmor %vm727, %vm728
        %v730 = vsel %vm729, %v721, %v726
        %v731 = vrsqrt.pop %v616
        %v732 = vmul.f32 %v731, %v616
        %v733 = vmul.f32 %v732, %v731
        %v734 = vmul.f32 0.5, %v733
        %v735 = vsub.f32 1.5, %v734
        %v736 = vmul.f32 %v731, %v735
        %vm737 = vweird.f32 %v616
        %vm738 = vweird.f32 %v731
        %vm739 = vmor %vm737, %vm738
        %v740 = vsel %vm739, %v731, %v736
        %v741 = vrsqrt.pop %v617
        %v742 = vmul.f32 %v741, %v617
        %v743 = vmul.f32 %v742, %v741
        %v744 = vmul.f32 0.5, %v743
        %v745 = vsub.f32 1.5, %v744
        %v746 = vmul.f32 %v741, %v745
        %vm747 = vweird.f32 %v617
        %vm748 = vweird.f32 %v741
        %vm749 = vmor %vm747, %vm748
        %v750 = vsel %vm749, %v741, %v746
        %v751 = vrsqrt.pop %v618
        %v752 = vmul.f32 %v751, %v618
        %v753 = vmul.f32 %v752, %v751
        %v754 = vmul.f32 0.5, %v753
        %v755 = vsub.f32 1.5, %v754
        %v756 = vmul.f32 %v751, %v755
        %vm757 = vweird.f32 %v618
        %vm758 = vweird.f32 %v751
        %vm759 = vmor %vm757, %vm758
        %v760 = vsel %vm759, %v751, %v756
        %v761 = vrsqrt.pop %v619
        %v762 = vmul.f32 %v761, %v619
        %v763 = vmul.f32 %v762, %v761
        %v764 = vmul.f32 0.5, %v763
        %v765 = vsub.f32 1.5, %v764
        %v766 = vmul.f32 %v761, %v765
        %vm767 = vweird.f32 %v619
        %vm768 = vweird.f32 %v761
        %vm769 = vmor %vm767, %vm768
        %v770 = vsel %vm769, %v761, %v766
        %v771 = vrsqrt.pop %v620
        %v772 = vmul.f32 %v771, %v620
        %v773 = vmul.f32 %v772, %v771
        %v774 = vmul.f32 0.5, %v773
        %v775 = vsub.f32 1.5, %v774
        %v776 = vmul.f32 %v771, %v775
        %vm777 = vweird.f32 %v620
        %vm778 = vweird.f32 %v771
        %vm779 = vmor %vm777, %vm778
        %v780 = vsel %vm779, %v771, %v776
        %v781 = vmul.f32 %v469, %v630
        %v782 = vmul.f32 %v470, %v630
        %v783 = vmul.f32 %v471, %v640
        %v784 = vmul.f32 %v472, %v640
        %v785 = vmul.f32 %v473, %v650
        %v786 = vmul.f32 %v474, %v650
        %v787 = vmul.f32 %v475, %v660
        %v788 = vmul.f32 %v476, %v660
        %v789 = vmul.f32 %v477, %v670
        %v790 = vmul.f32 %v478, %v670
        %v791 = vmul.f32 %v479, %v680
        %v792 = vmul.f32 %v480, %v680
        %v793 = vmul.f32 %v481, %v690
        %v794 = vmul.f32 %v482, %v690
        %v795 = vmul.f32 %v483, %v700
        %v796 = vmul.f32 %v484, %v700
        %v797 = vmul.f32 %v485, %v710
        %v798 = vmul.f32 %v486, %v710
        %v799 = vmul.f32 %v487, %v720
        %v800 = vmul.f32 %v488, %v720
        %v801 = vmul.f32 %v489, %v730
        %v802 = vmul.f32 %v490, %v730
        %v803 = vmul.f32 %v491, %v740
        %v804 = vmul.f32 %v492, %v740
        %v805 = vmul.f32 %v493, %v750
        %v806 = vmul.f32 %v494, %v750
        %v807 = vmul.f32 %v495, %v760
        %v808 = vmul.f32 %v496, %v760
        %v809 = vmul.f32 %v497, %v770
        %v810 = vmul.f32 %v498, %v770
        %v811 = vmul.f32 %v499, %v780
        %v812 = vmul.f32 %v500, %v780
        %v814 = vperm.slane %v501, 0
        %v815 = vperm.slane %v501, 1
        %v818 = vmul.f32 %v781, %v814
        %v819 = vmul.f32 %v782, %v815
        %v820 = vmul.f32 %v783, %v814
        %v821 = vmul.f32 %v784, %v815
        %v822 = vmul.f32 %v785, %v814
        %v823 = vmul.f32 %v786, %v815
        %v824 = vmul.f32 %v787, %v814
        %v825 = vmul.f32 %v788, %v815
        %v826 = vmul.f32 %v789, %v814
        %v827 = vmul.f32 %v790, %v815
        %v828 = vmul.f32 %v791, %v814
        %v829 = vmul.f32 %v792, %v815
        %v830 = vmul.f32 %v793, %v814
        %v831 = vmul.f32 %v794, %v815
        %v832 = vmul.f32 %v795, %v814
        %v833 = vmul.f32 %v796, %v815
        %v834 = vmul.f32 %v797, %v814
        %v835 = vmul.f32 %v798, %v815
        %v836 = vmul.f32 %v799, %v814
        %v837 = vmul.f32 %v800, %v815
        %v838 = vmul.f32 %v801, %v814
        %v839 = vmul.f32 %v802, %v815
        %v840 = vmul.f32 %v803, %v814
        %v841 = vmul.f32 %v804, %v815
        %v842 = vmul.f32 %v805, %v814
        %v843 = vmul.f32 %v806, %v815
        %v844 = vmul.f32 %v807, %v814
        %v845 = vmul.f32 %v808, %v815
        %v846 = vmul.f32 %v809, %v814
        %v847 = vmul.f32 %v810, %v815
        %v848 = vmul.f32 %v811, %v814
        %v849 = vmul.f32 %v812, %v815
        %v850 = vpack.c.bf16 %v820, %v818
        %v851 = vpack.c.bf16 %v821, %v819
        %v852 = vpack.c.bf16 %v824, %v822
        %v853 = vpack.c.bf16 %v825, %v823
        %v854 = vpack.c.bf16 %v828, %v826
        %v855 = vpack.c.bf16 %v829, %v827
        %v856 = vpack.c.bf16 %v832, %v830
        %v857 = vpack.c.bf16 %v833, %v831
        %v858 = vpack.c.bf16 %v836, %v834
        %v859 = vpack.c.bf16 %v837, %v835
        %v860 = vpack.c.bf16 %v840, %v838
        %v861 = vpack.c.bf16 %v841, %v839
        %v862 = vpack.c.bf16 %v844, %v842
        %v863 = vpack.c.bf16 %v845, %v843
        %v864 = vpack.c.bf16 %v848, %v846
        %v865 = vpack.c.bf16 %v849, %v847
        %v866 = vld [vmem:[#allocation6] sm:$0xff]
        %v867 = vld [vmem:[#allocation6 + $0x8] sm:$0xff]
        %v868 = vld [vmem:[#allocation6 + $0x10] sm:$0xff]
        %v869 = vld [vmem:[#allocation6 + $0x18] sm:$0xff]
        %v870 = vld [vmem:[#allocation6 + $0x20] sm:$0xff]
        %v871 = vld [vmem:[#allocation6 + $0x28] sm:$0xff]
        %v872 = vld [vmem:[#allocation6 + $0x30] sm:$0xff]
        %v873 = vld [vmem:[#allocation6 + $0x38] sm:$0xff]
        %v874 = vld [vmem:[#allocation6 + $0x40] sm:$0xff]
        %v875 = vld [vmem:[#allocation6 + $0x48] sm:$0xff]
        %v876 = vld [vmem:[#allocation6 + $0x50] sm:$0xff]
        %v877 = vld [vmem:[#allocation6 + $0x58] sm:$0xff]
        %v878 = vld [vmem:[#allocation6 + $0x60] sm:$0xff]
        %v879 = vld [vmem:[#allocation6 + $0x68] sm:$0xff]
        %v880 = vld [vmem:[#allocation6 + $0x70] sm:$0xff]
        %v881 = vld [vmem:[#allocation6 + $0x78] sm:$0xff]
        %v882 = vld [vmem:[#allocation6 + $0x80] sm:$0xff]
        %v883 = vld [vmem:[#allocation6 + $0x88] sm:$0xff]
        %v884 = vld [vmem:[#allocation6 + $0x90] sm:$0xff]
        %v885 = vld [vmem:[#allocation6 + $0x98] sm:$0xff]
        %v886 = vld [vmem:[#allocation6 + $0xa0] sm:$0xff]
        %v887 = vld [vmem:[#allocation6 + $0xa8] sm:$0xff]
        %v888 = vld [vmem:[#allocation6 + $0xb0] sm:$0xff]
        %v889 = vld [vmem:[#allocation6 + $0xb8] sm:$0xff]
        %v890 = vld [vmem:[#allocation6 + $0xc0] sm:$0xff]
        %v891 = vld [vmem:[#allocation6 + $0xc8] sm:$0xff]
        %v892 = vld [vmem:[#allocation6 + $0xd0] sm:$0xff]
        %v893 = vld [vmem:[#allocation6 + $0xd8] sm:$0xff]
        %v894 = vld [vmem:[#allocation6 + $0xe0] sm:$0xff]
        %v895 = vld [vmem:[#allocation6 + $0xe8] sm:$0xff]
        %v896 = vld [vmem:[#allocation6 + $0xf0] sm:$0xff]
        %v897 = vld [vmem:[#allocation6 + $0xf8] sm:$0xff]
        %v898 = vld [vmem:[#allocation6 + $0x100] sm:$0xff]
        %v899 = vld [vmem:[#allocation6 + $0x108] sm:$0xff]
        %v900 = vld [vmem:[#allocation6 + $0x110] sm:$0xff]
        %v901 = vld [vmem:[#allocation6 + $0x118] sm:$0xff]
        %v902 = vld [vmem:[#allocation6 + $0x120] sm:$0xff]
        %v903 = vld [vmem:[#allocation6 + $0x128] sm:$0xff]
        %v904 = vld [vmem:[#allocation6 + $0x130] sm:$0xff]
        %v905 = vld [vmem:[#allocation6 + $0x138] sm:$0xff]
        %v906 = vld [vmem:[#allocation6 + $0x140] sm:$0xff]
        %v907 = vld [vmem:[#allocation6 + $0x148] sm:$0xff]
        %v908 = vld [vmem:[#allocation6 + $0x150] sm:$0xff]
        %v909 = vld [vmem:[#allocation6 + $0x158] sm:$0xff]
        %v910 = vld [vmem:[#allocation6 + $0x160] sm:$0xff]
        %v911 = vld [vmem:[#allocation6 + $0x168] sm:$0xff]
        %v912 = vld [vmem:[#allocation6 + $0x170] sm:$0xff]
        %v913 = vld [vmem:[#allocation6 + $0x178] sm:$0xff]
        %v914 = vld [vmem:[#allocation6 + $0x180] sm:$0xff]
        %v915 = vld [vmem:[#allocation6 + $0x188] sm:$0xff]
        %v916 = vld [vmem:[#allocation6 + $0x190] sm:$0xff]
        %v917 = vld [vmem:[#allocation6 + $0x198] sm:$0xff]
        %v918 = vld [vmem:[#allocation6 + $0x1a0] sm:$0xff]
        %v919 = vld [vmem:[#allocation6 + $0x1a8] sm:$0xff]
        %v920 = vld [vmem:[#allocation6 + $0x1b0] sm:$0xff]
        %v921 = vld [vmem:[#allocation6 + $0x1b8] sm:$0xff]
        %v922 = vld [vmem:[#allocation6 + $0x1c0] sm:$0xff]
        %v923 = vld [vmem:[#allocation6 + $0x1c8] sm:$0xff]
        %v924 = vld [vmem:[#allocation6 + $0x1d0] sm:$0xff]
        %v925 = vld [vmem:[#allocation6 + $0x1d8] sm:$0xff]
        %v926 = vld [vmem:[#allocation6 + $0x1e0] sm:$0xff]
        %v927 = vld [vmem:[#allocation6 + $0x1e8] sm:$0xff]
        %v928 = vld [vmem:[#allocation6 + $0x1f0] sm:$0xff]
        %v929 = vld [vmem:[#allocation6 + $0x1f8] sm:$0xff]
        %v930 = vld [vmem:[#allocation6 + $0x200] sm:$0xff]
        %v931 = vld [vmem:[#allocation6 + $0x208] sm:$0xff]
        %v932 = vld [vmem:[#allocation6 + $0x210] sm:$0xff]
        %v933 = vld [vmem:[#allocation6 + $0x218] sm:$0xff]
        %v934 = vld [vmem:[#allocation6 + $0x220] sm:$0xff]
        %v935 = vld [vmem:[#allocation6 + $0x228] sm:$0xff]
        %v936 = vld [vmem:[#allocation6 + $0x230] sm:$0xff]
        %v937 = vld [vmem:[#allocation6 + $0x238] sm:$0xff]
        %v938 = vld [vmem:[#allocation6 + $0x240] sm:$0xff]
        %v939 = vld [vmem:[#allocation6 + $0x248] sm:$0xff]
        %v940 = vld [vmem:[#allocation6 + $0x250] sm:$0xff]
        %v941 = vld [vmem:[#allocation6 + $0x258] sm:$0xff]
        %v942 = vld [vmem:[#allocation6 + $0x260] sm:$0xff]
        %v943 = vld [vmem:[#allocation6 + $0x268] sm:$0xff]
        %v944 = vld [vmem:[#allocation6 + $0x270] sm:$0xff]
        %v945 = vld [vmem:[#allocation6 + $0x278] sm:$0xff]
        %v946 = vld [vmem:[#allocation6 + $0x280] sm:$0xff]
        %v947 = vld [vmem:[#allocation6 + $0x288] sm:$0xff]
        %v948 = vld [vmem:[#allocation6 + $0x290] sm:$0xff]
        %v949 = vld [vmem:[#allocation6 + $0x298] sm:$0xff]
        %v950 = vld [vmem:[#allocation6 + $0x2a0] sm:$0xff]
        %v951 = vld [vmem:[#allocation6 + $0x2a8] sm:$0xff]
        %v952 = vld [vmem:[#allocation6 + $0x2b0] sm:$0xff]
        %v953 = vld [vmem:[#allocation6 + $0x2b8] sm:$0xff]
        %v954 = vld [vmem:[#allocation6 + $0x2c0] sm:$0xff]
        %v955 = vld [vmem:[#allocation6 + $0x2c8] sm:$0xff]
        %v956 = vld [vmem:[#allocation6 + $0x2d0] sm:$0xff]
        %v957 = vld [vmem:[#allocation6 + $0x2d8] sm:$0xff]
        %v958 = vld [vmem:[#allocation6 + $0x2e0] sm:$0xff]
        %v959 = vld [vmem:[#allocation6 + $0x2e8] sm:$0xff]
        %v960 = vld [vmem:[#allocation6 + $0x2f0] sm:$0xff]
        %v961 = vld [vmem:[#allocation6 + $0x2f8] sm:$0xff]
        %v1058 = vunpack.c.l.b16 %v866
        %v1059 = vunpack.c.h.b16 %v866
        %v1060 = vunpack.c.l.b16 %v867
        %v1061 = vunpack.c.h.b16 %v867
        %v1062 = vunpack.c.l.b16 %v868
        %v1063 = vunpack.c.h.b16 %v868
        %v1064 = vunpack.c.l.b16 %v869
        %v1065 = vunpack.c.h.b16 %v869
        %v1066 = vunpack.c.l.b16 %v870
        %v1067 = vunpack.c.h.b16 %v870
        %v1068 = vunpack.c.l.b16 %v871
        %v1069 = vunpack.c.h.b16 %v871
        %v1070 = vunpack.c.l.b16 %v872
        %v1071 = vunpack.c.h.b16 %v872
        %v1072 = vunpack.c.l.b16 %v873
        %v1073 = vunpack.c.h.b16 %v873
        %v1074 = vunpack.c.l.b16 %v874
        %v1075 = vunpack.c.h.b16 %v874
        %v1076 = vunpack.c.l.b16 %v875
        %v1077 = vunpack.c.h.b16 %v875
        %v1078 = vunpack.c.l.b16 %v876
        %v1079 = vunpack.c.h.b16 %v876
        %v1080 = vunpack.c.l.b16 %v877
        %v1081 = vunpack.c.h.b16 %v877
        %v1082 = vunpack.c.l.b16 %v878
        %v1083 = vunpack.c.h.b16 %v878
        %v1084 = vunpack.c.l.b16 %v879
        %v1085 = vunpack.c.h.b16 %v879
        %v1086 = vunpack.c.l.b16 %v880
        %v1087 = vunpack.c.h.b16 %v880
        %v1088 = vunpack.c.l.b16 %v881
        %v1089 = vunpack.c.h.b16 %v881
        %v1090 = vunpack.c.l.b16 %v882
        %v1091 = vunpack.c.h.b16 %v882
        %v1092 = vunpack.c.l.b16 %v883
        %v1093 = vunpack.c.h.b16 %v883
        %v1094 = vunpack.c.l.b16 %v884
        %v1095 = vunpack.c.h.b16 %v884
        %v1096 = vunpack.c.l.b16 %v885
        %v1097 = vunpack.c.h.b16 %v885
        %v1098 = vunpack.c.l.b16 %v886
        %v1099 = vunpack.c.h.b16 %v886
        %v1100 = vunpack.c.l.b16 %v887
        %v1101 = vunpack.c.h.b16 %v887
        %v1102 = vunpack.c.l.b16 %v888
        %v1103 = vunpack.c.h.b16 %v888
        %v1104 = vunpack.c.l.b16 %v889
        %v1105 = vunpack.c.h.b16 %v889
        %v1106 = vunpack.c.l.b16 %v890
        %v1107 = vunpack.c.h.b16 %v890
        %v1108 = vunpack.c.l.b16 %v891
        %v1109 = vunpack.c.h.b16 %v891
        %v1110 = vunpack.c.l.b16 %v892
        %v1111 = vunpack.c.h.b16 %v892
        %v1112 = vunpack.c.l.b16 %v893
        %v1113 = vunpack.c.h.b16 %v893
        %v1114 = vunpack.c.l.b16 %v894
        %v1115 = vunpack.c.h.b16 %v894
        %v1116 = vunpack.c.l.b16 %v895
        %v1117 = vunpack.c.h.b16 %v895
        %v1118 = vunpack.c.l.b16 %v896
        %v1119 = vunpack.c.h.b16 %v896
        %v1120 = vunpack.c.l.b16 %v897
        %v1121 = vunpack.c.h.b16 %v897
        %v1122 = vunpack.c.l.b16 %v898
        %v1123 = vunpack.c.h.b16 %v898
        %v1124 = vunpack.c.l.b16 %v899
        %v1125 = vunpack.c.h.b16 %v899
        %v1126 = vunpack.c.l.b16 %v900
        %v1127 = vunpack.c.h.b16 %v900
        %v1128 = vunpack.c.l.b16 %v901
        %v1129 = vunpack.c.h.b16 %v901
        %v1130 = vunpack.c.l.b16 %v902
        %v1131 = vunpack.c.h.b16 %v902
        %v1132 = vunpack.c.l.b16 %v903
        %v1133 = vunpack.c.h.b16 %v903
        %v1134 = vunpack.c.l.b16 %v904
        %v1135 = vunpack.c.h.b16 %v904
        %v1136 = vunpack.c.l.b16 %v905
        %v1137 = vunpack.c.h.b16 %v905
        %v1138 = vunpack.c.l.b16 %v906
        %v1139 = vunpack.c.h.b16 %v906
        %v1140 = vunpack.c.l.b16 %v907
        %v1141 = vunpack.c.h.b16 %v907
        %v1142 = vunpack.c.l.b16 %v908
        %v1143 = vunpack.c.h.b16 %v908
        %v1144 = vunpack.c.l.b16 %v909
        %v1145 = vunpack.c.h.b16 %v909
        %v1146 = vunpack.c.l.b16 %v910
        %v1147 = vunpack.c.h.b16 %v910
        %v1148 = vunpack.c.l.b16 %v911
        %v1149 = vunpack.c.h.b16 %v911
        %v1150 = vunpack.c.l.b16 %v912
        %v1151 = vunpack.c.h.b16 %v912
        %v1152 = vunpack.c.l.b16 %v913
        %v1153 = vunpack.c.h.b16 %v913
        %v1154 = vunpack.c.l.b16 %v914
        %v1155 = vunpack.c.h.b16 %v914
        %v1156 = vunpack.c.l.b16 %v915
        %v1157 = vunpack.c.h.b16 %v915
        %v1158 = vunpack.c.l.b16 %v916
        %v1159 = vunpack.c.h.b16 %v916
        %v1160 = vunpack.c.l.b16 %v917
        %v1161 = vunpack.c.h.b16 %v917
        %v1162 = vunpack.c.l.b16 %v918
        %v1163 = vunpack.c.h.b16 %v918
        %v1164 = vunpack.c.l.b16 %v919
        %v1165 = vunpack.c.h.b16 %v919
        %v1166 = vunpack.c.l.b16 %v920
        %v1167 = vunpack.c.h.b16 %v920
        %v1168 = vunpack.c.l.b16 %v921
        %v1169 = vunpack.c.h.b16 %v921
        %v1170 = vunpack.c.l.b16 %v922
        %v1171 = vunpack.c.h.b16 %v922
        %v1172 = vunpack.c.l.b16 %v923
        %v1173 = vunpack.c.h.b16 %v923
        %v1174 = vunpack.c.l.b16 %v924
        %v1175 = vunpack.c.h.b16 %v924
        %v1176 = vunpack.c.l.b16 %v925
        %v1177 = vunpack.c.h.b16 %v925
        %v1178 = vunpack.c.l.b16 %v926
        %v1179 = vunpack.c.h.b16 %v926
        %v1180 = vunpack.c.l.b16 %v927
        %v1181 = vunpack.c.h.b16 %v927
        %v1182 = vunpack.c.l.b16 %v928
        %v1183 = vunpack.c.h.b16 %v928
        %v1184 = vunpack.c.l.b16 %v929
        %v1185 = vunpack.c.h.b16 %v929
        %v1186 = vunpack.c.l.b16 %v930
        %v1187 = vunpack.c.h.b16 %v930
        %v1188 = vunpack.c.l.b16 %v931
        %v1189 = vunpack.c.h.b16 %v931
        %v1190 = vunpack.c.l.b16 %v932
        %v1191 = vunpack.c.h.b16 %v932
        %v1192 = vunpack.c.l.b16 %v933
        %v1193 = vunpack.c.h.b16 %v933
        %v1194 = vunpack.c.l.b16 %v934
        %v1195 = vunpack.c.h.b16 %v934
        %v1196 = vunpack.c.l.b16 %v935
        %v1197 = vunpack.c.h.b16 %v935
        %v1198 = vunpack.c.l.b16 %v936
        %v1199 = vunpack.c.h.b16 %v936
        %v1200 = vunpack.c.l.b16 %v937
        %v1201 = vunpack.c.h.b16 %v937
        %v1202 = vunpack.c.l.b16 %v938
        %v1203 = vunpack.c.h.b16 %v938
        %v1204 = vunpack.c.l.b16 %v939
        %v1205 = vunpack.c.h.b16 %v939
        %v1206 = vunpack.c.l.b16 %v940
        %v1207 = vunpack.c.h.b16 %v940
        %v1208 = vunpack.c.l.b16 %v941
        %v1209 = vunpack.c.h.b16 %v941
        %v1210 = vunpack.c.l.b16 %v942
        %v1211 = vunpack.c.h.b16 %v942
        %v1212 = vunpack.c.l.b16 %v943
        %v1213 = vunpack.c.h.b16 %v943
        %v1214 = vunpack.c.l.b16 %v944
        %v1215 = vunpack.c.h.b16 %v944
        %v1216 = vunpack.c.l.b16 %v945
        %v1217 = vunpack.c.h.b16 %v945
        %v1218 = vunpack.c.l.b16 %v946
        %v1219 = vunpack.c.h.b16 %v946
        %v1220 = vunpack.c.l.b16 %v947
        %v1221 = vunpack.c.h.b16 %v947
        %v1222 = vunpack.c.l.b16 %v948
        %v1223 = vunpack.c.h.b16 %v948
        %v1224 = vunpack.c.l.b16 %v949
        %v1225 = vunpack.c.h.b16 %v949
        %v1226 = vunpack.c.l.b16 %v950
        %v1227 = vunpack.c.h.b16 %v950
        %v1228 = vunpack.c.l.b16 %v951
        %v1229 = vunpack.c.h.b16 %v951
        %v1230 = vunpack.c.l.b16 %v952
        %v1231 = vunpack.c.h.b16 %v952
        %v1232 = vunpack.c.l.b16 %v953
        %v1233 = vunpack.c.h.b16 %v953
        %v1234 = vunpack.c.l.b16 %v954
        %v1235 = vunpack.c.h.b16 %v954
        %v1236 = vunpack.c.l.b16 %v955
        %v1237 = vunpack.c.h.b16 %v955
        %v1238 = vunpack.c.l.b16 %v956
        %v1239 = vunpack.c.h.b16 %v956
        %v1240 = vunpack.c.l.b16 %v957
        %v1241 = vunpack.c.h.b16 %v957
        %v1242 = vunpack.c.l.b16 %v958
        %v1243 = vunpack.c.h.b16 %v958
        %v1244 = vunpack.c.l.b16 %v959
        %v1245 = vunpack.c.h.b16 %v959
        %v1246 = vunpack.c.l.b16 %v960
        %v1247 = vunpack.c.h.b16 %v960
        %v1248 = vunpack.c.l.b16 %v961
        %v1249 = vunpack.c.h.b16 %v961
        %v1250 = vpack.c.b16 %v1064, %v1058
        %v1251 = vpack.c.b16 %v1065, %v1059
        %v1252 = vpack.c.b16 %v1066, %v1060
        %v1253 = vpack.c.b16 %v1067, %v1061
        %v1254 = vpack.c.b16 %v1068, %v1062
        %v1255 = vpack.c.b16 %v1069, %v1063
        %v1256 = vpack.c.b16 %v1076, %v1070
        %v1257 = vpack.c.b16 %v1077, %v1071
        %v1258 = vpack.c.b16 %v1078, %v1072
        %v1259 = vpack.c.b16 %v1079, %v1073
        %v1260 = vpack.c.b16 %v1080, %v1074
        %v1261 = vpack.c.b16 %v1081, %v1075
        %v1262 = vpack.c.b16 %v1088, %v1082
        %v1263 = vpack.c.b16 %v1089, %v1083
        %v1264 = vpack.c.b16 %v1090, %v1084
        %v1265 = vpack.c.b16 %v1091, %v1085
        %v1266 = vpack.c.b16 %v1092, %v1086
        %v1267 = vpack.c.b16 %v1093, %v1087
        %v1268 = vpack.c.b16 %v1100, %v1094
        %v1269 = vpack.c.b16 %v1101, %v1095
        %v1270 = vpack.c.b16 %v1102, %v1096
        %v1271 = vpack.c.b16 %v1103, %v1097
        %v1272 = vpack.c.b16 %v1104, %v1098
        %v1273 = vpack.c.b16 %v1105, %v1099
        %v1274 = vpack.c.b16 %v1112, %v1106
        %v1275 = vpack.c.b16 %v1113, %v1107
        %v1276 = vpack.c.b16 %v1114, %v1108
        %v1277 = vpack.c.b16 %v1115, %v1109
        %v1278 = vpack.c.b16 %v1116, %v1110
        %v1279 = vpack.c.b16 %v1117, %v1111
        %v1280 = vpack.c.b16 %v1124, %v1118
        %v1281 = vpack.c.b16 %v1125, %v1119
        %v1282 = vpack.c.b16 %v1126, %v1120
        %v1283 = vpack.c.b16 %v1127, %v1121
        %v1284 = vpack.c.b16 %v1128, %v1122
        %v1285 = vpack.c.b16 %v1129, %v1123
        %v1286 = vpack.c.b16 %v1136, %v1130
        %v1287 = vpack.c.b16 %v1137, %v1131
        %v1288 = vpack.c.b16 %v1138, %v1132
        %v1289 = vpack.c.b16 %v1139, %v1133
        %v1290 = vpack.c.b16 %v1140, %v1134
        %v1291 = vpack.c.b16 %v1141, %v1135
        %v1292 = vpack.c.b16 %v1148, %v1142
        %v1293 = vpack.c.b16 %v1149, %v1143
        %v1294 = vpack.c.b16 %v1150, %v1144
        %v1295 = vpack.c.b16 %v1151, %v1145
        %v1296 = vpack.c.b16 %v1152, %v1146
        %v1297 = vpack.c.b16 %v1153, %v1147
        %v1298 = vpack.c.b16 %v1160, %v1154
        %v1299 = vpack.c.b16 %v1161, %v1155
        %v1300 = vpack.c.b16 %v1162, %v1156
        %v1301 = vpack.c.b16 %v1163, %v1157
        %v1302 = vpack.c.b16 %v1164, %v1158
        %v1303 = vpack.c.b16 %v1165, %v1159
        %v1304 = vpack.c.b16 %v1172, %v1166
        %v1305 = vpack.c.b16 %v1173, %v1167
        %v1306 = vpack.c.b16 %v1174, %v1168
        %v1307 = vpack.c.b16 %v1175, %v1169
        %v1308 = vpack.c.b16 %v1176, %v1170
        %v1309 = vpack.c.b16 %v1177, %v1171
        %v1310 = vpack.c.b16 %v1184, %v1178
        %v1311 = vpack.c.b16 %v1185, %v1179
        %v1312 = vpack.c.b16 %v1186, %v1180
        %v1313 = vpack.c.b16 %v1187, %v1181
        %v1314 = vpack.c.b16 %v1188, %v1182
        %v1315 = vpack.c.b16 %v1189, %v1183
        %v1316 = vpack.c.b16 %v1196, %v1190
        %v1317 = vpack.c.b16 %v1197, %v1191
        %v1318 = vpack.c.b16 %v1198, %v1192
        %v1319 = vpack.c.b16 %v1199, %v1193
        %v1320 = vpack.c.b16 %v1200, %v1194
        %v1321 = vpack.c.b16 %v1201, %v1195
        %v1322 = vpack.c.b16 %v1208, %v1202
        %v1323 = vpack.c.b16 %v1209, %v1203
        %v1324 = vpack.c.b16 %v1210, %v1204
        %v1325 = vpack.c.b16 %v1211, %v1205
        %v1326 = vpack.c.b16 %v1212, %v1206
        %v1327 = vpack.c.b16 %v1213, %v1207
        %v1328 = vpack.c.b16 %v1220, %v1214
        %v1329 = vpack.c.b16 %v1221, %v1215
        %v1330 = vpack.c.b16 %v1222, %v1216
        %v1331 = vpack.c.b16 %v1223, %v1217
        %v1332 = vpack.c.b16 %v1224, %v1218
        %v1333 = vpack.c.b16 %v1225, %v1219
        %v1334 = vpack.c.b16 %v1232, %v1226
        %v1335 = vpack.c.b16 %v1233, %v1227
        %v1336 = vpack.c.b16 %v1234, %v1228
        %v1337 = vpack.c.b16 %v1235, %v1229
        %v1338 = vpack.c.b16 %v1236, %v1230
        %v1339 = vpack.c.b16 %v1237, %v1231
        %v1340 = vpack.c.b16 %v1244, %v1238
        %v1341 = vpack.c.b16 %v1245, %v1239
        %v1342 = vpack.c.b16 %v1246, %v1240
        %v1343 = vpack.c.b16 %v1247, %v1241
        %v1344 = vpack.c.b16 %v1248, %v1242
        %v1345 = vpack.c.b16 %v1249, %v1243
        %1442 = vmatpush.bf16.msra.mxu0 %v1292
        %1443 = vmatpush.bf16.msra.mxu0 %v1286
        %1444 = vmatpush.bf16.msra.mxu0 %v1280
        %1445 = vmatpush.bf16.msra.mxu0 %v1274
        %1446 = vmatpush.bf16.msra.mxu0 %v1268
        %1447 = vmatpush.bf16.msra.mxu0 %v1262
        %1448 = vmatpush.bf16.msra.mxu0 %v1256
        %1449 = vmatpush.bf16.msra.mxu0 %v1250
        %1450 = vmatmul.bf16.gmra.mxu0 %v850
        %v1451 = vpop.f32.mrf.mxu0
        %v1452 = vadd.f32 0.0, %v1451
        %v1453 = vpop.f32.mrf.mxu0
        %v1454 = vadd.f32 0.0, %v1453
        %1455 = vmatmul.bf16.gmra.mxu0 %v852
        %v1456 = vpop.f32.mrf.mxu0
        %v1457 = vadd.f32 0.0, %v1456
        %v1458 = vpop.f32.mrf.mxu0
        %v1459 = vadd.f32 0.0, %v1458
        %1460 = vmatmul.bf16.gmra.mxu0 %v854
        %v1461 = vpop.f32.mrf.mxu0
        %v1462 = vadd.f32 0.0, %v1461
        %v1463 = vpop.f32.mrf.mxu0
        %v1464 = vadd.f32 0.0, %v1463
        %1465 = vmatmul.bf16.gmra.mxu0 %v856
        %v1466 = vpop.f32.mrf.mxu0
        %v1467 = vadd.f32 0.0, %v1466
        %v1468 = vpop.f32.mrf.mxu0
        %v1469 = vadd.f32 0.0, %v1468
        %1470 = vmatmul.bf16.gmra.mxu0 %v858
        %v1471 = vpop.f32.mrf.mxu0
        %v1472 = vadd.f32 0.0, %v1471
        %v1473 = vpop.f32.mrf.mxu0
        %v1474 = vadd.f32 0.0, %v1473
        %1475 = vmatmul.bf16.gmra.mxu0 %v860
        %v1476 = vpop.f32.mrf.mxu0
        %v1477 = vadd.f32 0.0, %v1476
        %v1478 = vpop.f32.mrf.mxu0
        %v1479 = vadd.f32 0.0, %v1478
        %1480 = vmatmul.bf16.gmra.mxu0 %v862
        %v1481 = vpop.f32.mrf.mxu0
        %v1482 = vadd.f32 0.0, %v1481
        %v1483 = vpop.f32.mrf.mxu0
        %v1484 = vadd.f32 0.0, %v1483
        %1485 = vmatmul.bf16.gmra.mxu0 %v864
        %v1486 = vpop.f32.mrf.mxu0
        %v1487 = vadd.f32 0.0, %v1486
        %v1488 = vpop.f32.mrf.mxu0
        %v1489 = vadd.f32 0.0, %v1488
        %1490 = vdwg.mxu0
        %1491 = vmatpush.bf16.msra.mxu0 %v1340
        %1492 = vmatpush.bf16.msra.mxu0 %v1334
        %1493 = vmatpush.bf16.msra.mxu0 %v1328
        %1494 = vmatpush.bf16.msra.mxu0 %v1322
        %1495 = vmatpush.bf16.msra.mxu0 %v1316
        %1496 = vmatpush.bf16.msra.mxu0 %v1310
        %1497 = vmatpush.bf16.msra.mxu0 %v1304
        %1498 = vmatpush.bf16.msra.mxu0 %v1298
        %1499 = vmatmul.bf16.gmra.mxu0 %v851
        %v1500 = vpop.f32.mrf.mxu0
        %v1501 = vadd.f32 %v1452, %v1500
        %v1502 = vpop.f32.mrf.mxu0
        %v1503 = vadd.f32 %v1454, %v1502
        %1504 = vmatmul.bf16.gmra.mxu0 %v853
        %v1505 = vpop.f32.mrf.mxu0
        %v1506 = vadd.f32 %v1457, %v1505
        %v1507 = vpop.f32.mrf.mxu0
        %v1508 = vadd.f32 %v1459, %v1507
        %1509 = vmatmul.bf16.gmra.mxu0 %v855
        %v1510 = vpop.f32.mrf.mxu0
        %v1511 = vadd.f32 %v1462, %v1510
        %v1512 = vpop.f32.mrf.mxu0
        %v1513 = vadd.f32 %v1464, %v1512
        %1514 = vmatmul.bf16.gmra.mxu0 %v857
        %v1515 = vpop.f32.mrf.mxu0
        %v1516 = vadd.f32 %v1467, %v1515
        %v1517 = vpop.f32.mrf.mxu0
        %v1518 = vadd.f32 %v1469, %v1517
        %1519 = vmatmul.bf16.gmra.mxu0 %v859
        %v1520 = vpop.f32.mrf.mxu0
        %v1521 = vadd.f32 %v1472, %v1520
        %v1522 = vpop.f32.mrf.mxu0
        %v1523 = vadd.f32 %v1474, %v1522
        %1524 = vmatmul.bf16.gmra.mxu0 %v861
        %v1525 = vpop.f32.mrf.mxu0
        %v1526 = vadd.f32 %v1477, %v1525
        %v1527 = vpop.f32.mrf.mxu0
        %v1528 = vadd.f32 %v1479, %v1527
        %1529 = vmatmul.bf16.gmra.mxu0 %v863
        %v1530 = vpop.f32.mrf.mxu0
        %v1531 = vadd.f32 %v1482, %v1530
        %v1532 = vpop.f32.mrf.mxu0
        %v1533 = vadd.f32 %v1484, %v1532
        %1534 = vmatmul.bf16.gmra.mxu0 %v865
        %v1535 = vpop.f32.mrf.mxu0
        %v1536 = vadd.f32 %v1487, %v1535
        %v1537 = vpop.f32.mrf.mxu0
        %v1538 = vadd.f32 %v1489, %v1537
        %1539 = vdwg.mxu0
        %1540 = vmatpush.bf16.msra.mxu0 %v1293
        %1541 = vmatpush.bf16.msra.mxu0 %v1287
        %1542 = vmatpush.bf16.msra.mxu0 %v1281
        %1543 = vmatpush.bf16.msra.mxu0 %v1275
        %1544 = vmatpush.bf16.msra.mxu0 %v1269
        %1545 = vmatpush.bf16.msra.mxu0 %v1263
        %1546 = vmatpush.bf16.msra.mxu0 %v1257
        %1547 = vmatpush.bf16.msra.mxu0 %v1251
        %1548 = vmatmul.bf16.gmra.mxu0 %v850
        %v1549 = vpop.f32.mrf.mxu0
        %v1550 = vadd.f32 0.0, %v1549
        %v1551 = vpop.f32.mrf.mxu0
        %v1552 = vadd.f32 0.0, %v1551
        %1553 = vmatmul.bf16.gmra.mxu0 %v852
        %v1554 = vpop.f32.mrf.mxu0
        %v1555 = vadd.f32 0.0, %v1554
        %v1556 = vpop.f32.mrf.mxu0
        %v1557 = vadd.f32 0.0, %v1556
        %1558 = vmatmul.bf16.gmra.mxu0 %v854
        %v1559 = vpop.f32.mrf.mxu0
        %v1560 = vadd.f32 0.0, %v1559
        %v1561 = vpop.f32.mrf.mxu0
        %v1562 = vadd.f32 0.0, %v1561
        %1563 = vmatmul.bf16.gmra.mxu0 %v856
        %v1564 = vpop.f32.mrf.mxu0
        %v1565 = vadd.f32 0.0, %v1564
        %v1566 = vpop.f32.mrf.mxu0
        %v1567 = vadd.f32 0.0, %v1566
        %1568 = vmatmul.bf16.gmra.mxu0 %v858
        %v1569 = vpop.f32.mrf.mxu0
        %v1570 = vadd.f32 0.0, %v1569
        %v1571 = vpop.f32.mrf.mxu0
        %v1572 = vadd.f32 0.0, %v1571
        %1573 = vmatmul.bf16.gmra.mxu0 %v860
        %v1574 = vpop.f32.mrf.mxu0
        %v1575 = vadd.f32 0.0, %v1574
        %v1576 = vpop.f32.mrf.mxu0
        %v1577 = vadd.f32 0.0, %v1576
        %1578 = vmatmul.bf16.gmra.mxu0 %v862
        %v1579 = vpop.f32.mrf.mxu0
        %v1580 = vadd.f32 0.0, %v1579
        %v1581 = vpop.f32.mrf.mxu0
        %v1582 = vadd.f32 0.0, %v1581
        %1583 = vmatmul.bf16.gmra.mxu0 %v864
        %v1584 = vpop.f32.mrf.mxu0
        %v1585 = vadd.f32 0.0, %v1584
        %v1586 = vpop.f32.mrf.mxu0
        %v1587 = vadd.f32 0.0, %v1586
        %1588 = vdwg.mxu0
        %1589 = vmatpush.bf16.msra.mxu0 %v1341
        %1590 = vmatpush.bf16.msra.mxu0 %v1335
        %1591 = vmatpush.bf16.msra.mxu0 %v1329
        %1592 = vmatpush.bf16.msra.mxu0 %v1323
        %1593 = vmatpush.bf16.msra.mxu0 %v1317
        %1594 = vmatpush.bf16.msra.mxu0 %v1311
        %1595 = vmatpush.bf16.msra.mxu0 %v1305
        %1596 = vmatpush.bf16.msra.mxu0 %v1299
        %1597 = vmatmul.bf16.gmra.mxu0 %v851
        %v1598 = vpop.f32.mrf.mxu0
        %v1599 = vadd.f32 %v1550, %v1598
        %v1600 = vpop.f32.mrf.mxu0
        %v1601 = vadd.f32 %v1552, %v1600
        %1602 = vmatmul.bf16.gmra.mxu0 %v853
        %v1603 = vpop.f32.mrf.mxu0
        %v1604 = vadd.f32 %v1555, %v1603
        %v1605 = vpop.f32.mrf.mxu0
        %v1606 = vadd.f32 %v1557, %v1605
        %1607 = vmatmul.bf16.gmra.mxu0 %v855
        %v1608 = vpop.f32.mrf.mxu0
        %v1609 = vadd.f32 %v1560, %v1608
        %v1610 = vpop.f32.mrf.mxu0
        %v1611 = vadd.f32 %v1562, %v1610
        %1612 = vmatmul.bf16.gmra.mxu0 %v857
        %v1613 = vpop.f32.mrf.mxu0
        %v1614 = vadd.f32 %v1565, %v1613
        %v1615 = vpop.f32.mrf.mxu0
        %v1616 = vadd.f32 %v1567, %v1615
        %1617 = vmatmul.bf16.gmra.mxu0 %v859
        %v1618 = vpop.f32.mrf.mxu0
        %v1619 = vadd.f32 %v1570, %v1618
        %v1620 = vpop.f32.mrf.mxu0
        %v1621 = vadd.f32 %v1572, %v1620
        %1622 = vmatmul.bf16.gmra.mxu0 %v861
        %v1623 = vpop.f32.mrf.mxu0
        %v1624 = vadd.f32 %v1575, %v1623
        %v1625 = vpop.f32.mrf.mxu0
        %v1626 = vadd.f32 %v1577, %v1625
        %1627 = vmatmul.bf16.gmra.mxu0 %v863
        %v1628 = vpop.f32.mrf.mxu0
        %v1629 = vadd.f32 %v1580, %v1628
        %v1630 = vpop.f32.mrf.mxu0
        %v1631 = vadd.f32 %v1582, %v1630
        %1632 = vmatmul.bf16.gmra.mxu0 %v865
        %v1633 = vpop.f32.mrf.mxu0
        %v1634 = vadd.f32 %v1585, %v1633
        %v1635 = vpop.f32.mrf.mxu0
        %v1636 = vadd.f32 %v1587, %v1635
        %1637 = vdwg.mxu0
        %1638 = vmatpush.bf16.msra.mxu0 %v1294
        %1639 = vmatpush.bf16.msra.mxu0 %v1288
        %1640 = vmatpush.bf16.msra.mxu0 %v1282
        %1641 = vmatpush.bf16.msra.mxu0 %v1276
        %1642 = vmatpush.bf16.msra.mxu0 %v1270
        %1643 = vmatpush.bf16.msra.mxu0 %v1264
        %1644 = vmatpush.bf16.msra.mxu0 %v1258
        %1645 = vmatpush.bf16.msra.mxu0 %v1252
        %1646 = vmatmul.bf16.gmra.mxu0 %v850
        %v1647 = vpop.f32.mrf.mxu0
        %v1648 = vadd.f32 0.0, %v1647
        %v1649 = vpop.f32.mrf.mxu0
        %v1650 = vadd.f32 0.0, %v1649
        %1651 = vmatmul.bf16.gmra.mxu0 %v852
        %v1652 = vpop.f32.mrf.mxu0
        %v1653 = vadd.f32 0.0, %v1652
        %v1654 = vpop.f32.mrf.mxu0
        %v1655 = vadd.f32 0.0, %v1654
        %1656 = vmatmul.bf16.gmra.mxu0 %v854
        %v1657 = vpop.f32.mrf.mxu0
        %v1658 = vadd.f32 0.0, %v1657
        %v1659 = vpop.f32.mrf.mxu0
        %v1660 = vadd.f32 0.0, %v1659
        %1661 = vmatmul.bf16.gmra.mxu0 %v856
        %v1662 = vpop.f32.mrf.mxu0
        %v1663 = vadd.f32 0.0, %v1662
        %v1664 = vpop.f32.mrf.mxu0
        %v1665 = vadd.f32 0.0, %v1664
        %1666 = vmatmul.bf16.gmra.mxu0 %v858
        %v1667 = vpop.f32.mrf.mxu0
        %v1668 = vadd.f32 0.0, %v1667
        %v1669 = vpop.f32.mrf.mxu0
        %v1670 = vadd.f32 0.0, %v1669
        %1671 = vmatmul.bf16.gmra.mxu0 %v860
        %v1672 = vpop.f32.mrf.mxu0
        %v1673 = vadd.f32 0.0, %v1672
        %v1674 = vpop.f32.mrf.mxu0
        %v1675 = vadd.f32 0.0, %v1674
        %1676 = vmatmul.bf16.gmra.mxu0 %v862
        %v1677 = vpop.f32.mrf.mxu0
        %v1678 = vadd.f32 0.0, %v1677
        %v1679 = vpop.f32.mrf.mxu0
        %v1680 = vadd.f32 0.0, %v1679
        %1681 = vmatmul.bf16.gmra.mxu0 %v864
        %v1682 = vpop.f32.mrf.mxu0
        %v1683 = vadd.f32 0.0, %v1682
        %v1684 = vpop.f32.mrf.mxu0
        %v1685 = vadd.f32 0.0, %v1684
        %1686 = vdwg.mxu0
        %1687 = vmatpush.bf16.msra.mxu0 %v1342
        %1688 = vmatpush.bf16.msra.mxu0 %v1336
        %1689 = vmatpush.bf16.msra.mxu0 %v1330
        %1690 = vmatpush.bf16.msra.mxu0 %v1324
        %1691 = vmatpush.bf16.msra.mxu0 %v1318
        %1692 = vmatpush.bf16.msra.mxu0 %v1312
        %1693 = vmatpush.bf16.msra.mxu0 %v1306
        %1694 = vmatpush.bf16.msra.mxu0 %v1300
        %1695 = vmatmul.bf16.gmra.mxu0 %v851
        %v1696 = vpop.f32.mrf.mxu0
        %v1697 = vadd.f32 %v1648, %v1696
        %v1698 = vpop.f32.mrf.mxu0
        %v1699 = vadd.f32 %v1650, %v1698
        %1700 = vmatmul.bf16.gmra.mxu0 %v853
        %v1701 = vpop.f32.mrf.mxu0
        %v1702 = vadd.f32 %v1653, %v1701
        %v1703 = vpop.f32.mrf.mxu0
        %v1704 = vadd.f32 %v1655, %v1703
        %1705 = vmatmul.bf16.gmra.mxu0 %v855
        %v1706 = vpop.f32.mrf.mxu0
        %v1707 = vadd.f32 %v1658, %v1706
        %v1708 = vpop.f32.mrf.mxu0
        %v1709 = vadd.f32 %v1660, %v1708
        %1710 = vmatmul.bf16.gmra.mxu0 %v857
        %v1711 = vpop.f32.mrf.mxu0
        %v1712 = vadd.f32 %v1663, %v1711
        %v1713 = vpop.f32.mrf.mxu0
        %v1714 = vadd.f32 %v1665, %v1713
        %1715 = vmatmul.bf16.gmra.mxu0 %v859
        %v1716 = vpop.f32.mrf.mxu0
        %v1717 = vadd.f32 %v1668, %v1716
        %v1718 = vpop.f32.mrf.mxu0
        %v1719 = vadd.f32 %v1670, %v1718
        %1720 = vmatmul.bf16.gmra.mxu0 %v861
        %v1721 = vpop.f32.mrf.mxu0
        %v1722 = vadd.f32 %v1673, %v1721
        %v1723 = vpop.f32.mrf.mxu0
        %v1724 = vadd.f32 %v1675, %v1723
        %1725 = vmatmul.bf16.gmra.mxu0 %v863
        %v1726 = vpop.f32.mrf.mxu0
        %v1727 = vadd.f32 %v1678, %v1726
        %v1728 = vpop.f32.mrf.mxu0
        %v1729 = vadd.f32 %v1680, %v1728
        %1730 = vmatmul.bf16.gmra.mxu0 %v865
        %v1731 = vpop.f32.mrf.mxu0
        %v1732 = vadd.f32 %v1683, %v1731
        %v1733 = vpop.f32.mrf.mxu0
        %v1734 = vadd.f32 %v1685, %v1733
        %1735 = vdwg.mxu0
        %1736 = vmatpush.bf16.msra.mxu0 %v1295
        %1737 = vmatpush.bf16.msra.mxu0 %v1289
        %1738 = vmatpush.bf16.msra.mxu0 %v1283
        %1739 = vmatpush.bf16.msra.mxu0 %v1277
        %1740 = vmatpush.bf16.msra.mxu0 %v1271
        %1741 = vmatpush.bf16.msra.mxu0 %v1265
        %1742 = vmatpush.bf16.msra.mxu0 %v1259
        %1743 = vmatpush.bf16.msra.mxu0 %v1253
        %1744 = vmatmul.bf16.gmra.mxu0 %v850
        %v1745 = vpop.f32.mrf.mxu0
        %v1746 = vadd.f32 0.0, %v1745
        %v1747 = vpop.f32.mrf.mxu0
        %v1748 = vadd.f32 0.0, %v1747
        %1749 = vmatmul.bf16.gmra.mxu0 %v852
        %v1750 = vpop.f32.mrf.mxu0
        %v1751 = vadd.f32 0.0, %v1750
        %v1752 = vpop.f32.mrf.mxu0
        %v1753 = vadd.f32 0.0, %v1752
        %1754 = vmatmul.bf16.gmra.mxu0 %v854
        %v1755 = vpop.f32.mrf.mxu0
        %v1756 = vadd.f32 0.0, %v1755
        %v1757 = vpop.f32.mrf.mxu0
        %v1758 = vadd.f32 0.0, %v1757
        %1759 = vmatmul.bf16.gmra.mxu0 %v856
        %v1760 = vpop.f32.mrf.mxu0
        %v1761 = vadd.f32 0.0, %v1760
        %v1762 = vpop.f32.mrf.mxu0
        %v1763 = vadd.f32 0.0, %v1762
        %1764 = vmatmul.bf16.gmra.mxu0 %v858
        %v1765 = vpop.f32.mrf.mxu0
        %v1766 = vadd.f32 0.0, %v1765
        %v1767 = vpop.f32.mrf.mxu0
        %v1768 = vadd.f32 0.0, %v1767
        %1769 = vmatmul.bf16.gmra.mxu0 %v860
        %v1770 = vpop.f32.mrf.mxu0
        %v1771 = vadd.f32 0.0, %v1770
        %v1772 = vpop.f32.mrf.mxu0
        %v1773 = vadd.f32 0.0, %v1772
        %1774 = vmatmul.bf16.gmra.mxu0 %v862
        %v1775 = vpop.f32.mrf.mxu0
        %v1776 = vadd.f32 0.0, %v1775
        %v1777 = vpop.f32.mrf.mxu0
        %v1778 = vadd.f32 0.0, %v1777
        %1779 = vmatmul.bf16.gmra.mxu0 %v864
        %v1780 = vpop.f32.mrf.mxu0
        %v1781 = vadd.f32 0.0, %v1780
        %v1782 = vpop.f32.mrf.mxu0
        %v1783 = vadd.f32 0.0, %v1782
        %1784 = vdwg.mxu0
        %1785 = vmatpush.bf16.msra.mxu0 %v1343
        %1786 = vmatpush.bf16.msra.mxu0 %v1337
        %1787 = vmatpush.bf16.msra.mxu0 %v1331
        %1788 = vmatpush.bf16.msra.mxu0 %v1325
        %1789 = vmatpush.bf16.msra.mxu0 %v1319
        %1790 = vmatpush.bf16.msra.mxu0 %v1313
        %1791 = vmatpush.bf16.msra.mxu0 %v1307
        %1792 = vmatpush.bf16.msra.mxu0 %v1301
        %1793 = vmatmul.bf16.gmra.mxu0 %v851
        %v1794 = vpop.f32.mrf.mxu0
        %v1795 = vadd.f32 %v1746, %v1794
        %v1796 = vpop.f32.mrf.mxu0
        %v1797 = vadd.f32 %v1748, %v1796
        %1798 = vmatmul.bf16.gmra.mxu0 %v853
        %v1799 = vpop.f32.mrf.mxu0
        %v1800 = vadd.f32 %v1751, %v1799
        %v1801 = vpop.f32.mrf.mxu0
        %v1802 = vadd.f32 %v1753, %v1801
        %1803 = vmatmul.bf16.gmra.mxu0 %v855
        %v1804 = vpop.f32.mrf.mxu0
        %v1805 = vadd.f32 %v1756, %v1804
        %v1806 = vpop.f32.mrf.mxu0
        %v1807 = vadd.f32 %v1758, %v1806
        %1808 = vmatmul.bf16.gmra.mxu0 %v857
        %v1809 = vpop.f32.mrf.mxu0
        %v1810 = vadd.f32 %v1761, %v1809
        %v1811 = vpop.f32.mrf.mxu0
        %v1812 = vadd.f32 %v1763, %v1811
        %1813 = vmatmul.bf16.gmra.mxu0 %v859
        %v1814 = vpop.f32.mrf.mxu0
        %v1815 = vadd.f32 %v1766, %v1814
        %v1816 = vpop.f32.mrf.mxu0
        %v1817 = vadd.f32 %v1768, %v1816
        %1818 = vmatmul.bf16.gmra.mxu0 %v861
        %v1819 = vpop.f32.mrf.mxu0
        %v1820 = vadd.f32 %v1771, %v1819
        %v1821 = vpop.f32.mrf.mxu0
        %v1822 = vadd.f32 %v1773, %v1821
        %1823 = vmatmul.bf16.gmra.mxu0 %v863
        %v1824 = vpop.f32.mrf.mxu0
        %v1825 = vadd.f32 %v1776, %v1824
        %v1826 = vpop.f32.mrf.mxu0
        %v1827 = vadd.f32 %v1778, %v1826
        %1828 = vmatmul.bf16.gmra.mxu0 %v865
        %v1829 = vpop.f32.mrf.mxu0
        %v1830 = vadd.f32 %v1781, %v1829
        %v1831 = vpop.f32.mrf.mxu0
        %v1832 = vadd.f32 %v1783, %v1831
        %1833 = vdwg.mxu0
        %1834 = vmatpush.bf16.msra.mxu0 %v1296
        %1835 = vmatpush.bf16.msra.mxu0 %v1290
        %1836 = vmatpush.bf16.msra.mxu0 %v1284
        %1837 = vmatpush.bf16.msra.mxu0 %v1278
        %1838 = vmatpush.bf16.msra.mxu0 %v1272
        %1839 = vmatpush.bf16.msra.mxu0 %v1266
        %1840 = vmatpush.bf16.msra.mxu0 %v1260
        %1841 = vmatpush.bf16.msra.mxu0 %v1254
        %1842 = vmatmul.bf16.gmra.mxu0 %v850
        %v1843 = vpop.f32.mrf.mxu0
        %v1844 = vadd.f32 0.0, %v1843
        %v1845 = vpop.f32.mrf.mxu0
        %v1846 = vadd.f32 0.0, %v1845
        %1847 = vmatmul.bf16.gmra.mxu0 %v852
        %v1848 = vpop.f32.mrf.mxu0
        %v1849 = vadd.f32 0.0, %v1848
        %v1850 = vpop.f32.mrf.mxu0
        %v1851 = vadd.f32 0.0, %v1850
        %1852 = vmatmul.bf16.gmra.mxu0 %v854
        %v1853 = vpop.f32.mrf.mxu0
        %v1854 = vadd.f32 0.0, %v1853
        %v1855 = vpop.f32.mrf.mxu0
        %v1856 = vadd.f32 0.0, %v1855
        %1857 = vmatmul.bf16.gmra.mxu0 %v856
        %v1858 = vpop.f32.mrf.mxu0
        %v1859 = vadd.f32 0.0, %v1858
        %v1860 = vpop.f32.mrf.mxu0
        %v1861 = vadd.f32 0.0, %v1860
        %1862 = vmatmul.bf16.gmra.mxu0 %v858
        %v1863 = vpop.f32.mrf.mxu0
        %v1864 = vadd.f32 0.0, %v1863
        %v1865 = vpop.f32.mrf.mxu0
        %v1866 = vadd.f32 0.0, %v1865
        %1867 = vmatmul.bf16.gmra.mxu0 %v860
        %v1868 = vpop.f32.mrf.mxu0
        %v1869 = vadd.f32 0.0, %v1868
        %v1870 = vpop.f32.mrf.mxu0
        %v1871 = vadd.f32 0.0, %v1870
        %1872 = vmatmul.bf16.gmra.mxu0 %v862
        %v1873 = vpop.f32.mrf.mxu0
        %v1874 = vadd.f32 0.0, %v1873
        %v1875 = vpop.f32.mrf.mxu0
        %v1876 = vadd.f32 0.0, %v1875
        %1877 = vmatmul.bf16.gmra.mxu0 %v864
        %v1878 = vpop.f32.mrf.mxu0
        %v1879 = vadd.f32 0.0, %v1878
        %v1880 = vpop.f32.mrf.mxu0
        %v1881 = vadd.f32 0.0, %v1880
        %1882 = vdwg.mxu0
        %1883 = vmatpush.bf16.msra.mxu0 %v1344
        %1884 = vmatpush.bf16.msra.mxu0 %v1338
        %1885 = vmatpush.bf16.msra.mxu0 %v1332
        %1886 = vmatpush.bf16.msra.mxu0 %v1326
        %1887 = vmatpush.bf16.msra.mxu0 %v1320
        %1888 = vmatpush.bf16.msra.mxu0 %v1314
        %1889 = vmatpush.bf16.msra.mxu0 %v1308
        %1890 = vmatpush.bf16.msra.mxu0 %v1302
        %1891 = vmatmul.bf16.gmra.mxu0 %v851
        %v1892 = vpop.f32.mrf.mxu0
        %v1893 = vadd.f32 %v1844, %v1892
        %v1894 = vpop.f32.mrf.mxu0
        %v1895 = vadd.f32 %v1846, %v1894
        %1896 = vmatmul.bf16.gmra.mxu0 %v853
        %v1897 = vpop.f32.mrf.mxu0
        %v1898 = vadd.f32 %v1849, %v1897
        %v1899 = vpop.f32.mrf.mxu0
        %v1900 = vadd.f32 %v1851, %v1899
        %1901 = vmatmul.bf16.gmra.mxu0 %v855
        %v1902 = vpop.f32.mrf.mxu0
        %v1903 = vadd.f32 %v1854, %v1902
        %v1904 = vpop.f32.mrf.mxu0
        %v1905 = vadd.f32 %v1856, %v1904
        %1906 = vmatmul.bf16.gmra.mxu0 %v857
        %v1907 = vpop.f32.mrf.mxu0
        %v1908 = vadd.f32 %v1859, %v1907
        %v1909 = vpop.f32.mrf.mxu0
        %v1910 = vadd.f32 %v1861, %v1909
        %1911 = vmatmul.bf16.gmra.mxu0 %v859
        %v1912 = vpop.f32.mrf.mxu0
        %v1913 = vadd.f32 %v1864, %v1912
        %v1914 = vpop.f32.mrf.mxu0
        %v1915 = vadd.f32 %v1866, %v1914
        %1916 = vmatmul.bf16.gmra.mxu0 %v861
        %v1917 = vpop.f32.mrf.mxu0
        %v1918 = vadd.f32 %v1869, %v1917
        %v1919 = vpop.f32.mrf.mxu0
        %v1920 = vadd.f32 %v1871, %v1919
        %1921 = vmatmul.bf16.gmra.mxu0 %v863
        %v1922 = vpop.f32.mrf.mxu0
        %v1923 = vadd.f32 %v1874, %v1922
        %v1924 = vpop.f32.mrf.mxu0
        %v1925 = vadd.f32 %v1876, %v1924
        %1926 = vmatmul.bf16.gmra.mxu0 %v865
        %v1927 = vpop.f32.mrf.mxu0
        %v1928 = vadd.f32 %v1879, %v1927
        %v1929 = vpop.f32.mrf.mxu0
        %v1930 = vadd.f32 %v1881, %v1929
        %1931 = vdwg.mxu0
        %1932 = vmatpush.bf16.msra.mxu0 %v1297
        %1933 = vmatpush.bf16.msra.mxu0 %v1291
        %1934 = vmatpush.bf16.msra.mxu0 %v1285
        %1935 = vmatpush.bf16.msra.mxu0 %v1279
        %1936 = vmatpush.bf16.msra.mxu0 %v1273
        %1937 = vmatpush.bf16.msra.mxu0 %v1267
        %1938 = vmatpush.bf16.msra.mxu0 %v1261
        %1939 = vmatpush.bf16.msra.mxu0 %v1255
        %1940 = vmatmul.bf16.gmra.mxu0 %v850
        %v1941 = vpop.f32.mrf.mxu0
        %v1942 = vadd.f32 0.0, %v1941
        %v1943 = vpop.f32.mrf.mxu0
        %v1944 = vadd.f32 0.0, %v1943
        %1945 = vmatmul.bf16.gmra.mxu0 %v852
        %v1946 = vpop.f32.mrf.mxu0
        %v1947 = vadd.f32 0.0, %v1946
        %v1948 = vpop.f32.mrf.mxu0
        %v1949 = vadd.f32 0.0, %v1948
        %1950 = vmatmul.bf16.gmra.mxu0 %v854
        %v1951 = vpop.f32.mrf.mxu0
        %v1952 = vadd.f32 0.0, %v1951
        %v1953 = vpop.f32.mrf.mxu0
        %v1954 = vadd.f32 0.0, %v1953
        %1955 = vmatmul.bf16.gmra.mxu0 %v856
        %v1956 = vpop.f32.mrf.mxu0
        %v1957 = vadd.f32 0.0, %v1956
        %v1958 = vpop.f32.mrf.mxu0
        %v1959 = vadd.f32 0.0, %v1958
        %1960 = vmatmul.bf16.gmra.mxu0 %v858
        %v1961 = vpop.f32.mrf.mxu0
        %v1962 = vadd.f32 0.0, %v1961
        %v1963 = vpop.f32.mrf.mxu0
        %v1964 = vadd.f32 0.0, %v1963
        %1965 = vmatmul.bf16.gmra.mxu0 %v860
        %v1966 = vpop.f32.mrf.mxu0
        %v1967 = vadd.f32 0.0, %v1966
        %v1968 = vpop.f32.mrf.mxu0
        %v1969 = vadd.f32 0.0, %v1968
        %1970 = vmatmul.bf16.gmra.mxu0 %v862
        %v1971 = vpop.f32.mrf.mxu0
        %v1972 = vadd.f32 0.0, %v1971
        %v1973 = vpop.f32.mrf.mxu0
        %v1974 = vadd.f32 0.0, %v1973
        %1975 = vmatmul.bf16.gmra.mxu0 %v864
        %v1976 = vpop.f32.mrf.mxu0
        %v1977 = vadd.f32 0.0, %v1976
        %v1978 = vpop.f32.mrf.mxu0
        %v1979 = vadd.f32 0.0, %v1978
        %1980 = vdwg.mxu0
        %1981 = vmatpush.bf16.msra.mxu0 %v1345
        %1982 = vmatpush.bf16.msra.mxu0 %v1339
        %1983 = vmatpush.bf16.msra.mxu0 %v1333
        %1984 = vmatpush.bf16.msra.mxu0 %v1327
        %1985 = vmatpush.bf16.msra.mxu0 %v1321
        %1986 = vmatpush.bf16.msra.mxu0 %v1315
        %1987 = vmatpush.bf16.msra.mxu0 %v1309
        %1988 = vmatpush.bf16.msra.mxu0 %v1303
        %1989 = vmatmul.bf16.gmra.mxu0 %v851
        %v1990 = vpop.f32.mrf.mxu0
        %v1991 = vadd.f32 %v1942, %v1990
        %v1992 = vpop.f32.mrf.mxu0
        %v1993 = vadd.f32 %v1944, %v1992
        %1994 = vmatmul.bf16.gmra.mxu0 %v853
        %v1995 = vpop.f32.mrf.mxu0
        %v1996 = vadd.f32 %v1947, %v1995
        %v1997 = vpop.f32.mrf.mxu0
        %v1998 = vadd.f32 %v1949, %v1997
        %1999 = vmatmul.bf16.gmra.mxu0 %v855
        %v2000 = vpop.f32.mrf.mxu0
        %v2001 = vadd.f32 %v1952, %v2000
        %v2002 = vpop.f32.mrf.mxu0
        %v2003 = vadd.f32 %v1954, %v2002
        %2004 = vmatmul.bf16.gmra.mxu0 %v857
        %v2005 = vpop.f32.mrf.mxu0
        %v2006 = vadd.f32 %v1957, %v2005
        %v2007 = vpop.f32.mrf.mxu0
        %v2008 = vadd.f32 %v1959, %v2007
        %2009 = vmatmul.bf16.gmra.mxu0 %v859
        %v2010 = vpop.f32.mrf.mxu0
        %v2011 = vadd.f32 %v1962, %v2010
        %v2012 = vpop.f32.mrf.mxu0
        %v2013 = vadd.f32 %v1964, %v2012
        %2014 = vmatmul.bf16.gmra.mxu0 %v861
        %v2015 = vpop.f32.mrf.mxu0
        %v2016 = vadd.f32 %v1967, %v2015
        %v2017 = vpop.f32.mrf.mxu0
        %v2018 = vadd.f32 %v1969, %v2017
        %2019 = vmatmul.bf16.gmra.mxu0 %v863
        %v2020 = vpop.f32.mrf.mxu0
        %v2021 = vadd.f32 %v1972, %v2020
        %v2022 = vpop.f32.mrf.mxu0
        %v2023 = vadd.f32 %v1974, %v2022
        %2024 = vmatmul.bf16.gmra.mxu0 %v865
        %v2025 = vpop.f32.mrf.mxu0
        %v2026 = vadd.f32 %v1977, %v2025
        %v2027 = vpop.f32.mrf.mxu0
        %v2028 = vadd.f32 %v1979, %v2027
        %2029 = vdwg.mxu0
        %v2030 = vld [vmem:[#allocation7] sm:$0xff]
        %v2031 = vld [vmem:[#allocation7 + $0x8] sm:$0xff]
        %v2032 = vld [vmem:[#allocation7 + $0x10] sm:$0xff]
        %v2033 = vld [vmem:[#allocation7 + $0x18] sm:$0xff]
        %v2034 = vld [vmem:[#allocation7 + $0x20] sm:$0xff]
        %v2035 = vld [vmem:[#allocation7 + $0x28] sm:$0xff]
        %v2036 = vld [vmem:[#allocation7 + $0x30] sm:$0xff]
        %v2037 = vld [vmem:[#allocation7 + $0x38] sm:$0xff]
        %v2038 = vld [vmem:[#allocation7 + $0x40] sm:$0xff]
        %v2039 = vld [vmem:[#allocation7 + $0x48] sm:$0xff]
        %v2040 = vld [vmem:[#allocation7 + $0x50] sm:$0xff]
        %v2041 = vld [vmem:[#allocation7 + $0x58] sm:$0xff]
        %v2042 = vld [vmem:[#allocation7 + $0x60] sm:$0xff]
        %v2043 = vld [vmem:[#allocation7 + $0x68] sm:$0xff]
        %v2044 = vld [vmem:[#allocation7 + $0x70] sm:$0xff]
        %v2045 = vld [vmem:[#allocation7 + $0x78] sm:$0xff]
        %v2046 = vld [vmem:[#allocation9] sm:$0xff]
        %v2047 = vld [vmem:[#allocation9 + $0x8] sm:$0xff]
        %v2048 = vld [vmem:[#allocation9 + $0x10] sm:$0xff]
        %v2049 = vld [vmem:[#allocation9 + $0x18] sm:$0xff]
        %v2050 = vld [vmem:[#allocation9 + $0x20] sm:$0xff]
        %v2051 = vld [vmem:[#allocation9 + $0x28] sm:$0xff]
        %v2052 = vld [vmem:[#allocation9 + $0x30] sm:$0xff]
        %v2053 = vld [vmem:[#allocation9 + $0x38] sm:$0xff]
        %v2054 = vld [vmem:[#allocation9 + $0x40] sm:$0xff]
        %v2055 = vld [vmem:[#allocation9 + $0x48] sm:$0xff]
        %v2056 = vld [vmem:[#allocation9 + $0x50] sm:$0xff]
        %v2057 = vld [vmem:[#allocation9 + $0x58] sm:$0xff]
        %v2058 = vld [vmem:[#allocation9 + $0x60] sm:$0xff]
        %v2059 = vld [vmem:[#allocation9 + $0x68] sm:$0xff]
        %v2060 = vld [vmem:[#allocation9 + $0x70] sm:$0xff]
        %v2061 = vld [vmem:[#allocation9 + $0x78] sm:$0xff]
        %2062 = vrot.lane.b32.xlu0 %v1501, 64
        %v2063 = vpop.permute.xlu0 %2062
        %2064 = vrot.lane.b32.xlu0 %v1503, 64
        %v2065 = vpop.permute.xlu0 %2064
        %2066 = vrot.lane.b32.xlu0 %v1506, 64
        %v2067 = vpop.permute.xlu0 %2066
        %2068 = vrot.lane.b32.xlu0 %v1508, 64
        %v2069 = vpop.permute.xlu0 %2068
        %2070 = vrot.lane.b32.xlu0 %v1511, 64
        %v2071 = vpop.permute.xlu0 %2070
        %2072 = vrot.lane.b32.xlu0 %v1513, 64
        %v2073 = vpop.permute.xlu0 %2072
        %2074 = vrot.lane.b32.xlu0 %v1516, 64
        %v2075 = vpop.permute.xlu0 %2074
        %2076 = vrot.lane.b32.xlu0 %v1518, 64
        %v2077 = vpop.permute.xlu0 %2076
        %2078 = vrot.lane.b32.xlu0 %v1521, 64
        %v2079 = vpop.permute.xlu0 %2078
        %2080 = vrot.lane.b32.xlu0 %v1523, 64
        %v2081 = vpop.permute.xlu0 %2080
        %2082 = vrot.lane.b32.xlu0 %v1526, 64
        %v2083 = vpop.permute.xlu0 %2082
        %2084 = vrot.lane.b32.xlu0 %v1528, 64
        %v2085 = vpop.permute.xlu0 %2084
        %2086 = vrot.lane.b32.xlu0 %v1531, 64
        %v2087 = vpop.permute.xlu0 %2086
        %2088 = vrot.lane.b32.xlu0 %v1533, 64
        %v2089 = vpop.permute.xlu0 %2088
        %2090 = vrot.lane.b32.xlu0 %v1536, 64
        %v2091 = vpop.permute.xlu0 %2090
        %2092 = vrot.lane.b32.xlu0 %v1538, 64
        %v2093 = vpop.permute.xlu0 %2092
        %2094 = vrot.lane.b32.xlu0 %v1599, 64
        %v2095 = vpop.permute.xlu0 %2094
        %2096 = vrot.lane.b32.xlu0 %v1601, 64
        %v2097 = vpop.permute.xlu0 %2096
        %2098 = vrot.lane.b32.xlu0 %v1604, 64
        %v2099 = vpop.permute.xlu0 %2098
        %2100 = vrot.lane.b32.xlu0 %v1606, 64
        %v2101 = vpop.permute.xlu0 %2100
        %2102 = vrot.lane.b32.xlu0 %v1609, 64
        %v2103 = vpop.permute.xlu0 %2102
        %2104 = vrot.lane.b32.xlu0 %v1611, 64
        %v2105 = vpop.permute.xlu0 %2104
        %2106 = vrot.lane.b32.xlu0 %v1614, 64
        %v2107 = vpop.permute.xlu0 %2106
        %2108 = vrot.lane.b32.xlu0 %v1616, 64
        %v2109 = vpop.permute.xlu0 %2108
        %2110 = vrot.lane.b32.xlu0 %v1619, 64
        %v2111 = vpop.permute.xlu0 %2110
        %2112 = vrot.lane.b32.xlu0 %v1621, 64
        %v2113 = vpop.permute.xlu0 %2112
        %2114 = vrot.lane.b32.xlu0 %v1624, 64
        %v2115 = vpop.permute.xlu0 %2114
        %2116 = vrot.lane.b32.xlu0 %v1626, 64
        %v2117 = vpop.permute.xlu0 %2116
        %2118 = vrot.lane.b32.xlu0 %v1629, 64
        %v2119 = vpop.permute.xlu0 %2118
        %2120 = vrot.lane.b32.xlu0 %v1631, 64
        %v2121 = vpop.permute.xlu0 %2120
        %2122 = vrot.lane.b32.xlu0 %v1634, 64
        %v2123 = vpop.permute.xlu0 %2122
        %2124 = vrot.lane.b32.xlu0 %v1636, 64
        %v2125 = vpop.permute.xlu0 %2124
        %v2126 = vmul.f32 %v1501, %v2030
        %v2127 = vmul.f32 %v1503, %v2031
        %v2128 = vmul.f32 %v1506, %v2032
        %v2129 = vmul.f32 %v1508, %v2033
        %v2130 = vmul.f32 %v1511, %v2034
        %v2131 = vmul.f32 %v1513, %v2035
        %v2132 = vmul.f32 %v1516, %v2036
        %v2133 = vmul.f32 %v1518, %v2037
        %v2134 = vmul.f32 %v1521, %v2038
        %v2135 = vmul.f32 %v1523, %v2039
        %v2136 = vmul.f32 %v1526, %v2040
        %v2137 = vmul.f32 %v1528, %v2041
        %v2138 = vmul.f32 %v1531, %v2042
        %v2139 = vmul.f32 %v1533, %v2043
        %v2140 = vmul.f32 %v1536, %v2044
        %v2141 = vmul.f32 %v1538, %v2045
        %v2142 = vmul.f32 %v1599, %v2030
        %v2143 = vmul.f32 %v1601, %v2031
        %v2144 = vmul.f32 %v1604, %v2032
        %v2145 = vmul.f32 %v1606, %v2033
        %v2146 = vmul.f32 %v1609, %v2034
        %v2147 = vmul.f32 %v1611, %v2035
        %v2148 = vmul.f32 %v1614, %v2036
        %v2149 = vmul.f32 %v1616, %v2037
        %v2150 = vmul.f32 %v1619, %v2038
        %v2151 = vmul.f32 %v1621, %v2039
        %v2152 = vmul.f32 %v1624, %v2040
        %v2153 = vmul.f32 %v1626, %v2041
        %v2154 = vmul.f32 %v1629, %v2042
        %v2155 = vmul.f32 %v1631, %v2043
        %v2156 = vmul.f32 %v1634, %v2044
        %v2157 = vmul.f32 %v1636, %v2045
        %v2158 = vmul.f32 %v2063, %v2046
        %v2159 = vmul.f32 %v2065, %v2047
        %v2160 = vmul.f32 %v2067, %v2048
        %v2161 = vmul.f32 %v2069, %v2049
        %v2162 = vmul.f32 %v2071, %v2050
        %v2163 = vmul.f32 %v2073, %v2051
        %v2164 = vmul.f32 %v2075, %v2052
        %v2165 = vmul.f32 %v2077, %v2053
        %v2166 = vmul.f32 %v2079, %v2054
        %v2167 = vmul.f32 %v2081, %v2055
        %v2168 = vmul.f32 %v2083, %v2056
        %v2169 = vmul.f32 %v2085, %v2057
        %v2170 = vmul.f32 %v2087, %v2058
        %v2171 = vmul.f32 %v2089, %v2059
        %v2172 = vmul.f32 %v2091, %v2060
        %v2173 = vmul.f32 %v2093, %v2061
        %v2174 = vmul.f32 %v2095, %v2046
        %v2175 = vmul.f32 %v2097, %v2047
        %v2176 = vmul.f32 %v2099, %v2048
        %v2177 = vmul.f32 %v2101, %v2049
        %v2178 = vmul.f32 %v2103, %v2050
        %v2179 = vmul.f32 %v2105, %v2051
        %v2180 = vmul.f32 %v2107, %v2052
        %v2181 = vmul.f32 %v2109, %v2053
        %v2182 = vmul.f32 %v2111, %v2054
        %v2183 = vmul.f32 %v2113, %v2055
        %v2184 = vmul.f32 %v2115, %v2056
        %v2185 = vmul.f32 %v2117, %v2057
        %v2186 = vmul.f32 %v2119, %v2058
        %v2187 = vmul.f32 %v2121, %v2059
        %v2188 = vmul.f32 %v2123, %v2060
        %v2189 = vmul.f32 %v2125, %v2061
        %v2190 = vadd.f32 %v2126, %v2158
        %v2191 = vadd.f32 %v2127, %v2159
        %v2192 = vadd.f32 %v2128, %v2160
        %v2193 = vadd.f32 %v2129, %v2161
        %v2194 = vadd.f32 %v2130, %v2162
        %v2195 = vadd.f32 %v2131, %v2163
        %v2196 = vadd.f32 %v2132, %v2164
        %v2197 = vadd.f32 %v2133, %v2165
        %v2198 = vadd.f32 %v2134, %v2166
        %v2199 = vadd.f32 %v2135, %v2167
        %v2200 = vadd.f32 %v2136, %v2168
        %v2201 = vadd.f32 %v2137, %v2169
        %v2202 = vadd.f32 %v2138, %v2170
        %v2203 = vadd.f32 %v2139, %v2171
        %v2204 = vadd.f32 %v2140, %v2172
        %v2205 = vadd.f32 %v2141, %v2173
        %v2206 = vadd.f32 %v2142, %v2174
        %v2207 = vadd.f32 %v2143, %v2175
        %v2208 = vadd.f32 %v2144, %v2176
        %v2209 = vadd.f32 %v2145, %v2177
        %v2210 = vadd.f32 %v2146, %v2178
        %v2211 = vadd.f32 %v2147, %v2179
        %v2212 = vadd.f32 %v2148, %v2180
        %v2213 = vadd.f32 %v2149, %v2181
        %v2214 = vadd.f32 %v2150, %v2182
        %v2215 = vadd.f32 %v2151, %v2183
        %v2216 = vadd.f32 %v2152, %v2184
        %v2217 = vadd.f32 %v2153, %v2185
        %v2218 = vadd.f32 %v2154, %v2186
        %v2219 = vadd.f32 %v2155, %v2187
        %v2220 = vadd.f32 %v2156, %v2188
        %v2221 = vadd.f32 %v2157, %v2189
        %v2222 = vmul.f32 %v2190, 0.088388346
        %v2223 = vmul.f32 %v2191, 0.088388346
        %v2224 = vmul.f32 %v2192, 0.088388346
        %v2225 = vmul.f32 %v2193, 0.088388346
        %v2226 = vmul.f32 %v2194, 0.088388346
        %v2227 = vmul.f32 %v2195, 0.088388346
        %v2228 = vmul.f32 %v2196, 0.088388346
        %v2229 = vmul.f32 %v2197, 0.088388346
        %v2230 = vmul.f32 %v2198, 0.088388346
        %v2231 = vmul.f32 %v2199, 0.088388346
        %v2232 = vmul.f32 %v2200, 0.088388346
        %v2233 = vmul.f32 %v2201, 0.088388346
        %v2234 = vmul.f32 %v2202, 0.088388346
        %v2235 = vmul.f32 %v2203, 0.088388346
        %v2236 = vmul.f32 %v2204, 0.088388346
        %v2237 = vmul.f32 %v2205, 0.088388346
        %v2238 = vmul.f32 %v2206, 0.088388346
        %v2239 = vmul.f32 %v2207, 0.088388346
        %v2240 = vmul.f32 %v2208, 0.088388346
        %v2241 = vmul.f32 %v2209, 0.088388346
        %v2242 = vmul.f32 %v2210, 0.088388346
        %v2243 = vmul.f32 %v2211, 0.088388346
        %v2244 = vmul.f32 %v2212, 0.088388346
        %v2245 = vmul.f32 %v2213, 0.088388346
        %v2246 = vmul.f32 %v2214, 0.088388346
        %v2247 = vmul.f32 %v2215, 0.088388346
        %v2248 = vmul.f32 %v2216, 0.088388346
        %v2249 = vmul.f32 %v2217, 0.088388346
        %v2250 = vmul.f32 %v2218, 0.088388346
        %v2251 = vmul.f32 %v2219, 0.088388346
        %v2252 = vmul.f32 %v2220, 0.088388346
        %v2253 = vmul.f32 %v2221, 0.088388346
        %v2254 = vpack.c.bf16 %v2222, %v2222
        %v2255 = vpack.c.bf16 %v2223, %v2223
        %v2256 = vpack.c.bf16 %v2224, %v2224
        %v2257 = vpack.c.bf16 %v2225, %v2225
        %v2258 = vpack.c.bf16 %v2226, %v2226
        %v2259 = vpack.c.bf16 %v2227, %v2227
        %v2260 = vpack.c.bf16 %v2228, %v2228
        %v2261 = vpack.c.bf16 %v2229, %v2229
        %v2262 = vpack.c.bf16 %v2230, %v2230
        %v2263 = vpack.c.bf16 %v2231, %v2231
        %v2264 = vpack.c.bf16 %v2232, %v2232
        %v2265 = vpack.c.bf16 %v2233, %v2233
        %v2266 = vpack.c.bf16 %v2234, %v2234
        %v2267 = vpack.c.bf16 %v2235, %v2235
        %v2268 = vpack.c.bf16 %v2236, %v2236
        %v2269 = vpack.c.bf16 %v2237, %v2237
        %v2270 = vpack.c.bf16 %v2238, %v2238
        %v2271 = vpack.c.bf16 %v2239, %v2239
        %v2272 = vpack.c.bf16 %v2240, %v2240
        %v2273 = vpack.c.bf16 %v2241, %v2241
        %v2274 = vpack.c.bf16 %v2242, %v2242
        %v2275 = vpack.c.bf16 %v2243, %v2243
        %v2276 = vpack.c.bf16 %v2244, %v2244
        %v2277 = vpack.c.bf16 %v2245, %v2245
        %v2278 = vpack.c.bf16 %v2246, %v2246
        %v2279 = vpack.c.bf16 %v2247, %v2247
        %v2280 = vpack.c.bf16 %v2248, %v2248
        %v2281 = vpack.c.bf16 %v2249, %v2249
        %v2282 = vpack.c.bf16 %v2250, %v2250
        %v2283 = vpack.c.bf16 %v2251, %v2251
        %v2284 = vpack.c.bf16 %v2252, %v2252
        %v2285 = vpack.c.bf16 %v2253, %v2253
        %2286 = vrot.lane.b32.xlu0 %v1697, 64
        %v2287 = vpop.permute.xlu0 %2286
        %2288 = vrot.lane.b32.xlu0 %v1699, 64
        %v2289 = vpop.permute.xlu0 %2288
        %2290 = vrot.lane.b32.xlu0 %v1702, 64
        %v2291 = vpop.permute.xlu0 %2290
        %2292 = vrot.lane.b32.xlu0 %v1704, 64
        %v2293 = vpop.permute.xlu0 %2292
        %2294 = vrot.lane.b32.xlu0 %v1707, 64
        %v2295 = vpop.permute.xlu0 %2294
        %2296 = vrot.lane.b32.xlu0 %v1709, 64
        %v2297 = vpop.permute.xlu0 %2296
        %2298 = vrot.lane.b32.xlu0 %v1712, 64
        %v2299 = vpop.permute.xlu0 %2298
        %2300 = vrot.lane.b32.xlu0 %v1714, 64
        %v2301 = vpop.permute.xlu0 %2300
        %2302 = vrot.lane.b32.xlu0 %v1717, 64
        %v2303 = vpop.permute.xlu0 %2302
        %2304 = vrot.lane.b32.xlu0 %v1719, 64
        %v2305 = vpop.permute.xlu0 %2304
        %2306 = vrot.lane.b32.xlu0 %v1722, 64
        %v2307 = vpop.permute.xlu0 %2306
        %2308 = vrot.lane.b32.xlu0 %v1724, 64
        %v2309 = vpop.permute.xlu0 %2308
        %2310 = vrot.lane.b32.xlu0 %v1727, 64
        %v2311 = vpop.permute.xlu0 %2310
        %2312 = vrot.lane.b32.xlu0 %v1729, 64
        %v2313 = vpop.permute.xlu0 %2312
        %2314 = vrot.lane.b32.xlu0 %v1732, 64
        %v2315 = vpop.permute.xlu0 %2314
        %2316 = vrot.lane.b32.xlu0 %v1734, 64
        %v2317 = vpop.permute.xlu0 %2316
        %2318 = vrot.lane.b32.xlu0 %v1795, 64
        %v2319 = vpop.permute.xlu0 %2318
        %2320 = vrot.lane.b32.xlu0 %v1797, 64
        %v2321 = vpop.permute.xlu0 %2320
        %2322 = vrot.lane.b32.xlu0 %v1800, 64
        %v2323 = vpop.permute.xlu0 %2322
        %2324 = vrot.lane.b32.xlu0 %v1802, 64
        %v2325 = vpop.permute.xlu0 %2324
        %2326 = vrot.lane.b32.xlu0 %v1805, 64
        %v2327 = vpop.permute.xlu0 %2326
        %2328 = vrot.lane.b32.xlu0 %v1807, 64
        %v2329 = vpop.permute.xlu0 %2328
        %2330 = vrot.lane.b32.xlu0 %v1810, 64
        %v2331 = vpop.permute.xlu0 %2330
        %2332 = vrot.lane.b32.xlu0 %v1812, 64
        %v2333 = vpop.permute.xlu0 %2332
        %2334 = vrot.lane.b32.xlu0 %v1815, 64
        %v2335 = vpop.permute.xlu0 %2334
        %2336 = vrot.lane.b32.xlu0 %v1817, 64
        %v2337 = vpop.permute.xlu0 %2336
        %2338 = vrot.lane.b32.xlu0 %v1820, 64
        %v2339 = vpop.permute.xlu0 %2338
        %2340 = vrot.lane.b32.xlu0 %v1822, 64
        %v2341 = vpop.permute.xlu0 %2340
        %2342 = vrot.lane.b32.xlu0 %v1825, 64
        %v2343 = vpop.permute.xlu0 %2342
        %2344 = vrot.lane.b32.xlu0 %v1827, 64
        %v2345 = vpop.permute.xlu0 %2344
        %2346 = vrot.lane.b32.xlu0 %v1830, 64
        %v2347 = vpop.permute.xlu0 %2346
        %2348 = vrot.lane.b32.xlu0 %v1832, 64
        %v2349 = vpop.permute.xlu0 %2348
        %v2350 = vmul.f32 %v1697, %v2030
        %v2351 = vmul.f32 %v1699, %v2031
        %v2352 = vmul.f32 %v1702, %v2032
        %v2353 = vmul.f32 %v1704, %v2033
        %v2354 = vmul.f32 %v1707, %v2034
        %v2355 = vmul.f32 %v1709, %v2035
        %v2356 = vmul.f32 %v1712, %v2036
        %v2357 = vmul.f32 %v1714, %v2037
        %v2358 = vmul.f32 %v1717, %v2038
        %v2359 = vmul.f32 %v1719, %v2039
        %v2360 = vmul.f32 %v1722, %v2040
        %v2361 = vmul.f32 %v1724, %v2041
        %v2362 = vmul.f32 %v1727, %v2042
        %v2363 = vmul.f32 %v1729, %v2043
        %v2364 = vmul.f32 %v1732, %v2044
        %v2365 = vmul.f32 %v1734, %v2045
        %v2366 = vmul.f32 %v1795, %v2030
        %v2367 = vmul.f32 %v1797, %v2031
        %v2368 = vmul.f32 %v1800, %v2032
        %v2369 = vmul.f32 %v1802, %v2033
        %v2370 = vmul.f32 %v1805, %v2034
        %v2371 = vmul.f32 %v1807, %v2035
        %v2372 = vmul.f32 %v1810, %v2036
        %v2373 = vmul.f32 %v1812, %v2037
        %v2374 = vmul.f32 %v1815, %v2038
        %v2375 = vmul.f32 %v1817, %v2039
        %v2376 = vmul.f32 %v1820, %v2040
        %v2377 = vmul.f32 %v1822, %v2041
        %v2378 = vmul.f32 %v1825, %v2042
        %v2379 = vmul.f32 %v1827, %v2043
        %v2380 = vmul.f32 %v1830, %v2044
        %v2381 = vmul.f32 %v1832, %v2045
        %v2382 = vmul.f32 %v2287, %v2046
        %v2383 = vmul.f32 %v2289, %v2047
        %v2384 = vmul.f32 %v2291, %v2048
        %v2385 = vmul.f32 %v2293, %v2049
        %v2386 = vmul.f32 %v2295, %v2050
        %v2387 = vmul.f32 %v2297, %v2051
        %v2388 = vmul.f32 %v2299, %v2052
        %v2389 = vmul.f32 %v2301, %v2053
        %v2390 = vmul.f32 %v2303, %v2054
        %v2391 = vmul.f32 %v2305, %v2055
        %v2392 = vmul.f32 %v2307, %v2056
        %v2393 = vmul.f32 %v2309, %v2057
        %v2394 = vmul.f32 %v2311, %v2058
        %v2395 = vmul.f32 %v2313, %v2059
        %v2396 = vmul.f32 %v2315, %v2060
        %v2397 = vmul.f32 %v2317, %v2061
        %v2398 = vmul.f32 %v2319, %v2046
        %v2399 = vmul.f32 %v2321, %v2047
        %v2400 = vmul.f32 %v2323, %v2048
        %v2401 = vmul.f32 %v2325, %v2049
        %v2402 = vmul.f32 %v2327, %v2050
        %v2403 = vmul.f32 %v2329, %v2051
        %v2404 = vmul.f32 %v2331, %v2052
        %v2405 = vmul.f32 %v2333, %v2053
        %v2406 = vmul.f32 %v2335, %v2054
        %v2407 = vmul.f32 %v2337, %v2055
        %v2408 = vmul.f32 %v2339, %v2056
        %v2409 = vmul.f32 %v2341, %v2057
        %v2410 = vmul.f32 %v2343, %v2058
        %v2411 = vmul.f32 %v2345, %v2059
        %v2412 = vmul.f32 %v2347, %v2060
        %v2413 = vmul.f32 %v2349, %v2061
        %v2414 = vadd.f32 %v2350, %v2382
        %v2415 = vadd.f32 %v2351, %v2383
        %v2416 = vadd.f32 %v2352, %v2384
        %v2417 = vadd.f32 %v2353, %v2385
        %v2418 = vadd.f32 %v2354, %v2386
        %v2419 = vadd.f32 %v2355, %v2387
        %v2420 = vadd.f32 %v2356, %v2388
        %v2421 = vadd.f32 %v2357, %v2389
        %v2422 = vadd.f32 %v2358, %v2390
        %v2423 = vadd.f32 %v2359, %v2391
        %v2424 = vadd.f32 %v2360, %v2392
        %v2425 = vadd.f32 %v2361, %v2393
        %v2426 = vadd.f32 %v2362, %v2394
        %v2427 = vadd.f32 %v2363, %v2395
        %v2428 = vadd.f32 %v2364, %v2396
        %v2429 = vadd.f32 %v2365, %v2397
        %v2430 = vadd.f32 %v2366, %v2398
        %v2431 = vadd.f32 %v2367, %v2399
        %v2432 = vadd.f32 %v2368, %v2400
        %v2433 = vadd.f32 %v2369, %v2401
        %v2434 = vadd.f32 %v2370, %v2402
        %v2435 = vadd.f32 %v2371, %v2403
        %v2436 = vadd.f32 %v2372, %v2404
        %v2437 = vadd.f32 %v2373, %v2405
        %v2438 = vadd.f32 %v2374, %v2406
        %v2439 = vadd.f32 %v2375, %v2407
        %v2440 = vadd.f32 %v2376, %v2408
        %v2441 = vadd.f32 %v2377, %v2409
        %v2442 = vadd.f32 %v2378, %v2410
        %v2443 = vadd.f32 %v2379, %v2411
        %v2444 = vadd.f32 %v2380, %v2412
        %v2445 = vadd.f32 %v2381, %v2413
        %v2446 = vpack.c.bf16 %v2414, %v2414
        %v2447 = vpack.c.bf16 %v2415, %v2415
        %v2448 = vpack.c.bf16 %v2416, %v2416
        %v2449 = vpack.c.bf16 %v2417, %v2417
        %v2450 = vpack.c.bf16 %v2418, %v2418
        %v2451 = vpack.c.bf16 %v2419, %v2419
        %v2452 = vpack.c.bf16 %v2420, %v2420
        %v2453 = vpack.c.bf16 %v2421, %v2421
        %v2454 = vpack.c.bf16 %v2422, %v2422
        %v2455 = vpack.c.bf16 %v2423, %v2423
        %v2456 = vpack.c.bf16 %v2424, %v2424
        %v2457 = vpack.c.bf16 %v2425, %v2425
        %v2458 = vpack.c.bf16 %v2426, %v2426
        %v2459 = vpack.c.bf16 %v2427, %v2427
        %v2460 = vpack.c.bf16 %v2428, %v2428
        %v2461 = vpack.c.bf16 %v2429, %v2429
        %v2462 = vpack.c.bf16 %v2430, %v2430
        %v2463 = vpack.c.bf16 %v2431, %v2431
        %v2464 = vpack.c.bf16 %v2432, %v2432
        %v2465 = vpack.c.bf16 %v2433, %v2433
        %v2466 = vpack.c.bf16 %v2434, %v2434
        %v2467 = vpack.c.bf16 %v2435, %v2435
        %v2468 = vpack.c.bf16 %v2436, %v2436
        %v2469 = vpack.c.bf16 %v2437, %v2437
        %v2470 = vpack.c.bf16 %v2438, %v2438
        %v2471 = vpack.c.bf16 %v2439, %v2439
        %v2472 = vpack.c.bf16 %v2440, %v2440
        %v2473 = vpack.c.bf16 %v2441, %v2441
        %v2474 = vpack.c.bf16 %v2442, %v2442
        %v2475 = vpack.c.bf16 %v2443, %v2443
        %v2476 = vpack.c.bf16 %v2444, %v2444
        %v2477 = vpack.c.bf16 %v2445, %v2445
        %v2478 = vpack.c.bf16 %v1893, %v1893
        %v2479 = vpack.c.bf16 %v1895, %v1895
        %v2480 = vpack.c.bf16 %v1898, %v1898
        %v2481 = vpack.c.bf16 %v1900, %v1900
        %v2482 = vpack.c.bf16 %v1903, %v1903
        %v2483 = vpack.c.bf16 %v1905, %v1905
        %v2484 = vpack.c.bf16 %v1908, %v1908
        %v2485 = vpack.c.bf16 %v1910, %v1910
        %v2486 = vpack.c.bf16 %v1913, %v1913
        %v2487 = vpack.c.bf16 %v1915, %v1915
        %v2488 = vpack.c.bf16 %v1918, %v1918
        %v2489 = vpack.c.bf16 %v1920, %v1920
        %v2490 = vpack.c.bf16 %v1923, %v1923
        %v2491 = vpack.c.bf16 %v1925, %v1925
        %v2492 = vpack.c.bf16 %v1928, %v1928
        %v2493 = vpack.c.bf16 %v1930, %v1930
        %v2494 = vpack.c.bf16 %v1991, %v1991
        %v2495 = vpack.c.bf16 %v1993, %v1993
        %v2496 = vpack.c.bf16 %v1996, %v1996
        %v2497 = vpack.c.bf16 %v1998, %v1998
        %v2498 = vpack.c.bf16 %v2001, %v2001
        %v2499 = vpack.c.bf16 %v2003, %v2003
        %v2500 = vpack.c.bf16 %v2006, %v2006
        %v2501 = vpack.c.bf16 %v2008, %v2008
        %v2502 = vpack.c.bf16 %v2011, %v2011
        %v2503 = vpack.c.bf16 %v2013, %v2013
        %v2504 = vpack.c.bf16 %v2016, %v2016
        %v2505 = vpack.c.bf16 %v2018, %v2018
        %v2506 = vpack.c.bf16 %v2021, %v2021
        %v2507 = vpack.c.bf16 %v2023, %v2023
        %v2508 = vpack.c.bf16 %v2026, %v2026
        %v2509 = vpack.c.bf16 %v2028, %v2028
        %v2526 = vunpack.c.l.b16 %v2254
        %v2527 = vunpack.c.l.b16 %v2255
        %v2528 = vunpack.c.l.b16 %v2256
        %v2529 = vunpack.c.l.b16 %v2257
        %v2530 = vunpack.c.l.b16 %v2258
        %v2531 = vunpack.c.l.b16 %v2259
        %v2532 = vunpack.c.l.b16 %v2260
        %v2533 = vunpack.c.l.b16 %v2261
        %v2534 = vunpack.c.l.b16 %v2262
        %v2535 = vunpack.c.l.b16 %v2263
        %v2536 = vunpack.c.l.b16 %v2264
        %v2537 = vunpack.c.l.b16 %v2265
        %v2538 = vunpack.c.l.b16 %v2266
        %v2539 = vunpack.c.l.b16 %v2267
        %v2540 = vunpack.c.l.b16 %v2268
        %v2541 = vunpack.c.l.b16 %v2269
        %v2542 = vpack.c.b16 %v2527, %v2526
        %v2543 = vpack.c.b16 %v2529, %v2528
        %v2544 = vpack.c.b16 %v2531, %v2530
        %v2545 = vpack.c.b16 %v2533, %v2532
        %v2546 = vpack.c.b16 %v2535, %v2534
        %v2547 = vpack.c.b16 %v2537, %v2536
        %v2548 = vpack.c.b16 %v2539, %v2538
        %v2549 = vpack.c.b16 %v2541, %v2540
        %v2574 = vunpack.c.l.b16 %v2446
        %v2575 = vunpack.c.l.b16 %v2447
        %v2576 = vunpack.c.l.b16 %v2448
        %v2577 = vunpack.c.l.b16 %v2449
        %v2578 = vunpack.c.l.b16 %v2450
        %v2579 = vunpack.c.l.b16 %v2451
        %v2580 = vunpack.c.l.b16 %v2452
        %v2581 = vunpack.c.l.b16 %v2453
        %v2582 = vunpack.c.l.b16 %v2454
        %v2583 = vunpack.c.l.b16 %v2455
        %v2584 = vunpack.c.l.b16 %v2456
        %v2585 = vunpack.c.l.b16 %v2457
        %v2586 = vunpack.c.l.b16 %v2458
        %v2587 = vunpack.c.l.b16 %v2459
        %v2588 = vunpack.c.l.b16 %v2460
        %v2589 = vunpack.c.l.b16 %v2461
        %v2590 = vpack.c.b16 %v2575, %v2574
        %v2591 = vpack.c.b16 %v2577, %v2576
        %v2592 = vpack.c.b16 %v2579, %v2578
        %v2593 = vpack.c.b16 %v2581, %v2580
        %v2594 = vpack.c.b16 %v2583, %v2582
        %v2595 = vpack.c.b16 %v2585, %v2584
        %v2596 = vpack.c.b16 %v2587, %v2586
        %v2597 = vpack.c.b16 %v2589, %v2588
        %2606 = vmatpush.bf16.xpose.msra.mxu0 %v2597
        %2607 = vmatpush.bf16.xpose.msra.mxu0 %v2596
        %2608 = vmatpush.bf16.xpose.msra.mxu0 %v2595
        %2609 = vmatpush.bf16.xpose.msra.mxu0 %v2594
        %2610 = vmatpush.bf16.xpose.msra.mxu0 %v2593
        %2611 = vmatpush.bf16.xpose.msra.mxu0 %v2592
        %2612 = vmatpush.bf16.xpose.msra.mxu0 %v2591
        %2613 = vmatpush.bf16.xpose.msra.mxu0 %v2590
        %2614 = vmatmul.bf16.gmra.mxu0 %v2542
        %v2615 = vpop.f32.mrf.mxu0
        %v2616 = vadd.f32 0.0, %v2615
        %v2617 = vpop.f32.mrf.mxu0
        %v2618 = vadd.f32 0.0, %v2617
        %2619 = vmatmul.bf16.gmra.mxu0 %v2543
        %v2620 = vpop.f32.mrf.mxu0
        %v2621 = vadd.f32 0.0, %v2620
        %v2622 = vpop.f32.mrf.mxu0
        %v2623 = vadd.f32 0.0, %v2622
        %2624 = vmatmul.bf16.gmra.mxu0 %v2544
        %v2625 = vpop.f32.mrf.mxu0
        %v2626 = vadd.f32 0.0, %v2625
        %v2627 = vpop.f32.mrf.mxu0
        %v2628 = vadd.f32 0.0, %v2627
        %2629 = vmatmul.bf16.gmra.mxu0 %v2545
        %v2630 = vpop.f32.mrf.mxu0
        %v2631 = vadd.f32 0.0, %v2630
        %v2632 = vpop.f32.mrf.mxu0
        %v2633 = vadd.f32 0.0, %v2632
        %2634 = vmatmul.bf16.gmra.mxu0 %v2546
        %v2635 = vpop.f32.mrf.mxu0
        %v2636 = vadd.f32 0.0, %v2635
        %v2637 = vpop.f32.mrf.mxu0
        %v2638 = vadd.f32 0.0, %v2637
        %2639 = vmatmul.bf16.gmra.mxu0 %v2547
        %v2640 = vpop.f32.mrf.mxu0
        %v2641 = vadd.f32 0.0, %v2640
        %v2642 = vpop.f32.mrf.mxu0
        %v2643 = vadd.f32 0.0, %v2642
        %2644 = vmatmul.bf16.gmra.mxu0 %v2548
        %v2645 = vpop.f32.mrf.mxu0
        %v2646 = vadd.f32 0.0, %v2645
        %v2647 = vpop.f32.mrf.mxu0
        %v2648 = vadd.f32 0.0, %v2647
        %2649 = vmatmul.bf16.gmra.mxu0 %v2549
        %v2650 = vpop.f32.mrf.mxu0
        %v2651 = vadd.f32 0.0, %v2650
        %v2652 = vpop.f32.mrf.mxu0
        %v2653 = vadd.f32 0.0, %v2652
        %2654 = vdwg.mxu0
        %v2671 = vunpack.c.l.b16 %v2270
        %v2672 = vunpack.c.l.b16 %v2271
        %v2673 = vunpack.c.l.b16 %v2272
        %v2674 = vunpack.c.l.b16 %v2273
        %v2675 = vunpack.c.l.b16 %v2274
        %v2676 = vunpack.c.l.b16 %v2275
        %v2677 = vunpack.c.l.b16 %v2276
        %v2678 = vunpack.c.l.b16 %v2277
        %v2679 = vunpack.c.l.b16 %v2278
        %v2680 = vunpack.c.l.b16 %v2279
        %v2681 = vunpack.c.l.b16 %v2280
        %v2682 = vunpack.c.l.b16 %v2281
        %v2683 = vunpack.c.l.b16 %v2282
        %v2684 = vunpack.c.l.b16 %v2283
        %v2685 = vunpack.c.l.b16 %v2284
        %v2686 = vunpack.c.l.b16 %v2285
        %v2687 = vpack.c.b16 %v2672, %v2671
        %v2688 = vpack.c.b16 %v2674, %v2673
        %v2689 = vpack.c.b16 %v2676, %v2675
        %v2690 = vpack.c.b16 %v2678, %v2677
        %v2691 = vpack.c.b16 %v2680, %v2679
        %v2692 = vpack.c.b16 %v2682, %v2681
        %v2693 = vpack.c.b16 %v2684, %v2683
        %v2694 = vpack.c.b16 %v2686, %v2685
        %v2719 = vunpack.c.l.b16 %v2462
        %v2720 = vunpack.c.l.b16 %v2463
        %v2721 = vunpack.c.l.b16 %v2464
        %v2722 = vunpack.c.l.b16 %v2465
        %v2723 = vunpack.c.l.b16 %v2466
        %v2724 = vunpack.c.l.b16 %v2467
        %v2725 = vunpack.c.l.b16 %v2468
        %v2726 = vunpack.c.l.b16 %v2469
        %v2727 = vunpack.c.l.b16 %v2470
        %v2728 = vunpack.c.l.b16 %v2471
        %v2729 = vunpack.c.l.b16 %v2472
        %v2730 = vunpack.c.l.b16 %v2473
        %v2731 = vunpack.c.l.b16 %v2474
        %v2732 = vunpack.c.l.b16 %v2475
        %v2733 = vunpack.c.l.b16 %v2476
        %v2734 = vunpack.c.l.b16 %v2477
        %v2735 = vpack.c.b16 %v2720, %v2719
        %v2736 = vpack.c.b16 %v2722, %v2721
        %v2737 = vpack.c.b16 %v2724, %v2723
        %v2738 = vpack.c.b16 %v2726, %v2725
        %v2739 = vpack.c.b16 %v2728, %v2727
        %v2740 = vpack.c.b16 %v2730, %v2729
        %v2741 = vpack.c.b16 %v2732, %v2731
        %v2742 = vpack.c.b16 %v2734, %v2733
        %2751 = vmatpush.bf16.xpose.msra.mxu0 %v2742
        %2752 = vmatpush.bf16.xpose.msra.mxu0 %v2741
        %2753 = vmatpush.bf16.xpose.msra.mxu0 %v2740
        %2754 = vmatpush.bf16.xpose.msra.mxu0 %v2739
        %2755 = vmatpush.bf16.xpose.msra.mxu0 %v2738
        %2756 = vmatpush.bf16.xpose.msra.mxu0 %v2737
        %2757 = vmatpush.bf16.xpose.msra.mxu0 %v2736
        %2758 = vmatpush.bf16.xpose.msra.mxu0 %v2735
        %2759 = vmatmul.bf16.gmra.mxu0 %v2687
        %v2760 = vpop.f32.mrf.mxu0
        %v2761 = vadd.f32 0.0, %v2760
        %v2762 = vpop.f32.mrf.mxu0
        %v2763 = vadd.f32 0.0, %v2762
        %2764 = vmatmul.bf16.gmra.mxu0 %v2688
        %v2765 = vpop.f32.mrf.mxu0
        %v2766 = vadd.f32 0.0, %v2765
        %v2767 = vpop.f32.mrf.mxu0
        %v2768 = vadd.f32 0.0, %v2767
        %2769 = vmatmul.bf16.gmra.mxu0 %v2689
        %v2770 = vpop.f32.mrf.mxu0
        %v2771 = vadd.f32 0.0, %v2770
        %v2772 = vpop.f32.mrf.mxu0
        %v2773 = vadd.f32 0.0, %v2772
        %2774 = vmatmul.bf16.gmra.mxu0 %v2690
        %v2775 = vpop.f32.mrf.mxu0
        %v2776 = vadd.f32 0.0, %v2775
        %v2777 = vpop.f32.mrf.mxu0
        %v2778 = vadd.f32 0.0, %v2777
        %2779 = vmatmul.bf16.gmra.mxu0 %v2691
        %v2780 = vpop.f32.mrf.mxu0
        %v2781 = vadd.f32 0.0, %v2780
        %v2782 = vpop.f32.mrf.mxu0
        %v2783 = vadd.f32 0.0, %v2782
        %2784 = vmatmul.bf16.gmra.mxu0 %v2692
        %v2785 = vpop.f32.mrf.mxu0
        %v2786 = vadd.f32 0.0, %v2785
        %v2787 = vpop.f32.mrf.mxu0
        %v2788 = vadd.f32 0.0, %v2787
        %2789 = vmatmul.bf16.gmra.mxu0 %v2693
        %v2790 = vpop.f32.mrf.mxu0
        %v2791 = vadd.f32 0.0, %v2790
        %v2792 = vpop.f32.mrf.mxu0
        %v2793 = vadd.f32 0.0, %v2792
        %2794 = vmatmul.bf16.gmra.mxu0 %v2694
        %v2795 = vpop.f32.mrf.mxu0
        %v2796 = vadd.f32 0.0, %v2795
        %v2797 = vpop.f32.mrf.mxu0
        %v2798 = vadd.f32 0.0, %v2797
        %2799 = vdwg.mxu0
        %v2800 = vlaneseq
        %v2801 = vshrl.u32 %v2800, 7
        %v2802 = vadd.s32 %v2801, 8
        %v2803 = vadd.s32 %v2801, 16
        %v2804 = vadd.s32 %v2801, 24
        %v2805 = vadd.s32 %v2801, 32
        %v2806 = vadd.s32 %v2801, 40
        %v2807 = vadd.s32 %v2801, 48
        %v2808 = vadd.s32 %v2801, 56
        %v2809 = vadd.s32 %v2801, 64
        %v2810 = vadd.s32 %v2801, 72
        %v2811 = vadd.s32 %v2801, 80
        %v2812 = vadd.s32 %v2801, 88
        %v2813 = vadd.s32 %v2801, 96
        %v2814 = vadd.s32 %v2801, 104
        %v2815 = vadd.s32 %v2801, 112
        %v2816 = vadd.s32 %v2801, 120
        %v2817 = vlaneseq
        %v2818 = vand.u32 %v2817, 127
        %vm2819 = vcmp.le.s32.totalorder %v2818, %v2801
        %vm2820 = vcmp.le.s32.totalorder %v2818, %v2802
        %vm2821 = vcmp.le.s32.totalorder %v2818, %v2803
        %vm2822 = vcmp.le.s32.totalorder %v2818, %v2804
        %vm2823 = vcmp.le.s32.totalorder %v2818, %v2805
        %vm2824 = vcmp.le.s32.totalorder %v2818, %v2806
        %vm2825 = vcmp.le.s32.totalorder %v2818, %v2807
        %vm2826 = vcmp.le.s32.totalorder %v2818, %v2808
        %vm2827 = vcmp.le.s32.totalorder %v2818, %v2809
        %vm2828 = vcmp.le.s32.totalorder %v2818, %v2810
        %vm2829 = vcmp.le.s32.totalorder %v2818, %v2811
        %vm2830 = vcmp.le.s32.totalorder %v2818, %v2812
        %vm2831 = vcmp.le.s32.totalorder %v2818, %v2813
        %vm2832 = vcmp.le.s32.totalorder %v2818, %v2814
        %vm2833 = vcmp.le.s32.totalorder %v2818, %v2815
        %vm2834 = vcmp.le.s32.totalorder %v2818, %v2816
        %v2835 = vsel %vm2819, 1, 0
        %v2836 = vsel %vm2820, 1, 0
        %v2837 = vsel %vm2821, 1, 0
        %v2838 = vsel %vm2822, 1, 0
        %v2839 = vsel %vm2823, 1, 0
        %v2840 = vsel %vm2824, 1, 0
        %v2841 = vsel %vm2825, 1, 0
        %v2842 = vsel %vm2826, 1, 0
        %v2843 = vsel %vm2827, 1, 0
        %v2844 = vsel %vm2828, 1, 0
        %v2845 = vsel %vm2829, 1, 0
        %v2846 = vsel %vm2830, 1, 0
        %v2847 = vsel %vm2831, 1, 0
        %v2848 = vsel %vm2832, 1, 0
        %v2849 = vsel %vm2833, 1, 0
        %v2850 = vsel %vm2834, 1, 0
        %vm2851 = vcmp.eq.s32.totalorder %v2835, 1
        %vm2852 = vcmp.eq.s32.totalorder %v2836, 1
        %vm2853 = vcmp.eq.s32.totalorder %v2837, 1
        %vm2854 = vcmp.eq.s32.totalorder %v2838, 1
        %vm2855 = vcmp.eq.s32.totalorder %v2839, 1
        %vm2856 = vcmp.eq.s32.totalorder %v2840, 1
        %vm2857 = vcmp.eq.s32.totalorder %v2841, 1
        %vm2858 = vcmp.eq.s32.totalorder %v2842, 1
        %vm2859 = vcmp.eq.s32.totalorder %v2843, 1
        %vm2860 = vcmp.eq.s32.totalorder %v2844, 1
        %vm2861 = vcmp.eq.s32.totalorder %v2845, 1
        %vm2862 = vcmp.eq.s32.totalorder %v2846, 1
        %vm2863 = vcmp.eq.s32.totalorder %v2847, 1
        %vm2864 = vcmp.eq.s32.totalorder %v2848, 1
        %vm2865 = vcmp.eq.s32.totalorder %v2849, 1
        %vm2866 = vcmp.eq.s32.totalorder %v2850, 1
        %v2867 = vsel %vm2851, %v2616, -1e+30
        %v2868 = vsel %vm2852, %v2618, -1e+30
        %v2869 = vsel %vm2853, %v2621, -1e+30
        %v2870 = vsel %vm2854, %v2623, -1e+30
        %v2871 = vsel %vm2855, %v2626, -1e+30
        %v2872 = vsel %vm2856, %v2628, -1e+30
        %v2873 = vsel %vm2857, %v2631, -1e+30
        %v2874 = vsel %vm2858, %v2633, -1e+30
        %v2875 = vsel %vm2859, %v2636, -1e+30
        %v2876 = vsel %vm2860, %v2638, -1e+30
        %v2877 = vsel %vm2861, %v2641, -1e+30
        %v2878 = vsel %vm2862, %v2643, -1e+30
        %v2879 = vsel %vm2863, %v2646, -1e+30
        %v2880 = vsel %vm2864, %v2648, -1e+30
        %v2881 = vsel %vm2865, %v2651, -1e+30
        %v2882 = vsel %vm2866, %v2653, -1e+30
        %v2883 = vsel %vm2851, %v2761, -1e+30
        %v2884 = vsel %vm2852, %v2763, -1e+30
        %v2885 = vsel %vm2853, %v2766, -1e+30
        %v2886 = vsel %vm2854, %v2768, -1e+30
        %v2887 = vsel %vm2855, %v2771, -1e+30
        %v2888 = vsel %vm2856, %v2773, -1e+30
        %v2889 = vsel %vm2857, %v2776, -1e+30
        %v2890 = vsel %vm2858, %v2778, -1e+30
        %v2891 = vsel %vm2859, %v2781, -1e+30
        %v2892 = vsel %vm2860, %v2783, -1e+30
        %v2893 = vsel %vm2861, %v2786, -1e+30
        %v2894 = vsel %vm2862, %v2788, -1e+30
        %v2895 = vsel %vm2863, %v2791, -1e+30
        %v2896 = vsel %vm2864, %v2793, -1e+30
        %v2897 = vsel %vm2865, %v2796, -1e+30
        %v2898 = vsel %vm2866, %v2798, -1e+30
        %2899 = vmax.xlane.f32.xlu0 %v2867
        %v2900 = vpop.xlane.xlu0 %2899
        %2901 = vmax.xlane.f32.xlu0 %v2868
        %v2902 = vpop.xlane.xlu0 %2901
        %2903 = vmax.xlane.f32.xlu0 %v2869
        %v2904 = vpop.xlane.xlu0 %2903
        %2905 = vmax.xlane.f32.xlu0 %v2870
        %v2906 = vpop.xlane.xlu0 %2905
        %2907 = vmax.xlane.f32.xlu0 %v2871
        %v2908 = vpop.xlane.xlu0 %2907
        %2909 = vmax.xlane.f32.xlu0 %v2872
        %v2910 = vpop.xlane.xlu0 %2909
        %2911 = vmax.xlane.f32.xlu0 %v2873
        %v2912 = vpop.xlane.xlu0 %2911
        %2913 = vmax.xlane.f32.xlu0 %v2874
        %v2914 = vpop.xlane.xlu0 %2913
        %2915 = vmax.xlane.f32.xlu0 %v2875
        %v2916 = vpop.xlane.xlu0 %2915
        %2917 = vmax.xlane.f32.xlu0 %v2876
        %v2918 = vpop.xlane.xlu0 %2917
        %2919 = vmax.xlane.f32.xlu0 %v2877
        %v2920 = vpop.xlane.xlu0 %2919
        %2921 = vmax.xlane.f32.xlu0 %v2878
        %v2922 = vpop.xlane.xlu0 %2921
        %2923 = vmax.xlane.f32.xlu0 %v2879
        %v2924 = vpop.xlane.xlu0 %2923
        %2925 = vmax.xlane.f32.xlu0 %v2880
        %v2926 = vpop.xlane.xlu0 %2925
        %2927 = vmax.xlane.f32.xlu0 %v2881
        %v2928 = vpop.xlane.xlu0 %2927
        %2929 = vmax.xlane.f32.xlu0 %v2882
        %v2930 = vpop.xlane.xlu0 %2929
        %2931 = vmax.xlane.f32.xlu0 %v2883
        %v2932 = vpop.xlane.xlu0 %2931
        %2933 = vmax.xlane.f32.xlu0 %v2884
        %v2934 = vpop.xlane.xlu0 %2933
        %2935 = vmax.xlane.f32.xlu0 %v2885
        %v2936 = vpop.xlane.xlu0 %2935
        %2937 = vmax.xlane.f32.xlu0 %v2886
        %v2938 = vpop.xlane.xlu0 %2937
        %2939 = vmax.xlane.f32.xlu0 %v2887
        %v2940 = vpop.xlane.xlu0 %2939
        %2941 = vmax.xlane.f32.xlu0 %v2888
        %v2942 = vpop.xlane.xlu0 %2941
        %2943 = vmax.xlane.f32.xlu0 %v2889
        %v2944 = vpop.xlane.xlu0 %2943
        %2945 = vmax.xlane.f32.xlu0 %v2890
        %v2946 = vpop.xlane.xlu0 %2945
        %2947 = vmax.xlane.f32.xlu0 %v2891
        %v2948 = vpop.xlane.xlu0 %2947
        %2949 = vmax.xlane.f32.xlu0 %v2892
        %v2950 = vpop.xlane.xlu0 %2949
        %2951 = vmax.xlane.f32.xlu0 %v2893
        %v2952 = vpop.xlane.xlu0 %2951
        %2953 = vmax.xlane.f32.xlu0 %v2894
        %v2954 = vpop.xlane.xlu0 %2953
        %2955 = vmax.xlane.f32.xlu0 %v2895
        %v2956 = vpop.xlane.xlu0 %2955
        %2957 = vmax.xlane.f32.xlu0 %v2896
        %v2958 = vpop.xlane.xlu0 %2957
        %2959 = vmax.xlane.f32.xlu0 %v2897
        %v2960 = vpop.xlane.xlu0 %2959
        %2961 = vmax.xlane.f32.xlu0 %v2898
        %v2962 = vpop.xlane.xlu0 %2961
        %v2963 = vsub.f32 %v2867, %v2900
        %v2964 = vsub.f32 %v2868, %v2902
        %v2965 = vsub.f32 %v2869, %v2904
        %v2966 = vsub.f32 %v2870, %v2906
        %v2967 = vsub.f32 %v2871, %v2908
        %v2968 = vsub.f32 %v2872, %v2910
        %v2969 = vsub.f32 %v2873, %v2912
        %v2970 = vsub.f32 %v2874, %v2914
        %v2971 = vsub.f32 %v2875, %v2916
        %v2972 = vsub.f32 %v2876, %v2918
        %v2973 = vsub.f32 %v2877, %v2920
        %v2974 = vsub.f32 %v2878, %v2922
        %v2975 = vsub.f32 %v2879, %v2924
        %v2976 = vsub.f32 %v2880, %v2926
        %v2977 = vsub.f32 %v2881, %v2928
        %v2978 = vsub.f32 %v2882, %v2930
        %v2979 = vsub.f32 %v2883, %v2932
        %v2980 = vsub.f32 %v2884, %v2934
        %v2981 = vsub.f32 %v2885, %v2936
        %v2982 = vsub.f32 %v2886, %v2938
        %v2983 = vsub.f32 %v2887, %v2940
        %v2984 = vsub.f32 %v2888, %v2942
        %v2985 = vsub.f32 %v2889, %v2944
        %v2986 = vsub.f32 %v2890, %v2946
        %v2987 = vsub.f32 %v2891, %v2948
        %v2988 = vsub.f32 %v2892, %v2950
        %v2989 = vsub.f32 %v2893, %v2952
        %v2990 = vsub.f32 %v2894, %v2954
        %v2991 = vsub.f32 %v2895, %v2956
        %v2992 = vsub.f32 %v2896, %v2958
        %v2993 = vsub.f32 %v2897, %v2960
        %v2994 = vsub.f32 %v2898, %v2962
        %v2995 = vmul.f32 %v2963, 1.442695
        %v2996 = vpow.pop %v2995
        %v2997 = vmul.f32 %v2964, 1.442695
        %v2998 = vpow.pop %v2997
        %v2999 = vmul.f32 %v2965, 1.442695
        %v3000 = vpow.pop %v2999
        %v3001 = vmul.f32 %v2966, 1.442695
        %v3002 = vpow.pop %v3001
        %v3003 = vmul.f32 %v2967, 1.442695
        %v3004 = vpow.pop %v3003
        %v3005 = vmul.f32 %v2968, 1.442695
        %v3006 = vpow.pop %v3005
        %v3007 = vmul.f32 %v2969, 1.442695
        %v3008 = vpow.pop %v3007
        %v3009 = vmul.f32 %v2970, 1.442695
        %v3010 = vpow.pop %v3009
        %v3011 = vmul.f32 %v2971, 1.442695
        %v3012 = vpow.pop %v3011
        %v3013 = vmul.f32 %v2972, 1.442695
        %v3014 = vpow.pop %v3013
        %v3015 = vmul.f32 %v2973, 1.442695
        %v3016 = vpow.pop %v3015
        %v3017 = vmul.f32 %v2974, 1.442695
        %v3018 = vpow.pop %v3017
        %v3019 = vmul.f32 %v2975, 1.442695
        %v3020 = vpow.pop %v3019
        %v3021 = vmul.f32 %v2976, 1.442695
        %v3022 = vpow.pop %v3021
        %v3023 = vmul.f32 %v2977, 1.442695
        %v3024 = vpow.pop %v3023
        %v3025 = vmul.f32 %v2978, 1.442695
        %v3026 = vpow.pop %v3025
        %v3027 = vmul.f32 %v2979, 1.442695
        %v3028 = vpow.pop %v3027
        %v3029 = vmul.f32 %v2980, 1.442695
        %v3030 = vpow.pop %v3029
        %v3031 = vmul.f32 %v2981, 1.442695
        %v3032 = vpow.pop %v3031
        %v3033 = vmul.f32 %v2982, 1.442695
        %v3034 = vpow.pop %v3033
        %v3035 = vmul.f32 %v2983, 1.442695
        %v3036 = vpow.pop %v3035
        %v3037 = vmul.f32 %v2984, 1.442695
        %v3038 = vpow.pop %v3037
        %v3039 = vmul.f32 %v2985, 1.442695
        %v3040 = vpow.pop %v3039
        %v3041 = vmul.f32 %v2986, 1.442695
        %v3042 = vpow.pop %v3041
        %v3043 = vmul.f32 %v2987, 1.442695
        %v3044 = vpow.pop %v3043
        %v3045 = vmul.f32 %v2988, 1.442695
        %v3046 = vpow.pop %v3045
        %v3047 = vmul.f32 %v2989, 1.442695
        %v3048 = vpow.pop %v3047
        %v3049 = vmul.f32 %v2990, 1.442695
        %v3050 = vpow.pop %v3049
        %v3051 = vmul.f32 %v2991, 1.442695
        %v3052 = vpow.pop %v3051
        %v3053 = vmul.f32 %v2992, 1.442695
        %v3054 = vpow.pop %v3053
        %v3055 = vmul.f32 %v2993, 1.442695
        %v3056 = vpow.pop %v3055
        %v3057 = vmul.f32 %v2994, 1.442695
        %v3058 = vpow.pop %v3057
        %3059 = vadd.xlane.f32.xlu0 %v2996
        %v3060 = vpop.xlane.xlu0 %3059
        %3061 = vadd.xlane.f32.xlu0 %v2998
        %v3062 = vpop.xlane.xlu0 %3061
        %3063 = vadd.xlane.f32.xlu0 %v3000
        %v3064 = vpop.xlane.xlu0 %3063
        %3065 = vadd.xlane.f32.xlu0 %v3002
        %v3066 = vpop.xlane.xlu0 %3065
        %3067 = vadd.xlane.f32.xlu0 %v3004
        %v3068 = vpop.xlane.xlu0 %3067
        %3069 = vadd.xlane.f32.xlu0 %v3006
        %v3070 = vpop.xlane.xlu0 %3069
        %3071 = vadd.xlane.f32.xlu0 %v3008
        %v3072 = vpop.xlane.xlu0 %3071
        %3073 = vadd.xlane.f32.xlu0 %v3010
        %v3074 = vpop.xlane.xlu0 %3073
        %3075 = vadd.xlane.f32.xlu0 %v3012
        %v3076 = vpop.xlane.xlu0 %3075
        %3077 = vadd.xlane.f32.xlu0 %v3014
        %v3078 = vpop.xlane.xlu0 %3077
        %3079 = vadd.xlane.f32.xlu0 %v3016
        %v3080 = vpop.xlane.xlu0 %3079
        %3081 = vadd.xlane.f32.xlu0 %v3018
        %v3082 = vpop.xlane.xlu0 %3081
        %3083 = vadd.xlane.f32.xlu0 %v3020
        %v3084 = vpop.xlane.xlu0 %3083
        %3085 = vadd.xlane.f32.xlu0 %v3022
        %v3086 = vpop.xlane.xlu0 %3085
        %3087 = vadd.xlane.f32.xlu0 %v3024
        %v3088 = vpop.xlane.xlu0 %3087
        %3089 = vadd.xlane.f32.xlu0 %v3026
        %v3090 = vpop.xlane.xlu0 %3089
        %3091 = vadd.xlane.f32.xlu0 %v3028
        %v3092 = vpop.xlane.xlu0 %3091
        %3093 = vadd.xlane.f32.xlu0 %v3030
        %v3094 = vpop.xlane.xlu0 %3093
        %3095 = vadd.xlane.f32.xlu0 %v3032
        %v3096 = vpop.xlane.xlu0 %3095
        %3097 = vadd.xlane.f32.xlu0 %v3034
        %v3098 = vpop.xlane.xlu0 %3097
        %3099 = vadd.xlane.f32.xlu0 %v3036
        %v3100 = vpop.xlane.xlu0 %3099
        %3101 = vadd.xlane.f32.xlu0 %v3038
        %v3102 = vpop.xlane.xlu0 %3101
        %3103 = vadd.xlane.f32.xlu0 %v3040
        %v3104 = vpop.xlane.xlu0 %3103
        %3105 = vadd.xlane.f32.xlu0 %v3042
        %v3106 = vpop.xlane.xlu0 %3105
        %3107 = vadd.xlane.f32.xlu0 %v3044
        %v3108 = vpop.xlane.xlu0 %3107
        %3109 = vadd.xlane.f32.xlu0 %v3046
        %v3110 = vpop.xlane.xlu0 %3109
        %3111 = vadd.xlane.f32.xlu0 %v3048
        %v3112 = vpop.xlane.xlu0 %3111
        %3113 = vadd.xlane.f32.xlu0 %v3050
        %v3114 = vpop.xlane.xlu0 %3113
        %3115 = vadd.xlane.f32.xlu0 %v3052
        %v3116 = vpop.xlane.xlu0 %3115
        %3117 = vadd.xlane.f32.xlu0 %v3054
        %v3118 = vpop.xlane.xlu0 %3117
        %3119 = vadd.xlane.f32.xlu0 %v3056
        %v3120 = vpop.xlane.xlu0 %3119
        %3121 = vadd.xlane.f32.xlu0 %v3058
        %v3122 = vpop.xlane.xlu0 %3121
        %v3123 = vrcp.pop %v3060
        %v3124 = vrcp.pop %v3062
        %v3125 = vrcp.pop %v3064
        %v3126 = vrcp.pop %v3066
        %v3127 = vrcp.pop %v3068
        %v3128 = vrcp.pop %v3070
        %v3129 = vrcp.pop %v3072
        %v3130 = vrcp.pop %v3074
        %v3131 = vrcp.pop %v3076
        %v3132 = vrcp.pop %v3078
        %v3133 = vrcp.pop %v3080
        %v3134 = vrcp.pop %v3082
        %v3135 = vrcp.pop %v3084
        %v3136 = vrcp.pop %v3086
        %v3137 = vrcp.pop %v3088
        %v3138 = vrcp.pop %v3090
        %v3139 = vrcp.pop %v3092
        %v3140 = vrcp.pop %v3094
        %v3141 = vrcp.pop %v3096
        %v3142 = vrcp.pop %v3098
        %v3143 = vrcp.pop %v3100
        %v3144 = vrcp.pop %v3102
        %v3145 = vrcp.pop %v3104
        %v3146 = vrcp.pop %v3106
        %v3147 = vrcp.pop %v3108
        %v3148 = vrcp.pop %v3110
        %v3149 = vrcp.pop %v3112
        %v3150 = vrcp.pop %v3114
        %v3151 = vrcp.pop %v3116
        %v3152 = vrcp.pop %v3118
        %v3153 = vrcp.pop %v3120
        %v3154 = vrcp.pop %v3122
        %v3155 = vmul.f32 %v2996, %v3123
        %v3156 = vmul.f32 %v2998, %v3124
        %v3157 = vmul.f32 %v3000, %v3125
        %v3158 = vmul.f32 %v3002, %v3126
        %v3159 = vmul.f32 %v3004, %v3127
        %v3160 = vmul.f32 %v3006, %v3128
        %v3161 = vmul.f32 %v3008, %v3129
        %v3162 = vmul.f32 %v3010, %v3130
        %v3163 = vmul.f32 %v3012, %v3131
        %v3164 = vmul.f32 %v3014, %v3132
        %v3165 = vmul.f32 %v3016, %v3133
        %v3166 = vmul.f32 %v3018, %v3134
        %v3167 = vmul.f32 %v3020, %v3135
        %v3168 = vmul.f32 %v3022, %v3136
        %v3169 = vmul.f32 %v3024, %v3137
        %v3170 = vmul.f32 %v3026, %v3138
        %v3171 = vmul.f32 %v3028, %v3139
        %v3172 = vmul.f32 %v3030, %v3140
        %v3173 = vmul.f32 %v3032, %v3141
        %v3174 = vmul.f32 %v3034, %v3142
        %v3175 = vmul.f32 %v3036, %v3143
        %v3176 = vmul.f32 %v3038, %v3144
        %v3177 = vmul.f32 %v3040, %v3145
        %v3178 = vmul.f32 %v3042, %v3146
        %v3179 = vmul.f32 %v3044, %v3147
        %v3180 = vmul.f32 %v3046, %v3148
        %v3181 = vmul.f32 %v3048, %v3149
        %v3182 = vmul.f32 %v3050, %v3150
        %v3183 = vmul.f32 %v3052, %v3151
        %v3184 = vmul.f32 %v3054, %v3152
        %v3185 = vmul.f32 %v3056, %v3153
        %v3186 = vmul.f32 %v3058, %v3154
        %v3187 = vpack.c.bf16 %v3155, %v3155
        %v3188 = vpack.c.bf16 %v3156, %v3156
        %v3189 = vpack.c.bf16 %v3157, %v3157
        %v3190 = vpack.c.bf16 %v3158, %v3158
        %v3191 = vpack.c.bf16 %v3159, %v3159
        %v3192 = vpack.c.bf16 %v3160, %v3160
        %v3193 = vpack.c.bf16 %v3161, %v3161
        %v3194 = vpack.c.bf16 %v3162, %v3162
        %v3195 = vpack.c.bf16 %v3163, %v3163
        %v3196 = vpack.c.bf16 %v3164, %v3164
        %v3197 = vpack.c.bf16 %v3165, %v3165
        %v3198 = vpack.c.bf16 %v3166, %v3166
        %v3199 = vpack.c.bf16 %v3167, %v3167
        %v3200 = vpack.c.bf16 %v3168, %v3168
        %v3201 = vpack.c.bf16 %v3169, %v3169
        %v3202 = vpack.c.bf16 %v3170, %v3170
        %v3203 = vpack.c.bf16 %v3171, %v3171
        %v3204 = vpack.c.bf16 %v3172, %v3172
        %v3205 = vpack.c.bf16 %v3173, %v3173
        %v3206 = vpack.c.bf16 %v3174, %v3174
        %v3207 = vpack.c.bf16 %v3175, %v3175
        %v3208 = vpack.c.bf16 %v3176, %v3176
        %v3209 = vpack.c.bf16 %v3177, %v3177
        %v3210 = vpack.c.bf16 %v3178, %v3178
        %v3211 = vpack.c.bf16 %v3179, %v3179
        %v3212 = vpack.c.bf16 %v3180, %v3180
        %v3213 = vpack.c.bf16 %v3181, %v3181
        %v3214 = vpack.c.bf16 %v3182, %v3182
        %v3215 = vpack.c.bf16 %v3183, %v3183
        %v3216 = vpack.c.bf16 %v3184, %v3184
        %v3217 = vpack.c.bf16 %v3185, %v3185
        %v3218 = vpack.c.bf16 %v3186, %v3186
        %v3235 = vunpack.c.l.b16 %v3187
        %v3236 = vunpack.c.l.b16 %v3188
        %v3237 = vunpack.c.l.b16 %v3189
        %v3238 = vunpack.c.l.b16 %v3190
        %v3239 = vunpack.c.l.b16 %v3191
        %v3240 = vunpack.c.l.b16 %v3192
        %v3241 = vunpack.c.l.b16 %v3193
        %v3242 = vunpack.c.l.b16 %v3194
        %v3243 = vunpack.c.l.b16 %v3195
        %v3244 = vunpack.c.l.b16 %v3196
        %v3245 = vunpack.c.l.b16 %v3197
        %v3246 = vunpack.c.l.b16 %v3198
        %v3247 = vunpack.c.l.b16 %v3199
        %v3248 = vunpack.c.l.b16 %v3200
        %v3249 = vunpack.c.l.b16 %v3201
        %v3250 = vunpack.c.l.b16 %v3202
        %v3251 = vpack.c.b16 %v3236, %v3235
        %v3252 = vpack.c.b16 %v3238, %v3237
        %v3253 = vpack.c.b16 %v3240, %v3239
        %v3254 = vpack.c.b16 %v3242, %v3241
        %v3255 = vpack.c.b16 %v3244, %v3243
        %v3256 = vpack.c.b16 %v3246, %v3245
        %v3257 = vpack.c.b16 %v3248, %v3247
        %v3258 = vpack.c.b16 %v3250, %v3249
        %v3283 = vunpack.c.l.b16 %v2478
        %v3284 = vunpack.c.l.b16 %v2479
        %v3285 = vunpack.c.l.b16 %v2480
        %v3286 = vunpack.c.l.b16 %v2481
        %v3287 = vunpack.c.l.b16 %v2482
        %v3288 = vunpack.c.l.b16 %v2483
        %v3289 = vunpack.c.l.b16 %v2484
        %v3290 = vunpack.c.l.b16 %v2485
        %v3291 = vunpack.c.l.b16 %v2486
        %v3292 = vunpack.c.l.b16 %v2487
        %v3293 = vunpack.c.l.b16 %v2488
        %v3294 = vunpack.c.l.b16 %v2489
        %v3295 = vunpack.c.l.b16 %v2490
        %v3296 = vunpack.c.l.b16 %v2491
        %v3297 = vunpack.c.l.b16 %v2492
        %v3298 = vunpack.c.l.b16 %v2493
        %v3299 = vpack.c.b16 %v3284, %v3283
        %v3300 = vpack.c.b16 %v3286, %v3285
        %v3301 = vpack.c.b16 %v3288, %v3287
        %v3302 = vpack.c.b16 %v3290, %v3289
        %v3303 = vpack.c.b16 %v3292, %v3291
        %v3304 = vpack.c.b16 %v3294, %v3293
        %v3305 = vpack.c.b16 %v3296, %v3295
        %v3306 = vpack.c.b16 %v3298, %v3297
        %3315 = vmatpush.bf16.msra.mxu0 %v3306
        %3316 = vmatpush.bf16.msra.mxu0 %v3305
        %3317 = vmatpush.bf16.msra.mxu0 %v3304
        %3318 = vmatpush.bf16.msra.mxu0 %v3303
        %3319 = vmatpush.bf16.msra.mxu0 %v3302
        %3320 = vmatpush.bf16.msra.mxu0 %v3301
        %3321 = vmatpush.bf16.msra.mxu0 %v3300
        %3322 = vmatpush.bf16.msra.mxu0 %v3299
        %3323 = vmatmul.bf16.gmra.mxu0 %v3251
        %v3324 = vpop.f32.mrf.mxu0
        %v3325 = vadd.f32 0.0, %v3324
        %v3326 = vpop.f32.mrf.mxu0
        %v3327 = vadd.f32 0.0, %v3326
        %3328 = vmatmul.bf16.gmra.mxu0 %v3252
        %v3329 = vpop.f32.mrf.mxu0
        %v3330 = vadd.f32 0.0, %v3329
        %v3331 = vpop.f32.mrf.mxu0
        %v3332 = vadd.f32 0.0, %v3331
        %3333 = vmatmul.bf16.gmra.mxu0 %v3253
        %v3334 = vpop.f32.mrf.mxu0
        %v3335 = vadd.f32 0.0, %v3334
        %v3336 = vpop.f32.mrf.mxu0
        %v3337 = vadd.f32 0.0, %v3336
        %3338 = vmatmul.bf16.gmra.mxu0 %v3254
        %v3339 = vpop.f32.mrf.mxu0
        %v3340 = vadd.f32 0.0, %v3339
        %v3341 = vpop.f32.mrf.mxu0
        %v3342 = vadd.f32 0.0, %v3341
        %3343 = vmatmul.bf16.gmra.mxu0 %v3255
        %v3344 = vpop.f32.mrf.mxu0
        %v3345 = vadd.f32 0.0, %v3344
        %v3346 = vpop.f32.mrf.mxu0
        %v3347 = vadd.f32 0.0, %v3346
        %3348 = vmatmul.bf16.gmra.mxu0 %v3256
        %v3349 = vpop.f32.mrf.mxu0
        %v3350 = vadd.f32 0.0, %v3349
        %v3351 = vpop.f32.mrf.mxu0
        %v3352 = vadd.f32 0.0, %v3351
        %3353 = vmatmul.bf16.gmra.mxu0 %v3257
        %v3354 = vpop.f32.mrf.mxu0
        %v3355 = vadd.f32 0.0, %v3354
        %v3356 = vpop.f32.mrf.mxu0
        %v3357 = vadd.f32 0.0, %v3356
        %3358 = vmatmul.bf16.gmra.mxu0 %v3258
        %v3359 = vpop.f32.mrf.mxu0
        %v3360 = vadd.f32 0.0, %v3359
        %v3361 = vpop.f32.mrf.mxu0
        %v3362 = vadd.f32 0.0, %v3361
        %3363 = vdwg.mxu0
        %v3380 = vunpack.c.l.b16 %v3203
        %v3381 = vunpack.c.l.b16 %v3204
        %v3382 = vunpack.c.l.b16 %v3205
        %v3383 = vunpack.c.l.b16 %v3206
        %v3384 = vunpack.c.l.b16 %v3207
        %v3385 = vunpack.c.l.b16 %v3208
        %v3386 = vunpack.c.l.b16 %v3209
        %v3387 = vunpack.c.l.b16 %v3210
        %v3388 = vunpack.c.l.b16 %v3211
        %v3389 = vunpack.c.l.b16 %v3212
        %v3390 = vunpack.c.l.b16 %v3213
        %v3391 = vunpack.c.l.b16 %v3214
        %v3392 = vunpack.c.l.b16 %v3215
        %v3393 = vunpack.c.l.b16 %v3216
        %v3394 = vunpack.c.l.b16 %v3217
        %v3395 = vunpack.c.l.b16 %v3218
        %v3396 = vpack.c.b16 %v3381, %v3380
        %v3397 = vpack.c.b16 %v3383, %v3382
        %v3398 = vpack.c.b16 %v3385, %v3384
        %v3399 = vpack.c.b16 %v3387, %v3386
        %v3400 = vpack.c.b16 %v3389, %v3388
        %v3401 = vpack.c.b16 %v3391, %v3390
        %v3402 = vpack.c.b16 %v3393, %v3392
        %v3403 = vpack.c.b16 %v3395, %v3394
        %v3428 = vunpack.c.l.b16 %v2494
        %v3429 = vunpack.c.l.b16 %v2495
        %v3430 = vunpack.c.l.b16 %v2496
        %v3431 = vunpack.c.l.b16 %v2497
        %v3432 = vunpack.c.l.b16 %v2498
        %v3433 = vunpack.c.l.b16 %v2499
        %v3434 = vunpack.c.l.b16 %v2500
        %v3435 = vunpack.c.l.b16 %v2501
        %v3436 = vunpack.c.l.b16 %v2502
        %v3437 = vunpack.c.l.b16 %v2503
        %v3438 = vunpack.c.l.b16 %v2504
        %v3439 = vunpack.c.l.b16 %v2505
        %v3440 = vunpack.c.l.b16 %v2506
        %v3441 = vunpack.c.l.b16 %v2507
        %v3442 = vunpack.c.l.b16 %v2508
        %v3443 = vunpack.c.l.b16 %v2509
        %v3444 = vpack.c.b16 %v3429, %v3428
        %v3445 = vpack.c.b16 %v3431, %v3430
        %v3446 = vpack.c.b16 %v3433, %v3432
        %v3447 = vpack.c.b16 %v3435, %v3434
        %v3448 = vpack.c.b16 %v3437, %v3436
        %v3449 = vpack.c.b16 %v3439, %v3438
        %v3450 = vpack.c.b16 %v3441, %v3440
        %v3451 = vpack.c.b16 %v3443, %v3442
        %3460 = vmatpush.bf16.msra.mxu0 %v3451
        %3461 = vmatpush.bf16.msra.mxu0 %v3450
        %3462 = vmatpush.bf16.msra.mxu0 %v3449
        %3463 = vmatpush.bf16.msra.mxu0 %v3448
        %3464 = vmatpush.bf16.msra.mxu0 %v3447
        %3465 = vmatpush.bf16.msra.mxu0 %v3446
        %3466 = vmatpush.bf16.msra.mxu0 %v3445
        %3467 = vmatpush.bf16.msra.mxu0 %v3444
        %3468 = vmatmul.bf16.gmra.mxu0 %v3396
        %v3469 = vpop.f32.mrf.mxu0
        %v3470 = vadd.f32 0.0, %v3469
        %v3471 = vpop.f32.mrf.mxu0
        %v3472 = vadd.f32 0.0, %v3471
        %3473 = vmatmul.bf16.gmra.mxu0 %v3397
        %v3474 = vpop.f32.mrf.mxu0
        %v3475 = vadd.f32 0.0, %v3474
        %v3476 = vpop.f32.mrf.mxu0
        %v3477 = vadd.f32 0.0, %v3476
        %3478 = vmatmul.bf16.gmra.mxu0 %v3398
        %v3479 = vpop.f32.mrf.mxu0
        %v3480 = vadd.f32 0.0, %v3479
        %v3481 = vpop.f32.mrf.mxu0
        %v3482 = vadd.f32 0.0, %v3481
        %3483 = vmatmul.bf16.gmra.mxu0 %v3399
        %v3484 = vpop.f32.mrf.mxu0
        %v3485 = vadd.f32 0.0, %v3484
        %v3486 = vpop.f32.mrf.mxu0
        %v3487 = vadd.f32 0.0, %v3486
        %3488 = vmatmul.bf16.gmra.mxu0 %v3400
        %v3489 = vpop.f32.mrf.mxu0
        %v3490 = vadd.f32 0.0, %v3489
        %v3491 = vpop.f32.mrf.mxu0
        %v3492 = vadd.f32 0.0, %v3491
        %3493 = vmatmul.bf16.gmra.mxu0 %v3401
        %v3494 = vpop.f32.mrf.mxu0
        %v3495 = vadd.f32 0.0, %v3494
        %v3496 = vpop.f32.mrf.mxu0
        %v3497 = vadd.f32 0.0, %v3496
        %3498 = vmatmul.bf16.gmra.mxu0 %v3402
        %v3499 = vpop.f32.mrf.mxu0
        %v3500 = vadd.f32 0.0, %v3499
        %v3501 = vpop.f32.mrf.mxu0
        %v3502 = vadd.f32 0.0, %v3501
        %3503 = vmatmul.bf16.gmra.mxu0 %v3403
        %v3504 = vpop.f32.mrf.mxu0
        %v3505 = vadd.f32 0.0, %v3504
        %v3506 = vpop.f32.mrf.mxu0
        %v3507 = vadd.f32 0.0, %v3506
        %3508 = vdwg.mxu0
        %v3509 = vpack.c.bf16 %v3327, %v3325
        %v3510 = vpack.c.bf16 %v3472, %v3470
        %v3511 = vpack.c.bf16 %v3332, %v3330
        %v3512 = vpack.c.bf16 %v3477, %v3475
        %v3513 = vpack.c.bf16 %v3337, %v3335
        %v3514 = vpack.c.bf16 %v3482, %v3480
        %v3515 = vpack.c.bf16 %v3342, %v3340
        %v3516 = vpack.c.bf16 %v3487, %v3485
        %v3517 = vpack.c.bf16 %v3347, %v3345
        %v3518 = vpack.c.bf16 %v3492, %v3490
        %v3519 = vpack.c.bf16 %v3352, %v3350
        %v3520 = vpack.c.bf16 %v3497, %v3495
        %v3521 = vpack.c.bf16 %v3357, %v3355
        %v3522 = vpack.c.bf16 %v3502, %v3500
        %v3523 = vpack.c.bf16 %v3362, %v3360
        %v3524 = vpack.c.bf16 %v3507, %v3505
        %v3525 = vld [vmem:[#allocation10] sm:$0xff]
        %v3526 = vld [vmem:[#allocation10 + $0x8] sm:$0xff]
        %v3527 = vld [vmem:[#allocation10 + $0x10] sm:$0xff]
        %v3528 = vld [vmem:[#allocation10 + $0x18] sm:$0xff]
        %v3529 = vld [vmem:[#allocation10 + $0x20] sm:$0xff]
        %v3530 = vld [vmem:[#allocation10 + $0x28] sm:$0xff]
        %v3531 = vld [vmem:[#allocation10 + $0x30] sm:$0xff]
        %v3532 = vld [vmem:[#allocation10 + $0x38] sm:$0xff]
        %v3533 = vld [vmem:[#allocation10 + $0x40] sm:$0xff]
        %v3534 = vld [vmem:[#allocation10 + $0x48] sm:$0xff]
        %v3535 = vld [vmem:[#allocation10 + $0x50] sm:$0xff]
        %v3536 = vld [vmem:[#allocation10 + $0x58] sm:$0xff]
        %v3537 = vld [vmem:[#allocation10 + $0x60] sm:$0xff]
        %v3538 = vld [vmem:[#allocation10 + $0x68] sm:$0xff]
        %v3539 = vld [vmem:[#allocation10 + $0x70] sm:$0xff]
        %v3540 = vld [vmem:[#allocation10 + $0x78] sm:$0xff]
        %v3541 = vld [vmem:[#allocation10 + $0x80] sm:$0xff]
        %v3542 = vld [vmem:[#allocation10 + $0x88] sm:$0xff]
        %v3543 = vld [vmem:[#allocation10 + $0x90] sm:$0xff]
        %v3544 = vld [vmem:[#allocation10 + $0x98] sm:$0xff]
        %v3545 = vld [vmem:[#allocation10 + $0xa0] sm:$0xff]
        %v3546 = vld [vmem:[#allocation10 + $0xa8] sm:$0xff]
        %v3547 = vld [vmem:[#allocation10 + $0xb0] sm:$0xff]
        %v3548 = vld [vmem:[#allocation10 + $0xb8] sm:$0xff]
        %v3549 = vld [vmem:[#allocation10 + $0xc0] sm:$0xff]
        %v3550 = vld [vmem:[#allocation10 + $0xc8] sm:$0xff]
        %v3551 = vld [vmem:[#allocation10 + $0xd0] sm:$0xff]
        %v3552 = vld [vmem:[#allocation10 + $0xd8] sm:$0xff]
        %v3553 = vld [vmem:[#allocation10 + $0xe0] sm:$0xff]
        %v3554 = vld [vmem:[#allocation10 + $0xe8] sm:$0xff]
        %v3555 = vld [vmem:[#allocation10 + $0xf0] sm:$0xff]
        %v3556 = vld [vmem:[#allocation10 + $0xf8] sm:$0xff]
        %v3589 = vunpack.c.l.b16 %v3525
        %v3590 = vunpack.c.h.b16 %v3525
        %v3591 = vunpack.c.l.b16 %v3526
        %v3592 = vunpack.c.h.b16 %v3526
        %v3593 = vunpack.c.l.b16 %v3527
        %v3594 = vunpack.c.h.b16 %v3527
        %v3595 = vunpack.c.l.b16 %v3528
        %v3596 = vunpack.c.h.b16 %v3528
        %v3597 = vunpack.c.l.b16 %v3529
        %v3598 = vunpack.c.h.b16 %v3529
        %v3599 = vunpack.c.l.b16 %v3530
        %v3600 = vunpack.c.h.b16 %v3530
        %v3601 = vunpack.c.l.b16 %v3531
        %v3602 = vunpack.c.h.b16 %v3531
        %v3603 = vunpack.c.l.b16 %v3532
        %v3604 = vunpack.c.h.b16 %v3532
        %v3605 = vunpack.c.l.b16 %v3533
        %v3606 = vunpack.c.h.b16 %v3533
        %v3607 = vunpack.c.l.b16 %v3534
        %v3608 = vunpack.c.h.b16 %v3534
        %v3609 = vunpack.c.l.b16 %v3535
        %v3610 = vunpack.c.h.b16 %v3535
        %v3611 = vunpack.c.l.b16 %v3536
        %v3612 = vunpack.c.h.b16 %v3536
        %v3613 = vunpack.c.l.b16 %v3537
        %v3614 = vunpack.c.h.b16 %v3537
        %v3615 = vunpack.c.l.b16 %v3538
        %v3616 = vunpack.c.h.b16 %v3538
        %v3617 = vunpack.c.l.b16 %v3539
        %v3618 = vunpack.c.h.b16 %v3539
        %v3619 = vunpack.c.l.b16 %v3540
        %v3620 = vunpack.c.h.b16 %v3540
        %v3621 = vunpack.c.l.b16 %v3541
        %v3622 = vunpack.c.h.b16 %v3541
        %v3623 = vunpack.c.l.b16 %v3542
        %v3624 = vunpack.c.h.b16 %v3542
        %v3625 = vunpack.c.l.b16 %v3543
        %v3626 = vunpack.c.h.b16 %v3543
        %v3627 = vunpack.c.l.b16 %v3544
        %v3628 = vunpack.c.h.b16 %v3544
        %v3629 = vunpack.c.l.b16 %v3545
        %v3630 = vunpack.c.h.b16 %v3545
        %v3631 = vunpack.c.l.b16 %v3546
        %v3632 = vunpack.c.h.b16 %v3546
        %v3633 = vunpack.c.l.b16 %v3547
        %v3634 = vunpack.c.h.b16 %v3547
        %v3635 = vunpack.c.l.b16 %v3548
        %v3636 = vunpack.c.h.b16 %v3548
        %v3637 = vunpack.c.l.b16 %v3549
        %v3638 = vunpack.c.h.b16 %v3549
        %v3639 = vunpack.c.l.b16 %v3550
        %v3640 = vunpack.c.h.b16 %v3550
        %v3641 = vunpack.c.l.b16 %v3551
        %v3642 = vunpack.c.h.b16 %v3551
        %v3643 = vunpack.c.l.b16 %v3552
        %v3644 = vunpack.c.h.b16 %v3552
        %v3645 = vunpack.c.l.b16 %v3553
        %v3646 = vunpack.c.h.b16 %v3553
        %v3647 = vunpack.c.l.b16 %v3554
        %v3648 = vunpack.c.h.b16 %v3554
        %v3649 = vunpack.c.l.b16 %v3555
        %v3650 = vunpack.c.h.b16 %v3555
        %v3651 = vunpack.c.l.b16 %v3556
        %v3652 = vunpack.c.h.b16 %v3556
        %v3653 = vpack.c.b16 %v3591, %v3589
        %v3654 = vpack.c.b16 %v3592, %v3590
        %v3655 = vpack.c.b16 %v3595, %v3593
        %v3656 = vpack.c.b16 %v3596, %v3594
        %v3657 = vpack.c.b16 %v3599, %v3597
        %v3658 = vpack.c.b16 %v3600, %v3598
        %v3659 = vpack.c.b16 %v3603, %v3601
        %v3660 = vpack.c.b16 %v3604, %v3602
        %v3661 = vpack.c.b16 %v3607, %v3605
        %v3662 = vpack.c.b16 %v3608, %v3606
        %v3663 = vpack.c.b16 %v3611, %v3609
        %v3664 = vpack.c.b16 %v3612, %v3610
        %v3665 = vpack.c.b16 %v3615, %v3613
        %v3666 = vpack.c.b16 %v3616, %v3614
        %v3667 = vpack.c.b16 %v3619, %v3617
        %v3668 = vpack.c.b16 %v3620, %v3618
        %v3669 = vpack.c.b16 %v3623, %v3621
        %v3670 = vpack.c.b16 %v3624, %v3622
        %v3671 = vpack.c.b16 %v3627, %v3625
        %v3672 = vpack.c.b16 %v3628, %v3626
        %v3673 = vpack.c.b16 %v3631, %v3629
        %v3674 = vpack.c.b16 %v3632, %v3630
        %v3675 = vpack.c.b16 %v3635, %v3633
        %v3676 = vpack.c.b16 %v3636, %v3634
        %v3677 = vpack.c.b16 %v3639, %v3637
        %v3678 = vpack.c.b16 %v3640, %v3638
        %v3679 = vpack.c.b16 %v3643, %v3641
        %v3680 = vpack.c.b16 %v3644, %v3642
        %v3681 = vpack.c.b16 %v3647, %v3645
        %v3682 = vpack.c.b16 %v3648, %v3646
        %v3683 = vpack.c.b16 %v3651, %v3649
        %v3684 = vpack.c.b16 %v3652, %v3650
        %3717 = vmatpush.bf16.msra.mxu0 %v3667
        %3718 = vmatpush.bf16.msra.mxu0 %v3665
        %3719 = vmatpush.bf16.msra.mxu0 %v3663
        %3720 = vmatpush.bf16.msra.mxu0 %v3661
        %3721 = vmatpush.bf16.msra.mxu0 %v3659
        %3722 = vmatpush.bf16.msra.mxu0 %v3657
        %3723 = vmatpush.bf16.msra.mxu0 %v3655
        %3724 = vmatpush.bf16.msra.mxu0 %v3653
        %3725 = vmatmul.bf16.gmra.mxu0 %v3509
        %v3726 = vpop.f32.mrf.mxu0
        %v3727 = vadd.f32 0.0, %v3726
        %v3728 = vpop.f32.mrf.mxu0
        %v3729 = vadd.f32 0.0, %v3728
        %3730 = vmatmul.bf16.gmra.mxu0 %v3511
        %v3731 = vpop.f32.mrf.mxu0
        %v3732 = vadd.f32 0.0, %v3731
        %v3733 = vpop.f32.mrf.mxu0
        %v3734 = vadd.f32 0.0, %v3733
        %3735 = vmatmul.bf16.gmra.mxu0 %v3513
        %v3736 = vpop.f32.mrf.mxu0
        %v3737 = vadd.f32 0.0, %v3736
        %v3738 = vpop.f32.mrf.mxu0
        %v3739 = vadd.f32 0.0, %v3738
        %3740 = vmatmul.bf16.gmra.mxu0 %v3515
        %v3741 = vpop.f32.mrf.mxu0
        %v3742 = vadd.f32 0.0, %v3741
        %v3743 = vpop.f32.mrf.mxu0
        %v3744 = vadd.f32 0.0, %v3743
        %3745 = vmatmul.bf16.gmra.mxu0 %v3517
        %v3746 = vpop.f32.mrf.mxu0
        %v3747 = vadd.f32 0.0, %v3746
        %v3748 = vpop.f32.mrf.mxu0
        %v3749 = vadd.f32 0.0, %v3748
        %3750 = vmatmul.bf16.gmra.mxu0 %v3519
        %v3751 = vpop.f32.mrf.mxu0
        %v3752 = vadd.f32 0.0, %v3751
        %v3753 = vpop.f32.mrf.mxu0
        %v3754 = vadd.f32 0.0, %v3753
        %3755 = vmatmul.bf16.gmra.mxu0 %v3521
        %v3756 = vpop.f32.mrf.mxu0
        %v3757 = vadd.f32 0.0, %v3756
        %v3758 = vpop.f32.mrf.mxu0
        %v3759 = vadd.f32 0.0, %v3758
        %3760 = vmatmul.bf16.gmra.mxu0 %v3523
        %v3761 = vpop.f32.mrf.mxu0
        %v3762 = vadd.f32 0.0, %v3761
        %v3763 = vpop.f32.mrf.mxu0
        %v3764 = vadd.f32 0.0, %v3763
        %3765 = vdwg.mxu0
        %3766 = vmatpush.bf16.msra.mxu0 %v3683
        %3767 = vmatpush.bf16.msra.mxu0 %v3681
        %3768 = vmatpush.bf16.msra.mxu0 %v3679
        %3769 = vmatpush.bf16.msra.mxu0 %v3677
        %3770 = vmatpush.bf16.msra.mxu0 %v3675
        %3771 = vmatpush.bf16.msra.mxu0 %v3673
        %3772 = vmatpush.bf16.msra.mxu0 %v3671
        %3773 = vmatpush.bf16.msra.mxu0 %v3669
        %3774 = vmatmul.bf16.gmra.mxu0 %v3510
        %v3775 = vpop.f32.mrf.mxu0
        %v3776 = vadd.f32 %v3727, %v3775
        %v3777 = vpop.f32.mrf.mxu0
        %v3778 = vadd.f32 %v3729, %v3777
        %3779 = vmatmul.bf16.gmra.mxu0 %v3512
        %v3780 = vpop.f32.mrf.mxu0
        %v3781 = vadd.f32 %v3732, %v3780
        %v3782 = vpop.f32.mrf.mxu0
        %v3783 = vadd.f32 %v3734, %v3782
        %3784 = vmatmul.bf16.gmra.mxu0 %v3514
        %v3785 = vpop.f32.mrf.mxu0
        %v3786 = vadd.f32 %v3737, %v3785
        %v3787 = vpop.f32.mrf.mxu0
        %v3788 = vadd.f32 %v3739, %v3787
        %3789 = vmatmul.bf16.gmra.mxu0 %v3516
        %v3790 = vpop.f32.mrf.mxu0
        %v3791 = vadd.f32 %v3742, %v3790
        %v3792 = vpop.f32.mrf.mxu0
        %v3793 = vadd.f32 %v3744, %v3792
        %3794 = vmatmul.bf16.gmra.mxu0 %v3518
        %v3795 = vpop.f32.mrf.mxu0
        %v3796 = vadd.f32 %v3747, %v3795
        %v3797 = vpop.f32.mrf.mxu0
        %v3798 = vadd.f32 %v3749, %v3797
        %3799 = vmatmul.bf16.gmra.mxu0 %v3520
        %v3800 = vpop.f32.mrf.mxu0
        %v3801 = vadd.f32 %v3752, %v3800
        %v3802 = vpop.f32.mrf.mxu0
        %v3803 = vadd.f32 %v3754, %v3802
        %3804 = vmatmul.bf16.gmra.mxu0 %v3522
        %v3805 = vpop.f32.mrf.mxu0
        %v3806 = vadd.f32 %v3757, %v3805
        %v3807 = vpop.f32.mrf.mxu0
        %v3808 = vadd.f32 %v3759, %v3807
        %3809 = vmatmul.bf16.gmra.mxu0 %v3524
        %v3810 = vpop.f32.mrf.mxu0
        %v3811 = vadd.f32 %v3762, %v3810
        %v3812 = vpop.f32.mrf.mxu0
        %v3813 = vadd.f32 %v3764, %v3812
        %3814 = vdwg.mxu0
        %3815 = vmatpush.bf16.msra.mxu0 %v3668
        %3816 = vmatpush.bf16.msra.mxu0 %v3666
        %3817 = vmatpush.bf16.msra.mxu0 %v3664
        %3818 = vmatpush.bf16.msra.mxu0 %v3662
        %3819 = vmatpush.bf16.msra.mxu0 %v3660
        %3820 = vmatpush.bf16.msra.mxu0 %v3658
        %3821 = vmatpush.bf16.msra.mxu0 %v3656
        %3822 = vmatpush.bf16.msra.mxu0 %v3654
        %3823 = vmatmul.bf16.gmra.mxu0 %v3509
        %v3824 = vpop.f32.mrf.mxu0
        %v3825 = vadd.f32 0.0, %v3824
        %v3826 = vpop.f32.mrf.mxu0
        %v3827 = vadd.f32 0.0, %v3826
        %3828 = vmatmul.bf16.gmra.mxu0 %v3511
        %v3829 = vpop.f32.mrf.mxu0
        %v3830 = vadd.f32 0.0, %v3829
        %v3831 = vpop.f32.mrf.mxu0
        %v3832 = vadd.f32 0.0, %v3831
        %3833 = vmatmul.bf16.gmra.mxu0 %v3513
        %v3834 = vpop.f32.mrf.mxu0
        %v3835 = vadd.f32 0.0, %v3834
        %v3836 = vpop.f32.mrf.mxu0
        %v3837 = vadd.f32 0.0, %v3836
        %3838 = vmatmul.bf16.gmra.mxu0 %v3515
        %v3839 = vpop.f32.mrf.mxu0
        %v3840 = vadd.f32 0.0, %v3839
        %v3841 = vpop.f32.mrf.mxu0
        %v3842 = vadd.f32 0.0, %v3841
        %3843 = vmatmul.bf16.gmra.mxu0 %v3517
        %v3844 = vpop.f32.mrf.mxu0
        %v3845 = vadd.f32 0.0, %v3844
        %v3846 = vpop.f32.mrf.mxu0
        %v3847 = vadd.f32 0.0, %v3846
        %3848 = vmatmul.bf16.gmra.mxu0 %v3519
        %v3849 = vpop.f32.mrf.mxu0
        %v3850 = vadd.f32 0.0, %v3849
        %v3851 = vpop.f32.mrf.mxu0
        %v3852 = vadd.f32 0.0, %v3851
        %3853 = vmatmul.bf16.gmra.mxu0 %v3521
        %v3854 = vpop.f32.mrf.mxu0
        %v3855 = vadd.f32 0.0, %v3854
        %v3856 = vpop.f32.mrf.mxu0
        %v3857 = vadd.f32 0.0, %v3856
        %3858 = vmatmul.bf16.gmra.mxu0 %v3523
        %v3859 = vpop.f32.mrf.mxu0
        %v3860 = vadd.f32 0.0, %v3859
        %v3861 = vpop.f32.mrf.mxu0
        %v3862 = vadd.f32 0.0, %v3861
        %3863 = vdwg.mxu0
        %3864 = vmatpush.bf16.msra.mxu0 %v3684
        %3865 = vmatpush.bf16.msra.mxu0 %v3682
        %3866 = vmatpush.bf16.msra.mxu0 %v3680
        %3867 = vmatpush.bf16.msra.mxu0 %v3678
        %3868 = vmatpush.bf16.msra.mxu0 %v3676
        %3869 = vmatpush.bf16.msra.mxu0 %v3674
        %3870 = vmatpush.bf16.msra.mxu0 %v3672
        %3871 = vmatpush.bf16.msra.mxu0 %v3670
        %3872 = vmatmul.bf16.gmra.mxu0 %v3510
        %v3873 = vpop.f32.mrf.mxu0
        %v3874 = vadd.f32 %v3825, %v3873
        %v3875 = vpop.f32.mrf.mxu0
        %v3876 = vadd.f32 %v3827, %v3875
        %3877 = vmatmul.bf16.gmra.mxu0 %v3512
        %v3878 = vpop.f32.mrf.mxu0
        %v3879 = vadd.f32 %v3830, %v3878
        %v3880 = vpop.f32.mrf.mxu0
        %v3881 = vadd.f32 %v3832, %v3880
        %3882 = vmatmul.bf16.gmra.mxu0 %v3514
        %v3883 = vpop.f32.mrf.mxu0
        %v3884 = vadd.f32 %v3835, %v3883
        %v3885 = vpop.f32.mrf.mxu0
        %v3886 = vadd.f32 %v3837, %v3885
        %3887 = vmatmul.bf16.gmra.mxu0 %v3516
        %v3888 = vpop.f32.mrf.mxu0
        %v3889 = vadd.f32 %v3840, %v3888
        %v3890 = vpop.f32.mrf.mxu0
        %v3891 = vadd.f32 %v3842, %v3890
        %3892 = vmatmul.bf16.gmra.mxu0 %v3518
        %v3893 = vpop.f32.mrf.mxu0
        %v3894 = vadd.f32 %v3845, %v3893
        %v3895 = vpop.f32.mrf.mxu0
        %v3896 = vadd.f32 %v3847, %v3895
        %3897 = vmatmul.bf16.gmra.mxu0 %v3520
        %v3898 = vpop.f32.mrf.mxu0
        %v3899 = vadd.f32 %v3850, %v3898
        %v3900 = vpop.f32.mrf.mxu0
        %v3901 = vadd.f32 %v3852, %v3900
        %3902 = vmatmul.bf16.gmra.mxu0 %v3522
        %v3903 = vpop.f32.mrf.mxu0
        %v3904 = vadd.f32 %v3855, %v3903
        %v3905 = vpop.f32.mrf.mxu0
        %v3906 = vadd.f32 %v3857, %v3905
        %3907 = vmatmul.bf16.gmra.mxu0 %v3524
        %v3908 = vpop.f32.mrf.mxu0
        %v3909 = vadd.f32 %v3860, %v3908
        %v3910 = vpop.f32.mrf.mxu0
        %v3911 = vadd.f32 %v3862, %v3910
        %3912 = vdwg.mxu0
        %v3913 = vadd.f32 %v469, %v3776
        %v3914 = vadd.f32 %v470, %v3874
        %v3915 = vadd.f32 %v471, %v3778
        %v3916 = vadd.f32 %v472, %v3876
        %v3917 = vadd.f32 %v473, %v3781
        %v3918 = vadd.f32 %v474, %v3879
        %v3919 = vadd.f32 %v475, %v3783
        %v3920 = vadd.f32 %v476, %v3881
        %v3921 = vadd.f32 %v477, %v3786
        %v3922 = vadd.f32 %v478, %v3884
        %v3923 = vadd.f32 %v479, %v3788
        %v3924 = vadd.f32 %v480, %v3886
        %v3925 = vadd.f32 %v481, %v3791
        %v3926 = vadd.f32 %v482, %v3889
        %v3927 = vadd.f32 %v483, %v3793
        %v3928 = vadd.f32 %v484, %v3891
        %v3929 = vadd.f32 %v485, %v3796
        %v3930 = vadd.f32 %v486, %v3894
        %v3931 = vadd.f32 %v487, %v3798
        %v3932 = vadd.f32 %v488, %v3896
        %v3933 = vadd.f32 %v489, %v3801
        %v3934 = vadd.f32 %v490, %v3899
        %v3935 = vadd.f32 %v491, %v3803
        %v3936 = vadd.f32 %v492, %v3901
        %v3937 = vadd.f32 %v493, %v3806
        %v3938 = vadd.f32 %v494, %v3904
        %v3939 = vadd.f32 %v495, %v3808
        %v3940 = vadd.f32 %v496, %v3906
        %v3941 = vadd.f32 %v497, %v3811
        %v3942 = vadd.f32 %v498, %v3909
        %v3943 = vadd.f32 %v499, %v3813
        %v3944 = vadd.f32 %v500, %v3911
        %v3945 = vld [vmem:[%s2] sm:$0x3]
        %v3946 = vmul.f32 %v3913, %v3913
        %v3947 = vmul.f32 %v3914, %v3914
        %v3948 = vmul.f32 %v3915, %v3915
        %v3949 = vmul.f32 %v3916, %v3916
        %v3950 = vmul.f32 %v3917, %v3917
        %v3951 = vmul.f32 %v3918, %v3918
        %v3952 = vmul.f32 %v3919, %v3919
        %v3953 = vmul.f32 %v3920, %v3920
        %v3954 = vmul.f32 %v3921, %v3921
        %v3955 = vmul.f32 %v3922, %v3922
        %v3956 = vmul.f32 %v3923, %v3923
        %v3957 = vmul.f32 %v3924, %v3924
        %v3958 = vmul.f32 %v3925, %v3925
        %v3959 = vmul.f32 %v3926, %v3926
        %v3960 = vmul.f32 %v3927, %v3927
        %v3961 = vmul.f32 %v3928, %v3928
        %v3962 = vmul.f32 %v3929, %v3929
        %v3963 = vmul.f32 %v3930, %v3930
        %v3964 = vmul.f32 %v3931, %v3931
        %v3965 = vmul.f32 %v3932, %v3932
        %v3966 = vmul.f32 %v3933, %v3933
        %v3967 = vmul.f32 %v3934, %v3934
        %v3968 = vmul.f32 %v3935, %v3935
        %v3969 = vmul.f32 %v3936, %v3936
        %v3970 = vmul.f32 %v3937, %v3937
        %v3971 = vmul.f32 %v3938, %v3938
        %v3972 = vmul.f32 %v3939, %v3939
        %v3973 = vmul.f32 %v3940, %v3940
        %v3974 = vmul.f32 %v3941, %v3941
        %v3975 = vmul.f32 %v3942, %v3942
        %v3976 = vmul.f32 %v3943, %v3943
        %v3977 = vmul.f32 %v3944, %v3944
        %v3978 = vadd.f32 %v3946, %v3947
        %3979 = vadd.xlane.f32.xlu0 %v3978
        %v3980 = vpop.xlane.xlu0 %3979
        %v3981 = vadd.f32 %v3948, %v3949
        %3982 = vadd.xlane.f32.xlu0 %v3981
        %v3983 = vpop.xlane.xlu0 %3982
        %v3984 = vadd.f32 %v3950, %v3951
        %3985 = vadd.xlane.f32.xlu0 %v3984
        %v3986 = vpop.xlane.xlu0 %3985
        %v3987 = vadd.f32 %v3952, %v3953
        %3988 = vadd.xlane.f32.xlu0 %v3987
        %v3989 = vpop.xlane.xlu0 %3988
        %v3990 = vadd.f32 %v3954, %v3955
        %3991 = vadd.xlane.f32.xlu0 %v3990
        %v3992 = vpop.xlane.xlu0 %3991
        %v3993 = vadd.f32 %v3956, %v3957
        %3994 = vadd.xlane.f32.xlu0 %v3993
        %v3995 = vpop.xlane.xlu0 %3994
        %v3996 = vadd.f32 %v3958, %v3959
        %3997 = vadd.xlane.f32.xlu0 %v3996
        %v3998 = vpop.xlane.xlu0 %3997
        %v3999 = vadd.f32 %v3960, %v3961
        %4000 = vadd.xlane.f32.xlu0 %v3999
        %v4001 = vpop.xlane.xlu0 %4000
        %v4002 = vadd.f32 %v3962, %v3963
        %4003 = vadd.xlane.f32.xlu0 %v4002
        %v4004 = vpop.xlane.xlu0 %4003
        %v4005 = vadd.f32 %v3964, %v3965
        %4006 = vadd.xlane.f32.xlu0 %v4005
        %v4007 = vpop.xlane.xlu0 %4006
        %v4008 = vadd.f32 %v3966, %v3967
        %4009 = vadd.xlane.f32.xlu0 %v4008
        %v4010 = vpop.xlane.xlu0 %4009
        %v4011 = vadd.f32 %v3968, %v3969
        %4012 = vadd.xlane.f32.xlu0 %v4011
        %v4013 = vpop.xlane.xlu0 %4012
        %v4014 = vadd.f32 %v3970, %v3971
        %4015 = vadd.xlane.f32.xlu0 %v4014
        %v4016 = vpop.xlane.xlu0 %4015
        %v4017 = vadd.f32 %v3972, %v3973
        %4018 = vadd.xlane.f32.xlu0 %v4017
        %v4019 = vpop.xlane.xlu0 %4018
        %v4020 = vadd.f32 %v3974, %v3975
        %4021 = vadd.xlane.f32.xlu0 %v4020
        %v4022 = vpop.xlane.xlu0 %4021
        %v4023 = vadd.f32 %v3976, %v3977
        %4024 = vadd.xlane.f32.xlu0 %v4023
        %v4025 = vpop.xlane.xlu0 %4024
        %v4026 = vmul.f32 %v3980, %v588
        %v4027 = vmul.f32 %v3983, %v588
        %v4028 = vmul.f32 %v3986, %v588
        %v4029 = vmul.f32 %v3989, %v588
        %v4030 = vmul.f32 %v3992, %v588
        %v4031 = vmul.f32 %v3995, %v588
        %v4032 = vmul.f32 %v3998, %v588
        %v4033 = vmul.f32 %v4001, %v588
        %v4034 = vmul.f32 %v4004, %v588
        %v4035 = vmul.f32 %v4007, %v588
        %v4036 = vmul.f32 %v4010, %v588
        %v4037 = vmul.f32 %v4013, %v588
        %v4038 = vmul.f32 %v4016, %v588
        %v4039 = vmul.f32 %v4019, %v588
        %v4040 = vmul.f32 %v4022, %v588
        %v4041 = vmul.f32 %v4025, %v588
        %v4042 = vadd.f32 %v4026, 1e-06
        %v4043 = vadd.f32 %v4027, 1e-06
        %v4044 = vadd.f32 %v4028, 1e-06
        %v4045 = vadd.f32 %v4029, 1e-06
        %v4046 = vadd.f32 %v4030, 1e-06
        %v4047 = vadd.f32 %v4031, 1e-06
        %v4048 = vadd.f32 %v4032, 1e-06
        %v4049 = vadd.f32 %v4033, 1e-06
        %v4050 = vadd.f32 %v4034, 1e-06
        %v4051 = vadd.f32 %v4035, 1e-06
        %v4052 = vadd.f32 %v4036, 1e-06
        %v4053 = vadd.f32 %v4037, 1e-06
        %v4054 = vadd.f32 %v4038, 1e-06
        %v4055 = vadd.f32 %v4039, 1e-06
        %v4056 = vadd.f32 %v4040, 1e-06
        %v4057 = vadd.f32 %v4041, 1e-06
        %v4058 = vrsqrt.pop %v4042
        %v4059 = vmul.f32 %v4058, %v4042
        %v4060 = vmul.f32 %v4059, %v4058
        %v4061 = vmul.f32 0.5, %v4060
        %v4062 = vsub.f32 1.5, %v4061
        %v4063 = vmul.f32 %v4058, %v4062
        %vm4064 = vweird.f32 %v4042
        %vm4065 = vweird.f32 %v4058
        %vm4066 = vmor %vm4064, %vm4065
        %v4067 = vsel %vm4066, %v4058, %v4063
        %v4068 = vrsqrt.pop %v4043
        %v4069 = vmul.f32 %v4068, %v4043
        %v4070 = vmul.f32 %v4069, %v4068
        %v4071 = vmul.f32 0.5, %v4070
        %v4072 = vsub.f32 1.5, %v4071
        %v4073 = vmul.f32 %v4068, %v4072
        %vm4074 = vweird.f32 %v4043
        %vm4075 = vweird.f32 %v4068
        %vm4076 = vmor %vm4074, %vm4075
        %v4077 = vsel %vm4076, %v4068, %v4073
        %v4078 = vrsqrt.pop %v4044
        %v4079 = vmul.f32 %v4078, %v4044
        %v4080 = vmul.f32 %v4079, %v4078
        %v4081 = vmul.f32 0.5, %v4080
        %v4082 = vsub.f32 1.5, %v4081
        %v4083 = vmul.f32 %v4078, %v4082
        %vm4084 = vweird.f32 %v4044
        %vm4085 = vweird.f32 %v4078
        %vm4086 = vmor %vm4084, %vm4085
        %v4087 = vsel %vm4086, %v4078, %v4083
        %v4088 = vrsqrt.pop %v4045
        %v4089 = vmul.f32 %v4088, %v4045
        %v4090 = vmul.f32 %v4089, %v4088
        %v4091 = vmul.f32 0.5, %v4090
        %v4092 = vsub.f32 1.5, %v4091
        %v4093 = vmul.f32 %v4088, %v4092
        %vm4094 = vweird.f32 %v4045
        %vm4095 = vweird.f32 %v4088
        %vm4096 = vmor %vm4094, %vm4095
        %v4097 = vsel %vm4096, %v4088, %v4093
        %v4098 = vrsqrt.pop %v4046
        %v4099 = vmul.f32 %v4098, %v4046
        %v4100 = vmul.f32 %v4099, %v4098
        %v4101 = vmul.f32 0.5, %v4100
        %v4102 = vsub.f32 1.5, %v4101
        %v4103 = vmul.f32 %v4098, %v4102
        %vm4104 = vweird.f32 %v4046
        %vm4105 = vweird.f32 %v4098
        %vm4106 = vmor %vm4104, %vm4105
        %v4107 = vsel %vm4106, %v4098, %v4103
        %v4108 = vrsqrt.pop %v4047
        %v4109 = vmul.f32 %v4108, %v4047
        %v4110 = vmul.f32 %v4109, %v4108
        %v4111 = vmul.f32 0.5, %v4110
        %v4112 = vsub.f32 1.5, %v4111
        %v4113 = vmul.f32 %v4108, %v4112
        %vm4114 = vweird.f32 %v4047
        %vm4115 = vweird.f32 %v4108
        %vm4116 = vmor %vm4114, %vm4115
        %v4117 = vsel %vm4116, %v4108, %v4113
        %v4118 = vrsqrt.pop %v4048
        %v4119 = vmul.f32 %v4118, %v4048
        %v4120 = vmul.f32 %v4119, %v4118
        %v4121 = vmul.f32 0.5, %v4120
        %v4122 = vsub.f32 1.5, %v4121
        %v4123 = vmul.f32 %v4118, %v4122
        %vm4124 = vweird.f32 %v4048
        %vm4125 = vweird.f32 %v4118
        %vm4126 = vmor %vm4124, %vm4125
        %v4127 = vsel %vm4126, %v4118, %v4123
        %v4128 = vrsqrt.pop %v4049
        %v4129 = vmul.f32 %v4128, %v4049
        %v4130 = vmul.f32 %v4129, %v4128
        %v4131 = vmul.f32 0.5, %v4130
        %v4132 = vsub.f32 1.5, %v4131
        %v4133 = vmul.f32 %v4128, %v4132
        %vm4134 = vweird.f32 %v4049
        %vm4135 = vweird.f32 %v4128
        %vm4136 = vmor %vm4134, %vm4135
        %v4137 = vsel %vm4136, %v4128, %v4133
        %v4138 = vrsqrt.pop %v4050
        %v4139 = vmul.f32 %v4138, %v4050
        %v4140 = vmul.f32 %v4139, %v4138
        %v4141 = vmul.f32 0.5, %v4140
        %v4142 = vsub.f32 1.5, %v4141
        %v4143 = vmul.f32 %v4138, %v4142
        %vm4144 = vweird.f32 %v4050
        %vm4145 = vweird.f32 %v4138
        %vm4146 = vmor %vm4144, %vm4145
        %v4147 = vsel %vm4146, %v4138, %v4143
        %v4148 = vrsqrt.pop %v4051
        %v4149 = vmul.f32 %v4148, %v4051
        %v4150 = vmul.f32 %v4149, %v4148
        %v4151 = vmul.f32 0.5, %v4150
        %v4152 = vsub.f32 1.5, %v4151
        %v4153 = vmul.f32 %v4148, %v4152
        %vm4154 = vweird.f32 %v4051
        %vm4155 = vweird.f32 %v4148
        %vm4156 = vmor %vm4154, %vm4155
        %v4157 = vsel %vm4156, %v4148, %v4153
        %v4158 = vrsqrt.pop %v4052
        %v4159 = vmul.f32 %v4158, %v4052
        %v4160 = vmul.f32 %v4159, %v4158
        %v4161 = vmul.f32 0.5, %v4160
        %v4162 = vsub.f32 1.5, %v4161
        %v4163 = vmul.f32 %v4158, %v4162
        %vm4164 = vweird.f32 %v4052
        %vm4165 = vweird.f32 %v4158
        %vm4166 = vmor %vm4164, %vm4165
        %v4167 = vsel %vm4166, %v4158, %v4163
        %v4168 = vrsqrt.pop %v4053
        %v4169 = vmul.f32 %v4168, %v4053
        %v4170 = vmul.f32 %v4169, %v4168
        %v4171 = vmul.f32 0.5, %v4170
        %v4172 = vsub.f32 1.5, %v4171
        %v4173 = vmul.f32 %v4168, %v4172
        %vm4174 = vweird.f32 %v4053
        %vm4175 = vweird.f32 %v4168
        %vm4176 = vmor %vm4174, %vm4175
        %v4177 = vsel %vm4176, %v4168, %v4173
        %v4178 = vrsqrt.pop %v4054
        %v4179 = vmul.f32 %v4178, %v4054
        %v4180 = vmul.f32 %v4179, %v4178
        %v4181 = vmul.f32 0.5, %v4180
        %v4182 = vsub.f32 1.5, %v4181
        %v4183 = vmul.f32 %v4178, %v4182
        %vm4184 = vweird.f32 %v4054
        %vm4185 = vweird.f32 %v4178
        %vm4186 = vmor %vm4184, %vm4185
        %v4187 = vsel %vm4186, %v4178, %v4183
        %v4188 = vrsqrt.pop %v4055
        %v4189 = vmul.f32 %v4188, %v4055
        %v4190 = vmul.f32 %v4189, %v4188
        %v4191 = vmul.f32 0.5, %v4190
        %v4192 = vsub.f32 1.5, %v4191
        %v4193 = vmul.f32 %v4188, %v4192
        %vm4194 = vweird.f32 %v4055
        %vm4195 = vweird.f32 %v4188
        %vm4196 = vmor %vm4194, %vm4195
        %v4197 = vsel %vm4196, %v4188, %v4193
        %v4198 = vrsqrt.pop %v4056
        %v4199 = vmul.f32 %v4198, %v4056
        %v4200 = vmul.f32 %v4199, %v4198
        %v4201 = vmul.f32 0.5, %v4200
        %v4202 = vsub.f32 1.5, %v4201
        %v4203 = vmul.f32 %v4198, %v4202
        %vm4204 = vweird.f32 %v4056
        %vm4205 = vweird.f32 %v4198
        %vm4206 = vmor %vm4204, %vm4205
        %v4207 = vsel %vm4206, %v4198, %v4203
        %v4208 = vrsqrt.pop %v4057
        %v4209 = vmul.f32 %v4208, %v4057
        %v4210 = vmul.f32 %v4209, %v4208
        %v4211 = vmul.f32 0.5, %v4210
        %v4212 = vsub.f32 1.5, %v4211
        %v4213 = vmul.f32 %v4208, %v4212
        %vm4214 = vweird.f32 %v4057
        %vm4215 = vweird.f32 %v4208
        %vm4216 = vmor %vm4214, %vm4215
        %v4217 = vsel %vm4216, %v4208, %v4213
        %v4218 = vmul.f32 %v3913, %v4067
        %v4219 = vmul.f32 %v3914, %v4067
        %v4220 = vmul.f32 %v3915, %v4077
        %v4221 = vmul.f32 %v3916, %v4077
        %v4222 = vmul.f32 %v3917, %v4087
        %v4223 = vmul.f32 %v3918, %v4087
        %v4224 = vmul.f32 %v3919, %v4097
        %v4225 = vmul.f32 %v3920, %v4097
        %v4226 = vmul.f32 %v3921, %v4107
        %v4227 = vmul.f32 %v3922, %v4107
        %v4228 = vmul.f32 %v3923, %v4117
        %v4229 = vmul.f32 %v3924, %v4117
        %v4230 = vmul.f32 %v3925, %v4127
        %v4231 = vmul.f32 %v3926, %v4127
        %v4232 = vmul.f32 %v3927, %v4137
        %v4233 = vmul.f32 %v3928, %v4137
        %v4234 = vmul.f32 %v3929, %v4147
        %v4235 = vmul.f32 %v3930, %v4147
        %v4236 = vmul.f32 %v3931, %v4157
        %v4237 = vmul.f32 %v3932, %v4157
        %v4238 = vmul.f32 %v3933, %v4167
        %v4239 = vmul.f32 %v3934, %v4167
        %v4240 = vmul.f32 %v3935, %v4177
        %v4241 = vmul.f32 %v3936, %v4177
        %v4242 = vmul.f32 %v3937, %v4187
        %v4243 = vmul.f32 %v3938, %v4187
        %v4244 = vmul.f32 %v3939, %v4197
        %v4245 = vmul.f32 %v3940, %v4197
        %v4246 = vmul.f32 %v3941, %v4207
        %v4247 = vmul.f32 %v3942, %v4207
        %v4248 = vmul.f32 %v3943, %v4217
        %v4249 = vmul.f32 %v3944, %v4217
        %v4251 = vperm.slane %v3945, 0
        %v4252 = vperm.slane %v3945, 1
        %v4255 = vmul.f32 %v4218, %v4251
        %v4256 = vmul.f32 %v4219, %v4252
        %v4257 = vmul.f32 %v4220, %v4251
        %v4258 = vmul.f32 %v4221, %v4252
        %v4259 = vmul.f32 %v4222, %v4251
        %v4260 = vmul.f32 %v4223, %v4252
        %v4261 = vmul.f32 %v4224, %v4251
        %v4262 = vmul.f32 %v4225, %v4252
        %v4263 = vmul.f32 %v4226, %v4251
        %v4264 = vmul.f32 %v4227, %v4252
        %v4265 = vmul.f32 %v4228, %v4251
        %v4266 = vmul.f32 %v4229, %v4252
        %v4267 = vmul.f32 %v4230, %v4251
        %v4268 = vmul.f32 %v4231, %v4252
        %v4269 = vmul.f32 %v4232, %v4251
        %v4270 = vmul.f32 %v4233, %v4252
        %v4271 = vmul.f32 %v4234, %v4251
        %v4272 = vmul.f32 %v4235, %v4252
        %v4273 = vmul.f32 %v4236, %v4251
        %v4274 = vmul.f32 %v4237, %v4252
        %v4275 = vmul.f32 %v4238, %v4251
        %v4276 = vmul.f32 %v4239, %v4252
        %v4277 = vmul.f32 %v4240, %v4251
        %v4278 = vmul.f32 %v4241, %v4252
        %v4279 = vmul.f32 %v4242, %v4251
        %v4280 = vmul.f32 %v4243, %v4252
        %v4281 = vmul.f32 %v4244, %v4251
        %v4282 = vmul.f32 %v4245, %v4252
        %v4283 = vmul.f32 %v4246, %v4251
        %v4284 = vmul.f32 %v4247, %v4252
        %v4285 = vmul.f32 %v4248, %v4251
        %v4286 = vmul.f32 %v4249, %v4252
        %v4287 = vpack.c.bf16 %v4257, %v4255
        %v4288 = vpack.c.bf16 %v4258, %v4256
        %v4289 = vpack.c.bf16 %v4261, %v4259
        %v4290 = vpack.c.bf16 %v4262, %v4260
        %v4291 = vpack.c.bf16 %v4265, %v4263
        %v4292 = vpack.c.bf16 %v4266, %v4264
        %v4293 = vpack.c.bf16 %v4269, %v4267
        %v4294 = vpack.c.bf16 %v4270, %v4268
        %v4295 = vpack.c.bf16 %v4273, %v4271
        %v4296 = vpack.c.bf16 %v4274, %v4272
        %v4297 = vpack.c.bf16 %v4277, %v4275
        %v4298 = vpack.c.bf16 %v4278, %v4276
        %v4299 = vpack.c.bf16 %v4281, %v4279
        %v4300 = vpack.c.bf16 %v4282, %v4280
        %v4301 = vpack.c.bf16 %v4285, %v4283
        %v4302 = vpack.c.bf16 %v4286, %v4284
        %v4303 = vld [vmem:[#allocation12] sm:$0xff]
        %v4304 = vld [vmem:[#allocation12 + $0x8] sm:$0xff]
        %v4305 = vld [vmem:[#allocation12 + $0x10] sm:$0xff]
        %v4306 = vld [vmem:[#allocation12 + $0x18] sm:$0xff]
        %v4307 = vld [vmem:[#allocation12 + $0x20] sm:$0xff]
        %v4308 = vld [vmem:[#allocation12 + $0x28] sm:$0xff]
        %v4309 = vld [vmem:[#allocation12 + $0x30] sm:$0xff]
        %v4310 = vld [vmem:[#allocation12 + $0x38] sm:$0xff]
        %v4311 = vld [vmem:[#allocation12 + $0x40] sm:$0xff]
        %v4312 = vld [vmem:[#allocation12 + $0x48] sm:$0xff]
        %v4313 = vld [vmem:[#allocation12 + $0x50] sm:$0xff]
        %v4314 = vld [vmem:[#allocation12 + $0x58] sm:$0xff]
        %v4315 = vld [vmem:[#allocation12 + $0x60] sm:$0xff]
        %v4316 = vld [vmem:[#allocation12 + $0x68] sm:$0xff]
        %v4317 = vld [vmem:[#allocation12 + $0x70] sm:$0xff]
        %v4318 = vld [vmem:[#allocation12 + $0x78] sm:$0xff]
        %v4319 = vld [vmem:[#allocation12 + $0x80] sm:$0xff]
        %v4320 = vld [vmem:[#allocation12 + $0x88] sm:$0xff]
        %v4321 = vld [vmem:[#allocation12 + $0x90] sm:$0xff]
        %v4322 = vld [vmem:[#allocation12 + $0x98] sm:$0xff]
        %v4323 = vld [vmem:[#allocation12 + $0xa0] sm:$0xff]
        %v4324 = vld [vmem:[#allocation12 + $0xa8] sm:$0xff]
        %v4325 = vld [vmem:[#allocation12 + $0xb0] sm:$0xff]
        %v4326 = vld [vmem:[#allocation12 + $0xb8] sm:$0xff]
        %v4327 = vld [vmem:[#allocation12 + $0xc0] sm:$0xff]
        %v4328 = vld [vmem:[#allocation12 + $0xc8] sm:$0xff]
        %v4329 = vld [vmem:[#allocation12 + $0xd0] sm:$0xff]
        %v4330 = vld [vmem:[#allocation12 + $0xd8] sm:$0xff]
        %v4331 = vld [vmem:[#allocation12 + $0xe0] sm:$0xff]
        %v4332 = vld [vmem:[#allocation12 + $0xe8] sm:$0xff]
        %v4333 = vld [vmem:[#allocation12 + $0xf0] sm:$0xff]
        %v4334 = vld [vmem:[#allocation12 + $0xf8] sm:$0xff]
        %v4335 = vld [vmem:[#allocation12 + $0x100] sm:$0xff]
        %v4336 = vld [vmem:[#allocation12 + $0x108] sm:$0xff]
        %v4337 = vld [vmem:[#allocation12 + $0x110] sm:$0xff]
        %v4338 = vld [vmem:[#allocation12 + $0x118] sm:$0xff]
        %v4339 = vld [vmem:[#allocation12 + $0x120] sm:$0xff]
        %v4340 = vld [vmem:[#allocation12 + $0x128] sm:$0xff]
        %v4341 = vld [vmem:[#allocation12 + $0x130] sm:$0xff]
        %v4342 = vld [vmem:[#allocation12 + $0x138] sm:$0xff]
        %v4343 = vld [vmem:[#allocation12 + $0x140] sm:$0xff]
        %v4344 = vld [vmem:[#allocation12 + $0x148] sm:$0xff]
        %v4345 = vld [vmem:[#allocation12 + $0x150] sm:$0xff]
        %v4346 = vld [vmem:[#allocation12 + $0x158] sm:$0xff]
        %v4347 = vld [vmem:[#allocation12 + $0x160] sm:$0xff]
        %v4348 = vld [vmem:[#allocation12 + $0x168] sm:$0xff]
        %v4349 = vld [vmem:[#allocation12 + $0x170] sm:$0xff]
        %v4350 = vld [vmem:[#allocation12 + $0x178] sm:$0xff]
        %v4351 = vld [vmem:[#allocation12 + $0x180] sm:$0xff]
        %v4352 = vld [vmem:[#allocation12 + $0x188] sm:$0xff]
        %v4353 = vld [vmem:[#allocation12 + $0x190] sm:$0xff]
        %v4354 = vld [vmem:[#allocation12 + $0x198] sm:$0xff]
        %v4355 = vld [vmem:[#allocation12 + $0x1a0] sm:$0xff]
        %v4356 = vld [vmem:[#allocation12 + $0x1a8] sm:$0xff]
        %v4357 = vld [vmem:[#allocation12 + $0x1b0] sm:$0xff]
        %v4358 = vld [vmem:[#allocation12 + $0x1b8] sm:$0xff]
        %v4359 = vld [vmem:[#allocation12 + $0x1c0] sm:$0xff]
        %v4360 = vld [vmem:[#allocation12 + $0x1c8] sm:$0xff]
        %v4361 = vld [vmem:[#allocation12 + $0x1d0] sm:$0xff]
        %v4362 = vld [vmem:[#allocation12 + $0x1d8] sm:$0xff]
        %v4363 = vld [vmem:[#allocation12 + $0x1e0] sm:$0xff]
        %v4364 = vld [vmem:[#allocation12 + $0x1e8] sm:$0xff]
        %v4365 = vld [vmem:[#allocation12 + $0x1f0] sm:$0xff]
        %v4366 = vld [vmem:[#allocation12 + $0x1f8] sm:$0xff]
        %v4367 = vld [vmem:[#allocation12 + $0x200] sm:$0xff]
        %v4368 = vld [vmem:[#allocation12 + $0x208] sm:$0xff]
        %v4369 = vld [vmem:[#allocation12 + $0x210] sm:$0xff]
        %v4370 = vld [vmem:[#allocation12 + $0x218] sm:$0xff]
        %v4371 = vld [vmem:[#allocation12 + $0x220] sm:$0xff]
        %v4372 = vld [vmem:[#allocation12 + $0x228] sm:$0xff]
        %v4373 = vld [vmem:[#allocation12 + $0x230] sm:$0xff]
        %v4374 = vld [vmem:[#allocation12 + $0x238] sm:$0xff]
        %v4375 = vld [vmem:[#allocation12 + $0x240] sm:$0xff]
        %v4376 = vld [vmem:[#allocation12 + $0x248] sm:$0xff]
        %v4377 = vld [vmem:[#allocation12 + $0x250] sm:$0xff]
        %v4378 = vld [vmem:[#allocation12 + $0x258] sm:$0xff]
        %v4379 = vld [vmem:[#allocation12 + $0x260] sm:$0xff]
        %v4380 = vld [vmem:[#allocation12 + $0x268] sm:$0xff]
        %v4381 = vld [vmem:[#allocation12 + $0x270] sm:$0xff]
        %v4382 = vld [vmem:[#allocation12 + $0x278] sm:$0xff]
        %v4383 = vld [vmem:[#allocation12 + $0x280] sm:$0xff]
        %v4384 = vld [vmem:[#allocation12 + $0x288] sm:$0xff]
        %v4385 = vld [vmem:[#allocation12 + $0x290] sm:$0xff]
        %v4386 = vld [vmem:[#allocation12 + $0x298] sm:$0xff]
        %v4387 = vld [vmem:[#allocation12 + $0x2a0] sm:$0xff]
        %v4388 = vld [vmem:[#allocation12 + $0x2a8] sm:$0xff]
        %v4389 = vld [vmem:[#allocation12 + $0x2b0] sm:$0xff]
        %v4390 = vld [vmem:[#allocation12 + $0x2b8] sm:$0xff]
        %v4391 = vld [vmem:[#allocation12 + $0x2c0] sm:$0xff]
        %v4392 = vld [vmem:[#allocation12 + $0x2c8] sm:$0xff]
        %v4393 = vld [vmem:[#allocation12 + $0x2d0] sm:$0xff]
        %v4394 = vld [vmem:[#allocation12 + $0x2d8] sm:$0xff]
        %v4395 = vld [vmem:[#allocation12 + $0x2e0] sm:$0xff]
        %v4396 = vld [vmem:[#allocation12 + $0x2e8] sm:$0xff]
        %v4397 = vld [vmem:[#allocation12 + $0x2f0] sm:$0xff]
        %v4398 = vld [vmem:[#allocation12 + $0x2f8] sm:$0xff]
        %v4399 = vld [vmem:[#allocation12 + $0x300] sm:$0xff]
        %v4400 = vld [vmem:[#allocation12 + $0x308] sm:$0xff]
        %v4401 = vld [vmem:[#allocation12 + $0x310] sm:$0xff]
        %v4402 = vld [vmem:[#allocation12 + $0x318] sm:$0xff]
        %v4403 = vld [vmem:[#allocation12 + $0x320] sm:$0xff]
        %v4404 = vld [vmem:[#allocation12 + $0x328] sm:$0xff]
        %v4405 = vld [vmem:[#allocation12 + $0x330] sm:$0xff]
        %v4406 = vld [vmem:[#allocation12 + $0x338] sm:$0xff]
        %v4407 = vld [vmem:[#allocation12 + $0x340] sm:$0xff]
        %v4408 = vld [vmem:[#allocation12 + $0x348] sm:$0xff]
        %v4409 = vld [vmem:[#allocation12 + $0x350] sm:$0xff]
        %v4410 = vld [vmem:[#allocation12 + $0x358] sm:$0xff]
        %v4411 = vld [vmem:[#allocation12 + $0x360] sm:$0xff]
        %v4412 = vld [vmem:[#allocation12 + $0x368] sm:$0xff]
        %v4413 = vld [vmem:[#allocation12 + $0x370] sm:$0xff]
        %v4414 = vld [vmem:[#allocation12 + $0x378] sm:$0xff]
        %v4415 = vld [vmem:[#allocation12 + $0x380] sm:$0xff]
        %v4416 = vld [vmem:[#allocation12 + $0x388] sm:$0xff]
        %v4417 = vld [vmem:[#allocation12 + $0x390] sm:$0xff]
        %v4418 = vld [vmem:[#allocation12 + $0x398] sm:$0xff]
        %v4419 = vld [vmem:[#allocation12 + $0x3a0] sm:$0xff]
        %v4420 = vld [vmem:[#allocation12 + $0x3a8] sm:$0xff]
        %v4421 = vld [vmem:[#allocation12 + $0x3b0] sm:$0xff]
        %v4422 = vld [vmem:[#allocation12 + $0x3b8] sm:$0xff]
        %v4423 = vld [vmem:[#allocation12 + $0x3c0] sm:$0xff]
        %v4424 = vld [vmem:[#allocation12 + $0x3c8] sm:$0xff]
        %v4425 = vld [vmem:[#allocation12 + $0x3d0] sm:$0xff]
        %v4426 = vld [vmem:[#allocation12 + $0x3d8] sm:$0xff]
        %v4427 = vld [vmem:[#allocation12 + $0x3e0] sm:$0xff]
        %v4428 = vld [vmem:[#allocation12 + $0x3e8] sm:$0xff]
        %v4429 = vld [vmem:[#allocation12 + $0x3f0] sm:$0xff]
        %v4430 = vld [vmem:[#allocation12 + $0x3f8] sm:$0xff]
        %v4559 = vunpack.c.l.b16 %v4303
        %v4560 = vunpack.c.h.b16 %v4303
        %v4561 = vunpack.c.l.b16 %v4304
        %v4562 = vunpack.c.h.b16 %v4304
        %v4563 = vunpack.c.l.b16 %v4305
        %v4564 = vunpack.c.h.b16 %v4305
        %v4565 = vunpack.c.l.b16 %v4306
        %v4566 = vunpack.c.h.b16 %v4306
        %v4567 = vunpack.c.l.b16 %v4307
        %v4568 = vunpack.c.h.b16 %v4307
        %v4569 = vunpack.c.l.b16 %v4308
        %v4570 = vunpack.c.h.b16 %v4308
        %v4571 = vunpack.c.l.b16 %v4309
        %v4572 = vunpack.c.h.b16 %v4309
        %v4573 = vunpack.c.l.b16 %v4310
        %v4574 = vunpack.c.h.b16 %v4310
        %v4575 = vunpack.c.l.b16 %v4311
        %v4576 = vunpack.c.h.b16 %v4311
        %v4577 = vunpack.c.l.b16 %v4312
        %v4578 = vunpack.c.h.b16 %v4312
        %v4579 = vunpack.c.l.b16 %v4313
        %v4580 = vunpack.c.h.b16 %v4313
        %v4581 = vunpack.c.l.b16 %v4314
        %v4582 = vunpack.c.h.b16 %v4314
        %v4583 = vunpack.c.l.b16 %v4315
        %v4584 = vunpack.c.h.b16 %v4315
        %v4585 = vunpack.c.l.b16 %v4316
        %v4586 = vunpack.c.h.b16 %v4316
        %v4587 = vunpack.c.l.b16 %v4317
        %v4588 = vunpack.c.h.b16 %v4317
        %v4589 = vunpack.c.l.b16 %v4318
        %v4590 = vunpack.c.h.b16 %v4318
        %v4591 = vunpack.c.l.b16 %v4319
        %v4592 = vunpack.c.h.b16 %v4319
        %v4593 = vunpack.c.l.b16 %v4320
        %v4594 = vunpack.c.h.b16 %v4320
        %v4595 = vunpack.c.l.b16 %v4321
        %v4596 = vunpack.c.h.b16 %v4321
        %v4597 = vunpack.c.l.b16 %v4322
        %v4598 = vunpack.c.h.b16 %v4322
        %v4599 = vunpack.c.l.b16 %v4323
        %v4600 = vunpack.c.h.b16 %v4323
        %v4601 = vunpack.c.l.b16 %v4324
        %v4602 = vunpack.c.h.b16 %v4324
        %v4603 = vunpack.c.l.b16 %v4325
        %v4604 = vunpack.c.h.b16 %v4325
        %v4605 = vunpack.c.l.b16 %v4326
        %v4606 = vunpack.c.h.b16 %v4326
        %v4607 = vunpack.c.l.b16 %v4327
        %v4608 = vunpack.c.h.b16 %v4327
        %v4609 = vunpack.c.l.b16 %v4328
        %v4610 = vunpack.c.h.b16 %v4328
        %v4611 = vunpack.c.l.b16 %v4329
        %v4612 = vunpack.c.h.b16 %v4329
        %v4613 = vunpack.c.l.b16 %v4330
        %v4614 = vunpack.c.h.b16 %v4330
        %v4615 = vunpack.c.l.b16 %v4331
        %v4616 = vunpack.c.h.b16 %v4331
        %v4617 = vunpack.c.l.b16 %v4332
        %v4618 = vunpack.c.h.b16 %v4332
        %v4619 = vunpack.c.l.b16 %v4333
        %v4620 = vunpack.c.h.b16 %v4333
        %v4621 = vunpack.c.l.b16 %v4334
        %v4622 = vunpack.c.h.b16 %v4334
        %v4623 = vunpack.c.l.b16 %v4335
        %v4624 = vunpack.c.h.b16 %v4335
        %v4625 = vunpack.c.l.b16 %v4336
        %v4626 = vunpack.c.h.b16 %v4336
        %v4627 = vunpack.c.l.b16 %v4337
        %v4628 = vunpack.c.h.b16 %v4337
        %v4629 = vunpack.c.l.b16 %v4338
        %v4630 = vunpack.c.h.b16 %v4338
        %v4631 = vunpack.c.l.b16 %v4339
        %v4632 = vunpack.c.h.b16 %v4339
        %v4633 = vunpack.c.l.b16 %v4340
        %v4634 = vunpack.c.h.b16 %v4340
        %v4635 = vunpack.c.l.b16 %v4341
        %v4636 = vunpack.c.h.b16 %v4341
        %v4637 = vunpack.c.l.b16 %v4342
        %v4638 = vunpack.c.h.b16 %v4342
        %v4639 = vunpack.c.l.b16 %v4343
        %v4640 = vunpack.c.h.b16 %v4343
        %v4641 = vunpack.c.l.b16 %v4344
        %v4642 = vunpack.c.h.b16 %v4344
        %v4643 = vunpack.c.l.b16 %v4345
        %v4644 = vunpack.c.h.b16 %v4345
        %v4645 = vunpack.c.l.b16 %v4346
        %v4646 = vunpack.c.h.b16 %v4346
        %v4647 = vunpack.c.l.b16 %v4347
        %v4648 = vunpack.c.h.b16 %v4347
        %v4649 = vunpack.c.l.b16 %v4348
        %v4650 = vunpack.c.h.b16 %v4348
        %v4651 = vunpack.c.l.b16 %v4349
        %v4652 = vunpack.c.h.b16 %v4349
        %v4653 = vunpack.c.l.b16 %v4350
        %v4654 = vunpack.c.h.b16 %v4350
        %v4655 = vunpack.c.l.b16 %v4351
        %v4656 = vunpack.c.h.b16 %v4351
        %v4657 = vunpack.c.l.b16 %v4352
        %v4658 = vunpack.c.h.b16 %v4352
        %v4659 = vunpack.c.l.b16 %v4353
        %v4660 = vunpack.c.h.b16 %v4353
        %v4661 = vunpack.c.l.b16 %v4354
        %v4662 = vunpack.c.h.b16 %v4354
        %v4663 = vunpack.c.l.b16 %v4355
        %v4664 = vunpack.c.h.b16 %v4355
        %v4665 = vunpack.c.l.b16 %v4356
        %v4666 = vunpack.c.h.b16 %v4356
        %v4667 = vunpack.c.l.b16 %v4357
        %v4668 = vunpack.c.h.b16 %v4357
        %v4669 = vunpack.c.l.b16 %v4358
        %v4670 = vunpack.c.h.b16 %v4358
        %v4671 = vunpack.c.l.b16 %v4359
        %v4672 = vunpack.c.h.b16 %v4359
        %v4673 = vunpack.c.l.b16 %v4360
        %v4674 = vunpack.c.h.b16 %v4360
        %v4675 = vunpack.c.l.b16 %v4361
        %v4676 = vunpack.c.h.b16 %v4361
        %v4677 = vunpack.c.l.b16 %v4362
        %v4678 = vunpack.c.h.b16 %v4362
        %v4679 = vunpack.c.l.b16 %v4363
        %v4680 = vunpack.c.h.b16 %v4363
        %v4681 = vunpack.c.l.b16 %v4364
        %v4682 = vunpack.c.h.b16 %v4364
        %v4683 = vunpack.c.l.b16 %v4365
        %v4684 = vunpack.c.h.b16 %v4365
        %v4685 = vunpack.c.l.b16 %v4366
        %v4686 = vunpack.c.h.b16 %v4366
        %v4687 = vunpack.c.l.b16 %v4367
        %v4688 = vunpack.c.h.b16 %v4367
        %v4689 = vunpack.c.l.b16 %v4368
        %v4690 = vunpack.c.h.b16 %v4368
        %v4691 = vunpack.c.l.b16 %v4369
        %v4692 = vunpack.c.h.b16 %v4369
        %v4693 = vunpack.c.l.b16 %v4370
        %v4694 = vunpack.c.h.b16 %v4370
        %v4695 = vunpack.c.l.b16 %v4371
        %v4696 = vunpack.c.h.b16 %v4371
        %v4697 = vunpack.c.l.b16 %v4372
        %v4698 = vunpack.c.h.b16 %v4372
        %v4699 = vunpack.c.l.b16 %v4373
        %v4700 = vunpack.c.h.b16 %v4373
        %v4701 = vunpack.c.l.b16 %v4374
        %v4702 = vunpack.c.h.b16 %v4374
        %v4703 = vunpack.c.l.b16 %v4375
        %v4704 = vunpack.c.h.b16 %v4375
        %v4705 = vunpack.c.l.b16 %v4376
        %v4706 = vunpack.c.h.b16 %v4376
        %v4707 = vunpack.c.l.b16 %v4377
        %v4708 = vunpack.c.h.b16 %v4377
        %v4709 = vunpack.c.l.b16 %v4378
        %v4710 = vunpack.c.h.b16 %v4378
        %v4711 = vunpack.c.l.b16 %v4379
        %v4712 = vunpack.c.h.b16 %v4379
        %v4713 = vunpack.c.l.b16 %v4380
        %v4714 = vunpack.c.h.b16 %v4380
        %v4715 = vunpack.c.l.b16 %v4381
        %v4716 = vunpack.c.h.b16 %v4381
        %v4717 = vunpack.c.l.b16 %v4382
        %v4718 = vunpack.c.h.b16 %v4382
        %v4719 = vunpack.c.l.b16 %v4383
        %v4720 = vunpack.c.h.b16 %v4383
        %v4721 = vunpack.c.l.b16 %v4384
        %v4722 = vunpack.c.h.b16 %v4384
        %v4723 = vunpack.c.l.b16 %v4385
        %v4724 = vunpack.c.h.b16 %v4385
        %v4725 = vunpack.c.l.b16 %v4386
        %v4726 = vunpack.c.h.b16 %v4386
        %v4727 = vunpack.c.l.b16 %v4387
        %v4728 = vunpack.c.h.b16 %v4387
        %v4729 = vunpack.c.l.b16 %v4388
        %v4730 = vunpack.c.h.b16 %v4388
        %v4731 = vunpack.c.l.b16 %v4389
        %v4732 = vunpack.c.h.b16 %v4389
        %v4733 = vunpack.c.l.b16 %v4390
        %v4734 = vunpack.c.h.b16 %v4390
        %v4735 = vunpack.c.l.b16 %v4391
        %v4736 = vunpack.c.h.b16 %v4391
        %v4737 = vunpack.c.l.b16 %v4392
        %v4738 = vunpack.c.h.b16 %v4392
        %v4739 = vunpack.c.l.b16 %v4393
        %v4740 = vunpack.c.h.b16 %v4393
        %v4741 = vunpack.c.l.b16 %v4394
        %v4742 = vunpack.c.h.b16 %v4394
        %v4743 = vunpack.c.l.b16 %v4395
        %v4744 = vunpack.c.h.b16 %v4395
        %v4745 = vunpack.c.l.b16 %v4396
        %v4746 = vunpack.c.h.b16 %v4396
        %v4747 = vunpack.c.l.b16 %v4397
        %v4748 = vunpack.c.h.b16 %v4397
        %v4749 = vunpack.c.l.b16 %v4398
        %v4750 = vunpack.c.h.b16 %v4398
        %v4751 = vunpack.c.l.b16 %v4399
        %v4752 = vunpack.c.h.b16 %v4399
        %v4753 = vunpack.c.l.b16 %v4400
        %v4754 = vunpack.c.h.b16 %v4400
        %v4755 = vunpack.c.l.b16 %v4401
        %v4756 = vunpack.c.h.b16 %v4401
        %v4757 = vunpack.c.l.b16 %v4402
        %v4758 = vunpack.c.h.b16 %v4402
        %v4759 = vunpack.c.l.b16 %v4403
        %v4760 = vunpack.c.h.b16 %v4403
        %v4761 = vunpack.c.l.b16 %v4404
        %v4762 = vunpack.c.h.b16 %v4404
        %v4763 = vunpack.c.l.b16 %v4405
        %v4764 = vunpack.c.h.b16 %v4405
        %v4765 = vunpack.c.l.b16 %v4406
        %v4766 = vunpack.c.h.b16 %v4406
        %v4767 = vunpack.c.l.b16 %v4407
        %v4768 = vunpack.c.h.b16 %v4407
        %v4769 = vunpack.c.l.b16 %v4408
        %v4770 = vunpack.c.h.b16 %v4408
        %v4771 = vunpack.c.l.b16 %v4409
        %v4772 = vunpack.c.h.b16 %v4409
        %v4773 = vunpack.c.l.b16 %v4410
        %v4774 = vunpack.c.h.b16 %v4410
        %v4775 = vunpack.c.l.b16 %v4411
        %v4776 = vunpack.c.h.b16 %v4411
        %v4777 = vunpack.c.l.b16 %v4412
        %v4778 = vunpack.c.h.b16 %v4412
        %v4779 = vunpack.c.l.b16 %v4413
        %v4780 = vunpack.c.h.b16 %v4413
        %v4781 = vunpack.c.l.b16 %v4414
        %v4782 = vunpack.c.h.b16 %v4414
        %v4783 = vunpack.c.l.b16 %v4415
        %v4784 = vunpack.c.h.b16 %v4415
        %v4785 = vunpack.c.l.b16 %v4416
        %v4786 = vunpack.c.h.b16 %v4416
        %v4787 = vunpack.c.l.b16 %v4417
        %v4788 = vunpack.c.h.b16 %v4417
        %v4789 = vunpack.c.l.b16 %v4418
        %v4790 = vunpack.c.h.b16 %v4418
        %v4791 = vunpack.c.l.b16 %v4419
        %v4792 = vunpack.c.h.b16 %v4419
        %v4793 = vunpack.c.l.b16 %v4420
        %v4794 = vunpack.c.h.b16 %v4420
        %v4795 = vunpack.c.l.b16 %v4421
        %v4796 = vunpack.c.h.b16 %v4421
        %v4797 = vunpack.c.l.b16 %v4422
        %v4798 = vunpack.c.h.b16 %v4422
        %v4799 = vunpack.c.l.b16 %v4423
        %v4800 = vunpack.c.h.b16 %v4423
        %v4801 = vunpack.c.l.b16 %v4424
        %v4802 = vunpack.c.h.b16 %v4424
        %v4803 = vunpack.c.l.b16 %v4425
        %v4804 = vunpack.c.h.b16 %v4425
        %v4805 = vunpack.c.l.b16 %v4426
        %v4806 = vunpack.c.h.b16 %v4426
        %v4807 = vunpack.c.l.b16 %v4427
        %v4808 = vunpack.c.h.b16 %v4427
        %v4809 = vunpack.c.l.b16 %v4428
        %v4810 = vunpack.c.h.b16 %v4428
        %v4811 = vunpack.c.l.b16 %v4429
        %v4812 = vunpack.c.h.b16 %v4429
        %v4813 = vunpack.c.l.b16 %v4430
        %v4814 = vunpack.c.h.b16 %v4430
        %v4815 = vpack.c.b16 %v4567, %v4559
        %v4816 = vpack.c.b16 %v4568, %v4560
        %v4817 = vpack.c.b16 %v4569, %v4561
        %v4818 = vpack.c.b16 %v4570, %v4562
        %v4819 = vpack.c.b16 %v4571, %v4563
        %v4820 = vpack.c.b16 %v4572, %v4564
        %v4821 = vpack.c.b16 %v4573, %v4565
        %v4822 = vpack.c.b16 %v4574, %v4566
        %v4823 = vpack.c.b16 %v4583, %v4575
        %v4824 = vpack.c.b16 %v4584, %v4576
        %v4825 = vpack.c.b16 %v4585, %v4577
        %v4826 = vpack.c.b16 %v4586, %v4578
        %v4827 = vpack.c.b16 %v4587, %v4579
        %v4828 = vpack.c.b16 %v4588, %v4580
        %v4829 = vpack.c.b16 %v4589, %v4581
        %v4830 = vpack.c.b16 %v4590, %v4582
        %v4831 = vpack.c.b16 %v4599, %v4591
        %v4832 = vpack.c.b16 %v4600, %v4592
        %v4833 = vpack.c.b16 %v4601, %v4593
        %v4834 = vpack.c.b16 %v4602, %v4594
        %v4835 = vpack.c.b16 %v4603, %v4595
        %v4836 = vpack.c.b16 %v4604, %v4596
        %v4837 = vpack.c.b16 %v4605, %v4597
        %v4838 = vpack.c.b16 %v4606, %v4598
        %v4839 = vpack.c.b16 %v4615, %v4607
        %v4840 = vpack.c.b16 %v4616, %v4608
        %v4841 = vpack.c.b16 %v4617, %v4609
        %v4842 = vpack.c.b16 %v4618, %v4610
        %v4843 = vpack.c.b16 %v4619, %v4611
        %v4844 = vpack.c.b16 %v4620, %v4612
        %v4845 = vpack.c.b16 %v4621, %v4613
        %v4846 = vpack.c.b16 %v4622, %v4614
        %v4847 = vpack.c.b16 %v4631, %v4623
        %v4848 = vpack.c.b16 %v4632, %v4624
        %v4849 = vpack.c.b16 %v4633, %v4625
        %v4850 = vpack.c.b16 %v4634, %v4626
        %v4851 = vpack.c.b16 %v4635, %v4627
        %v4852 = vpack.c.b16 %v4636, %v4628
        %v4853 = vpack.c.b16 %v4637, %v4629
        %v4854 = vpack.c.b16 %v4638, %v4630
        %v4855 = vpack.c.b16 %v4647, %v4639
        %v4856 = vpack.c.b16 %v4648, %v4640
        %v4857 = vpack.c.b16 %v4649, %v4641
        %v4858 = vpack.c.b16 %v4650, %v4642
        %v4859 = vpack.c.b16 %v4651, %v4643
        %v4860 = vpack.c.b16 %v4652, %v4644
        %v4861 = vpack.c.b16 %v4653, %v4645
        %v4862 = vpack.c.b16 %v4654, %v4646
        %v4863 = vpack.c.b16 %v4663, %v4655
        %v4864 = vpack.c.b16 %v4664, %v4656
        %v4865 = vpack.c.b16 %v4665, %v4657
        %v4866 = vpack.c.b16 %v4666, %v4658
        %v4867 = vpack.c.b16 %v4667, %v4659
        %v4868 = vpack.c.b16 %v4668, %v4660
        %v4869 = vpack.c.b16 %v4669, %v4661
        %v4870 = vpack.c.b16 %v4670, %v4662
        %v4871 = vpack.c.b16 %v4679, %v4671
        %v4872 = vpack.c.b16 %v4680, %v4672
        %v4873 = vpack.c.b16 %v4681, %v4673
        %v4874 = vpack.c.b16 %v4682, %v4674
        %v4875 = vpack.c.b16 %v4683, %v4675
        %v4876 = vpack.c.b16 %v4684, %v4676
        %v4877 = vpack.c.b16 %v4685, %v4677
        %v4878 = vpack.c.b16 %v4686, %v4678
        %v4879 = vpack.c.b16 %v4695, %v4687
        %v4880 = vpack.c.b16 %v4696, %v4688
        %v4881 = vpack.c.b16 %v4697, %v4689
        %v4882 = vpack.c.b16 %v4698, %v4690
        %v4883 = vpack.c.b16 %v4699, %v4691
        %v4884 = vpack.c.b16 %v4700, %v4692
        %v4885 = vpack.c.b16 %v4701, %v4693
        %v4886 = vpack.c.b16 %v4702, %v4694
        %v4887 = vpack.c.b16 %v4711, %v4703
        %v4888 = vpack.c.b16 %v4712, %v4704
        %v4889 = vpack.c.b16 %v4713, %v4705
        %v4890 = vpack.c.b16 %v4714, %v4706
        %v4891 = vpack.c.b16 %v4715, %v4707
        %v4892 = vpack.c.b16 %v4716, %v4708
        %v4893 = vpack.c.b16 %v4717, %v4709
        %v4894 = vpack.c.b16 %v4718, %v4710
        %v4895 = vpack.c.b16 %v4727, %v4719
        %v4896 = vpack.c.b16 %v4728, %v4720
        %v4897 = vpack.c.b16 %v4729, %v4721
        %v4898 = vpack.c.b16 %v4730, %v4722
        %v4899 = vpack.c.b16 %v4731, %v4723
        %v4900 = vpack.c.b16 %v4732, %v4724
        %v4901 = vpack.c.b16 %v4733, %v4725
        %v4902 = vpack.c.b16 %v4734, %v4726
        %v4903 = vpack.c.b16 %v4743, %v4735
        %v4904 = vpack.c.b16 %v4744, %v4736
        %v4905 = vpack.c.b16 %v4745, %v4737
        %v4906 = vpack.c.b16 %v4746, %v4738
        %v4907 = vpack.c.b16 %v4747, %v4739
        %v4908 = vpack.c.b16 %v4748, %v4740
        %v4909 = vpack.c.b16 %v4749, %v4741
        %v4910 = vpack.c.b16 %v4750, %v4742
        %v4911 = vpack.c.b16 %v4759, %v4751
        %v4912 = vpack.c.b16 %v4760, %v4752
        %v4913 = vpack.c.b16 %v4761, %v4753
        %v4914 = vpack.c.b16 %v4762, %v4754
        %v4915 = vpack.c.b16 %v4763, %v4755
        %v4916 = vpack.c.b16 %v4764, %v4756
        %v4917 = vpack.c.b16 %v4765, %v4757
        %v4918 = vpack.c.b16 %v4766, %v4758
        %v4919 = vpack.c.b16 %v4775, %v4767
        %v4920 = vpack.c.b16 %v4776, %v4768
        %v4921 = vpack.c.b16 %v4777, %v4769
        %v4922 = vpack.c.b16 %v4778, %v4770
        %v4923 = vpack.c.b16 %v4779, %v4771
        %v4924 = vpack.c.b16 %v4780, %v4772
        %v4925 = vpack.c.b16 %v4781, %v4773
        %v4926 = vpack.c.b16 %v4782, %v4774
        %v4927 = vpack.c.b16 %v4791, %v4783
        %v4928 = vpack.c.b16 %v4792, %v4784
        %v4929 = vpack.c.b16 %v4793, %v4785
        %v4930 = vpack.c.b16 %v4794, %v4786
        %v4931 = vpack.c.b16 %v4795, %v4787
        %v4932 = vpack.c.b16 %v4796, %v4788
        %v4933 = vpack.c.b16 %v4797, %v4789
        %v4934 = vpack.c.b16 %v4798, %v4790
        %v4935 = vpack.c.b16 %v4807, %v4799
        %v4936 = vpack.c.b16 %v4808, %v4800
        %v4937 = vpack.c.b16 %v4809, %v4801
        %v4938 = vpack.c.b16 %v4810, %v4802
        %v4939 = vpack.c.b16 %v4811, %v4803
        %v4940 = vpack.c.b16 %v4812, %v4804
        %v4941 = vpack.c.b16 %v4813, %v4805
        %v4942 = vpack.c.b16 %v4814, %v4806
        %5071 = vmatpush.bf16.msra.mxu0 %v4871
        %5072 = vmatpush.bf16.msra.mxu0 %v4863
        %5073 = vmatpush.bf16.msra.mxu0 %v4855
        %5074 = vmatpush.bf16.msra.mxu0 %v4847
        %5075 = vmatpush.bf16.msra.mxu0 %v4839
        %5076 = vmatpush.bf16.msra.mxu0 %v4831
        %5077 = vmatpush.bf16.msra.mxu0 %v4823
        %5078 = vmatpush.bf16.msra.mxu0 %v4815
        %5079 = vmatmul.bf16.gmra.mxu0 %v4287
        %v5080 = vpop.f32.mrf.mxu0
        %v5081 = vadd.f32 0.0, %v5080
        %v5082 = vpop.f32.mrf.mxu0
        %v5083 = vadd.f32 0.0, %v5082
        %5084 = vmatmul.bf16.gmra.mxu0 %v4289
        %v5085 = vpop.f32.mrf.mxu0
        %v5086 = vadd.f32 0.0, %v5085
        %v5087 = vpop.f32.mrf.mxu0
        %v5088 = vadd.f32 0.0, %v5087
        %5089 = vmatmul.bf16.gmra.mxu0 %v4291
        %v5090 = vpop.f32.mrf.mxu0
        %v5091 = vadd.f32 0.0, %v5090
        %v5092 = vpop.f32.mrf.mxu0
        %v5093 = vadd.f32 0.0, %v5092
        %5094 = vmatmul.bf16.gmra.mxu0 %v4293
        %v5095 = vpop.f32.mrf.mxu0
        %v5096 = vadd.f32 0.0, %v5095
        %v5097 = vpop.f32.mrf.mxu0
        %v5098 = vadd.f32 0.0, %v5097
        %5099 = vmatmul.bf16.gmra.mxu0 %v4295
        %v5100 = vpop.f32.mrf.mxu0
        %v5101 = vadd.f32 0.0, %v5100
        %v5102 = vpop.f32.mrf.mxu0
        %v5103 = vadd.f32 0.0, %v5102
        %5104 = vmatmul.bf16.gmra.mxu0 %v4297
        %v5105 = vpop.f32.mrf.mxu0
        %v5106 = vadd.f32 0.0, %v5105
        %v5107 = vpop.f32.mrf.mxu0
        %v5108 = vadd.f32 0.0, %v5107
        %5109 = vmatmul.bf16.gmra.mxu0 %v4299
        %v5110 = vpop.f32.mrf.mxu0
        %v5111 = vadd.f32 0.0, %v5110
        %v5112 = vpop.f32.mrf.mxu0
        %v5113 = vadd.f32 0.0, %v5112
        %5114 = vmatmul.bf16.gmra.mxu0 %v4301
        %v5115 = vpop.f32.mrf.mxu0
        %v5116 = vadd.f32 0.0, %v5115
        %v5117 = vpop.f32.mrf.mxu0
        %v5118 = vadd.f32 0.0, %v5117
        %5119 = vdwg.mxu0
        %5120 = vmatpush.bf16.msra.mxu0 %v4935
        %5121 = vmatpush.bf16.msra.mxu0 %v4927
        %5122 = vmatpush.bf16.msra.mxu0 %v4919
        %5123 = vmatpush.bf16.msra.mxu0 %v4911
        %5124 = vmatpush.bf16.msra.mxu0 %v4903
        %5125 = vmatpush.bf16.msra.mxu0 %v4895
        %5126 = vmatpush.bf16.msra.mxu0 %v4887
        %5127 = vmatpush.bf16.msra.mxu0 %v4879
        %5128 = vmatmul.bf16.gmra.mxu0 %v4288
        %v5129 = vpop.f32.mrf.mxu0
        %v5130 = vadd.f32 %v5081, %v5129
        %v5131 = vpop.f32.mrf.mxu0
        %v5132 = vadd.f32 %v5083, %v5131
        %5133 = vmatmul.bf16.gmra.mxu0 %v4290
        %v5134 = vpop.f32.mrf.mxu0
        %v5135 = vadd.f32 %v5086, %v5134
        %v5136 = vpop.f32.mrf.mxu0
        %v5137 = vadd.f32 %v5088, %v5136
        %5138 = vmatmul.bf16.gmra.mxu0 %v4292
        %v5139 = vpop.f32.mrf.mxu0
        %v5140 = vadd.f32 %v5091, %v5139
        %v5141 = vpop.f32.mrf.mxu0
        %v5142 = vadd.f32 %v5093, %v5141
        %5143 = vmatmul.bf16.gmra.mxu0 %v4294
        %v5144 = vpop.f32.mrf.mxu0
        %v5145 = vadd.f32 %v5096, %v5144
        %v5146 = vpop.f32.mrf.mxu0
        %v5147 = vadd.f32 %v5098, %v5146
        %5148 = vmatmul.bf16.gmra.mxu0 %v4296
        %v5149 = vpop.f32.mrf.mxu0
        %v5150 = vadd.f32 %v5101, %v5149
        %v5151 = vpop.f32.mrf.mxu0
        %v5152 = vadd.f32 %v5103, %v5151
        %5153 = vmatmul.bf16.gmra.mxu0 %v4298
        %v5154 = vpop.f32.mrf.mxu0
        %v5155 = vadd.f32 %v5106, %v5154
        %v5156 = vpop.f32.mrf.mxu0
        %v5157 = vadd.f32 %v5108, %v5156
        %5158 = vmatmul.bf16.gmra.mxu0 %v4300
        %v5159 = vpop.f32.mrf.mxu0
        %v5160 = vadd.f32 %v5111, %v5159
        %v5161 = vpop.f32.mrf.mxu0
        %v5162 = vadd.f32 %v5113, %v5161
        %5163 = vmatmul.bf16.gmra.mxu0 %v4302
        %v5164 = vpop.f32.mrf.mxu0
        %v5165 = vadd.f32 %v5116, %v5164
        %v5166 = vpop.f32.mrf.mxu0
        %v5167 = vadd.f32 %v5118, %v5166
        %5168 = vdwg.mxu0
        %5169 = vmatpush.bf16.msra.mxu0 %v4872
        %5170 = vmatpush.bf16.msra.mxu0 %v4864
        %5171 = vmatpush.bf16.msra.mxu0 %v4856
        %5172 = vmatpush.bf16.msra.mxu0 %v4848
        %5173 = vmatpush.bf16.msra.mxu0 %v4840
        %5174 = vmatpush.bf16.msra.mxu0 %v4832
        %5175 = vmatpush.bf16.msra.mxu0 %v4824
        %5176 = vmatpush.bf16.msra.mxu0 %v4816
        %5177 = vmatmul.bf16.gmra.mxu0 %v4287
        %v5178 = vpop.f32.mrf.mxu0
        %v5179 = vadd.f32 0.0, %v5178
        %v5180 = vpop.f32.mrf.mxu0
        %v5181 = vadd.f32 0.0, %v5180
        %5182 = vmatmul.bf16.gmra.mxu0 %v4289
        %v5183 = vpop.f32.mrf.mxu0
        %v5184 = vadd.f32 0.0, %v5183
        %v5185 = vpop.f32.mrf.mxu0
        %v5186 = vadd.f32 0.0, %v5185
        %5187 = vmatmul.bf16.gmra.mxu0 %v4291
        %v5188 = vpop.f32.mrf.mxu0
        %v5189 = vadd.f32 0.0, %v5188
        %v5190 = vpop.f32.mrf.mxu0
        %v5191 = vadd.f32 0.0, %v5190
        %5192 = vmatmul.bf16.gmra.mxu0 %v4293
        %v5193 = vpop.f32.mrf.mxu0
        %v5194 = vadd.f32 0.0, %v5193
        %v5195 = vpop.f32.mrf.mxu0
        %v5196 = vadd.f32 0.0, %v5195
        %5197 = vmatmul.bf16.gmra.mxu0 %v4295
        %v5198 = vpop.f32.mrf.mxu0
        %v5199 = vadd.f32 0.0, %v5198
        %v5200 = vpop.f32.mrf.mxu0
        %v5201 = vadd.f32 0.0, %v5200
        %5202 = vmatmul.bf16.gmra.mxu0 %v4297
        %v5203 = vpop.f32.mrf.mxu0
        %v5204 = vadd.f32 0.0, %v5203
        %v5205 = vpop.f32.mrf.mxu0
        %v5206 = vadd.f32 0.0, %v5205
        %5207 = vmatmul.bf16.gmra.mxu0 %v4299
        %v5208 = vpop.f32.mrf.mxu0
        %v5209 = vadd.f32 0.0, %v5208
        %v5210 = vpop.f32.mrf.mxu0
        %v5211 = vadd.f32 0.0, %v5210
        %5212 = vmatmul.bf16.gmra.mxu0 %v4301
        %v5213 = vpop.f32.mrf.mxu0
        %v5214 = vadd.f32 0.0, %v5213
        %v5215 = vpop.f32.mrf.mxu0
        %v5216 = vadd.f32 0.0, %v5215
        %5217 = vdwg.mxu0
        %5218 = vmatpush.bf16.msra.mxu0 %v4936
        %5219 = vmatpush.bf16.msra.mxu0 %v4928
        %5220 = vmatpush.bf16.msra.mxu0 %v4920
        %5221 = vmatpush.bf16.msra.mxu0 %v4912
        %5222 = vmatpush.bf16.msra.mxu0 %v4904
        %5223 = vmatpush.bf16.msra.mxu0 %v4896
        %5224 = vmatpush.bf16.msra.mxu0 %v4888
        %5225 = vmatpush.bf16.msra.mxu0 %v4880
        %5226 = vmatmul.bf16.gmra.mxu0 %v4288
        %v5227 = vpop.f32.mrf.mxu0
        %v5228 = vadd.f32 %v5179, %v5227
        %v5229 = vpop.f32.mrf.mxu0
        %v5230 = vadd.f32 %v5181, %v5229
        %5231 = vmatmul.bf16.gmra.mxu0 %v4290
        %v5232 = vpop.f32.mrf.mxu0
        %v5233 = vadd.f32 %v5184, %v5232
        %v5234 = vpop.f32.mrf.mxu0
        %v5235 = vadd.f32 %v5186, %v5234
        %5236 = vmatmul.bf16.gmra.mxu0 %v4292
        %v5237 = vpop.f32.mrf.mxu0
        %v5238 = vadd.f32 %v5189, %v5237
        %v5239 = vpop.f32.mrf.mxu0
        %v5240 = vadd.f32 %v5191, %v5239
        %5241 = vmatmul.bf16.gmra.mxu0 %v4294
        %v5242 = vpop.f32.mrf.mxu0
        %v5243 = vadd.f32 %v5194, %v5242
        %v5244 = vpop.f32.mrf.mxu0
        %v5245 = vadd.f32 %v5196, %v5244
        %5246 = vmatmul.bf16.gmra.mxu0 %v4296
        %v5247 = vpop.f32.mrf.mxu0
        %v5248 = vadd.f32 %v5199, %v5247
        %v5249 = vpop.f32.mrf.mxu0
        %v5250 = vadd.f32 %v5201, %v5249
        %5251 = vmatmul.bf16.gmra.mxu0 %v4298
        %v5252 = vpop.f32.mrf.mxu0
        %v5253 = vadd.f32 %v5204, %v5252
        %v5254 = vpop.f32.mrf.mxu0
        %v5255 = vadd.f32 %v5206, %v5254
        %5256 = vmatmul.bf16.gmra.mxu0 %v4300
        %v5257 = vpop.f32.mrf.mxu0
        %v5258 = vadd.f32 %v5209, %v5257
        %v5259 = vpop.f32.mrf.mxu0
        %v5260 = vadd.f32 %v5211, %v5259
        %5261 = vmatmul.bf16.gmra.mxu0 %v4302
        %v5262 = vpop.f32.mrf.mxu0
        %v5263 = vadd.f32 %v5214, %v5262
        %v5264 = vpop.f32.mrf.mxu0
        %v5265 = vadd.f32 %v5216, %v5264
        %5266 = vdwg.mxu0
        %5267 = vmatpush.bf16.msra.mxu0 %v4873
        %5268 = vmatpush.bf16.msra.mxu0 %v4865
        %5269 = vmatpush.bf16.msra.mxu0 %v4857
        %5270 = vmatpush.bf16.msra.mxu0 %v4849
        %5271 = vmatpush.bf16.msra.mxu0 %v4841
        %5272 = vmatpush.bf16.msra.mxu0 %v4833
        %5273 = vmatpush.bf16.msra.mxu0 %v4825
        %5274 = vmatpush.bf16.msra.mxu0 %v4817
        %5275 = vmatmul.bf16.gmra.mxu0 %v4287
        %v5276 = vpop.f32.mrf.mxu0
        %v5277 = vadd.f32 0.0, %v5276
        %v5278 = vpop.f32.mrf.mxu0
        %v5279 = vadd.f32 0.0, %v5278
        %5280 = vmatmul.bf16.gmra.mxu0 %v4289
        %v5281 = vpop.f32.mrf.mxu0
        %v5282 = vadd.f32 0.0, %v5281
        %v5283 = vpop.f32.mrf.mxu0
        %v5284 = vadd.f32 0.0, %v5283
        %5285 = vmatmul.bf16.gmra.mxu0 %v4291
        %v5286 = vpop.f32.mrf.mxu0
        %v5287 = vadd.f32 0.0, %v5286
        %v5288 = vpop.f32.mrf.mxu0
        %v5289 = vadd.f32 0.0, %v5288
        %5290 = vmatmul.bf16.gmra.mxu0 %v4293
        %v5291 = vpop.f32.mrf.mxu0
        %v5292 = vadd.f32 0.0, %v5291
        %v5293 = vpop.f32.mrf.mxu0
        %v5294 = vadd.f32 0.0, %v5293
        %5295 = vmatmul.bf16.gmra.mxu0 %v4295
        %v5296 = vpop.f32.mrf.mxu0
        %v5297 = vadd.f32 0.0, %v5296
        %v5298 = vpop.f32.mrf.mxu0
        %v5299 = vadd.f32 0.0, %v5298
        %5300 = vmatmul.bf16.gmra.mxu0 %v4297
        %v5301 = vpop.f32.mrf.mxu0
        %v5302 = vadd.f32 0.0, %v5301
        %v5303 = vpop.f32.mrf.mxu0
        %v5304 = vadd.f32 0.0, %v5303
        %5305 = vmatmul.bf16.gmra.mxu0 %v4299
        %v5306 = vpop.f32.mrf.mxu0
        %v5307 = vadd.f32 0.0, %v5306
        %v5308 = vpop.f32.mrf.mxu0
        %v5309 = vadd.f32 0.0, %v5308
        %5310 = vmatmul.bf16.gmra.mxu0 %v4301
        %v5311 = vpop.f32.mrf.mxu0
        %v5312 = vadd.f32 0.0, %v5311
        %v5313 = vpop.f32.mrf.mxu0
        %v5314 = vadd.f32 0.0, %v5313
        %5315 = vdwg.mxu0
        %5316 = vmatpush.bf16.msra.mxu0 %v4937
        %5317 = vmatpush.bf16.msra.mxu0 %v4929
        %5318 = vmatpush.bf16.msra.mxu0 %v4921
        %5319 = vmatpush.bf16.msra.mxu0 %v4913
        %5320 = vmatpush.bf16.msra.mxu0 %v4905
        %5321 = vmatpush.bf16.msra.mxu0 %v4897
        %5322 = vmatpush.bf16.msra.mxu0 %v4889
        %5323 = vmatpush.bf16.msra.mxu0 %v4881
        %5324 = vmatmul.bf16.gmra.mxu0 %v4288
        %v5325 = vpop.f32.mrf.mxu0
        %v5326 = vadd.f32 %v5277, %v5325
        %v5327 = vpop.f32.mrf.mxu0
        %v5328 = vadd.f32 %v5279, %v5327
        %5329 = vmatmul.bf16.gmra.mxu0 %v4290
        %v5330 = vpop.f32.mrf.mxu0
        %v5331 = vadd.f32 %v5282, %v5330
        %v5332 = vpop.f32.mrf.mxu0
        %v5333 = vadd.f32 %v5284, %v5332
        %5334 = vmatmul.bf16.gmra.mxu0 %v4292
        %v5335 = vpop.f32.mrf.mxu0
        %v5336 = vadd.f32 %v5287, %v5335
        %v5337 = vpop.f32.mrf.mxu0
        %v5338 = vadd.f32 %v5289, %v5337
        %5339 = vmatmul.bf16.gmra.mxu0 %v4294
        %v5340 = vpop.f32.mrf.mxu0
        %v5341 = vadd.f32 %v5292, %v5340
        %v5342 = vpop.f32.mrf.mxu0
        %v5343 = vadd.f32 %v5294, %v5342
        %5344 = vmatmul.bf16.gmra.mxu0 %v4296
        %v5345 = vpop.f32.mrf.mxu0
        %v5346 = vadd.f32 %v5297, %v5345
        %v5347 = vpop.f32.mrf.mxu0
        %v5348 = vadd.f32 %v5299, %v5347
        %5349 = vmatmul.bf16.gmra.mxu0 %v4298
        %v5350 = vpop.f32.mrf.mxu0
        %v5351 = vadd.f32 %v5302, %v5350
        %v5352 = vpop.f32.mrf.mxu0
        %v5353 = vadd.f32 %v5304, %v5352
        %5354 = vmatmul.bf16.gmra.mxu0 %v4300
        %v5355 = vpop.f32.mrf.mxu0
        %v5356 = vadd.f32 %v5307, %v5355
        %v5357 = vpop.f32.mrf.mxu0
        %v5358 = vadd.f32 %v5309, %v5357
        %5359 = vmatmul.bf16.gmra.mxu0 %v4302
        %v5360 = vpop.f32.mrf.mxu0
        %v5361 = vadd.f32 %v5312, %v5360
        %v5362 = vpop.f32.mrf.mxu0
        %v5363 = vadd.f32 %v5314, %v5362
        %5364 = vdwg.mxu0
        %5365 = vmatpush.bf16.msra.mxu0 %v4874
        %5366 = vmatpush.bf16.msra.mxu0 %v4866
        %5367 = vmatpush.bf16.msra.mxu0 %v4858
        %5368 = vmatpush.bf16.msra.mxu0 %v4850
        %5369 = vmatpush.bf16.msra.mxu0 %v4842
        %5370 = vmatpush.bf16.msra.mxu0 %v4834
        %5371 = vmatpush.bf16.msra.mxu0 %v4826
        %5372 = vmatpush.bf16.msra.mxu0 %v4818
        %5373 = vmatmul.bf16.gmra.mxu0 %v4287
        %v5374 = vpop.f32.mrf.mxu0
        %v5375 = vadd.f32 0.0, %v5374
        %v5376 = vpop.f32.mrf.mxu0
        %v5377 = vadd.f32 0.0, %v5376
        %5378 = vmatmul.bf16.gmra.mxu0 %v4289
        %v5379 = vpop.f32.mrf.mxu0
        %v5380 = vadd.f32 0.0, %v5379
        %v5381 = vpop.f32.mrf.mxu0
        %v5382 = vadd.f32 0.0, %v5381
        %5383 = vmatmul.bf16.gmra.mxu0 %v4291
        %v5384 = vpop.f32.mrf.mxu0
        %v5385 = vadd.f32 0.0, %v5384
        %v5386 = vpop.f32.mrf.mxu0
        %v5387 = vadd.f32 0.0, %v5386
        %5388 = vmatmul.bf16.gmra.mxu0 %v4293
        %v5389 = vpop.f32.mrf.mxu0
        %v5390 = vadd.f32 0.0, %v5389
        %v5391 = vpop.f32.mrf.mxu0
        %v5392 = vadd.f32 0.0, %v5391
        %5393 = vmatmul.bf16.gmra.mxu0 %v4295
        %v5394 = vpop.f32.mrf.mxu0
        %v5395 = vadd.f32 0.0, %v5394
        %v5396 = vpop.f32.mrf.mxu0
        %v5397 = vadd.f32 0.0, %v5396
        %5398 = vmatmul.bf16.gmra.mxu0 %v4297
        %v5399 = vpop.f32.mrf.mxu0
        %v5400 = vadd.f32 0.0, %v5399
        %v5401 = vpop.f32.mrf.mxu0
        %v5402 = vadd.f32 0.0, %v5401
        %5403 = vmatmul.bf16.gmra.mxu0 %v4299
        %v5404 = vpop.f32.mrf.mxu0
        %v5405 = vadd.f32 0.0, %v5404
        %v5406 = vpop.f32.mrf.mxu0
        %v5407 = vadd.f32 0.0, %v5406
        %5408 = vmatmul.bf16.gmra.mxu0 %v4301
        %v5409 = vpop.f32.mrf.mxu0
        %v5410 = vadd.f32 0.0, %v5409
        %v5411 = vpop.f32.mrf.mxu0
        %v5412 = vadd.f32 0.0, %v5411
        %5413 = vdwg.mxu0
        %5414 = vmatpush.bf16.msra.mxu0 %v4938
        %5415 = vmatpush.bf16.msra.mxu0 %v4930
        %5416 = vmatpush.bf16.msra.mxu0 %v4922
        %5417 = vmatpush.bf16.msra.mxu0 %v4914
        %5418 = vmatpush.bf16.msra.mxu0 %v4906
        %5419 = vmatpush.bf16.msra.mxu0 %v4898
        %5420 = vmatpush.bf16.msra.mxu0 %v4890
        %5421 = vmatpush.bf16.msra.mxu0 %v4882
        %5422 = vmatmul.bf16.gmra.mxu0 %v4288
        %v5423 = vpop.f32.mrf.mxu0
        %v5424 = vadd.f32 %v5375, %v5423
        %v5425 = vpop.f32.mrf.mxu0
        %v5426 = vadd.f32 %v5377, %v5425
        %5427 = vmatmul.bf16.gmra.mxu0 %v4290
        %v5428 = vpop.f32.mrf.mxu0
        %v5429 = vadd.f32 %v5380, %v5428
        %v5430 = vpop.f32.mrf.mxu0
        %v5431 = vadd.f32 %v5382, %v5430
        %5432 = vmatmul.bf16.gmra.mxu0 %v4292
        %v5433 = vpop.f32.mrf.mxu0
        %v5434 = vadd.f32 %v5385, %v5433
        %v5435 = vpop.f32.mrf.mxu0
        %v5436 = vadd.f32 %v5387, %v5435
        %5437 = vmatmul.bf16.gmra.mxu0 %v4294
        %v5438 = vpop.f32.mrf.mxu0
        %v5439 = vadd.f32 %v5390, %v5438
        %v5440 = vpop.f32.mrf.mxu0
        %v5441 = vadd.f32 %v5392, %v5440
        %5442 = vmatmul.bf16.gmra.mxu0 %v4296
        %v5443 = vpop.f32.mrf.mxu0
        %v5444 = vadd.f32 %v5395, %v5443
        %v5445 = vpop.f32.mrf.mxu0
        %v5446 = vadd.f32 %v5397, %v5445
        %5447 = vmatmul.bf16.gmra.mxu0 %v4298
        %v5448 = vpop.f32.mrf.mxu0
        %v5449 = vadd.f32 %v5400, %v5448
        %v5450 = vpop.f32.mrf.mxu0
        %v5451 = vadd.f32 %v5402, %v5450
        %5452 = vmatmul.bf16.gmra.mxu0 %v4300
        %v5453 = vpop.f32.mrf.mxu0
        %v5454 = vadd.f32 %v5405, %v5453
        %v5455 = vpop.f32.mrf.mxu0
        %v5456 = vadd.f32 %v5407, %v5455
        %5457 = vmatmul.bf16.gmra.mxu0 %v4302
        %v5458 = vpop.f32.mrf.mxu0
        %v5459 = vadd.f32 %v5410, %v5458
        %v5460 = vpop.f32.mrf.mxu0
        %v5461 = vadd.f32 %v5412, %v5460
        %5462 = vdwg.mxu0
        %5463 = vmatpush.bf16.msra.mxu0 %v4875
        %5464 = vmatpush.bf16.msra.mxu0 %v4867
        %5465 = vmatpush.bf16.msra.mxu0 %v4859
        %5466 = vmatpush.bf16.msra.mxu0 %v4851
        %5467 = vmatpush.bf16.msra.mxu0 %v4843
        %5468 = vmatpush.bf16.msra.mxu0 %v4835
        %5469 = vmatpush.bf16.msra.mxu0 %v4827
        %5470 = vmatpush.bf16.msra.mxu0 %v4819
        %5471 = vmatmul.bf16.gmra.mxu0 %v4287
        %v5472 = vpop.f32.mrf.mxu0
        %v5473 = vadd.f32 0.0, %v5472
        %v5474 = vpop.f32.mrf.mxu0
        %v5475 = vadd.f32 0.0, %v5474
        %5476 = vmatmul.bf16.gmra.mxu0 %v4289
        %v5477 = vpop.f32.mrf.mxu0
        %v5478 = vadd.f32 0.0, %v5477
        %v5479 = vpop.f32.mrf.mxu0
        %v5480 = vadd.f32 0.0, %v5479
        %5481 = vmatmul.bf16.gmra.mxu0 %v4291
        %v5482 = vpop.f32.mrf.mxu0
        %v5483 = vadd.f32 0.0, %v5482
        %v5484 = vpop.f32.mrf.mxu0
        %v5485 = vadd.f32 0.0, %v5484
        %5486 = vmatmul.bf16.gmra.mxu0 %v4293
        %v5487 = vpop.f32.mrf.mxu0
        %v5488 = vadd.f32 0.0, %v5487
        %v5489 = vpop.f32.mrf.mxu0
        %v5490 = vadd.f32 0.0, %v5489
        %5491 = vmatmul.bf16.gmra.mxu0 %v4295
        %v5492 = vpop.f32.mrf.mxu0
        %v5493 = vadd.f32 0.0, %v5492
        %v5494 = vpop.f32.mrf.mxu0
        %v5495 = vadd.f32 0.0, %v5494
        %5496 = vmatmul.bf16.gmra.mxu0 %v4297
        %v5497 = vpop.f32.mrf.mxu0
        %v5498 = vadd.f32 0.0, %v5497
        %v5499 = vpop.f32.mrf.mxu0
        %v5500 = vadd.f32 0.0, %v5499
        %5501 = vmatmul.bf16.gmra.mxu0 %v4299
        %v5502 = vpop.f32.mrf.mxu0
        %v5503 = vadd.f32 0.0, %v5502
        %v5504 = vpop.f32.mrf.mxu0
        %v5505 = vadd.f32 0.0, %v5504
        %5506 = vmatmul.bf16.gmra.mxu0 %v4301
        %v5507 = vpop.f32.mrf.mxu0
        %v5508 = vadd.f32 0.0, %v5507
        %v5509 = vpop.f32.mrf.mxu0
        %v5510 = vadd.f32 0.0, %v5509
        %5511 = vdwg.mxu0
        %5512 = vmatpush.bf16.msra.mxu0 %v4939
        %5513 = vmatpush.bf16.msra.mxu0 %v4931
        %5514 = vmatpush.bf16.msra.mxu0 %v4923
        %5515 = vmatpush.bf16.msra.mxu0 %v4915
        %5516 = vmatpush.bf16.msra.mxu0 %v4907
        %5517 = vmatpush.bf16.msra.mxu0 %v4899
        %5518 = vmatpush.bf16.msra.mxu0 %v4891
        %5519 = vmatpush.bf16.msra.mxu0 %v4883
        %5520 = vmatmul.bf16.gmra.mxu0 %v4288
        %v5521 = vpop.f32.mrf.mxu0
        %v5522 = vadd.f32 %v5473, %v5521
        %v5523 = vpop.f32.mrf.mxu0
        %v5524 = vadd.f32 %v5475, %v5523
        %5525 = vmatmul.bf16.gmra.mxu0 %v4290
        %v5526 = vpop.f32.mrf.mxu0
        %v5527 = vadd.f32 %v5478, %v5526
        %v5528 = vpop.f32.mrf.mxu0
        %v5529 = vadd.f32 %v5480, %v5528
        %5530 = vmatmul.bf16.gmra.mxu0 %v4292
        %v5531 = vpop.f32.mrf.mxu0
        %v5532 = vadd.f32 %v5483, %v5531
        %v5533 = vpop.f32.mrf.mxu0
        %v5534 = vadd.f32 %v5485, %v5533
        %5535 = vmatmul.bf16.gmra.mxu0 %v4294
        %v5536 = vpop.f32.mrf.mxu0
        %v5537 = vadd.f32 %v5488, %v5536
        %v5538 = vpop.f32.mrf.mxu0
        %v5539 = vadd.f32 %v5490, %v5538
        %5540 = vmatmul.bf16.gmra.mxu0 %v4296
        %v5541 = vpop.f32.mrf.mxu0
        %v5542 = vadd.f32 %v5493, %v5541
        %v5543 = vpop.f32.mrf.mxu0
        %v5544 = vadd.f32 %v5495, %v5543
        %5545 = vmatmul.bf16.gmra.mxu0 %v4298
        %v5546 = vpop.f32.mrf.mxu0
        %v5547 = vadd.f32 %v5498, %v5546
        %v5548 = vpop.f32.mrf.mxu0
        %v5549 = vadd.f32 %v5500, %v5548
        %5550 = vmatmul.bf16.gmra.mxu0 %v4300
        %v5551 = vpop.f32.mrf.mxu0
        %v5552 = vadd.f32 %v5503, %v5551
        %v5553 = vpop.f32.mrf.mxu0
        %v5554 = vadd.f32 %v5505, %v5553
        %5555 = vmatmul.bf16.gmra.mxu0 %v4302
        %v5556 = vpop.f32.mrf.mxu0
        %v5557 = vadd.f32 %v5508, %v5556
        %v5558 = vpop.f32.mrf.mxu0
        %v5559 = vadd.f32 %v5510, %v5558
        %5560 = vdwg.mxu0
        %5561 = vmatpush.bf16.msra.mxu0 %v4876
        %5562 = vmatpush.bf16.msra.mxu0 %v4868
        %5563 = vmatpush.bf16.msra.mxu0 %v4860
        %5564 = vmatpush.bf16.msra.mxu0 %v4852
        %5565 = vmatpush.bf16.msra.mxu0 %v4844
        %5566 = vmatpush.bf16.msra.mxu0 %v4836
        %5567 = vmatpush.bf16.msra.mxu0 %v4828
        %5568 = vmatpush.bf16.msra.mxu0 %v4820
        %5569 = vmatmul.bf16.gmra.mxu0 %v4287
        %v5570 = vpop.f32.mrf.mxu0
        %v5571 = vadd.f32 0.0, %v5570
        %v5572 = vpop.f32.mrf.mxu0
        %v5573 = vadd.f32 0.0, %v5572
        %5574 = vmatmul.bf16.gmra.mxu0 %v4289
        %v5575 = vpop.f32.mrf.mxu0
        %v5576 = vadd.f32 0.0, %v5575
        %v5577 = vpop.f32.mrf.mxu0
        %v5578 = vadd.f32 0.0, %v5577
        %5579 = vmatmul.bf16.gmra.mxu0 %v4291
        %v5580 = vpop.f32.mrf.mxu0
        %v5581 = vadd.f32 0.0, %v5580
        %v5582 = vpop.f32.mrf.mxu0
        %v5583 = vadd.f32 0.0, %v5582
        %5584 = vmatmul.bf16.gmra.mxu0 %v4293
        %v5585 = vpop.f32.mrf.mxu0
        %v5586 = vadd.f32 0.0, %v5585
        %v5587 = vpop.f32.mrf.mxu0
        %v5588 = vadd.f32 0.0, %v5587
        %5589 = vmatmul.bf16.gmra.mxu0 %v4295
        %v5590 = vpop.f32.mrf.mxu0
        %v5591 = vadd.f32 0.0, %v5590
        %v5592 = vpop.f32.mrf.mxu0
        %v5593 = vadd.f32 0.0, %v5592
        %5594 = vmatmul.bf16.gmra.mxu0 %v4297
        %v5595 = vpop.f32.mrf.mxu0
        %v5596 = vadd.f32 0.0, %v5595
        %v5597 = vpop.f32.mrf.mxu0
        %v5598 = vadd.f32 0.0, %v5597
        %5599 = vmatmul.bf16.gmra.mxu0 %v4299
        %v5600 = vpop.f32.mrf.mxu0
        %v5601 = vadd.f32 0.0, %v5600
        %v5602 = vpop.f32.mrf.mxu0
        %v5603 = vadd.f32 0.0, %v5602
        %5604 = vmatmul.bf16.gmra.mxu0 %v4301
        %v5605 = vpop.f32.mrf.mxu0
        %v5606 = vadd.f32 0.0, %v5605
        %v5607 = vpop.f32.mrf.mxu0
        %v5608 = vadd.f32 0.0, %v5607
        %5609 = vdwg.mxu0
        %5610 = vmatpush.bf16.msra.mxu0 %v4940
        %5611 = vmatpush.bf16.msra.mxu0 %v4932
        %5612 = vmatpush.bf16.msra.mxu0 %v4924
        %5613 = vmatpush.bf16.msra.mxu0 %v4916
        %5614 = vmatpush.bf16.msra.mxu0 %v4908
        %5615 = vmatpush.bf16.msra.mxu0 %v4900
        %5616 = vmatpush.bf16.msra.mxu0 %v4892
        %5617 = vmatpush.bf16.msra.mxu0 %v4884
        %5618 = vmatmul.bf16.gmra.mxu0 %v4288
        %v5619 = vpop.f32.mrf.mxu0
        %v5620 = vadd.f32 %v5571, %v5619
        %v5621 = vpop.f32.mrf.mxu0
        %v5622 = vadd.f32 %v5573, %v5621
        %5623 = vmatmul.bf16.gmra.mxu0 %v4290
        %v5624 = vpop.f32.mrf.mxu0
        %v5625 = vadd.f32 %v5576, %v5624
        %v5626 = vpop.f32.mrf.mxu0
        %v5627 = vadd.f32 %v5578, %v5626
        %5628 = vmatmul.bf16.gmra.mxu0 %v4292
        %v5629 = vpop.f32.mrf.mxu0
        %v5630 = vadd.f32 %v5581, %v5629
        %v5631 = vpop.f32.mrf.mxu0
        %v5632 = vadd.f32 %v5583, %v5631
        %5633 = vmatmul.bf16.gmra.mxu0 %v4294
        %v5634 = vpop.f32.mrf.mxu0
        %v5635 = vadd.f32 %v5586, %v5634
        %v5636 = vpop.f32.mrf.mxu0
        %v5637 = vadd.f32 %v5588, %v5636
        %5638 = vmatmul.bf16.gmra.mxu0 %v4296
        %v5639 = vpop.f32.mrf.mxu0
        %v5640 = vadd.f32 %v5591, %v5639
        %v5641 = vpop.f32.mrf.mxu0
        %v5642 = vadd.f32 %v5593, %v5641
        %5643 = vmatmul.bf16.gmra.mxu0 %v4298
        %v5644 = vpop.f32.mrf.mxu0
        %v5645 = vadd.f32 %v5596, %v5644
        %v5646 = vpop.f32.mrf.mxu0
        %v5647 = vadd.f32 %v5598, %v5646
        %5648 = vmatmul.bf16.gmra.mxu0 %v4300
        %v5649 = vpop.f32.mrf.mxu0
        %v5650 = vadd.f32 %v5601, %v5649
        %v5651 = vpop.f32.mrf.mxu0
        %v5652 = vadd.f32 %v5603, %v5651
        %5653 = vmatmul.bf16.gmra.mxu0 %v4302
        %v5654 = vpop.f32.mrf.mxu0
        %v5655 = vadd.f32 %v5606, %v5654
        %v5656 = vpop.f32.mrf.mxu0
        %v5657 = vadd.f32 %v5608, %v5656
        %5658 = vdwg.mxu0
        %5659 = vmatpush.bf16.msra.mxu0 %v4877
        %5660 = vmatpush.bf16.msra.mxu0 %v4869
        %5661 = vmatpush.bf16.msra.mxu0 %v4861
        %5662 = vmatpush.bf16.msra.mxu0 %v4853
        %5663 = vmatpush.bf16.msra.mxu0 %v4845
        %5664 = vmatpush.bf16.msra.mxu0 %v4837
        %5665 = vmatpush.bf16.msra.mxu0 %v4829
        %5666 = vmatpush.bf16.msra.mxu0 %v4821
        %5667 = vmatmul.bf16.gmra.mxu0 %v4287
        %v5668 = vpop.f32.mrf.mxu0
        %v5669 = vadd.f32 0.0, %v5668
        %v5670 = vpop.f32.mrf.mxu0
        %v5671 = vadd.f32 0.0, %v5670
        %5672 = vmatmul.bf16.gmra.mxu0 %v4289
        %v5673 = vpop.f32.mrf.mxu0
        %v5674 = vadd.f32 0.0, %v5673
        %v5675 = vpop.f32.mrf.mxu0
        %v5676 = vadd.f32 0.0, %v5675
        %5677 = vmatmul.bf16.gmra.mxu0 %v4291
        %v5678 = vpop.f32.mrf.mxu0
        %v5679 = vadd.f32 0.0, %v5678
        %v5680 = vpop.f32.mrf.mxu0
        %v5681 = vadd.f32 0.0, %v5680
        %5682 = vmatmul.bf16.gmra.mxu0 %v4293
        %v5683 = vpop.f32.mrf.mxu0
        %v5684 = vadd.f32 0.0, %v5683
        %v5685 = vpop.f32.mrf.mxu0
        %v5686 = vadd.f32 0.0, %v5685
        %5687 = vmatmul.bf16.gmra.mxu0 %v4295
        %v5688 = vpop.f32.mrf.mxu0
        %v5689 = vadd.f32 0.0, %v5688
        %v5690 = vpop.f32.mrf.mxu0
        %v5691 = vadd.f32 0.0, %v5690
        %5692 = vmatmul.bf16.gmra.mxu0 %v4297
        %v5693 = vpop.f32.mrf.mxu0
        %v5694 = vadd.f32 0.0, %v5693
        %v5695 = vpop.f32.mrf.mxu0
        %v5696 = vadd.f32 0.0, %v5695
        %5697 = vmatmul.bf16.gmra.mxu0 %v4299
        %v5698 = vpop.f32.mrf.mxu0
        %v5699 = vadd.f32 0.0, %v5698
        %v5700 = vpop.f32.mrf.mxu0
        %v5701 = vadd.f32 0.0, %v5700
        %5702 = vmatmul.bf16.gmra.mxu0 %v4301
        %v5703 = vpop.f32.mrf.mxu0
        %v5704 = vadd.f32 0.0, %v5703
        %v5705 = vpop.f32.mrf.mxu0
        %v5706 = vadd.f32 0.0, %v5705
        %5707 = vdwg.mxu0
        %5708 = vmatpush.bf16.msra.mxu0 %v4941
        %5709 = vmatpush.bf16.msra.mxu0 %v4933
        %5710 = vmatpush.bf16.msra.mxu0 %v4925
        %5711 = vmatpush.bf16.msra.mxu0 %v4917
        %5712 = vmatpush.bf16.msra.mxu0 %v4909
        %5713 = vmatpush.bf16.msra.mxu0 %v4901
        %5714 = vmatpush.bf16.msra.mxu0 %v4893
        %5715 = vmatpush.bf16.msra.mxu0 %v4885
        %5716 = vmatmul.bf16.gmra.mxu0 %v4288
        %v5717 = vpop.f32.mrf.mxu0
        %v5718 = vadd.f32 %v5669, %v5717
        %v5719 = vpop.f32.mrf.mxu0
        %v5720 = vadd.f32 %v5671, %v5719
        %5721 = vmatmul.bf16.gmra.mxu0 %v4290
        %v5722 = vpop.f32.mrf.mxu0
        %v5723 = vadd.f32 %v5674, %v5722
        %v5724 = vpop.f32.mrf.mxu0
        %v5725 = vadd.f32 %v5676, %v5724
        %5726 = vmatmul.bf16.gmra.mxu0 %v4292
        %v5727 = vpop.f32.mrf.mxu0
        %v5728 = vadd.f32 %v5679, %v5727
        %v5729 = vpop.f32.mrf.mxu0
        %v5730 = vadd.f32 %v5681, %v5729
        %5731 = vmatmul.bf16.gmra.mxu0 %v4294
        %v5732 = vpop.f32.mrf.mxu0
        %v5733 = vadd.f32 %v5684, %v5732
        %v5734 = vpop.f32.mrf.mxu0
        %v5735 = vadd.f32 %v5686, %v5734
        %5736 = vmatmul.bf16.gmra.mxu0 %v4296
        %v5737 = vpop.f32.mrf.mxu0
        %v5738 = vadd.f32 %v5689, %v5737
        %v5739 = vpop.f32.mrf.mxu0
        %v5740 = vadd.f32 %v5691, %v5739
        %5741 = vmatmul.bf16.gmra.mxu0 %v4298
        %v5742 = vpop.f32.mrf.mxu0
        %v5743 = vadd.f32 %v5694, %v5742
        %v5744 = vpop.f32.mrf.mxu0
        %v5745 = vadd.f32 %v5696, %v5744
        %5746 = vmatmul.bf16.gmra.mxu0 %v4300
        %v5747 = vpop.f32.mrf.mxu0
        %v5748 = vadd.f32 %v5699, %v5747
        %v5749 = vpop.f32.mrf.mxu0
        %v5750 = vadd.f32 %v5701, %v5749
        %5751 = vmatmul.bf16.gmra.mxu0 %v4302
        %v5752 = vpop.f32.mrf.mxu0
        %v5753 = vadd.f32 %v5704, %v5752
        %v5754 = vpop.f32.mrf.mxu0
        %v5755 = vadd.f32 %v5706, %v5754
        %5756 = vdwg.mxu0
        %5757 = vmatpush.bf16.msra.mxu0 %v4878
        %5758 = vmatpush.bf16.msra.mxu0 %v4870
        %5759 = vmatpush.bf16.msra.mxu0 %v4862
        %5760 = vmatpush.bf16.msra.mxu0 %v4854
        %5761 = vmatpush.bf16.msra.mxu0 %v4846
        %5762 = vmatpush.bf16.msra.mxu0 %v4838
        %5763 = vmatpush.bf16.msra.mxu0 %v4830
        %5764 = vmatpush.bf16.msra.mxu0 %v4822
        %5765 = vmatmul.bf16.gmra.mxu0 %v4287
        %v5766 = vpop.f32.mrf.mxu0
        %v5767 = vadd.f32 0.0, %v5766
        %v5768 = vpop.f32.mrf.mxu0
        %v5769 = vadd.f32 0.0, %v5768
        %5770 = vmatmul.bf16.gmra.mxu0 %v4289
        %v5771 = vpop.f32.mrf.mxu0
        %v5772 = vadd.f32 0.0, %v5771
        %v5773 = vpop.f32.mrf.mxu0
        %v5774 = vadd.f32 0.0, %v5773
        %5775 = vmatmul.bf16.gmra.mxu0 %v4291
        %v5776 = vpop.f32.mrf.mxu0
        %v5777 = vadd.f32 0.0, %v5776
        %v5778 = vpop.f32.mrf.mxu0
        %v5779 = vadd.f32 0.0, %v5778
        %5780 = vmatmul.bf16.gmra.mxu0 %v4293
        %v5781 = vpop.f32.mrf.mxu0
        %v5782 = vadd.f32 0.0, %v5781
        %v5783 = vpop.f32.mrf.mxu0
        %v5784 = vadd.f32 0.0, %v5783
        %5785 = vmatmul.bf16.gmra.mxu0 %v4295
        %v5786 = vpop.f32.mrf.mxu0
        %v5787 = vadd.f32 0.0, %v5786
        %v5788 = vpop.f32.mrf.mxu0
        %v5789 = vadd.f32 0.0, %v5788
        %5790 = vmatmul.bf16.gmra.mxu0 %v4297
        %v5791 = vpop.f32.mrf.mxu0
        %v5792 = vadd.f32 0.0, %v5791
        %v5793 = vpop.f32.mrf.mxu0
        %v5794 = vadd.f32 0.0, %v5793
        %5795 = vmatmul.bf16.gmra.mxu0 %v4299
        %v5796 = vpop.f32.mrf.mxu0
        %v5797 = vadd.f32 0.0, %v5796
        %v5798 = vpop.f32.mrf.mxu0
        %v5799 = vadd.f32 0.0, %v5798
        %5800 = vmatmul.bf16.gmra.mxu0 %v4301
        %v5801 = vpop.f32.mrf.mxu0
        %v5802 = vadd.f32 0.0, %v5801
        %v5803 = vpop.f32.mrf.mxu0
        %v5804 = vadd.f32 0.0, %v5803
        %5805 = vdwg.mxu0
        %5806 = vmatpush.bf16.msra.mxu0 %v4942
        %5807 = vmatpush.bf16.msra.mxu0 %v4934
        %5808 = vmatpush.bf16.msra.mxu0 %v4926
        %5809 = vmatpush.bf16.msra.mxu0 %v4918
        %5810 = vmatpush.bf16.msra.mxu0 %v4910
        %5811 = vmatpush.bf16.msra.mxu0 %v4902
        %5812 = vmatpush.bf16.msra.mxu0 %v4894
        %5813 = vmatpush.bf16.msra.mxu0 %v4886
        %5814 = vmatmul.bf16.gmra.mxu0 %v4288
        %v5815 = vpop.f32.mrf.mxu0
        %v5816 = vadd.f32 %v5767, %v5815
        %v5817 = vpop.f32.mrf.mxu0
        %v5818 = vadd.f32 %v5769, %v5817
        %5819 = vmatmul.bf16.gmra.mxu0 %v4290
        %v5820 = vpop.f32.mrf.mxu0
        %v5821 = vadd.f32 %v5772, %v5820
        %v5822 = vpop.f32.mrf.mxu0
        %v5823 = vadd.f32 %v5774, %v5822
        %5824 = vmatmul.bf16.gmra.mxu0 %v4292
        %v5825 = vpop.f32.mrf.mxu0
        %v5826 = vadd.f32 %v5777, %v5825
        %v5827 = vpop.f32.mrf.mxu0
        %v5828 = vadd.f32 %v5779, %v5827
        %5829 = vmatmul.bf16.gmra.mxu0 %v4294
        %v5830 = vpop.f32.mrf.mxu0
        %v5831 = vadd.f32 %v5782, %v5830
        %v5832 = vpop.f32.mrf.mxu0
        %v5833 = vadd.f32 %v5784, %v5832
        %5834 = vmatmul.bf16.gmra.mxu0 %v4296
        %v5835 = vpop.f32.mrf.mxu0
        %v5836 = vadd.f32 %v5787, %v5835
        %v5837 = vpop.f32.mrf.mxu0
        %v5838 = vadd.f32 %v5789, %v5837
        %5839 = vmatmul.bf16.gmra.mxu0 %v4298
        %v5840 = vpop.f32.mrf.mxu0
        %v5841 = vadd.f32 %v5792, %v5840
        %v5842 = vpop.f32.mrf.mxu0
        %v5843 = vadd.f32 %v5794, %v5842
        %5844 = vmatmul.bf16.gmra.mxu0 %v4300
        %v5845 = vpop.f32.mrf.mxu0
        %v5846 = vadd.f32 %v5797, %v5845
        %v5847 = vpop.f32.mrf.mxu0
        %v5848 = vadd.f32 %v5799, %v5847
        %5849 = vmatmul.bf16.gmra.mxu0 %v4302
        %v5850 = vpop.f32.mrf.mxu0
        %v5851 = vadd.f32 %v5802, %v5850
        %v5852 = vpop.f32.mrf.mxu0
        %v5853 = vadd.f32 %v5804, %v5852
        %5854 = vdwg.mxu0
        %v5855 = vxor.u32 %v5130, 2147483648
        %v5856 = vxor.u32 %v5228, 2147483648
        %v5857 = vxor.u32 %v5326, 2147483648
        %v5858 = vxor.u32 %v5424, 2147483648
        %v5859 = vxor.u32 %v5132, 2147483648
        %v5860 = vxor.u32 %v5230, 2147483648
        %v5861 = vxor.u32 %v5328, 2147483648
        %v5862 = vxor.u32 %v5426, 2147483648
        %v5863 = vxor.u32 %v5135, 2147483648
        %v5864 = vxor.u32 %v5233, 2147483648
        %v5865 = vxor.u32 %v5331, 2147483648
        %v5866 = vxor.u32 %v5429, 2147483648
        %v5867 = vxor.u32 %v5137, 2147483648
        %v5868 = vxor.u32 %v5235, 2147483648
        %v5869 = vxor.u32 %v5333, 2147483648
        %v5870 = vxor.u32 %v5431, 2147483648
        %v5871 = vxor.u32 %v5140, 2147483648
        %v5872 = vxor.u32 %v5238, 2147483648
        %v5873 = vxor.u32 %v5336, 2147483648
        %v5874 = vxor.u32 %v5434, 2147483648
        %v5875 = vxor.u32 %v5142, 2147483648
        %v5876 = vxor.u32 %v5240, 2147483648
        %v5877 = vxor.u32 %v5338, 2147483648
        %v5878 = vxor.u32 %v5436, 2147483648
        %v5879 = vxor.u32 %v5145, 2147483648
        %v5880 = vxor.u32 %v5243, 2147483648
        %v5881 = vxor.u32 %v5341, 2147483648
        %v5882 = vxor.u32 %v5439, 2147483648
        %v5883 = vxor.u32 %v5147, 2147483648
        %v5884 = vxor.u32 %v5245, 2147483648
        %v5885 = vxor.u32 %v5343, 2147483648
        %v5886 = vxor.u32 %v5441, 2147483648
        %v5887 = vxor.u32 %v5150, 2147483648
        %v5888 = vxor.u32 %v5248, 2147483648
        %v5889 = vxor.u32 %v5346, 2147483648
        %v5890 = vxor.u32 %v5444, 2147483648
        %v5891 = vxor.u32 %v5152, 2147483648
        %v5892 = vxor.u32 %v5250, 2147483648
        %v5893 = vxor.u32 %v5348, 2147483648
        %v5894 = vxor.u32 %v5446, 2147483648
        %v5895 = vxor.u32 %v5155, 2147483648
        %v5896 = vxor.u32 %v5253, 2147483648
        %v5897 = vxor.u32 %v5351, 2147483648
        %v5898 = vxor.u32 %v5449, 2147483648
        %v5899 = vxor.u32 %v5157, 2147483648
        %v5900 = vxor.u32 %v5255, 2147483648
        %v5901 = vxor.u32 %v5353, 2147483648
        %v5902 = vxor.u32 %v5451, 2147483648
        %v5903 = vxor.u32 %v5160, 2147483648
        %v5904 = vxor.u32 %v5258, 2147483648
        %v5905 = vxor.u32 %v5356, 2147483648
        %v5906 = vxor.u32 %v5454, 2147483648
        %v5907 = vxor.u32 %v5162, 2147483648
        %v5908 = vxor.u32 %v5260, 2147483648
        %v5909 = vxor.u32 %v5358, 2147483648
        %v5910 = vxor.u32 %v5456, 2147483648
        %v5911 = vxor.u32 %v5165, 2147483648
        %v5912 = vxor.u32 %v5263, 2147483648
        %v5913 = vxor.u32 %v5361, 2147483648
        %v5914 = vxor.u32 %v5459, 2147483648
        %v5915 = vxor.u32 %v5167, 2147483648
        %v5916 = vxor.u32 %v5265, 2147483648
        %v5917 = vxor.u32 %v5363, 2147483648
        %v5918 = vxor.u32 %v5461, 2147483648
        %v5919 = vmul.f32 %v5855, 1.442695
        %v5920 = vpow.pop %v5919
        %v5921 = vmul.f32 %v5856, 1.442695
        %v5922 = vpow.pop %v5921
        %v5923 = vmul.f32 %v5857, 1.442695
        %v5924 = vpow.pop %v5923
        %v5925 = vmul.f32 %v5858, 1.442695
        %v5926 = vpow.pop %v5925
        %v5927 = vmul.f32 %v5859, 1.442695
        %v5928 = vpow.pop %v5927
        %v5929 = vmul.f32 %v5860, 1.442695
        %v5930 = vpow.pop %v5929
        %v5931 = vmul.f32 %v5861, 1.442695
        %v5932 = vpow.pop %v5931
        %v5933 = vmul.f32 %v5862, 1.442695
        %v5934 = vpow.pop %v5933
        %v5935 = vmul.f32 %v5863, 1.442695
        %v5936 = vpow.pop %v5935
        %v5937 = vmul.f32 %v5864, 1.442695
        %v5938 = vpow.pop %v5937
        %v5939 = vmul.f32 %v5865, 1.442695
        %v5940 = vpow.pop %v5939
        %v5941 = vmul.f32 %v5866, 1.442695
        %v5942 = vpow.pop %v5941
        %v5943 = vmul.f32 %v5867, 1.442695
        %v5944 = vpow.pop %v5943
        %v5945 = vmul.f32 %v5868, 1.442695
        %v5946 = vpow.pop %v5945
        %v5947 = vmul.f32 %v5869, 1.442695
        %v5948 = vpow.pop %v5947
        %v5949 = vmul.f32 %v5870, 1.442695
        %v5950 = vpow.pop %v5949
        %v5951 = vmul.f32 %v5871, 1.442695
        %v5952 = vpow.pop %v5951
        %v5953 = vmul.f32 %v5872, 1.442695
        %v5954 = vpow.pop %v5953
        %v5955 = vmul.f32 %v5873, 1.442695
        %v5956 = vpow.pop %v5955
        %v5957 = vmul.f32 %v5874, 1.442695
        %v5958 = vpow.pop %v5957
        %v5959 = vmul.f32 %v5875, 1.442695
        %v5960 = vpow.pop %v5959
        %v5961 = vmul.f32 %v5876, 1.442695
        %v5962 = vpow.pop %v5961
        %v5963 = vmul.f32 %v5877, 1.442695
        %v5964 = vpow.pop %v5963
        %v5965 = vmul.f32 %v5878, 1.442695
        %v5966 = vpow.pop %v5965
        %v5967 = vmul.f32 %v5879, 1.442695
        %v5968 = vpow.pop %v5967
        %v5969 = vmul.f32 %v5880, 1.442695
        %v5970 = vpow.pop %v5969
        %v5971 = vmul.f32 %v5881, 1.442695
        %v5972 = vpow.pop %v5971
        %v5973 = vmul.f32 %v5882, 1.442695
        %v5974 = vpow.pop %v5973
        %v5975 = vmul.f32 %v5883, 1.442695
        %v5976 = vpow.pop %v5975
        %v5977 = vmul.f32 %v5884, 1.442695
        %v5978 = vpow.pop %v5977
        %v5979 = vmul.f32 %v5885, 1.442695
        %v5980 = vpow.pop %v5979
        %v5981 = vmul.f32 %v5886, 1.442695
        %v5982 = vpow.pop %v5981
        %v5983 = vmul.f32 %v5887, 1.442695
        %v5984 = vpow.pop %v5983
        %v5985 = vmul.f32 %v5888, 1.442695
        %v5986 = vpow.pop %v5985
        %v5987 = vmul.f32 %v5889, 1.442695
        %v5988 = vpow.pop %v5987
        %v5989 = vmul.f32 %v5890, 1.442695
        %v5990 = vpow.pop %v5989
        %v5991 = vmul.f32 %v5891, 1.442695
        %v5992 = vpow.pop %v5991
        %v5993 = vmul.f32 %v5892, 1.442695
        %v5994 = vpow.pop %v5993
        %v5995 = vmul.f32 %v5893, 1.442695
        %v5996 = vpow.pop %v5995
        %v5997 = vmul.f32 %v5894, 1.442695
        %v5998 = vpow.pop %v5997
        %v5999 = vmul.f32 %v5895, 1.442695
        %v6000 = vpow.pop %v5999
        %v6001 = vmul.f32 %v5896, 1.442695
        %v6002 = vpow.pop %v6001
        %v6003 = vmul.f32 %v5897, 1.442695
        %v6004 = vpow.pop %v6003
        %v6005 = vmul.f32 %v5898, 1.442695
        %v6006 = vpow.pop %v6005
        %v6007 = vmul.f32 %v5899, 1.442695
        %v6008 = vpow.pop %v6007
        %v6009 = vmul.f32 %v5900, 1.442695
        %v6010 = vpow.pop %v6009
        %v6011 = vmul.f32 %v5901, 1.442695
        %v6012 = vpow.pop %v6011
        %v6013 = vmul.f32 %v5902, 1.442695
        %v6014 = vpow.pop %v6013
        %v6015 = vmul.f32 %v5903, 1.442695
        %v6016 = vpow.pop %v6015
        %v6017 = vmul.f32 %v5904, 1.442695
        %v6018 = vpow.pop %v6017
        %v6019 = vmul.f32 %v5905, 1.442695
        %v6020 = vpow.pop %v6019
        %v6021 = vmul.f32 %v5906, 1.442695
        %v6022 = vpow.pop %v6021
        %v6023 = vmul.f32 %v5907, 1.442695
        %v6024 = vpow.pop %v6023
        %v6025 = vmul.f32 %v5908, 1.442695
        %v6026 = vpow.pop %v6025
        %v6027 = vmul.f32 %v5909, 1.442695
        %v6028 = vpow.pop %v6027
        %v6029 = vmul.f32 %v5910, 1.442695
        %v6030 = vpow.pop %v6029
        %v6031 = vmul.f32 %v5911, 1.442695
        %v6032 = vpow.pop %v6031
        %v6033 = vmul.f32 %v5912, 1.442695
        %v6034 = vpow.pop %v6033
        %v6035 = vmul.f32 %v5913, 1.442695
        %v6036 = vpow.pop %v6035
        %v6037 = vmul.f32 %v5914, 1.442695
        %v6038 = vpow.pop %v6037
        %v6039 = vmul.f32 %v5915, 1.442695
        %v6040 = vpow.pop %v6039
        %v6041 = vmul.f32 %v5916, 1.442695
        %v6042 = vpow.pop %v6041
        %v6043 = vmul.f32 %v5917, 1.442695
        %v6044 = vpow.pop %v6043
        %v6045 = vmul.f32 %v5918, 1.442695
        %v6046 = vpow.pop %v6045
        %v6047 = vadd.f32 %v5920, 1.0
        %v6048 = vadd.f32 %v5922, 1.0
        %v6049 = vadd.f32 %v5924, 1.0
        %v6050 = vadd.f32 %v5926, 1.0
        %v6051 = vadd.f32 %v5928, 1.0
        %v6052 = vadd.f32 %v5930, 1.0
        %v6053 = vadd.f32 %v5932, 1.0
        %v6054 = vadd.f32 %v5934, 1.0
        %v6055 = vadd.f32 %v5936, 1.0
        %v6056 = vadd.f32 %v5938, 1.0
        %v6057 = vadd.f32 %v5940, 1.0
        %v6058 = vadd.f32 %v5942, 1.0
        %v6059 = vadd.f32 %v5944, 1.0
        %v6060 = vadd.f32 %v5946, 1.0
        %v6061 = vadd.f32 %v5948, 1.0
        %v6062 = vadd.f32 %v5950, 1.0
        %v6063 = vadd.f32 %v5952, 1.0
        %v6064 = vadd.f32 %v5954, 1.0
        %v6065 = vadd.f32 %v5956, 1.0
        %v6066 = vadd.f32 %v5958, 1.0
        %v6067 = vadd.f32 %v5960, 1.0
        %v6068 = vadd.f32 %v5962, 1.0
        %v6069 = vadd.f32 %v5964, 1.0
        %v6070 = vadd.f32 %v5966, 1.0
        %v6071 = vadd.f32 %v5968, 1.0
        %v6072 = vadd.f32 %v5970, 1.0
        %v6073 = vadd.f32 %v5972, 1.0
        %v6074 = vadd.f32 %v5974, 1.0
        %v6075 = vadd.f32 %v5976, 1.0
        %v6076 = vadd.f32 %v5978, 1.0
        %v6077 = vadd.f32 %v5980, 1.0
        %v6078 = vadd.f32 %v5982, 1.0
        %v6079 = vadd.f32 %v5984, 1.0
        %v6080 = vadd.f32 %v5986, 1.0
        %v6081 = vadd.f32 %v5988, 1.0
        %v6082 = vadd.f32 %v5990, 1.0
        %v6083 = vadd.f32 %v5992, 1.0
        %v6084 = vadd.f32 %v5994, 1.0
        %v6085 = vadd.f32 %v5996, 1.0
        %v6086 = vadd.f32 %v5998, 1.0
        %v6087 = vadd.f32 %v6000, 1.0
        %v6088 = vadd.f32 %v6002, 1.0
        %v6089 = vadd.f32 %v6004, 1.0
        %v6090 = vadd.f32 %v6006, 1.0
        %v6091 = vadd.f32 %v6008, 1.0
        %v6092 = vadd.f32 %v6010, 1.0
        %v6093 = vadd.f32 %v6012, 1.0
        %v6094 = vadd.f32 %v6014, 1.0
        %v6095 = vadd.f32 %v6016, 1.0
        %v6096 = vadd.f32 %v6018, 1.0
        %v6097 = vadd.f32 %v6020, 1.0
        %v6098 = vadd.f32 %v6022, 1.0
        %v6099 = vadd.f32 %v6024, 1.0
        %v6100 = vadd.f32 %v6026, 1.0
        %v6101 = vadd.f32 %v6028, 1.0
        %v6102 = vadd.f32 %v6030, 1.0
        %v6103 = vadd.f32 %v6032, 1.0
        %v6104 = vadd.f32 %v6034, 1.0
        %v6105 = vadd.f32 %v6036, 1.0
        %v6106 = vadd.f32 %v6038, 1.0
        %v6107 = vadd.f32 %v6040, 1.0
        %v6108 = vadd.f32 %v6042, 1.0
        %v6109 = vadd.f32 %v6044, 1.0
        %v6110 = vadd.f32 %v6046, 1.0
        %v6111 = vrcp.pop %v6047
        %v6112 = vmul.f32 %v6047, %v6111
        %v6113 = vsub.f32 1.0, %v6112
        %v6114 = vmul.f32 %v6111, %v6113
        %v6115 = vadd.f32 %v6111, %v6114
        %vm6116 = vweird.f32 %v6047
        %vm6117 = vweird.f32 %v6111
        %vm6118 = vmor %vm6116, %vm6117
        %v6119 = vsel %vm6118, %v6111, %v6115
        %v6120 = vand.u32 2147483647, %v6047
        %vm6121 = vcmp.eq.f32.partialorder %v6120, 8.507059e+37
        %v6122 = vand.u32 %v6047, 2147483648
        %v6123 = vor.u32 1.1754944e-38, %v6122
        %v6124 = vsel %vm6121, %v6123, %v6119
        %v6125 = vmul.f32 1.0, %v6124
        %v6126 = vrcp.pop %v6048
        %v6127 = vmul.f32 %v6048, %v6126
        %v6128 = vsub.f32 1.0, %v6127
        %v6129 = vmul.f32 %v6126, %v6128
        %v6130 = vadd.f32 %v6126, %v6129
        %vm6131 = vweird.f32 %v6048
        %vm6132 = vweird.f32 %v6126
        %vm6133 = vmor %vm6131, %vm6132
        %v6134 = vsel %vm6133, %v6126, %v6130
        %v6135 = vand.u32 2147483647, %v6048
        %vm6136 = vcmp.eq.f32.partialorder %v6135, 8.507059e+37
        %v6137 = vand.u32 %v6048, 2147483648
        %v6138 = vor.u32 1.1754944e-38, %v6137
        %v6139 = vsel %vm6136, %v6138, %v6134
        %v6140 = vmul.f32 1.0, %v6139
        %v6141 = vrcp.pop %v6049
        %v6142 = vmul.f32 %v6049, %v6141
        %v6143 = vsub.f32 1.0, %v6142
        %v6144 = vmul.f32 %v6141, %v6143
        %v6145 = vadd.f32 %v6141, %v6144
        %vm6146 = vweird.f32 %v6049
        %vm6147 = vweird.f32 %v6141
        %vm6148 = vmor %vm6146, %vm6147
        %v6149 = vsel %vm6148, %v6141, %v6145
        %v6150 = vand.u32 2147483647, %v6049
        %vm6151 = vcmp.eq.f32.partialorder %v6150, 8.507059e+37
        %v6152 = vand.u32 %v6049, 2147483648
        %v6153 = vor.u32 1.1754944e-38, %v6152
        %v6154 = vsel %vm6151, %v6153, %v6149
        %v6155 = vmul.f32 1.0, %v6154
        %v6156 = vrcp.pop %v6050
        %v6157 = vmul.f32 %v6050, %v6156
        %v6158 = vsub.f32 1.0, %v6157
        %v6159 = vmul.f32 %v6156, %v6158
        %v6160 = vadd.f32 %v6156, %v6159
        %vm6161 = vweird.f32 %v6050
        %vm6162 = vweird.f32 %v6156
        %vm6163 = vmor %vm6161, %vm6162
        %v6164 = vsel %vm6163, %v6156, %v6160
        %v6165 = vand.u32 2147483647, %v6050
        %vm6166 = vcmp.eq.f32.partialorder %v6165, 8.507059e+37
        %v6167 = vand.u32 %v6050, 2147483648
        %v6168 = vor.u32 1.1754944e-38, %v6167
        %v6169 = vsel %vm6166, %v6168, %v6164
        %v6170 = vmul.f32 1.0, %v6169
        %v6171 = vrcp.pop %v6051
        %v6172 = vmul.f32 %v6051, %v6171
        %v6173 = vsub.f32 1.0, %v6172
        %v6174 = vmul.f32 %v6171, %v6173
        %v6175 = vadd.f32 %v6171, %v6174
        %vm6176 = vweird.f32 %v6051
        %vm6177 = vweird.f32 %v6171
        %vm6178 = vmor %vm6176, %vm6177
        %v6179 = vsel %vm6178, %v6171, %v6175
        %v6180 = vand.u32 2147483647, %v6051
        %vm6181 = vcmp.eq.f32.partialorder %v6180, 8.507059e+37
        %v6182 = vand.u32 %v6051, 2147483648
        %v6183 = vor.u32 1.1754944e-38, %v6182
        %v6184 = vsel %vm6181, %v6183, %v6179
        %v6185 = vmul.f32 1.0, %v6184
        %v6186 = vrcp.pop %v6052
        %v6187 = vmul.f32 %v6052, %v6186
        %v6188 = vsub.f32 1.0, %v6187
        %v6189 = vmul.f32 %v6186, %v6188
        %v6190 = vadd.f32 %v6186, %v6189
        %vm6191 = vweird.f32 %v6052
        %vm6192 = vweird.f32 %v6186
        %vm6193 = vmor %vm6191, %vm6192
        %v6194 = vsel %vm6193, %v6186, %v6190
        %v6195 = vand.u32 2147483647, %v6052
        %vm6196 = vcmp.eq.f32.partialorder %v6195, 8.507059e+37
        %v6197 = vand.u32 %v6052, 2147483648
        %v6198 = vor.u32 1.1754944e-38, %v6197
        %v6199 = vsel %vm6196, %v6198, %v6194
        %v6200 = vmul.f32 1.0, %v6199
        %v6201 = vrcp.pop %v6053
        %v6202 = vmul.f32 %v6053, %v6201
        %v6203 = vsub.f32 1.0, %v6202
        %v6204 = vmul.f32 %v6201, %v6203
        %v6205 = vadd.f32 %v6201, %v6204
        %vm6206 = vweird.f32 %v6053
        %vm6207 = vweird.f32 %v6201
        %vm6208 = vmor %vm6206, %vm6207
        %v6209 = vsel %vm6208, %v6201, %v6205
        %v6210 = vand.u32 2147483647, %v6053
        %vm6211 = vcmp.eq.f32.partialorder %v6210, 8.507059e+37
        %v6212 = vand.u32 %v6053, 2147483648
        %v6213 = vor.u32 1.1754944e-38, %v6212
        %v6214 = vsel %vm6211, %v6213, %v6209
        %v6215 = vmul.f32 1.0, %v6214
        %v6216 = vrcp.pop %v6054
        %v6217 = vmul.f32 %v6054, %v6216
        %v6218 = vsub.f32 1.0, %v6217
        %v6219 = vmul.f32 %v6216, %v6218
        %v6220 = vadd.f32 %v6216, %v6219
        %vm6221 = vweird.f32 %v6054
        %vm6222 = vweird.f32 %v6216
        %vm6223 = vmor %vm6221, %vm6222
        %v6224 = vsel %vm6223, %v6216, %v6220
        %v6225 = vand.u32 2147483647, %v6054
        %vm6226 = vcmp.eq.f32.partialorder %v6225, 8.507059e+37
        %v6227 = vand.u32 %v6054, 2147483648
        %v6228 = vor.u32 1.1754944e-38, %v6227
        %v6229 = vsel %vm6226, %v6228, %v6224
        %v6230 = vmul.f32 1.0, %v6229
        %v6231 = vrcp.pop %v6055
        %v6232 = vmul.f32 %v6055, %v6231
        %v6233 = vsub.f32 1.0, %v6232
        %v6234 = vmul.f32 %v6231, %v6233
        %v6235 = vadd.f32 %v6231, %v6234
        %vm6236 = vweird.f32 %v6055
        %vm6237 = vweird.f32 %v6231
        %vm6238 = vmor %vm6236, %vm6237
        %v6239 = vsel %vm6238, %v6231, %v6235
        %v6240 = vand.u32 2147483647, %v6055
        %vm6241 = vcmp.eq.f32.partialorder %v6240, 8.507059e+37
        %v6242 = vand.u32 %v6055, 2147483648
        %v6243 = vor.u32 1.1754944e-38, %v6242
        %v6244 = vsel %vm6241, %v6243, %v6239
        %v6245 = vmul.f32 1.0, %v6244
        %v6246 = vrcp.pop %v6056
        %v6247 = vmul.f32 %v6056, %v6246
        %v6248 = vsub.f32 1.0, %v6247
        %v6249 = vmul.f32 %v6246, %v6248
        %v6250 = vadd.f32 %v6246, %v6249
        %vm6251 = vweird.f32 %v6056
        %vm6252 = vweird.f32 %v6246
        %vm6253 = vmor %vm6251, %vm6252
        %v6254 = vsel %vm6253, %v6246, %v6250
        %v6255 = vand.u32 2147483647, %v6056
        %vm6256 = vcmp.eq.f32.partialorder %v6255, 8.507059e+37
        %v6257 = vand.u32 %v6056, 2147483648
        %v6258 = vor.u32 1.1754944e-38, %v6257
        %v6259 = vsel %vm6256, %v6258, %v6254
        %v6260 = vmul.f32 1.0, %v6259
        %v6261 = vrcp.pop %v6057
        %v6262 = vmul.f32 %v6057, %v6261
        %v6263 = vsub.f32 1.0, %v6262
        %v6264 = vmul.f32 %v6261, %v6263
        %v6265 = vadd.f32 %v6261, %v6264
        %vm6266 = vweird.f32 %v6057
        %vm6267 = vweird.f32 %v6261
        %vm6268 = vmor %vm6266, %vm6267
        %v6269 = vsel %vm6268, %v6261, %v6265
        %v6270 = vand.u32 2147483647, %v6057
        %vm6271 = vcmp.eq.f32.partialorder %v6270, 8.507059e+37
        %v6272 = vand.u32 %v6057, 2147483648
        %v6273 = vor.u32 1.1754944e-38, %v6272
        %v6274 = vsel %vm6271, %v6273, %v6269
        %v6275 = vmul.f32 1.0, %v6274
        %v6276 = vrcp.pop %v6058
        %v6277 = vmul.f32 %v6058, %v6276
        %v6278 = vsub.f32 1.0, %v6277
        %v6279 = vmul.f32 %v6276, %v6278
        %v6280 = vadd.f32 %v6276, %v6279
        %vm6281 = vweird.f32 %v6058
        %vm6282 = vweird.f32 %v6276
        %vm6283 = vmor %vm6281, %vm6282
        %v6284 = vsel %vm6283, %v6276, %v6280
        %v6285 = vand.u32 2147483647, %v6058
        %vm6286 = vcmp.eq.f32.partialorder %v6285, 8.507059e+37
        %v6287 = vand.u32 %v6058, 2147483648
        %v6288 = vor.u32 1.1754944e-38, %v6287
        %v6289 = vsel %vm6286, %v6288, %v6284
        %v6290 = vmul.f32 1.0, %v6289
        %v6291 = vrcp.pop %v6059
        %v6292 = vmul.f32 %v6059, %v6291
        %v6293 = vsub.f32 1.0, %v6292
        %v6294 = vmul.f32 %v6291, %v6293
        %v6295 = vadd.f32 %v6291, %v6294
        %vm6296 = vweird.f32 %v6059
        %vm6297 = vweird.f32 %v6291
        %vm6298 = vmor %vm6296, %vm6297
        %v6299 = vsel %vm6298, %v6291, %v6295
        %v6300 = vand.u32 2147483647, %v6059
        %vm6301 = vcmp.eq.f32.partialorder %v6300, 8.507059e+37
        %v6302 = vand.u32 %v6059, 2147483648
        %v6303 = vor.u32 1.1754944e-38, %v6302
        %v6304 = vsel %vm6301, %v6303, %v6299
        %v6305 = vmul.f32 1.0, %v6304
        %v6306 = vrcp.pop %v6060
        %v6307 = vmul.f32 %v6060, %v6306
        %v6308 = vsub.f32 1.0, %v6307
        %v6309 = vmul.f32 %v6306, %v6308
        %v6310 = vadd.f32 %v6306, %v6309
        %vm6311 = vweird.f32 %v6060
        %vm6312 = vweird.f32 %v6306
        %vm6313 = vmor %vm6311, %vm6312
        %v6314 = vsel %vm6313, %v6306, %v6310
        %v6315 = vand.u32 2147483647, %v6060
        %vm6316 = vcmp.eq.f32.partialorder %v6315, 8.507059e+37
        %v6317 = vand.u32 %v6060, 2147483648
        %v6318 = vor.u32 1.1754944e-38, %v6317
        %v6319 = vsel %vm6316, %v6318, %v6314
        %v6320 = vmul.f32 1.0, %v6319
        %v6321 = vrcp.pop %v6061
        %v6322 = vmul.f32 %v6061, %v6321
        %v6323 = vsub.f32 1.0, %v6322
        %v6324 = vmul.f32 %v6321, %v6323
        %v6325 = vadd.f32 %v6321, %v6324
        %vm6326 = vweird.f32 %v6061
        %vm6327 = vweird.f32 %v6321
        %vm6328 = vmor %vm6326, %vm6327
        %v6329 = vsel %vm6328, %v6321, %v6325
        %v6330 = vand.u32 2147483647, %v6061
        %vm6331 = vcmp.eq.f32.partialorder %v6330, 8.507059e+37
        %v6332 = vand.u32 %v6061, 2147483648
        %v6333 = vor.u32 1.1754944e-38, %v6332
        %v6334 = vsel %vm6331, %v6333, %v6329
        %v6335 = vmul.f32 1.0, %v6334
        %v6336 = vrcp.pop %v6062
        %v6337 = vmul.f32 %v6062, %v6336
        %v6338 = vsub.f32 1.0, %v6337
        %v6339 = vmul.f32 %v6336, %v6338
        %v6340 = vadd.f32 %v6336, %v6339
        %vm6341 = vweird.f32 %v6062
        %vm6342 = vweird.f32 %v6336
        %vm6343 = vmor %vm6341, %vm6342
        %v6344 = vsel %vm6343, %v6336, %v6340
        %v6345 = vand.u32 2147483647, %v6062
        %vm6346 = vcmp.eq.f32.partialorder %v6345, 8.507059e+37
        %v6347 = vand.u32 %v6062, 2147483648
        %v6348 = vor.u32 1.1754944e-38, %v6347
        %v6349 = vsel %vm6346, %v6348, %v6344
        %v6350 = vmul.f32 1.0, %v6349
        %v6351 = vrcp.pop %v6063
        %v6352 = vmul.f32 %v6063, %v6351
        %v6353 = vsub.f32 1.0, %v6352
        %v6354 = vmul.f32 %v6351, %v6353
        %v6355 = vadd.f32 %v6351, %v6354
        %vm6356 = vweird.f32 %v6063
        %vm6357 = vweird.f32 %v6351
        %vm6358 = vmor %vm6356, %vm6357
        %v6359 = vsel %vm6358, %v6351, %v6355
        %v6360 = vand.u32 2147483647, %v6063
        %vm6361 = vcmp.eq.f32.partialorder %v6360, 8.507059e+37
        %v6362 = vand.u32 %v6063, 2147483648
        %v6363 = vor.u32 1.1754944e-38, %v6362
        %v6364 = vsel %vm6361, %v6363, %v6359
        %v6365 = vmul.f32 1.0, %v6364
        %v6366 = vrcp.pop %v6064
        %v6367 = vmul.f32 %v6064, %v6366
        %v6368 = vsub.f32 1.0, %v6367
        %v6369 = vmul.f32 %v6366, %v6368
        %v6370 = vadd.f32 %v6366, %v6369
        %vm6371 = vweird.f32 %v6064
        %vm6372 = vweird.f32 %v6366
        %vm6373 = vmor %vm6371, %vm6372
        %v6374 = vsel %vm6373, %v6366, %v6370
        %v6375 = vand.u32 2147483647, %v6064
        %vm6376 = vcmp.eq.f32.partialorder %v6375, 8.507059e+37
        %v6377 = vand.u32 %v6064, 2147483648
        %v6378 = vor.u32 1.1754944e-38, %v6377
        %v6379 = vsel %vm6376, %v6378, %v6374
        %v6380 = vmul.f32 1.0, %v6379
        %v6381 = vrcp.pop %v6065
        %v6382 = vmul.f32 %v6065, %v6381
        %v6383 = vsub.f32 1.0, %v6382
        %v6384 = vmul.f32 %v6381, %v6383
        %v6385 = vadd.f32 %v6381, %v6384
        %vm6386 = vweird.f32 %v6065
        %vm6387 = vweird.f32 %v6381
        %vm6388 = vmor %vm6386, %vm6387
        %v6389 = vsel %vm6388, %v6381, %v6385
        %v6390 = vand.u32 2147483647, %v6065
        %vm6391 = vcmp.eq.f32.partialorder %v6390, 8.507059e+37
        %v6392 = vand.u32 %v6065, 2147483648
        %v6393 = vor.u32 1.1754944e-38, %v6392
        %v6394 = vsel %vm6391, %v6393, %v6389
        %v6395 = vmul.f32 1.0, %v6394
        %v6396 = vrcp.pop %v6066
        %v6397 = vmul.f32 %v6066, %v6396
        %v6398 = vsub.f32 1.0, %v6397
        %v6399 = vmul.f32 %v6396, %v6398
        %v6400 = vadd.f32 %v6396, %v6399
        %vm6401 = vweird.f32 %v6066
        %vm6402 = vweird.f32 %v6396
        %vm6403 = vmor %vm6401, %vm6402
        %v6404 = vsel %vm6403, %v6396, %v6400
        %v6405 = vand.u32 2147483647, %v6066
        %vm6406 = vcmp.eq.f32.partialorder %v6405, 8.507059e+37
        %v6407 = vand.u32 %v6066, 2147483648
        %v6408 = vor.u32 1.1754944e-38, %v6407
        %v6409 = vsel %vm6406, %v6408, %v6404
        %v6410 = vmul.f32 1.0, %v6409
        %v6411 = vrcp.pop %v6067
        %v6412 = vmul.f32 %v6067, %v6411
        %v6413 = vsub.f32 1.0, %v6412
        %v6414 = vmul.f32 %v6411, %v6413
        %v6415 = vadd.f32 %v6411, %v6414
        %vm6416 = vweird.f32 %v6067
        %vm6417 = vweird.f32 %v6411
        %vm6418 = vmor %vm6416, %vm6417
        %v6419 = vsel %vm6418, %v6411, %v6415
        %v6420 = vand.u32 2147483647, %v6067
        %vm6421 = vcmp.eq.f32.partialorder %v6420, 8.507059e+37
        %v6422 = vand.u32 %v6067, 2147483648
        %v6423 = vor.u32 1.1754944e-38, %v6422
        %v6424 = vsel %vm6421, %v6423, %v6419
        %v6425 = vmul.f32 1.0, %v6424
        %v6426 = vrcp.pop %v6068
        %v6427 = vmul.f32 %v6068, %v6426
        %v6428 = vsub.f32 1.0, %v6427
        %v6429 = vmul.f32 %v6426, %v6428
        %v6430 = vadd.f32 %v6426, %v6429
        %vm6431 = vweird.f32 %v6068
        %vm6432 = vweird.f32 %v6426
        %vm6433 = vmor %vm6431, %vm6432
        %v6434 = vsel %vm6433, %v6426, %v6430
        %v6435 = vand.u32 2147483647, %v6068
        %vm6436 = vcmp.eq.f32.partialorder %v6435, 8.507059e+37
        %v6437 = vand.u32 %v6068, 2147483648
        %v6438 = vor.u32 1.1754944e-38, %v6437
        %v6439 = vsel %vm6436, %v6438, %v6434
        %v6440 = vmul.f32 1.0, %v6439
        %v6441 = vrcp.pop %v6069
        %v6442 = vmul.f32 %v6069, %v6441
        %v6443 = vsub.f32 1.0, %v6442
        %v6444 = vmul.f32 %v6441, %v6443
        %v6445 = vadd.f32 %v6441, %v6444
        %vm6446 = vweird.f32 %v6069
        %vm6447 = vweird.f32 %v6441
        %vm6448 = vmor %vm6446, %vm6447
        %v6449 = vsel %vm6448, %v6441, %v6445
        %v6450 = vand.u32 2147483647, %v6069
        %vm6451 = vcmp.eq.f32.partialorder %v6450, 8.507059e+37
        %v6452 = vand.u32 %v6069, 2147483648
        %v6453 = vor.u32 1.1754944e-38, %v6452
        %v6454 = vsel %vm6451, %v6453, %v6449
        %v6455 = vmul.f32 1.0, %v6454
        %v6456 = vrcp.pop %v6070
        %v6457 = vmul.f32 %v6070, %v6456
        %v6458 = vsub.f32 1.0, %v6457
        %v6459 = vmul.f32 %v6456, %v6458
        %v6460 = vadd.f32 %v6456, %v6459
        %vm6461 = vweird.f32 %v6070
        %vm6462 = vweird.f32 %v6456
        %vm6463 = vmor %vm6461, %vm6462
        %v6464 = vsel %vm6463, %v6456, %v6460
        %v6465 = vand.u32 2147483647, %v6070
        %vm6466 = vcmp.eq.f32.partialorder %v6465, 8.507059e+37
        %v6467 = vand.u32 %v6070, 2147483648
        %v6468 = vor.u32 1.1754944e-38, %v6467
        %v6469 = vsel %vm6466, %v6468, %v6464
        %v6470 = vmul.f32 1.0, %v6469
        %v6471 = vrcp.pop %v6071
        %v6472 = vmul.f32 %v6071, %v6471
        %v6473 = vsub.f32 1.0, %v6472
        %v6474 = vmul.f32 %v6471, %v6473
        %v6475 = vadd.f32 %v6471, %v6474
        %vm6476 = vweird.f32 %v6071
        %vm6477 = vweird.f32 %v6471
        %vm6478 = vmor %vm6476, %vm6477
        %v6479 = vsel %vm6478, %v6471, %v6475
        %v6480 = vand.u32 2147483647, %v6071
        %vm6481 = vcmp.eq.f32.partialorder %v6480, 8.507059e+37
        %v6482 = vand.u32 %v6071, 2147483648
        %v6483 = vor.u32 1.1754944e-38, %v6482
        %v6484 = vsel %vm6481, %v6483, %v6479
        %v6485 = vmul.f32 1.0, %v6484
        %v6486 = vrcp.pop %v6072
        %v6487 = vmul.f32 %v6072, %v6486
        %v6488 = vsub.f32 1.0, %v6487
        %v6489 = vmul.f32 %v6486, %v6488
        %v6490 = vadd.f32 %v6486, %v6489
        %vm6491 = vweird.f32 %v6072
        %vm6492 = vweird.f32 %v6486
        %vm6493 = vmor %vm6491, %vm6492
        %v6494 = vsel %vm6493, %v6486, %v6490
        %v6495 = vand.u32 2147483647, %v6072
        %vm6496 = vcmp.eq.f32.partialorder %v6495, 8.507059e+37
        %v6497 = vand.u32 %v6072, 2147483648
        %v6498 = vor.u32 1.1754944e-38, %v6497
        %v6499 = vsel %vm6496, %v6498, %v6494
        %v6500 = vmul.f32 1.0, %v6499
        %v6501 = vrcp.pop %v6073
        %v6502 = vmul.f32 %v6073, %v6501
        %v6503 = vsub.f32 1.0, %v6502
        %v6504 = vmul.f32 %v6501, %v6503
        %v6505 = vadd.f32 %v6501, %v6504
        %vm6506 = vweird.f32 %v6073
        %vm6507 = vweird.f32 %v6501
        %vm6508 = vmor %vm6506, %vm6507
        %v6509 = vsel %vm6508, %v6501, %v6505
        %v6510 = vand.u32 2147483647, %v6073
        %vm6511 = vcmp.eq.f32.partialorder %v6510, 8.507059e+37
        %v6512 = vand.u32 %v6073, 2147483648
        %v6513 = vor.u32 1.1754944e-38, %v6512
        %v6514 = vsel %vm6511, %v6513, %v6509
        %v6515 = vmul.f32 1.0, %v6514
        %v6516 = vrcp.pop %v6074
        %v6517 = vmul.f32 %v6074, %v6516
        %v6518 = vsub.f32 1.0, %v6517
        %v6519 = vmul.f32 %v6516, %v6518
        %v6520 = vadd.f32 %v6516, %v6519
        %vm6521 = vweird.f32 %v6074
        %vm6522 = vweird.f32 %v6516
        %vm6523 = vmor %vm6521, %vm6522
        %v6524 = vsel %vm6523, %v6516, %v6520
        %v6525 = vand.u32 2147483647, %v6074
        %vm6526 = vcmp.eq.f32.partialorder %v6525, 8.507059e+37
        %v6527 = vand.u32 %v6074, 2147483648
        %v6528 = vor.u32 1.1754944e-38, %v6527
        %v6529 = vsel %vm6526, %v6528, %v6524
        %v6530 = vmul.f32 1.0, %v6529
        %v6531 = vrcp.pop %v6075
        %v6532 = vmul.f32 %v6075, %v6531
        %v6533 = vsub.f32 1.0, %v6532
        %v6534 = vmul.f32 %v6531, %v6533
        %v6535 = vadd.f32 %v6531, %v6534
        %vm6536 = vweird.f32 %v6075
        %vm6537 = vweird.f32 %v6531
        %vm6538 = vmor %vm6536, %vm6537
        %v6539 = vsel %vm6538, %v6531, %v6535
        %v6540 = vand.u32 2147483647, %v6075
        %vm6541 = vcmp.eq.f32.partialorder %v6540, 8.507059e+37
        %v6542 = vand.u32 %v6075, 2147483648
        %v6543 = vor.u32 1.1754944e-38, %v6542
        %v6544 = vsel %vm6541, %v6543, %v6539
        %v6545 = vmul.f32 1.0, %v6544
        %v6546 = vrcp.pop %v6076
        %v6547 = vmul.f32 %v6076, %v6546
        %v6548 = vsub.f32 1.0, %v6547
        %v6549 = vmul.f32 %v6546, %v6548
        %v6550 = vadd.f32 %v6546, %v6549
        %vm6551 = vweird.f32 %v6076
        %vm6552 = vweird.f32 %v6546
        %vm6553 = vmor %vm6551, %vm6552
        %v6554 = vsel %vm6553, %v6546, %v6550
        %v6555 = vand.u32 2147483647, %v6076
        %vm6556 = vcmp.eq.f32.partialorder %v6555, 8.507059e+37
        %v6557 = vand.u32 %v6076, 2147483648
        %v6558 = vor.u32 1.1754944e-38, %v6557
        %v6559 = vsel %vm6556, %v6558, %v6554
        %v6560 = vmul.f32 1.0, %v6559
        %v6561 = vrcp.pop %v6077
        %v6562 = vmul.f32 %v6077, %v6561
        %v6563 = vsub.f32 1.0, %v6562
        %v6564 = vmul.f32 %v6561, %v6563
        %v6565 = vadd.f32 %v6561, %v6564
        %vm6566 = vweird.f32 %v6077
        %vm6567 = vweird.f32 %v6561
        %vm6568 = vmor %vm6566, %vm6567
        %v6569 = vsel %vm6568, %v6561, %v6565
        %v6570 = vand.u32 2147483647, %v6077
        %vm6571 = vcmp.eq.f32.partialorder %v6570, 8.507059e+37
        %v6572 = vand.u32 %v6077, 2147483648
        %v6573 = vor.u32 1.1754944e-38, %v6572
        %v6574 = vsel %vm6571, %v6573, %v6569
        %v6575 = vmul.f32 1.0, %v6574
        %v6576 = vrcp.pop %v6078
        %v6577 = vmul.f32 %v6078, %v6576
        %v6578 = vsub.f32 1.0, %v6577
        %v6579 = vmul.f32 %v6576, %v6578
        %v6580 = vadd.f32 %v6576, %v6579
        %vm6581 = vweird.f32 %v6078
        %vm6582 = vweird.f32 %v6576
        %vm6583 = vmor %vm6581, %vm6582
        %v6584 = vsel %vm6583, %v6576, %v6580
        %v6585 = vand.u32 2147483647, %v6078
        %vm6586 = vcmp.eq.f32.partialorder %v6585, 8.507059e+37
        %v6587 = vand.u32 %v6078, 2147483648
        %v6588 = vor.u32 1.1754944e-38, %v6587
        %v6589 = vsel %vm6586, %v6588, %v6584
        %v6590 = vmul.f32 1.0, %v6589
        %v6591 = vrcp.pop %v6079
        %v6592 = vmul.f32 %v6079, %v6591
        %v6593 = vsub.f32 1.0, %v6592
        %v6594 = vmul.f32 %v6591, %v6593
        %v6595 = vadd.f32 %v6591, %v6594
        %vm6596 = vweird.f32 %v6079
        %vm6597 = vweird.f32 %v6591
        %vm6598 = vmor %vm6596, %vm6597
        %v6599 = vsel %vm6598, %v6591, %v6595
        %v6600 = vand.u32 2147483647, %v6079
        %vm6601 = vcmp.eq.f32.partialorder %v6600, 8.507059e+37
        %v6602 = vand.u32 %v6079, 2147483648
        %v6603 = vor.u32 1.1754944e-38, %v6602
        %v6604 = vsel %vm6601, %v6603, %v6599
        %v6605 = vmul.f32 1.0, %v6604
        %v6606 = vrcp.pop %v6080
        %v6607 = vmul.f32 %v6080, %v6606
        %v6608 = vsub.f32 1.0, %v6607
        %v6609 = vmul.f32 %v6606, %v6608
        %v6610 = vadd.f32 %v6606, %v6609
        %vm6611 = vweird.f32 %v6080
        %vm6612 = vweird.f32 %v6606
        %vm6613 = vmor %vm6611, %vm6612
        %v6614 = vsel %vm6613, %v6606, %v6610
        %v6615 = vand.u32 2147483647, %v6080
        %vm6616 = vcmp.eq.f32.partialorder %v6615, 8.507059e+37
        %v6617 = vand.u32 %v6080, 2147483648
        %v6618 = vor.u32 1.1754944e-38, %v6617
        %v6619 = vsel %vm6616, %v6618, %v6614
        %v6620 = vmul.f32 1.0, %v6619
        %v6621 = vrcp.pop %v6081
        %v6622 = vmul.f32 %v6081, %v6621
        %v6623 = vsub.f32 1.0, %v6622
        %v6624 = vmul.f32 %v6621, %v6623
        %v6625 = vadd.f32 %v6621, %v6624
        %vm6626 = vweird.f32 %v6081
        %vm6627 = vweird.f32 %v6621
        %vm6628 = vmor %vm6626, %vm6627
        %v6629 = vsel %vm6628, %v6621, %v6625
        %v6630 = vand.u32 2147483647, %v6081
        %vm6631 = vcmp.eq.f32.partialorder %v6630, 8.507059e+37
        %v6632 = vand.u32 %v6081, 2147483648
        %v6633 = vor.u32 1.1754944e-38, %v6632
        %v6634 = vsel %vm6631, %v6633, %v6629
        %v6635 = vmul.f32 1.0, %v6634
        %v6636 = vrcp.pop %v6082
        %v6637 = vmul.f32 %v6082, %v6636
        %v6638 = vsub.f32 1.0, %v6637
        %v6639 = vmul.f32 %v6636, %v6638
        %v6640 = vadd.f32 %v6636, %v6639
        %vm6641 = vweird.f32 %v6082
        %vm6642 = vweird.f32 %v6636
        %vm6643 = vmor %vm6641, %vm6642
        %v6644 = vsel %vm6643, %v6636, %v6640
        %v6645 = vand.u32 2147483647, %v6082
        %vm6646 = vcmp.eq.f32.partialorder %v6645, 8.507059e+37
        %v6647 = vand.u32 %v6082, 2147483648
        %v6648 = vor.u32 1.1754944e-38, %v6647
        %v6649 = vsel %vm6646, %v6648, %v6644
        %v6650 = vmul.f32 1.0, %v6649
        %v6651 = vrcp.pop %v6083
        %v6652 = vmul.f32 %v6083, %v6651
        %v6653 = vsub.f32 1.0, %v6652
        %v6654 = vmul.f32 %v6651, %v6653
        %v6655 = vadd.f32 %v6651, %v6654
        %vm6656 = vweird.f32 %v6083
        %vm6657 = vweird.f32 %v6651
        %vm6658 = vmor %vm6656, %vm6657
        %v6659 = vsel %vm6658, %v6651, %v6655
        %v6660 = vand.u32 2147483647, %v6083
        %vm6661 = vcmp.eq.f32.partialorder %v6660, 8.507059e+37
        %v6662 = vand.u32 %v6083, 2147483648
        %v6663 = vor.u32 1.1754944e-38, %v6662
        %v6664 = vsel %vm6661, %v6663, %v6659
        %v6665 = vmul.f32 1.0, %v6664
        %v6666 = vrcp.pop %v6084
        %v6667 = vmul.f32 %v6084, %v6666
        %v6668 = vsub.f32 1.0, %v6667
        %v6669 = vmul.f32 %v6666, %v6668
        %v6670 = vadd.f32 %v6666, %v6669
        %vm6671 = vweird.f32 %v6084
        %vm6672 = vweird.f32 %v6666
        %vm6673 = vmor %vm6671, %vm6672
        %v6674 = vsel %vm6673, %v6666, %v6670
        %v6675 = vand.u32 2147483647, %v6084
        %vm6676 = vcmp.eq.f32.partialorder %v6675, 8.507059e+37
        %v6677 = vand.u32 %v6084, 2147483648
        %v6678 = vor.u32 1.1754944e-38, %v6677
        %v6679 = vsel %vm6676, %v6678, %v6674
        %v6680 = vmul.f32 1.0, %v6679
        %v6681 = vrcp.pop %v6085
        %v6682 = vmul.f32 %v6085, %v6681
        %v6683 = vsub.f32 1.0, %v6682
        %v6684 = vmul.f32 %v6681, %v6683
        %v6685 = vadd.f32 %v6681, %v6684
        %vm6686 = vweird.f32 %v6085
        %vm6687 = vweird.f32 %v6681
        %vm6688 = vmor %vm6686, %vm6687
        %v6689 = vsel %vm6688, %v6681, %v6685
        %v6690 = vand.u32 2147483647, %v6085
        %vm6691 = vcmp.eq.f32.partialorder %v6690, 8.507059e+37
        %v6692 = vand.u32 %v6085, 2147483648
        %v6693 = vor.u32 1.1754944e-38, %v6692
        %v6694 = vsel %vm6691, %v6693, %v6689
        %v6695 = vmul.f32 1.0, %v6694
        %v6696 = vrcp.pop %v6086
        %v6697 = vmul.f32 %v6086, %v6696
        %v6698 = vsub.f32 1.0, %v6697
        %v6699 = vmul.f32 %v6696, %v6698
        %v6700 = vadd.f32 %v6696, %v6699
        %vm6701 = vweird.f32 %v6086
        %vm6702 = vweird.f32 %v6696
        %vm6703 = vmor %vm6701, %vm6702
        %v6704 = vsel %vm6703, %v6696, %v6700
        %v6705 = vand.u32 2147483647, %v6086
        %vm6706 = vcmp.eq.f32.partialorder %v6705, 8.507059e+37
        %v6707 = vand.u32 %v6086, 2147483648
        %v6708 = vor.u32 1.1754944e-38, %v6707
        %v6709 = vsel %vm6706, %v6708, %v6704
        %v6710 = vmul.f32 1.0, %v6709
        %v6711 = vrcp.pop %v6087
        %v6712 = vmul.f32 %v6087, %v6711
        %v6713 = vsub.f32 1.0, %v6712
        %v6714 = vmul.f32 %v6711, %v6713
        %v6715 = vadd.f32 %v6711, %v6714
        %vm6716 = vweird.f32 %v6087
        %vm6717 = vweird.f32 %v6711
        %vm6718 = vmor %vm6716, %vm6717
        %v6719 = vsel %vm6718, %v6711, %v6715
        %v6720 = vand.u32 2147483647, %v6087
        %vm6721 = vcmp.eq.f32.partialorder %v6720, 8.507059e+37
        %v6722 = vand.u32 %v6087, 2147483648
        %v6723 = vor.u32 1.1754944e-38, %v6722
        %v6724 = vsel %vm6721, %v6723, %v6719
        %v6725 = vmul.f32 1.0, %v6724
        %v6726 = vrcp.pop %v6088
        %v6727 = vmul.f32 %v6088, %v6726
        %v6728 = vsub.f32 1.0, %v6727
        %v6729 = vmul.f32 %v6726, %v6728
        %v6730 = vadd.f32 %v6726, %v6729
        %vm6731 = vweird.f32 %v6088
        %vm6732 = vweird.f32 %v6726
        %vm6733 = vmor %vm6731, %vm6732
        %v6734 = vsel %vm6733, %v6726, %v6730
        %v6735 = vand.u32 2147483647, %v6088
        %vm6736 = vcmp.eq.f32.partialorder %v6735, 8.507059e+37
        %v6737 = vand.u32 %v6088, 2147483648
        %v6738 = vor.u32 1.1754944e-38, %v6737
        %v6739 = vsel %vm6736, %v6738, %v6734
        %v6740 = vmul.f32 1.0, %v6739
        %v6741 = vrcp.pop %v6089
        %v6742 = vmul.f32 %v6089, %v6741
        %v6743 = vsub.f32 1.0, %v6742
        %v6744 = vmul.f32 %v6741, %v6743
        %v6745 = vadd.f32 %v6741, %v6744
        %vm6746 = vweird.f32 %v6089
        %vm6747 = vweird.f32 %v6741
        %vm6748 = vmor %vm6746, %vm6747
        %v6749 = vsel %vm6748, %v6741, %v6745
        %v6750 = vand.u32 2147483647, %v6089
        %vm6751 = vcmp.eq.f32.partialorder %v6750, 8.507059e+37
        %v6752 = vand.u32 %v6089, 2147483648
        %v6753 = vor.u32 1.1754944e-38, %v6752
        %v6754 = vsel %vm6751, %v6753, %v6749
        %v6755 = vmul.f32 1.0, %v6754
        %v6756 = vrcp.pop %v6090
        %v6757 = vmul.f32 %v6090, %v6756
        %v6758 = vsub.f32 1.0, %v6757
        %v6759 = vmul.f32 %v6756, %v6758
        %v6760 = vadd.f32 %v6756, %v6759
        %vm6761 = vweird.f32 %v6090
        %vm6762 = vweird.f32 %v6756
        %vm6763 = vmor %vm6761, %vm6762
        %v6764 = vsel %vm6763, %v6756, %v6760
        %v6765 = vand.u32 2147483647, %v6090
        %vm6766 = vcmp.eq.f32.partialorder %v6765, 8.507059e+37
        %v6767 = vand.u32 %v6090, 2147483648
        %v6768 = vor.u32 1.1754944e-38, %v6767
        %v6769 = vsel %vm6766, %v6768, %v6764
        %v6770 = vmul.f32 1.0, %v6769
        %v6771 = vrcp.pop %v6091
        %v6772 = vmul.f32 %v6091, %v6771
        %v6773 = vsub.f32 1.0, %v6772
        %v6774 = vmul.f32 %v6771, %v6773
        %v6775 = vadd.f32 %v6771, %v6774
        %vm6776 = vweird.f32 %v6091
        %vm6777 = vweird.f32 %v6771
        %vm6778 = vmor %vm6776, %vm6777
        %v6779 = vsel %vm6778, %v6771, %v6775
        %v6780 = vand.u32 2147483647, %v6091
        %vm6781 = vcmp.eq.f32.partialorder %v6780, 8.507059e+37
        %v6782 = vand.u32 %v6091, 2147483648
        %v6783 = vor.u32 1.1754944e-38, %v6782
        %v6784 = vsel %vm6781, %v6783, %v6779
        %v6785 = vmul.f32 1.0, %v6784
        %v6786 = vrcp.pop %v6092
        %v6787 = vmul.f32 %v6092, %v6786
        %v6788 = vsub.f32 1.0, %v6787
        %v6789 = vmul.f32 %v6786, %v6788
        %v6790 = vadd.f32 %v6786, %v6789
        %vm6791 = vweird.f32 %v6092
        %vm6792 = vweird.f32 %v6786
        %vm6793 = vmor %vm6791, %vm6792
        %v6794 = vsel %vm6793, %v6786, %v6790
        %v6795 = vand.u32 2147483647, %v6092
        %vm6796 = vcmp.eq.f32.partialorder %v6795, 8.507059e+37
        %v6797 = vand.u32 %v6092, 2147483648
        %v6798 = vor.u32 1.1754944e-38, %v6797
        %v6799 = vsel %vm6796, %v6798, %v6794
        %v6800 = vmul.f32 1.0, %v6799
        %v6801 = vrcp.pop %v6093
        %v6802 = vmul.f32 %v6093, %v6801
        %v6803 = vsub.f32 1.0, %v6802
        %v6804 = vmul.f32 %v6801, %v6803
        %v6805 = vadd.f32 %v6801, %v6804
        %vm6806 = vweird.f32 %v6093
        %vm6807 = vweird.f32 %v6801
        %vm6808 = vmor %vm6806, %vm6807
        %v6809 = vsel %vm6808, %v6801, %v6805
        %v6810 = vand.u32 2147483647, %v6093
        %vm6811 = vcmp.eq.f32.partialorder %v6810, 8.507059e+37
        %v6812 = vand.u32 %v6093, 2147483648
        %v6813 = vor.u32 1.1754944e-38, %v6812
        %v6814 = vsel %vm6811, %v6813, %v6809
        %v6815 = vmul.f32 1.0, %v6814
        %v6816 = vrcp.pop %v6094
        %v6817 = vmul.f32 %v6094, %v6816
        %v6818 = vsub.f32 1.0, %v6817
        %v6819 = vmul.f32 %v6816, %v6818
        %v6820 = vadd.f32 %v6816, %v6819
        %vm6821 = vweird.f32 %v6094
        %vm6822 = vweird.f32 %v6816
        %vm6823 = vmor %vm6821, %vm6822
        %v6824 = vsel %vm6823, %v6816, %v6820
        %v6825 = vand.u32 2147483647, %v6094
        %vm6826 = vcmp.eq.f32.partialorder %v6825, 8.507059e+37
        %v6827 = vand.u32 %v6094, 2147483648
        %v6828 = vor.u32 1.1754944e-38, %v6827
        %v6829 = vsel %vm6826, %v6828, %v6824
        %v6830 = vmul.f32 1.0, %v6829
        %v6831 = vrcp.pop %v6095
        %v6832 = vmul.f32 %v6095, %v6831
        %v6833 = vsub.f32 1.0, %v6832
        %v6834 = vmul.f32 %v6831, %v6833
        %v6835 = vadd.f32 %v6831, %v6834
        %vm6836 = vweird.f32 %v6095
        %vm6837 = vweird.f32 %v6831
        %vm6838 = vmor %vm6836, %vm6837
        %v6839 = vsel %vm6838, %v6831, %v6835
        %v6840 = vand.u32 2147483647, %v6095
        %vm6841 = vcmp.eq.f32.partialorder %v6840, 8.507059e+37
        %v6842 = vand.u32 %v6095, 2147483648
        %v6843 = vor.u32 1.1754944e-38, %v6842
        %v6844 = vsel %vm6841, %v6843, %v6839
        %v6845 = vmul.f32 1.0, %v6844
        %v6846 = vrcp.pop %v6096
        %v6847 = vmul.f32 %v6096, %v6846
        %v6848 = vsub.f32 1.0, %v6847
        %v6849 = vmul.f32 %v6846, %v6848
        %v6850 = vadd.f32 %v6846, %v6849
        %vm6851 = vweird.f32 %v6096
        %vm6852 = vweird.f32 %v6846
        %vm6853 = vmor %vm6851, %vm6852
        %v6854 = vsel %vm6853, %v6846, %v6850
        %v6855 = vand.u32 2147483647, %v6096
        %vm6856 = vcmp.eq.f32.partialorder %v6855, 8.507059e+37
        %v6857 = vand.u32 %v6096, 2147483648
        %v6858 = vor.u32 1.1754944e-38, %v6857
        %v6859 = vsel %vm6856, %v6858, %v6854
        %v6860 = vmul.f32 1.0, %v6859
        %v6861 = vrcp.pop %v6097
        %v6862 = vmul.f32 %v6097, %v6861
        %v6863 = vsub.f32 1.0, %v6862
        %v6864 = vmul.f32 %v6861, %v6863
        %v6865 = vadd.f32 %v6861, %v6864
        %vm6866 = vweird.f32 %v6097
        %vm6867 = vweird.f32 %v6861
        %vm6868 = vmor %vm6866, %vm6867
        %v6869 = vsel %vm6868, %v6861, %v6865
        %v6870 = vand.u32 2147483647, %v6097
        %vm6871 = vcmp.eq.f32.partialorder %v6870, 8.507059e+37
        %v6872 = vand.u32 %v6097, 2147483648
        %v6873 = vor.u32 1.1754944e-38, %v6872
        %v6874 = vsel %vm6871, %v6873, %v6869
        %v6875 = vmul.f32 1.0, %v6874
        %v6876 = vrcp.pop %v6098
        %v6877 = vmul.f32 %v6098, %v6876
        %v6878 = vsub.f32 1.0, %v6877
        %v6879 = vmul.f32 %v6876, %v6878
        %v6880 = vadd.f32 %v6876, %v6879
        %vm6881 = vweird.f32 %v6098
        %vm6882 = vweird.f32 %v6876
        %vm6883 = vmor %vm6881, %vm6882
        %v6884 = vsel %vm6883, %v6876, %v6880
        %v6885 = vand.u32 2147483647, %v6098
        %vm6886 = vcmp.eq.f32.partialorder %v6885, 8.507059e+37
        %v6887 = vand.u32 %v6098, 2147483648
        %v6888 = vor.u32 1.1754944e-38, %v6887
        %v6889 = vsel %vm6886, %v6888, %v6884
        %v6890 = vmul.f32 1.0, %v6889
        %v6891 = vrcp.pop %v6099
        %v6892 = vmul.f32 %v6099, %v6891
        %v6893 = vsub.f32 1.0, %v6892
        %v6894 = vmul.f32 %v6891, %v6893
        %v6895 = vadd.f32 %v6891, %v6894
        %vm6896 = vweird.f32 %v6099
        %vm6897 = vweird.f32 %v6891
        %vm6898 = vmor %vm6896, %vm6897
        %v6899 = vsel %vm6898, %v6891, %v6895
        %v6900 = vand.u32 2147483647, %v6099
        %vm6901 = vcmp.eq.f32.partialorder %v6900, 8.507059e+37
        %v6902 = vand.u32 %v6099, 2147483648
        %v6903 = vor.u32 1.1754944e-38, %v6902
        %v6904 = vsel %vm6901, %v6903, %v6899
        %v6905 = vmul.f32 1.0, %v6904
        %v6906 = vrcp.pop %v6100
        %v6907 = vmul.f32 %v6100, %v6906
        %v6908 = vsub.f32 1.0, %v6907
        %v6909 = vmul.f32 %v6906, %v6908
        %v6910 = vadd.f32 %v6906, %v6909
        %vm6911 = vweird.f32 %v6100
        %vm6912 = vweird.f32 %v6906
        %vm6913 = vmor %vm6911, %vm6912
        %v6914 = vsel %vm6913, %v6906, %v6910
        %v6915 = vand.u32 2147483647, %v6100
        %vm6916 = vcmp.eq.f32.partialorder %v6915, 8.507059e+37
        %v6917 = vand.u32 %v6100, 2147483648
        %v6918 = vor.u32 1.1754944e-38, %v6917
        %v6919 = vsel %vm6916, %v6918, %v6914
        %v6920 = vmul.f32 1.0, %v6919
        %v6921 = vrcp.pop %v6101
        %v6922 = vmul.f32 %v6101, %v6921
        %v6923 = vsub.f32 1.0, %v6922
        %v6924 = vmul.f32 %v6921, %v6923
        %v6925 = vadd.f32 %v6921, %v6924
        %vm6926 = vweird.f32 %v6101
        %vm6927 = vweird.f32 %v6921
        %vm6928 = vmor %vm6926, %vm6927
        %v6929 = vsel %vm6928, %v6921, %v6925
        %v6930 = vand.u32 2147483647, %v6101
        %vm6931 = vcmp.eq.f32.partialorder %v6930, 8.507059e+37
        %v6932 = vand.u32 %v6101, 2147483648
        %v6933 = vor.u32 1.1754944e-38, %v6932
        %v6934 = vsel %vm6931, %v6933, %v6929
        %v6935 = vmul.f32 1.0, %v6934
        %v6936 = vrcp.pop %v6102
        %v6937 = vmul.f32 %v6102, %v6936
        %v6938 = vsub.f32 1.0, %v6937
        %v6939 = vmul.f32 %v6936, %v6938
        %v6940 = vadd.f32 %v6936, %v6939
        %vm6941 = vweird.f32 %v6102
        %vm6942 = vweird.f32 %v6936
        %vm6943 = vmor %vm6941, %vm6942
        %v6944 = vsel %vm6943, %v6936, %v6940
        %v6945 = vand.u32 2147483647, %v6102
        %vm6946 = vcmp.eq.f32.partialorder %v6945, 8.507059e+37
        %v6947 = vand.u32 %v6102, 2147483648
        %v6948 = vor.u32 1.1754944e-38, %v6947
        %v6949 = vsel %vm6946, %v6948, %v6944
        %v6950 = vmul.f32 1.0, %v6949
        %v6951 = vrcp.pop %v6103
        %v6952 = vmul.f32 %v6103, %v6951
        %v6953 = vsub.f32 1.0, %v6952
        %v6954 = vmul.f32 %v6951, %v6953
        %v6955 = vadd.f32 %v6951, %v6954
        %vm6956 = vweird.f32 %v6103
        %vm6957 = vweird.f32 %v6951
        %vm6958 = vmor %vm6956, %vm6957
        %v6959 = vsel %vm6958, %v6951, %v6955
        %v6960 = vand.u32 2147483647, %v6103
        %vm6961 = vcmp.eq.f32.partialorder %v6960, 8.507059e+37
        %v6962 = vand.u32 %v6103, 2147483648
        %v6963 = vor.u32 1.1754944e-38, %v6962
        %v6964 = vsel %vm6961, %v6963, %v6959
        %v6965 = vmul.f32 1.0, %v6964
        %v6966 = vrcp.pop %v6104
        %v6967 = vmul.f32 %v6104, %v6966
        %v6968 = vsub.f32 1.0, %v6967
        %v6969 = vmul.f32 %v6966, %v6968
        %v6970 = vadd.f32 %v6966, %v6969
        %vm6971 = vweird.f32 %v6104
        %vm6972 = vweird.f32 %v6966
        %vm6973 = vmor %vm6971, %vm6972
        %v6974 = vsel %vm6973, %v6966, %v6970
        %v6975 = vand.u32 2147483647, %v6104
        %vm6976 = vcmp.eq.f32.partialorder %v6975, 8.507059e+37
        %v6977 = vand.u32 %v6104, 2147483648
        %v6978 = vor.u32 1.1754944e-38, %v6977
        %v6979 = vsel %vm6976, %v6978, %v6974
        %v6980 = vmul.f32 1.0, %v6979
        %v6981 = vrcp.pop %v6105
        %v6982 = vmul.f32 %v6105, %v6981
        %v6983 = vsub.f32 1.0, %v6982
        %v6984 = vmul.f32 %v6981, %v6983
        %v6985 = vadd.f32 %v6981, %v6984
        %vm6986 = vweird.f32 %v6105
        %vm6987 = vweird.f32 %v6981
        %vm6988 = vmor %vm6986, %vm6987
        %v6989 = vsel %vm6988, %v6981, %v6985
        %v6990 = vand.u32 2147483647, %v6105
        %vm6991 = vcmp.eq.f32.partialorder %v6990, 8.507059e+37
        %v6992 = vand.u32 %v6105, 2147483648
        %v6993 = vor.u32 1.1754944e-38, %v6992
        %v6994 = vsel %vm6991, %v6993, %v6989
        %v6995 = vmul.f32 1.0, %v6994
        %v6996 = vrcp.pop %v6106
        %v6997 = vmul.f32 %v6106, %v6996
        %v6998 = vsub.f32 1.0, %v6997
        %v6999 = vmul.f32 %v6996, %v6998
        %v7000 = vadd.f32 %v6996, %v6999
        %vm7001 = vweird.f32 %v6106
        %vm7002 = vweird.f32 %v6996
        %vm7003 = vmor %vm7001, %vm7002
        %v7004 = vsel %vm7003, %v6996, %v7000
        %v7005 = vand.u32 2147483647, %v6106
        %vm7006 = vcmp.eq.f32.partialorder %v7005, 8.507059e+37
        %v7007 = vand.u32 %v6106, 2147483648
        %v7008 = vor.u32 1.1754944e-38, %v7007
        %v7009 = vsel %vm7006, %v7008, %v7004
        %v7010 = vmul.f32 1.0, %v7009
        %v7011 = vrcp.pop %v6107
        %v7012 = vmul.f32 %v6107, %v7011
        %v7013 = vsub.f32 1.0, %v7012
        %v7014 = vmul.f32 %v7011, %v7013
        %v7015 = vadd.f32 %v7011, %v7014
        %vm7016 = vweird.f32 %v6107
        %vm7017 = vweird.f32 %v7011
        %vm7018 = vmor %vm7016, %vm7017
        %v7019 = vsel %vm7018, %v7011, %v7015
        %v7020 = vand.u32 2147483647, %v6107
        %vm7021 = vcmp.eq.f32.partialorder %v7020, 8.507059e+37
        %v7022 = vand.u32 %v6107, 2147483648
        %v7023 = vor.u32 1.1754944e-38, %v7022
        %v7024 = vsel %vm7021, %v7023, %v7019
        %v7025 = vmul.f32 1.0, %v7024
        %v7026 = vrcp.pop %v6108
        %v7027 = vmul.f32 %v6108, %v7026
        %v7028 = vsub.f32 1.0, %v7027
        %v7029 = vmul.f32 %v7026, %v7028
        %v7030 = vadd.f32 %v7026, %v7029
        %vm7031 = vweird.f32 %v6108
        %vm7032 = vweird.f32 %v7026
        %vm7033 = vmor %vm7031, %vm7032
        %v7034 = vsel %vm7033, %v7026, %v7030
        %v7035 = vand.u32 2147483647, %v6108
        %vm7036 = vcmp.eq.f32.partialorder %v7035, 8.507059e+37
        %v7037 = vand.u32 %v6108, 2147483648
        %v7038 = vor.u32 1.1754944e-38, %v7037
        %v7039 = vsel %vm7036, %v7038, %v7034
        %v7040 = vmul.f32 1.0, %v7039
        %v7041 = vrcp.pop %v6109
        %v7042 = vmul.f32 %v6109, %v7041
        %v7043 = vsub.f32 1.0, %v7042
        %v7044 = vmul.f32 %v7041, %v7043
        %v7045 = vadd.f32 %v7041, %v7044
        %vm7046 = vweird.f32 %v6109
        %vm7047 = vweird.f32 %v7041
        %vm7048 = vmor %vm7046, %vm7047
        %v7049 = vsel %vm7048, %v7041, %v7045
        %v7050 = vand.u32 2147483647, %v6109
        %vm7051 = vcmp.eq.f32.partialorder %v7050, 8.507059e+37
        %v7052 = vand.u32 %v6109, 2147483648
        %v7053 = vor.u32 1.1754944e-38, %v7052
        %v7054 = vsel %vm7051, %v7053, %v7049
        %v7055 = vmul.f32 1.0, %v7054
        %v7056 = vrcp.pop %v6110
        %v7057 = vmul.f32 %v6110, %v7056
        %v7058 = vsub.f32 1.0, %v7057
        %v7059 = vmul.f32 %v7056, %v7058
        %v7060 = vadd.f32 %v7056, %v7059
        %vm7061 = vweird.f32 %v6110
        %vm7062 = vweird.f32 %v7056
        %vm7063 = vmor %vm7061, %vm7062
        %v7064 = vsel %vm7063, %v7056, %v7060
        %v7065 = vand.u32 2147483647, %v6110
        %vm7066 = vcmp.eq.f32.partialorder %v7065, 8.507059e+37
        %v7067 = vand.u32 %v6110, 2147483648
        %v7068 = vor.u32 1.1754944e-38, %v7067
        %v7069 = vsel %vm7066, %v7068, %v7064
        %v7070 = vmul.f32 1.0, %v7069
        %v7071 = vmul.f32 %v5130, %v6125
        %v7072 = vmul.f32 %v5228, %v6140
        %v7073 = vmul.f32 %v5326, %v6155
        %v7074 = vmul.f32 %v5424, %v6170
        %v7075 = vmul.f32 %v5132, %v6185
        %v7076 = vmul.f32 %v5230, %v6200
        %v7077 = vmul.f32 %v5328, %v6215
        %v7078 = vmul.f32 %v5426, %v6230
        %v7079 = vmul.f32 %v5135, %v6245
        %v7080 = vmul.f32 %v5233, %v6260
        %v7081 = vmul.f32 %v5331, %v6275
        %v7082 = vmul.f32 %v5429, %v6290
        %v7083 = vmul.f32 %v5137, %v6305
        %v7084 = vmul.f32 %v5235, %v6320
        %v7085 = vmul.f32 %v5333, %v6335
        %v7086 = vmul.f32 %v5431, %v6350
        %v7087 = vmul.f32 %v5140, %v6365
        %v7088 = vmul.f32 %v5238, %v6380
        %v7089 = vmul.f32 %v5336, %v6395
        %v7090 = vmul.f32 %v5434, %v6410
        %v7091 = vmul.f32 %v5142, %v6425
        %v7092 = vmul.f32 %v5240, %v6440
        %v7093 = vmul.f32 %v5338, %v6455
        %v7094 = vmul.f32 %v5436, %v6470
        %v7095 = vmul.f32 %v5145, %v6485
        %v7096 = vmul.f32 %v5243, %v6500
        %v7097 = vmul.f32 %v5341, %v6515
        %v7098 = vmul.f32 %v5439, %v6530
        %v7099 = vmul.f32 %v5147, %v6545
        %v7100 = vmul.f32 %v5245, %v6560
        %v7101 = vmul.f32 %v5343, %v6575
        %v7102 = vmul.f32 %v5441, %v6590
        %v7103 = vmul.f32 %v5150, %v6605
        %v7104 = vmul.f32 %v5248, %v6620
        %v7105 = vmul.f32 %v5346, %v6635
        %v7106 = vmul.f32 %v5444, %v6650
        %v7107 = vmul.f32 %v5152, %v6665
        %v7108 = vmul.f32 %v5250, %v6680
        %v7109 = vmul.f32 %v5348, %v6695
        %v7110 = vmul.f32 %v5446, %v6710
        %v7111 = vmul.f32 %v5155, %v6725
        %v7112 = vmul.f32 %v5253, %v6740
        %v7113 = vmul.f32 %v5351, %v6755
        %v7114 = vmul.f32 %v5449, %v6770
        %v7115 = vmul.f32 %v5157, %v6785
        %v7116 = vmul.f32 %v5255, %v6800
        %v7117 = vmul.f32 %v5353, %v6815
        %v7118 = vmul.f32 %v5451, %v6830
        %v7119 = vmul.f32 %v5160, %v6845
        %v7120 = vmul.f32 %v5258, %v6860
        %v7121 = vmul.f32 %v5356, %v6875
        %v7122 = vmul.f32 %v5454, %v6890
        %v7123 = vmul.f32 %v5162, %v6905
        %v7124 = vmul.f32 %v5260, %v6920
        %v7125 = vmul.f32 %v5358, %v6935
        %v7126 = vmul.f32 %v5456, %v6950
        %v7127 = vmul.f32 %v5165, %v6965
        %v7128 = vmul.f32 %v5263, %v6980
        %v7129 = vmul.f32 %v5361, %v6995
        %v7130 = vmul.f32 %v5459, %v7010
        %v7131 = vmul.f32 %v5167, %v7025
        %v7132 = vmul.f32 %v5265, %v7040
        %v7133 = vmul.f32 %v5363, %v7055
        %v7134 = vmul.f32 %v5461, %v7070
        %v7135 = vmul.f32 %v7071, %v5522
        %v7136 = vmul.f32 %v7072, %v5620
        %v7137 = vmul.f32 %v7073, %v5718
        %v7138 = vmul.f32 %v7074, %v5816
        %v7139 = vmul.f32 %v7075, %v5524
        %v7140 = vmul.f32 %v7076, %v5622
        %v7141 = vmul.f32 %v7077, %v5720
        %v7142 = vmul.f32 %v7078, %v5818
        %v7143 = vmul.f32 %v7079, %v5527
        %v7144 = vmul.f32 %v7080, %v5625
        %v7145 = vmul.f32 %v7081, %v5723
        %v7146 = vmul.f32 %v7082, %v5821
        %v7147 = vmul.f32 %v7083, %v5529
        %v7148 = vmul.f32 %v7084, %v5627
        %v7149 = vmul.f32 %v7085, %v5725
        %v7150 = vmul.f32 %v7086, %v5823
        %v7151 = vmul.f32 %v7087, %v5532
        %v7152 = vmul.f32 %v7088, %v5630
        %v7153 = vmul.f32 %v7089, %v5728
        %v7154 = vmul.f32 %v7090, %v5826
        %v7155 = vmul.f32 %v7091, %v5534
        %v7156 = vmul.f32 %v7092, %v5632
        %v7157 = vmul.f32 %v7093, %v5730
        %v7158 = vmul.f32 %v7094, %v5828
        %v7159 = vmul.f32 %v7095, %v5537
        %v7160 = vmul.f32 %v7096, %v5635
        %v7161 = vmul.f32 %v7097, %v5733
        %v7162 = vmul.f32 %v7098, %v5831
        %v7163 = vmul.f32 %v7099, %v5539
        %v7164 = vmul.f32 %v7100, %v5637
        %v7165 = vmul.f32 %v7101, %v5735
        %v7166 = vmul.f32 %v7102, %v5833
        %v7167 = vmul.f32 %v7103, %v5542
        %v7168 = vmul.f32 %v7104, %v5640
        %v7169 = vmul.f32 %v7105, %v5738
        %v7170 = vmul.f32 %v7106, %v5836
        %v7171 = vmul.f32 %v7107, %v5544
        %v7172 = vmul.f32 %v7108, %v5642
        %v7173 = vmul.f32 %v7109, %v5740
        %v7174 = vmul.f32 %v7110, %v5838
        %v7175 = vmul.f32 %v7111, %v5547
        %v7176 = vmul.f32 %v7112, %v5645
        %v7177 = vmul.f32 %v7113, %v5743
        %v7178 = vmul.f32 %v7114, %v5841
        %v7179 = vmul.f32 %v7115, %v5549
        %v7180 = vmul.f32 %v7116, %v5647
        %v7181 = vmul.f32 %v7117, %v5745
        %v7182 = vmul.f32 %v7118, %v5843
        %v7183 = vmul.f32 %v7119, %v5552
        %v7184 = vmul.f32 %v7120, %v5650
        %v7185 = vmul.f32 %v7121, %v5748
        %v7186 = vmul.f32 %v7122, %v5846
        %v7187 = vmul.f32 %v7123, %v5554
        %v7188 = vmul.f32 %v7124, %v5652
        %v7189 = vmul.f32 %v7125, %v5750
        %v7190 = vmul.f32 %v7126, %v5848
        %v7191 = vmul.f32 %v7127, %v5557
        %v7192 = vmul.f32 %v7128, %v5655
        %v7193 = vmul.f32 %v7129, %v5753
        %v7194 = vmul.f32 %v7130, %v5851
        %v7195 = vmul.f32 %v7131, %v5559
        %v7196 = vmul.f32 %v7132, %v5657
        %v7197 = vmul.f32 %v7133, %v5755
        %v7198 = vmul.f32 %v7134, %v5853
        %v7199 = vpack.c.bf16 %v7139, %v7135
        %v7200 = vpack.c.bf16 %v7140, %v7136
        %v7201 = vpack.c.bf16 %v7141, %v7137
        %v7202 = vpack.c.bf16 %v7142, %v7138
        %v7203 = vpack.c.bf16 %v7147, %v7143
        %v7204 = vpack.c.bf16 %v7148, %v7144
        %v7205 = vpack.c.bf16 %v7149, %v7145
        %v7206 = vpack.c.bf16 %v7150, %v7146
        %v7207 = vpack.c.bf16 %v7155, %v7151
        %v7208 = vpack.c.bf16 %v7156, %v7152
        %v7209 = vpack.c.bf16 %v7157, %v7153
        %v7210 = vpack.c.bf16 %v7158, %v7154
        %v7211 = vpack.c.bf16 %v7163, %v7159
        %v7212 = vpack.c.bf16 %v7164, %v7160
        %v7213 = vpack.c.bf16 %v7165, %v7161
        %v7214 = vpack.c.bf16 %v7166, %v7162
        %v7215 = vpack.c.bf16 %v7171, %v7167
        %v7216 = vpack.c.bf16 %v7172, %v7168
        %v7217 = vpack.c.bf16 %v7173, %v7169
        %v7218 = vpack.c.bf16 %v7174, %v7170
        %v7219 = vpack.c.bf16 %v7179, %v7175
        %v7220 = vpack.c.bf16 %v7180, %v7176
        %v7221 = vpack.c.bf16 %v7181, %v7177
        %v7222 = vpack.c.bf16 %v7182, %v7178
        %v7223 = vpack.c.bf16 %v7187, %v7183
        %v7224 = vpack.c.bf16 %v7188, %v7184
        %v7225 = vpack.c.bf16 %v7189, %v7185
        %v7226 = vpack.c.bf16 %v7190, %v7186
        %v7227 = vpack.c.bf16 %v7195, %v7191
        %v7228 = vpack.c.bf16 %v7196, %v7192
        %v7229 = vpack.c.bf16 %v7197, %v7193
        %v7230 = vpack.c.bf16 %v7198, %v7194
        %v7231 = vld [vmem:[#allocation13] sm:$0xff]
        %v7232 = vld [vmem:[#allocation13 + $0x8] sm:$0xff]
        %v7233 = vld [vmem:[#allocation13 + $0x10] sm:$0xff]
        %v7234 = vld [vmem:[#allocation13 + $0x18] sm:$0xff]
        %v7235 = vld [vmem:[#allocation13 + $0x20] sm:$0xff]
        %v7236 = vld [vmem:[#allocation13 + $0x28] sm:$0xff]
        %v7237 = vld [vmem:[#allocation13 + $0x30] sm:$0xff]
        %v7238 = vld [vmem:[#allocation13 + $0x38] sm:$0xff]
        %v7239 = vld [vmem:[#allocation13 + $0x40] sm:$0xff]
        %v7240 = vld [vmem:[#allocation13 + $0x48] sm:$0xff]
        %v7241 = vld [vmem:[#allocation13 + $0x50] sm:$0xff]
        %v7242 = vld [vmem:[#allocation13 + $0x58] sm:$0xff]
        %v7243 = vld [vmem:[#allocation13 + $0x60] sm:$0xff]
        %v7244 = vld [vmem:[#allocation13 + $0x68] sm:$0xff]
        %v7245 = vld [vmem:[#allocation13 + $0x70] sm:$0xff]
        %v7246 = vld [vmem:[#allocation13 + $0x78] sm:$0xff]
        %v7247 = vld [vmem:[#allocation13 + $0x80] sm:$0xff]
        %v7248 = vld [vmem:[#allocation13 + $0x88] sm:$0xff]
        %v7249 = vld [vmem:[#allocation13 + $0x90] sm:$0xff]
        %v7250 = vld [vmem:[#allocation13 + $0x98] sm:$0xff]
        %v7251 = vld [vmem:[#allocation13 + $0xa0] sm:$0xff]
        %v7252 = vld [vmem:[#allocation13 + $0xa8] sm:$0xff]
        %v7253 = vld [vmem:[#allocation13 + $0xb0] sm:$0xff]
        %v7254 = vld [vmem:[#allocation13 + $0xb8] sm:$0xff]
        %v7255 = vld [vmem:[#allocation13 + $0xc0] sm:$0xff]
        %v7256 = vld [vmem:[#allocation13 + $0xc8] sm:$0xff]
        %v7257 = vld [vmem:[#allocation13 + $0xd0] sm:$0xff]
        %v7258 = vld [vmem:[#allocation13 + $0xd8] sm:$0xff]
        %v7259 = vld [vmem:[#allocation13 + $0xe0] sm:$0xff]
        %v7260 = vld [vmem:[#allocation13 + $0xe8] sm:$0xff]
        %v7261 = vld [vmem:[#allocation13 + $0xf0] sm:$0xff]
        %v7262 = vld [vmem:[#allocation13 + $0xf8] sm:$0xff]
        %v7263 = vld [vmem:[#allocation13 + $0x100] sm:$0xff]
        %v7264 = vld [vmem:[#allocation13 + $0x108] sm:$0xff]
        %v7265 = vld [vmem:[#allocation13 + $0x110] sm:$0xff]
        %v7266 = vld [vmem:[#allocation13 + $0x118] sm:$0xff]
        %v7267 = vld [vmem:[#allocation13 + $0x120] sm:$0xff]
        %v7268 = vld [vmem:[#allocation13 + $0x128] sm:$0xff]
        %v7269 = vld [vmem:[#allocation13 + $0x130] sm:$0xff]
        %v7270 = vld [vmem:[#allocation13 + $0x138] sm:$0xff]
        %v7271 = vld [vmem:[#allocation13 + $0x140] sm:$0xff]
        %v7272 = vld [vmem:[#allocation13 + $0x148] sm:$0xff]
        %v7273 = vld [vmem:[#allocation13 + $0x150] sm:$0xff]
        %v7274 = vld [vmem:[#allocation13 + $0x158] sm:$0xff]
        %v7275 = vld [vmem:[#allocation13 + $0x160] sm:$0xff]
        %v7276 = vld [vmem:[#allocation13 + $0x168] sm:$0xff]
        %v7277 = vld [vmem:[#allocation13 + $0x170] sm:$0xff]
        %v7278 = vld [vmem:[#allocation13 + $0x178] sm:$0xff]
        %v7279 = vld [vmem:[#allocation13 + $0x180] sm:$0xff]
        %v7280 = vld [vmem:[#allocation13 + $0x188] sm:$0xff]
        %v7281 = vld [vmem:[#allocation13 + $0x190] sm:$0xff]
        %v7282 = vld [vmem:[#allocation13 + $0x198] sm:$0xff]
        %v7283 = vld [vmem:[#allocation13 + $0x1a0] sm:$0xff]
        %v7284 = vld [vmem:[#allocation13 + $0x1a8] sm:$0xff]
        %v7285 = vld [vmem:[#allocation13 + $0x1b0] sm:$0xff]
        %v7286 = vld [vmem:[#allocation13 + $0x1b8] sm:$0xff]
        %v7287 = vld [vmem:[#allocation13 + $0x1c0] sm:$0xff]
        %v7288 = vld [vmem:[#allocation13 + $0x1c8] sm:$0xff]
        %v7289 = vld [vmem:[#allocation13 + $0x1d0] sm:$0xff]
        %v7290 = vld [vmem:[#allocation13 + $0x1d8] sm:$0xff]
        %v7291 = vld [vmem:[#allocation13 + $0x1e0] sm:$0xff]
        %v7292 = vld [vmem:[#allocation13 + $0x1e8] sm:$0xff]
        %v7293 = vld [vmem:[#allocation13 + $0x1f0] sm:$0xff]
        %v7294 = vld [vmem:[#allocation13 + $0x1f8] sm:$0xff]
        %v7359 = vunpack.c.l.b16 %v7231
        %v7360 = vunpack.c.h.b16 %v7231
        %v7361 = vunpack.c.l.b16 %v7232
        %v7362 = vunpack.c.h.b16 %v7232
        %v7363 = vunpack.c.l.b16 %v7233
        %v7364 = vunpack.c.h.b16 %v7233
        %v7365 = vunpack.c.l.b16 %v7234
        %v7366 = vunpack.c.h.b16 %v7234
        %v7367 = vunpack.c.l.b16 %v7235
        %v7368 = vunpack.c.h.b16 %v7235
        %v7369 = vunpack.c.l.b16 %v7236
        %v7370 = vunpack.c.h.b16 %v7236
        %v7371 = vunpack.c.l.b16 %v7237
        %v7372 = vunpack.c.h.b16 %v7237
        %v7373 = vunpack.c.l.b16 %v7238
        %v7374 = vunpack.c.h.b16 %v7238
        %v7375 = vunpack.c.l.b16 %v7239
        %v7376 = vunpack.c.h.b16 %v7239
        %v7377 = vunpack.c.l.b16 %v7240
        %v7378 = vunpack.c.h.b16 %v7240
        %v7379 = vunpack.c.l.b16 %v7241
        %v7380 = vunpack.c.h.b16 %v7241
        %v7381 = vunpack.c.l.b16 %v7242
        %v7382 = vunpack.c.h.b16 %v7242
        %v7383 = vunpack.c.l.b16 %v7243
        %v7384 = vunpack.c.h.b16 %v7243
        %v7385 = vunpack.c.l.b16 %v7244
        %v7386 = vunpack.c.h.b16 %v7244
        %v7387 = vunpack.c.l.b16 %v7245
        %v7388 = vunpack.c.h.b16 %v7245
        %v7389 = vunpack.c.l.b16 %v7246
        %v7390 = vunpack.c.h.b16 %v7246
        %v7391 = vunpack.c.l.b16 %v7247
        %v7392 = vunpack.c.h.b16 %v7247
        %v7393 = vunpack.c.l.b16 %v7248
        %v7394 = vunpack.c.h.b16 %v7248
        %v7395 = vunpack.c.l.b16 %v7249
        %v7396 = vunpack.c.h.b16 %v7249
        %v7397 = vunpack.c.l.b16 %v7250
        %v7398 = vunpack.c.h.b16 %v7250
        %v7399 = vunpack.c.l.b16 %v7251
        %v7400 = vunpack.c.h.b16 %v7251
        %v7401 = vunpack.c.l.b16 %v7252
        %v7402 = vunpack.c.h.b16 %v7252
        %v7403 = vunpack.c.l.b16 %v7253
        %v7404 = vunpack.c.h.b16 %v7253
        %v7405 = vunpack.c.l.b16 %v7254
        %v7406 = vunpack.c.h.b16 %v7254
        %v7407 = vunpack.c.l.b16 %v7255
        %v7408 = vunpack.c.h.b16 %v7255
        %v7409 = vunpack.c.l.b16 %v7256
        %v7410 = vunpack.c.h.b16 %v7256
        %v7411 = vunpack.c.l.b16 %v7257
        %v7412 = vunpack.c.h.b16 %v7257
        %v7413 = vunpack.c.l.b16 %v7258
        %v7414 = vunpack.c.h.b16 %v7258
        %v7415 = vunpack.c.l.b16 %v7259
        %v7416 = vunpack.c.h.b16 %v7259
        %v7417 = vunpack.c.l.b16 %v7260
        %v7418 = vunpack.c.h.b16 %v7260
        %v7419 = vunpack.c.l.b16 %v7261
        %v7420 = vunpack.c.h.b16 %v7261
        %v7421 = vunpack.c.l.b16 %v7262
        %v7422 = vunpack.c.h.b16 %v7262
        %v7423 = vunpack.c.l.b16 %v7263
        %v7424 = vunpack.c.h.b16 %v7263
        %v7425 = vunpack.c.l.b16 %v7264
        %v7426 = vunpack.c.h.b16 %v7264
        %v7427 = vunpack.c.l.b16 %v7265
        %v7428 = vunpack.c.h.b16 %v7265
        %v7429 = vunpack.c.l.b16 %v7266
        %v7430 = vunpack.c.h.b16 %v7266
        %v7431 = vunpack.c.l.b16 %v7267
        %v7432 = vunpack.c.h.b16 %v7267
        %v7433 = vunpack.c.l.b16 %v7268
        %v7434 = vunpack.c.h.b16 %v7268
        %v7435 = vunpack.c.l.b16 %v7269
        %v7436 = vunpack.c.h.b16 %v7269
        %v7437 = vunpack.c.l.b16 %v7270
        %v7438 = vunpack.c.h.b16 %v7270
        %v7439 = vunpack.c.l.b16 %v7271
        %v7440 = vunpack.c.h.b16 %v7271
        %v7441 = vunpack.c.l.b16 %v7272
        %v7442 = vunpack.c.h.b16 %v7272
        %v7443 = vunpack.c.l.b16 %v7273
        %v7444 = vunpack.c.h.b16 %v7273
        %v7445 = vunpack.c.l.b16 %v7274
        %v7446 = vunpack.c.h.b16 %v7274
        %v7447 = vunpack.c.l.b16 %v7275
        %v7448 = vunpack.c.h.b16 %v7275
        %v7449 = vunpack.c.l.b16 %v7276
        %v7450 = vunpack.c.h.b16 %v7276
        %v7451 = vunpack.c.l.b16 %v7277
        %v7452 = vunpack.c.h.b16 %v7277
        %v7453 = vunpack.c.l.b16 %v7278
        %v7454 = vunpack.c.h.b16 %v7278
        %v7455 = vunpack.c.l.b16 %v7279
        %v7456 = vunpack.c.h.b16 %v7279
        %v7457 = vunpack.c.l.b16 %v7280
        %v7458 = vunpack.c.h.b16 %v7280
        %v7459 = vunpack.c.l.b16 %v7281
        %v7460 = vunpack.c.h.b16 %v7281
        %v7461 = vunpack.c.l.b16 %v7282
        %v7462 = vunpack.c.h.b16 %v7282
        %v7463 = vunpack.c.l.b16 %v7283
        %v7464 = vunpack.c.h.b16 %v7283
        %v7465 = vunpack.c.l.b16 %v7284
        %v7466 = vunpack.c.h.b16 %v7284
        %v7467 = vunpack.c.l.b16 %v7285
        %v7468 = vunpack.c.h.b16 %v7285
        %v7469 = vunpack.c.l.b16 %v7286
        %v7470 = vunpack.c.h.b16 %v7286
        %v7471 = vunpack.c.l.b16 %v7287
        %v7472 = vunpack.c.h.b16 %v7287
        %v7473 = vunpack.c.l.b16 %v7288
        %v7474 = vunpack.c.h.b16 %v7288
        %v7475 = vunpack.c.l.b16 %v7289
        %v7476 = vunpack.c.h.b16 %v7289
        %v7477 = vunpack.c.l.b16 %v7290
        %v7478 = vunpack.c.h.b16 %v7290
        %v7479 = vunpack.c.l.b16 %v7291
        %v7480 = vunpack.c.h.b16 %v7291
        %v7481 = vunpack.c.l.b16 %v7292
        %v7482 = vunpack.c.h.b16 %v7292
        %v7483 = vunpack.c.l.b16 %v7293
        %v7484 = vunpack.c.h.b16 %v7293
        %v7485 = vunpack.c.l.b16 %v7294
        %v7486 = vunpack.c.h.b16 %v7294
        %v7487 = vpack.c.b16 %v7361, %v7359
        %v7488 = vpack.c.b16 %v7362, %v7360
        %v7489 = vpack.c.b16 %v7365, %v7363
        %v7490 = vpack.c.b16 %v7366, %v7364
        %v7491 = vpack.c.b16 %v7369, %v7367
        %v7492 = vpack.c.b16 %v7370, %v7368
        %v7493 = vpack.c.b16 %v7373, %v7371
        %v7494 = vpack.c.b16 %v7374, %v7372
        %v7495 = vpack.c.b16 %v7377, %v7375
        %v7496 = vpack.c.b16 %v7378, %v7376
        %v7497 = vpack.c.b16 %v7381, %v7379
        %v7498 = vpack.c.b16 %v7382, %v7380
        %v7499 = vpack.c.b16 %v7385, %v7383
        %v7500 = vpack.c.b16 %v7386, %v7384
        %v7501 = vpack.c.b16 %v7389, %v7387
        %v7502 = vpack.c.b16 %v7390, %v7388
        %v7503 = vpack.c.b16 %v7393, %v7391
        %v7504 = vpack.c.b16 %v7394, %v7392
        %v7505 = vpack.c.b16 %v7397, %v7395
        %v7506 = vpack.c.b16 %v7398, %v7396
        %v7507 = vpack.c.b16 %v7401, %v7399
        %v7508 = vpack.c.b16 %v7402, %v7400
        %v7509 = vpack.c.b16 %v7405, %v7403
        %v7510 = vpack.c.b16 %v7406, %v7404
        %v7511 = vpack.c.b16 %v7409, %v7407
        %v7512 = vpack.c.b16 %v7410, %v7408
        %v7513 = vpack.c.b16 %v7413, %v7411
        %v7514 = vpack.c.b16 %v7414, %v7412
        %v7515 = vpack.c.b16 %v7417, %v7415
        %v7516 = vpack.c.b16 %v7418, %v7416
        %v7517 = vpack.c.b16 %v7421, %v7419
        %v7518 = vpack.c.b16 %v7422, %v7420
        %v7519 = vpack.c.b16 %v7425, %v7423
        %v7520 = vpack.c.b16 %v7426, %v7424
        %v7521 = vpack.c.b16 %v7429, %v7427
        %v7522 = vpack.c.b16 %v7430, %v7428
        %v7523 = vpack.c.b16 %v7433, %v7431
        %v7524 = vpack.c.b16 %v7434, %v7432
        %v7525 = vpack.c.b16 %v7437, %v7435
        %v7526 = vpack.c.b16 %v7438, %v7436
        %v7527 = vpack.c.b16 %v7441, %v7439
        %v7528 = vpack.c.b16 %v7442, %v7440
        %v7529 = vpack.c.b16 %v7445, %v7443
        %v7530 = vpack.c.b16 %v7446, %v7444
        %v7531 = vpack.c.b16 %v7449, %v7447
        %v7532 = vpack.c.b16 %v7450, %v7448
        %v7533 = vpack.c.b16 %v7453, %v7451
        %v7534 = vpack.c.b16 %v7454, %v7452
        %v7535 = vpack.c.b16 %v7457, %v7455
        %v7536 = vpack.c.b16 %v7458, %v7456
        %v7537 = vpack.c.b16 %v7461, %v7459
        %v7538 = vpack.c.b16 %v7462, %v7460
        %v7539 = vpack.c.b16 %v7465, %v7463
        %v7540 = vpack.c.b16 %v7466, %v7464
        %v7541 = vpack.c.b16 %v7469, %v7467
        %v7542 = vpack.c.b16 %v7470, %v7468
        %v7543 = vpack.c.b16 %v7473, %v7471
        %v7544 = vpack.c.b16 %v7474, %v7472
        %v7545 = vpack.c.b16 %v7477, %v7475
        %v7546 = vpack.c.b16 %v7478, %v7476
        %v7547 = vpack.c.b16 %v7481, %v7479
        %v7548 = vpack.c.b16 %v7482, %v7480
        %v7549 = vpack.c.b16 %v7485, %v7483
        %v7550 = vpack.c.b16 %v7486, %v7484
        %7615 = vmatpush.bf16.msra.mxu0 %v7501
        %7616 = vmatpush.bf16.msra.mxu0 %v7499
        %7617 = vmatpush.bf16.msra.mxu0 %v7497
        %7618 = vmatpush.bf16.msra.mxu0 %v7495
        %7619 = vmatpush.bf16.msra.mxu0 %v7493
        %7620 = vmatpush.bf16.msra.mxu0 %v7491
        %7621 = vmatpush.bf16.msra.mxu0 %v7489
        %7622 = vmatpush.bf16.msra.mxu0 %v7487
        %7623 = vmatmul.bf16.gmra.mxu0 %v7199
        %v7624 = vpop.f32.mrf.mxu0
        %v7625 = vadd.f32 0.0, %v7624
        %v7626 = vpop.f32.mrf.mxu0
        %v7627 = vadd.f32 0.0, %v7626
        %7628 = vmatmul.bf16.gmra.mxu0 %v7203
        %v7629 = vpop.f32.mrf.mxu0
        %v7630 = vadd.f32 0.0, %v7629
        %v7631 = vpop.f32.mrf.mxu0
        %v7632 = vadd.f32 0.0, %v7631
        %7633 = vmatmul.bf16.gmra.mxu0 %v7207
        %v7634 = vpop.f32.mrf.mxu0
        %v7635 = vadd.f32 0.0, %v7634
        %v7636 = vpop.f32.mrf.mxu0
        %v7637 = vadd.f32 0.0, %v7636
        %7638 = vmatmul.bf16.gmra.mxu0 %v7211
        %v7639 = vpop.f32.mrf.mxu0
        %v7640 = vadd.f32 0.0, %v7639
        %v7641 = vpop.f32.mrf.mxu0
        %v7642 = vadd.f32 0.0, %v7641
        %7643 = vmatmul.bf16.gmra.mxu0 %v7215
        %v7644 = vpop.f32.mrf.mxu0
        %v7645 = vadd.f32 0.0, %v7644
        %v7646 = vpop.f32.mrf.mxu0
        %v7647 = vadd.f32 0.0, %v7646
        %7648 = vmatmul.bf16.gmra.mxu0 %v7219
        %v7649 = vpop.f32.mrf.mxu0
        %v7650 = vadd.f32 0.0, %v7649
        %v7651 = vpop.f32.mrf.mxu0
        %v7652 = vadd.f32 0.0, %v7651
        %7653 = vmatmul.bf16.gmra.mxu0 %v7223
        %v7654 = vpop.f32.mrf.mxu0
        %v7655 = vadd.f32 0.0, %v7654
        %v7656 = vpop.f32.mrf.mxu0
        %v7657 = vadd.f32 0.0, %v7656
        %7658 = vmatmul.bf16.gmra.mxu0 %v7227
        %v7659 = vpop.f32.mrf.mxu0
        %v7660 = vadd.f32 0.0, %v7659
        %v7661 = vpop.f32.mrf.mxu0
        %v7662 = vadd.f32 0.0, %v7661
        %7663 = vdwg.mxu0
        %7664 = vmatpush.bf16.msra.mxu0 %v7517
        %7665 = vmatpush.bf16.msra.mxu0 %v7515
        %7666 = vmatpush.bf16.msra.mxu0 %v7513
        %7667 = vmatpush.bf16.msra.mxu0 %v7511
        %7668 = vmatpush.bf16.msra.mxu0 %v7509
        %7669 = vmatpush.bf16.msra.mxu0 %v7507
        %7670 = vmatpush.bf16.msra.mxu0 %v7505
        %7671 = vmatpush.bf16.msra.mxu0 %v7503
        %7672 = vmatmul.bf16.gmra.mxu0 %v7200
        %v7673 = vpop.f32.mrf.mxu0
        %v7674 = vadd.f32 %v7625, %v7673
        %v7675 = vpop.f32.mrf.mxu0
        %v7676 = vadd.f32 %v7627, %v7675
        %7677 = vmatmul.bf16.gmra.mxu0 %v7204
        %v7678 = vpop.f32.mrf.mxu0
        %v7679 = vadd.f32 %v7630, %v7678
        %v7680 = vpop.f32.mrf.mxu0
        %v7681 = vadd.f32 %v7632, %v7680
        %7682 = vmatmul.bf16.gmra.mxu0 %v7208
        %v7683 = vpop.f32.mrf.mxu0
        %v7684 = vadd.f32 %v7635, %v7683
        %v7685 = vpop.f32.mrf.mxu0
        %v7686 = vadd.f32 %v7637, %v7685
        %7687 = vmatmul.bf16.gmra.mxu0 %v7212
        %v7688 = vpop.f32.mrf.mxu0
        %v7689 = vadd.f32 %v7640, %v7688
        %v7690 = vpop.f32.mrf.mxu0
        %v7691 = vadd.f32 %v7642, %v7690
        %7692 = vmatmul.bf16.gmra.mxu0 %v7216
        %v7693 = vpop.f32.mrf.mxu0
        %v7694 = vadd.f32 %v7645, %v7693
        %v7695 = vpop.f32.mrf.mxu0
        %v7696 = vadd.f32 %v7647, %v7695
        %7697 = vmatmul.bf16.gmra.mxu0 %v7220
        %v7698 = vpop.f32.mrf.mxu0
        %v7699 = vadd.f32 %v7650, %v7698
        %v7700 = vpop.f32.mrf.mxu0
        %v7701 = vadd.f32 %v7652, %v7700
        %7702 = vmatmul.bf16.gmra.mxu0 %v7224
        %v7703 = vpop.f32.mrf.mxu0
        %v7704 = vadd.f32 %v7655, %v7703
        %v7705 = vpop.f32.mrf.mxu0
        %v7706 = vadd.f32 %v7657, %v7705
        %7707 = vmatmul.bf16.gmra.mxu0 %v7228
        %v7708 = vpop.f32.mrf.mxu0
        %v7709 = vadd.f32 %v7660, %v7708
        %v7710 = vpop.f32.mrf.mxu0
        %v7711 = vadd.f32 %v7662, %v7710
        %7712 = vdwg.mxu0
        %7713 = vmatpush.bf16.msra.mxu0 %v7533
        %7714 = vmatpush.bf16.msra.mxu0 %v7531
        %7715 = vmatpush.bf16.msra.mxu0 %v7529
        %7716 = vmatpush.bf16.msra.mxu0 %v7527
        %7717 = vmatpush.bf16.msra.mxu0 %v7525
        %7718 = vmatpush.bf16.msra.mxu0 %v7523
        %7719 = vmatpush.bf16.msra.mxu0 %v7521
        %7720 = vmatpush.bf16.msra.mxu0 %v7519
        %7721 = vmatmul.bf16.gmra.mxu0 %v7201
        %v7722 = vpop.f32.mrf.mxu0
        %v7723 = vadd.f32 %v7674, %v7722
        %v7724 = vpop.f32.mrf.mxu0
        %v7725 = vadd.f32 %v7676, %v7724
        %7726 = vmatmul.bf16.gmra.mxu0 %v7205
        %v7727 = vpop.f32.mrf.mxu0
        %v7728 = vadd.f32 %v7679, %v7727
        %v7729 = vpop.f32.mrf.mxu0
        %v7730 = vadd.f32 %v7681, %v7729
        %7731 = vmatmul.bf16.gmra.mxu0 %v7209
        %v7732 = vpop.f32.mrf.mxu0
        %v7733 = vadd.f32 %v7684, %v7732
        %v7734 = vpop.f32.mrf.mxu0
        %v7735 = vadd.f32 %v7686, %v7734
        %7736 = vmatmul.bf16.gmra.mxu0 %v7213
        %v7737 = vpop.f32.mrf.mxu0
        %v7738 = vadd.f32 %v7689, %v7737
        %v7739 = vpop.f32.mrf.mxu0
        %v7740 = vadd.f32 %v7691, %v7739
        %7741 = vmatmul.bf16.gmra.mxu0 %v7217
        %v7742 = vpop.f32.mrf.mxu0
        %v7743 = vadd.f32 %v7694, %v7742
        %v7744 = vpop.f32.mrf.mxu0
        %v7745 = vadd.f32 %v7696, %v7744
        %7746 = vmatmul.bf16.gmra.mxu0 %v7221
        %v7747 = vpop.f32.mrf.mxu0
        %v7748 = vadd.f32 %v7699, %v7747
        %v7749 = vpop.f32.mrf.mxu0
        %v7750 = vadd.f32 %v7701, %v7749
        %7751 = vmatmul.bf16.gmra.mxu0 %v7225
        %v7752 = vpop.f32.mrf.mxu0
        %v7753 = vadd.f32 %v7704, %v7752
        %v7754 = vpop.f32.mrf.mxu0
        %v7755 = vadd.f32 %v7706, %v7754
        %7756 = vmatmul.bf16.gmra.mxu0 %v7229
        %v7757 = vpop.f32.mrf.mxu0
        %v7758 = vadd.f32 %v7709, %v7757
        %v7759 = vpop.f32.mrf.mxu0
        %v7760 = vadd.f32 %v7711, %v7759
        %7761 = vdwg.mxu0
        %7762 = vmatpush.bf16.msra.mxu0 %v7549
        %7763 = vmatpush.bf16.msra.mxu0 %v7547
        %7764 = vmatpush.bf16.msra.mxu0 %v7545
        %7765 = vmatpush.bf16.msra.mxu0 %v7543
        %7766 = vmatpush.bf16.msra.mxu0 %v7541
        %7767 = vmatpush.bf16.msra.mxu0 %v7539
        %7768 = vmatpush.bf16.msra.mxu0 %v7537
        %7769 = vmatpush.bf16.msra.mxu0 %v7535
        %7770 = vmatmul.bf16.gmra.mxu0 %v7202
        %v7771 = vpop.f32.mrf.mxu0
        %v7772 = vadd.f32 %v7723, %v7771
        %v7773 = vpop.f32.mrf.mxu0
        %v7774 = vadd.f32 %v7725, %v7773
        %7775 = vmatmul.bf16.gmra.mxu0 %v7206
        %v7776 = vpop.f32.mrf.mxu0
        %v7777 = vadd.f32 %v7728, %v7776
        %v7778 = vpop.f32.mrf.mxu0
        %v7779 = vadd.f32 %v7730, %v7778
        %7780 = vmatmul.bf16.gmra.mxu0 %v7210
        %v7781 = vpop.f32.mrf.mxu0
        %v7782 = vadd.f32 %v7733, %v7781
        %v7783 = vpop.f32.mrf.mxu0
        %v7784 = vadd.f32 %v7735, %v7783
        %7785 = vmatmul.bf16.gmra.mxu0 %v7214
        %v7786 = vpop.f32.mrf.mxu0
        %v7787 = vadd.f32 %v7738, %v7786
        %v7788 = vpop.f32.mrf.mxu0
        %v7789 = vadd.f32 %v7740, %v7788
        %7790 = vmatmul.bf16.gmra.mxu0 %v7218
        %v7791 = vpop.f32.mrf.mxu0
        %v7792 = vadd.f32 %v7743, %v7791
        %v7793 = vpop.f32.mrf.mxu0
        %v7794 = vadd.f32 %v7745, %v7793
        %7795 = vmatmul.bf16.gmra.mxu0 %v7222
        %v7796 = vpop.f32.mrf.mxu0
        %v7797 = vadd.f32 %v7748, %v7796
        %v7798 = vpop.f32.mrf.mxu0
        %v7799 = vadd.f32 %v7750, %v7798
        %7800 = vmatmul.bf16.gmra.mxu0 %v7226
        %v7801 = vpop.f32.mrf.mxu0
        %v7802 = vadd.f32 %v7753, %v7801
        %v7803 = vpop.f32.mrf.mxu0
        %v7804 = vadd.f32 %v7755, %v7803
        %7805 = vmatmul.bf16.gmra.mxu0 %v7230
        %v7806 = vpop.f32.mrf.mxu0
        %v7807 = vadd.f32 %v7758, %v7806
        %v7808 = vpop.f32.mrf.mxu0
        %v7809 = vadd.f32 %v7760, %v7808
        %7810 = vdwg.mxu0
        %7811 = vmatpush.bf16.msra.mxu0 %v7502
        %7812 = vmatpush.bf16.msra.mxu0 %v7500
        %7813 = vmatpush.bf16.msra.mxu0 %v7498
        %7814 = vmatpush.bf16.msra.mxu0 %v7496
        %7815 = vmatpush.bf16.msra.mxu0 %v7494
        %7816 = vmatpush.bf16.msra.mxu0 %v7492
        %7817 = vmatpush.bf16.msra.mxu0 %v7490
        %7818 = vmatpush.bf16.msra.mxu0 %v7488
        %7819 = vmatmul.bf16.gmra.mxu0 %v7199
        %v7820 = vpop.f32.mrf.mxu0
        %v7821 = vadd.f32 0.0, %v7820
        %v7822 = vpop.f32.mrf.mxu0
        %v7823 = vadd.f32 0.0, %v7822
        %7824 = vmatmul.bf16.gmra.mxu0 %v7203
        %v7825 = vpop.f32.mrf.mxu0
        %v7826 = vadd.f32 0.0, %v7825
        %v7827 = vpop.f32.mrf.mxu0
        %v7828 = vadd.f32 0.0, %v7827
        %7829 = vmatmul.bf16.gmra.mxu0 %v7207
        %v7830 = vpop.f32.mrf.mxu0
        %v7831 = vadd.f32 0.0, %v7830
        %v7832 = vpop.f32.mrf.mxu0
        %v7833 = vadd.f32 0.0, %v7832
        %7834 = vmatmul.bf16.gmra.mxu0 %v7211
        %v7835 = vpop.f32.mrf.mxu0
        %v7836 = vadd.f32 0.0, %v7835
        %v7837 = vpop.f32.mrf.mxu0
        %v7838 = vadd.f32 0.0, %v7837
        %7839 = vmatmul.bf16.gmra.mxu0 %v7215
        %v7840 = vpop.f32.mrf.mxu0
        %v7841 = vadd.f32 0.0, %v7840
        %v7842 = vpop.f32.mrf.mxu0
        %v7843 = vadd.f32 0.0, %v7842
        %7844 = vmatmul.bf16.gmra.mxu0 %v7219
        %v7845 = vpop.f32.mrf.mxu0
        %v7846 = vadd.f32 0.0, %v7845
        %v7847 = vpop.f32.mrf.mxu0
        %v7848 = vadd.f32 0.0, %v7847
        %7849 = vmatmul.bf16.gmra.mxu0 %v7223
        %v7850 = vpop.f32.mrf.mxu0
        %v7851 = vadd.f32 0.0, %v7850
        %v7852 = vpop.f32.mrf.mxu0
        %v7853 = vadd.f32 0.0, %v7852
        %7854 = vmatmul.bf16.gmra.mxu0 %v7227
        %v7855 = vpop.f32.mrf.mxu0
        %v7856 = vadd.f32 0.0, %v7855
        %v7857 = vpop.f32.mrf.mxu0
        %v7858 = vadd.f32 0.0, %v7857
        %7859 = vdwg.mxu0
        %7860 = vmatpush.bf16.msra.mxu0 %v7518
        %7861 = vmatpush.bf16.msra.mxu0 %v7516
        %7862 = vmatpush.bf16.msra.mxu0 %v7514
        %7863 = vmatpush.bf16.msra.mxu0 %v7512
        %7864 = vmatpush.bf16.msra.mxu0 %v7510
        %7865 = vmatpush.bf16.msra.mxu0 %v7508
        %7866 = vmatpush.bf16.msra.mxu0 %v7506
        %7867 = vmatpush.bf16.msra.mxu0 %v7504
        %7868 = vmatmul.bf16.gmra.mxu0 %v7200
        %v7869 = vpop.f32.mrf.mxu0
        %v7870 = vadd.f32 %v7821, %v7869
        %v7871 = vpop.f32.mrf.mxu0
        %v7872 = vadd.f32 %v7823, %v7871
        %7873 = vmatmul.bf16.gmra.mxu0 %v7204
        %v7874 = vpop.f32.mrf.mxu0
        %v7875 = vadd.f32 %v7826, %v7874
        %v7876 = vpop.f32.mrf.mxu0
        %v7877 = vadd.f32 %v7828, %v7876
        %7878 = vmatmul.bf16.gmra.mxu0 %v7208
        %v7879 = vpop.f32.mrf.mxu0
        %v7880 = vadd.f32 %v7831, %v7879
        %v7881 = vpop.f32.mrf.mxu0
        %v7882 = vadd.f32 %v7833, %v7881
        %7883 = vmatmul.bf16.gmra.mxu0 %v7212
        %v7884 = vpop.f32.mrf.mxu0
        %v7885 = vadd.f32 %v7836, %v7884
        %v7886 = vpop.f32.mrf.mxu0
        %v7887 = vadd.f32 %v7838, %v7886
        %7888 = vmatmul.bf16.gmra.mxu0 %v7216
        %v7889 = vpop.f32.mrf.mxu0
        %v7890 = vadd.f32 %v7841, %v7889
        %v7891 = vpop.f32.mrf.mxu0
        %v7892 = vadd.f32 %v7843, %v7891
        %7893 = vmatmul.bf16.gmra.mxu0 %v7220
        %v7894 = vpop.f32.mrf.mxu0
        %v7895 = vadd.f32 %v7846, %v7894
        %v7896 = vpop.f32.mrf.mxu0
        %v7897 = vadd.f32 %v7848, %v7896
        %7898 = vmatmul.bf16.gmra.mxu0 %v7224
        %v7899 = vpop.f32.mrf.mxu0
        %v7900 = vadd.f32 %v7851, %v7899
        %v7901 = vpop.f32.mrf.mxu0
        %v7902 = vadd.f32 %v7853, %v7901
        %7903 = vmatmul.bf16.gmra.mxu0 %v7228
        %v7904 = vpop.f32.mrf.mxu0
        %v7905 = vadd.f32 %v7856, %v7904
        %v7906 = vpop.f32.mrf.mxu0
        %v7907 = vadd.f32 %v7858, %v7906
        %7908 = vdwg.mxu0
        %7909 = vmatpush.bf16.msra.mxu0 %v7534
        %7910 = vmatpush.bf16.msra.mxu0 %v7532
        %7911 = vmatpush.bf16.msra.mxu0 %v7530
        %7912 = vmatpush.bf16.msra.mxu0 %v7528
        %7913 = vmatpush.bf16.msra.mxu0 %v7526
        %7914 = vmatpush.bf16.msra.mxu0 %v7524
        %7915 = vmatpush.bf16.msra.mxu0 %v7522
        %7916 = vmatpush.bf16.msra.mxu0 %v7520
        %7917 = vmatmul.bf16.gmra.mxu0 %v7201
        %v7918 = vpop.f32.mrf.mxu0
        %v7919 = vadd.f32 %v7870, %v7918
        %v7920 = vpop.f32.mrf.mxu0
        %v7921 = vadd.f32 %v7872, %v7920
        %7922 = vmatmul.bf16.gmra.mxu0 %v7205
        %v7923 = vpop.f32.mrf.mxu0
        %v7924 = vadd.f32 %v7875, %v7923
        %v7925 = vpop.f32.mrf.mxu0
        %v7926 = vadd.f32 %v7877, %v7925
        %7927 = vmatmul.bf16.gmra.mxu0 %v7209
        %v7928 = vpop.f32.mrf.mxu0
        %v7929 = vadd.f32 %v7880, %v7928
        %v7930 = vpop.f32.mrf.mxu0
        %v7931 = vadd.f32 %v7882, %v7930
        %7932 = vmatmul.bf16.gmra.mxu0 %v7213
        %v7933 = vpop.f32.mrf.mxu0
        %v7934 = vadd.f32 %v7885, %v7933
        %v7935 = vpop.f32.mrf.mxu0
        %v7936 = vadd.f32 %v7887, %v7935
        %7937 = vmatmul.bf16.gmra.mxu0 %v7217
        %v7938 = vpop.f32.mrf.mxu0
        %v7939 = vadd.f32 %v7890, %v7938
        %v7940 = vpop.f32.mrf.mxu0
        %v7941 = vadd.f32 %v7892, %v7940
        %7942 = vmatmul.bf16.gmra.mxu0 %v7221
        %v7943 = vpop.f32.mrf.mxu0
        %v7944 = vadd.f32 %v7895, %v7943
        %v7945 = vpop.f32.mrf.mxu0
        %v7946 = vadd.f32 %v7897, %v7945
        %7947 = vmatmul.bf16.gmra.mxu0 %v7225
        %v7948 = vpop.f32.mrf.mxu0
        %v7949 = vadd.f32 %v7900, %v7948
        %v7950 = vpop.f32.mrf.mxu0
        %v7951 = vadd.f32 %v7902, %v7950
        %7952 = vmatmul.bf16.gmra.mxu0 %v7229
        %v7953 = vpop.f32.mrf.mxu0
        %v7954 = vadd.f32 %v7905, %v7953
        %v7955 = vpop.f32.mrf.mxu0
        %v7956 = vadd.f32 %v7907, %v7955
        %7957 = vdwg.mxu0
        %7958 = vmatpush.bf16.msra.mxu0 %v7550
        %7959 = vmatpush.bf16.msra.mxu0 %v7548
        %7960 = vmatpush.bf16.msra.mxu0 %v7546
        %7961 = vmatpush.bf16.msra.mxu0 %v7544
        %7962 = vmatpush.bf16.msra.mxu0 %v7542
        %7963 = vmatpush.bf16.msra.mxu0 %v7540
        %7964 = vmatpush.bf16.msra.mxu0 %v7538
        %7965 = vmatpush.bf16.msra.mxu0 %v7536
        %7966 = vmatmul.bf16.gmra.mxu0 %v7202
        %v7967 = vpop.f32.mrf.mxu0
        %v7968 = vadd.f32 %v7919, %v7967
        %v7969 = vpop.f32.mrf.mxu0
        %v7970 = vadd.f32 %v7921, %v7969
        %7971 = vmatmul.bf16.gmra.mxu0 %v7206
        %v7972 = vpop.f32.mrf.mxu0
        %v7973 = vadd.f32 %v7924, %v7972
        %v7974 = vpop.f32.mrf.mxu0
        %v7975 = vadd.f32 %v7926, %v7974
        %7976 = vmatmul.bf16.gmra.mxu0 %v7210
        %v7977 = vpop.f32.mrf.mxu0
        %v7978 = vadd.f32 %v7929, %v7977
        %v7979 = vpop.f32.mrf.mxu0
        %v7980 = vadd.f32 %v7931, %v7979
        %7981 = vmatmul.bf16.gmra.mxu0 %v7214
        %v7982 = vpop.f32.mrf.mxu0
        %v7983 = vadd.f32 %v7934, %v7982
        %v7984 = vpop.f32.mrf.mxu0
        %v7985 = vadd.f32 %v7936, %v7984
        %7986 = vmatmul.bf16.gmra.mxu0 %v7218
        %v7987 = vpop.f32.mrf.mxu0
        %v7988 = vadd.f32 %v7939, %v7987
        %v7989 = vpop.f32.mrf.mxu0
        %v7990 = vadd.f32 %v7941, %v7989
        %7991 = vmatmul.bf16.gmra.mxu0 %v7222
        %v7992 = vpop.f32.mrf.mxu0
        %v7993 = vadd.f32 %v7944, %v7992
        %v7994 = vpop.f32.mrf.mxu0
        %v7995 = vadd.f32 %v7946, %v7994
        %7996 = vmatmul.bf16.gmra.mxu0 %v7226
        %v7997 = vpop.f32.mrf.mxu0
        %v7998 = vadd.f32 %v7949, %v7997
        %v7999 = vpop.f32.mrf.mxu0
        %v8000 = vadd.f32 %v7951, %v7999
        %8001 = vmatmul.bf16.gmra.mxu0 %v7230
        %v8002 = vpop.f32.mrf.mxu0
        %v8003 = vadd.f32 %v7954, %v8002
        %v8004 = vpop.f32.mrf.mxu0
        %v8005 = vadd.f32 %v7956, %v8004
        %8006 = vdwg.mxu0
        %v8007 = vadd.f32 %v3913, %v7772
        %v8008 = vadd.f32 %v3914, %v7968
        %v8009 = vadd.f32 %v3915, %v7774
        %v8010 = vadd.f32 %v3916, %v7970
        %v8011 = vadd.f32 %v3917, %v7777
        %v8012 = vadd.f32 %v3918, %v7973
        %v8013 = vadd.f32 %v3919, %v7779
        %v8014 = vadd.f32 %v3920, %v7975
        %v8015 = vadd.f32 %v3921, %v7782
        %v8016 = vadd.f32 %v3922, %v7978
        %v8017 = vadd.f32 %v3923, %v7784
        %v8018 = vadd.f32 %v3924, %v7980
        %v8019 = vadd.f32 %v3925, %v7787
        %v8020 = vadd.f32 %v3926, %v7983
        %v8021 = vadd.f32 %v3927, %v7789
        %v8022 = vadd.f32 %v3928, %v7985
        %v8023 = vadd.f32 %v3929, %v7792
        %v8024 = vadd.f32 %v3930, %v7988
        %v8025 = vadd.f32 %v3931, %v7794
        %v8026 = vadd.f32 %v3932, %v7990
        %v8027 = vadd.f32 %v3933, %v7797
        %v8028 = vadd.f32 %v3934, %v7993
        %v8029 = vadd.f32 %v3935, %v7799
        %v8030 = vadd.f32 %v3936, %v7995
        %v8031 = vadd.f32 %v3937, %v7802
        %v8032 = vadd.f32 %v3938, %v7998
        %v8033 = vadd.f32 %v3939, %v7804
        %v8034 = vadd.f32 %v3940, %v8000
        %v8035 = vadd.f32 %v3941, %v7807
        %v8036 = vadd.f32 %v3942, %v8003
        %v8037 = vadd.f32 %v3943, %v7809
        %v8038 = vadd.f32 %v3944, %v8005
        %8039 = vst [vmem:[%s468] sm:$0xff] %v8007
        %8040 = vst [vmem:[%s468 + $0x8] sm:$0xff] %v8008
        %8041 = vst [vmem:[%s468 + $0x10] sm:$0xff] %v8009
        %8042 = vst [vmem:[%s468 + $0x18] sm:$0xff] %v8010
        %8043 = vst [vmem:[%s468 + $0x20] sm:$0xff] %v8011
        %8044 = vst [vmem:[%s468 + $0x28] sm:$0xff] %v8012
        %8045 = vst [vmem:[%s468 + $0x30] sm:$0xff] %v8013
        %8046 = vst [vmem:[%s468 + $0x38] sm:$0xff] %v8014
        %8047 = vst [vmem:[%s468 + $0x40] sm:$0xff] %v8015
        %8048 = vst [vmem:[%s468 + $0x48] sm:$0xff] %v8016
        %8049 = vst [vmem:[%s468 + $0x50] sm:$0xff] %v8017
        %8050 = vst [vmem:[%s468 + $0x58] sm:$0xff] %v8018
        %8051 = vst [vmem:[%s468 + $0x60] sm:$0xff] %v8019
        %8052 = vst [vmem:[%s468 + $0x68] sm:$0xff] %v8020
        %8053 = vst [vmem:[%s468 + $0x70] sm:$0xff] %v8021
        %8054 = vst [vmem:[%s468 + $0x78] sm:$0xff] %v8022
        %8055 = vst [vmem:[%s468 + $0x80] sm:$0xff] %v8023
        %8056 = vst [vmem:[%s468 + $0x88] sm:$0xff] %v8024
        %8057 = vst [vmem:[%s468 + $0x90] sm:$0xff] %v8025
        %8058 = vst [vmem:[%s468 + $0x98] sm:$0xff] %v8026
        %8059 = vst [vmem:[%s468 + $0xa0] sm:$0xff] %v8027
        %8060 = vst [vmem:[%s468 + $0xa8] sm:$0xff] %v8028
        %8061 = vst [vmem:[%s468 + $0xb0] sm:$0xff] %v8029
        %8062 = vst [vmem:[%s468 + $0xb8] sm:$0xff] %v8030
        %8063 = vst [vmem:[%s468 + $0xc0] sm:$0xff] %v8031
        %8064 = vst [vmem:[%s468 + $0xc8] sm:$0xff] %v8032
        %8065 = vst [vmem:[%s468 + $0xd0] sm:$0xff] %v8033
        %8066 = vst [vmem:[%s468 + $0xd8] sm:$0xff] %v8034
        %8067 = vst [vmem:[%s468 + $0xe0] sm:$0xff] %v8035
        %8068 = vst [vmem:[%s468 + $0xe8] sm:$0xff] %v8036
        %8069 = vst [vmem:[%s468 + $0xf0] sm:$0xff] %v8037
        %8070 = vst [vmem:[%s468 + $0xf8] sm:$0xff] %v8038
        %p8071 = scmp.lt.s32.totalorder %s27, 1
        %s8072 = scalar_select %p8071, %s27, 1
        %s8073 = smul.addr %s8072, 32
        %s8074 = smul.addr %s8073, 8
        %s8075 = scalar_lea.vmem %s9, %s8074
        // Predicated region
        $region89: #{infer_model_single_forward.2} parent=55 // pred_check
          %p8076 = pneg %p239
        $region90: #{infer_model_single_forward.2} parent=55 // pred_check_branch
          %8078 = sbr.rel (%p8076) target = $region92
        $region91: #{infer_model_single_forward.2} parent=55 // pred_region
          _
        $region92: #{infer_model_single_forward.2} parent=55 // pred_fallthru
          _
      $region56: #{infer_model_single_forward.2} parent=5 // pred_fallthru
        _
      %p8079 = scmp.le.s32.totalorder 2, %s22
      // Predicated region
      $region93: #{infer_model_single_forward.2} parent=5 // pred_check
        %p8080 = pneg %p8079
      $region94: #{infer_model_single_forward.2} parent=5 // pred_check_branch
        %8082 = sbr.rel (%p8080) target = $region96
      $region95: #{infer_model_single_forward.2} parent=5 // pred_region
        %s8083 = ssub.s32 %s22, 2
        // Predicated region
        $region97: #{infer_model_single_forward.2} parent=95 // pred_check
          %p8084 = pneg %p245
        $region98: #{infer_model_single_forward.2} parent=95 // pred_check_branch
          %8086 = sbr.rel (%p8084) target = $region100
        $region99: #{infer_model_single_forward.2} parent=95 // pred_region
          %p8087 = scmp.lt.s32.totalorder %s28, 1
          %s8088 = scalar_select %p8087, %s28, 1
          %s8089 = smul.addr %s8088, 32
          %s8090 = smul.addr %s8089, 8
          %s8091 = scalar_lea.vmem %s9, %s8090
        $region100: #{infer_model_single_forward.2} parent=95 // pred_fallthru
          _
      $region96: #{infer_model_single_forward.2} parent=5 // pred_fallthru
        _
    $region6: #{infer_model_single_forward.2} parent=1 // loop_footer
      %s26 = sadd.s32 1, %s22
    $region7: #{infer_model_single_forward.2} parent=1 // loop_footer_branch
      %21 = sbr.rel target = $region3
    $region8: #{infer_model_single_forward.2} parent=1 // loop_exit
      _
    %8092 = vsyncpa [#allocation3], 1
    %s8093 = scalar_lea.sflag [#allocation3], 1
    %8094 = vsyncpa %s8093, 1
    %8095 = vsyncpa [#allocation5], 1
    %8096 = vsyncpa [#allocation8], 1
    %8097 = vsyncpa [#allocation11], 1
    %8098 = vsyncpa [#allocation14], 1

</llo_original>
